<compile_context>
chip_gen: v7x
topology: tpu7x:2x2x1
jax: 0.10.0
libtpu: 0.0.40
codegen_flags: <defaults>
</compile_context>

<pallas_src>
import functools
import numpy as np

import jax
import jax.numpy as jnp
from jax.experimental import pallas as pl
from jax.experimental.pallas import tpu as pltpu

# ----------------------------- model config (small, synthetic) ---------------
B = 2                    # image batch
CHANNELS = 3
IMG = 32                 # image height/width
PATCH = 8                # patch size
GRID = IMG // PATCH      # 4
NUM_PATCHES = GRID * GRID  # 16  -> num_queries (boxes)
DV = 32                  # vision hidden size
DT = 32                  # text hidden size
HEADS = 4                # attention heads (head_dim = 8)
FFV = 64                 # vision MLP intermediate
FFT = 64                 # text MLP intermediate
LAYERS_V = 2
LAYERS_T = 2
E = 16                   # text projection dim (class-head out_dim)
NUM_TXT_QUERIES = 2      # text queries per image  (num_classes)
L = 8                    # text sequence length
VOCAB = 64
EPS_LN = 1e-5
OUT_PAD = 128            # lane-dense packed detection-head output width


# ----------------------------- in-kernel math helpers ------------------------
def _erf_approx(x):
    # Abramowitz & Stegun 7.1.26 polynomial, |err| <= 1.5e-7 (float32-accurate).
    a1, a2, a3, a4, a5 = 0.254829592, -0.284496736, 1.421413741, -1.453152027, 1.061405429
    p = 0.3275911
    ax = jnp.abs(x)
    t = 1.0 / (1.0 + p * ax)
    poly = ((((a5 * t + a4) * t + a3) * t + a2) * t + a1) * t
    y = 1.0 - poly * jnp.exp(-ax * ax)
    return jnp.where(x >= 0, y, -y)


def _gelu_exact(x):
    # matches torch.nn.GELU() (erf form) up to float32 precision
    return 0.5 * x * (1.0 + _erf_approx(x * 0.70710678118654752))


def _quick_gelu(x):
    # OWL-ViT / CLIP hidden_act = "quick_gelu"
    return x * jax.nn.sigmoid(1.702 * x)


def _ln(x, g, b, eps=EPS_LN):
    mu = jnp.mean(x, axis=-1, keepdims=True)
    xc = x - mu
    var = jnp.mean(xc * xc, axis=-1, keepdims=True)
    return xc * jax.lax.rsqrt(var + eps) * g + b


# ----------------------------- shared fused encoder-layer body ----------------
def _layer_block(x, mask, ln1g, ln1b, qw_ref, qb_ref, kw_ref, kb_ref,
                 vw_ref, vb_ref, ow_ref, ob, ln2g, ln2b,
                 fc1w, fc1b, fc2w, fc2b, *, heads):
    """One pre-LN CLIP encoder layer. x: [S, D] values; q/k/v/o weights are refs
    with a leading head axis so no lane slicing / lane concat is needed."""
    h = _ln(x, ln1g, ln1b)

    attn = None
    for hh in range(heads):                          # static unroll (heads = 4)
        qh = jnp.dot(h, qw_ref[hh], preferred_element_type=jnp.float32) + qb_ref[hh]
        kh = jnp.dot(h, kw_ref[hh], preferred_element_type=jnp.float32) + kb_ref[hh]
        vh = jnp.dot(h, vw_ref[hh], preferred_element_type=jnp.float32) + vb_ref[hh]
        s = jax.lax.dot_general(qh, kh, (((1,), (1,)), ((), ())),
                                preferred_element_type=jnp.float32)      # [S, S]
        if mask is not None:
            s = s + mask
        s = s - jnp.max(s, axis=-1, keepdims=True)
        e = jnp.exp(s)
        p = e / jnp.sum(e, axis=-1, keepdims=True)   # exact softmax denominator
        oh = jnp.dot(p, vh, preferred_element_type=jnp.float32)          # [S, Dh]
        contrib = jnp.dot(oh, ow_ref[hh], preferred_element_type=jnp.float32)  # [S, D]
        attn = contrib if attn is None else attn + contrib
    h1 = x + attn + ob                               # residual + out-proj bias

    m = _ln(h1, ln2g, ln2b)
    m = jnp.dot(m, fc1w, preferred_element_type=jnp.float32) + fc1b
    m = _quick_gelu(m)
    m = jnp.dot(m, fc2w, preferred_element_type=jnp.float32) + fc2b
    return h1 + m                                    # residual


# ----------------------------- text tower: ONE fused pallas_call --------------
def _text_stack_kernel(x_ref, m_ref,
                       ln1g_ref, ln1b_ref, qw_ref, qb_ref, kw_ref, kb_ref,
                       vw_ref, vb_ref, ow_ref, ob_ref, ln2g_ref, ln2b_ref,
                       fc1w_ref, fc1b_ref, fc2w_ref, fc2b_ref,
                       fing_ref, finb_ref,
                       o_ref, x_scr, *, heads, n_layers):
    l = pl.program_id(0)

    @pl.when(l == 0)
    def _load():
        x_scr[...] = x_ref[...]

    mask = m_ref[...]                                # hoisted out of the head loop
    y = _layer_block(x_scr[...], mask,
                     ln1g_ref[...], ln1b_ref[...],
                     qw_ref, qb_ref, kw_ref, kb_ref, vw_ref, vb_ref,
                     ow_ref, ob_ref[...],
                     ln2g_ref[...], ln2b_ref[...],
                     fc1w_ref[...], fc1b_ref[...], fc2w_ref[...], fc2b_ref[...],
                     heads=heads)
    x_scr[...] = y                                   # activation stays in VMEM

    @pl.when(l == n_layers - 1)
    def _final():
        o_ref[...] = _ln(y, fing_ref[...], finb_ref[...])   # final text LN fused


def text_stack(x_flat, mask2d, p):
    M, D = x_flat.shape
    tp = p["txt_layers"]
    LT = tp["ln1_g"].shape[0]
    H = tp["q_w"].shape[1]
    Dh = tp["q_w"].shape[3]
    FF = tp["fc1_w"].shape[2]

    def full(shape):
        nd = len(shape)
        return pl.BlockSpec(shape, lambda l: (0,) * nd)

    def per_layer(shape):
        nd = len(shape)
        return pl.BlockSpec((pl.Squeezed(),) + shape, lambda l: (l,) + (0,) * nd)

    return pl.pallas_call(
        functools.partial(_text_stack_kernel, heads=H, n_layers=LT),
        out_shape=jax.ShapeDtypeStruct((M, D), jnp.float32),
        grid=(LT,),
        in_specs=[full((M, D)), full((M, M)),
                  per_layer((1, D)), per_layer((1, D)),
                  per_layer((H, D, Dh)), per_layer((H, 1, Dh)),
                  per_layer((H, D, Dh)), per_layer((H, 1, Dh)),
                  per_layer((H, D, Dh)), per_layer((H, 1, Dh)),
                  per_layer((H, Dh, D)), per_layer((1, D)),
                  per_layer((1, D)), per_layer((1, D)),
                  per_layer((D, FF)), per_layer((1, FF)),
                  per_layer((FF, D)), per_layer((1, D)),
                  full((1, D)), full((1, D))],
        out_specs=full((M, D)),
        scratch_shapes=[pltpu.VMEM((M, D), jnp.float32)],
        compiler_params=pltpu.CompilerParams(dimension_semantics=("arbitrary",)),
    )(x_flat, mask2d,
      tp["ln1_g"], tp["ln1_b"], tp["q_w"], tp["q_b"], tp["k_w"], tp["k_b"],
      tp["v_w"], tp["v_b"], tp["o_w"], tp["o_b"], tp["ln2_g"], tp["ln2_b"],
      tp["fc1_w"], tp["fc1_b"], tp["fc2_w"], tp["fc2_b"],
      p["final_ln_g"], p["final_ln_b"])


# ------------------- vision tower + detection heads: ONE fused pallas_call ----
def _vision_det_kernel(
        patch_ref, pw_ref, pos_ref, preg_ref, preb_ref,
        ln1g_ref, ln1b_ref, qw_ref, qb_ref, kw_ref, kb_ref, vw_ref, vb_ref,
        ow_ref, ob_ref, ln2g_ref, ln2b_ref, fc1w_ref, fc1b_ref, fc2w_ref, fc2b_ref,
        postg_ref, postb_ref, detg_ref, detb_ref, clsw_ref, clsb_ref,
        bw0_ref, bb0_ref, bw1_ref, bb1_ref, bw2_ref, bb2_ref, bias_ref,
        q_ref, qm_ref,
        o_ref,
        x_scr,
        *, heads, n_layers, num_queries, e_dim):
    l = pl.program_id(1)

    # ---- prologue (only at layer 0): patch-embed + cls slot + pos-emb + pre-LN.
    # patches carry a leading zero row and the class embedding is folded into
    # row 0 of pos_ref, so one aligned matmul produces the full [1+P, D] embed.
    @pl.when(l == 0)
    def _embed():
        x0 = jnp.dot(patch_ref[...], pw_ref[...],
                     preferred_element_type=jnp.float32) + pos_ref[...]
        x_scr[...] = _ln(x0, preg_ref[...], preb_ref[...])

    # ---- one encoder layer on the VMEM-resident activation ----
    y = _layer_block(x_scr[...], None,
                     ln1g_ref[...], ln1b_ref[...],
                     qw_ref, qb_ref, kw_ref, kb_ref, vw_ref, vb_ref,
                     ow_ref, ob_ref[...],
                     ln2g_ref[...], ln2b_ref[...],
                     fc1w_ref[...], fc1b_ref[...], fc2w_ref[...], fc2b_ref[...],
                     heads=heads)
    x_scr[...] = y

    # ---- epilogue (only at last layer): full detection head ----
    @pl.when(l == n_layers - 1)
    def _det():
        xfull = _ln(y, postg_ref[...], postb_ref[...])                  # [1+P, D]
        feat = _ln(xfull[1:, :] * xfull[0:1, :], detg_ref[...], detb_ref[...])  # [P, D]

        # class head (logit_shift / logit_scale folded as 2 extra MXU columns)
        ce = jnp.dot(feat, clsw_ref[...],
                     preferred_element_type=jnp.float32) + clsb_ref[...]  # [P, E+2]
        ice = ce[:, :e_dim]
        shift = ce[:, e_dim:e_dim + 1]
        scale_raw = ce[:, e_dim + 1:e_dim + 2]
        ice = ice * jax.lax.rsqrt(jnp.sum(ice * ice, axis=-1, keepdims=True) + 1e-6)
        qe = q_ref[...]                                                  # [Q, E]
        qn = qe * jax.lax.rsqrt(jnp.sum(qe * qe, axis=-1, keepdims=True) + 1e-6)
        logits = jax.lax.dot_general(ice, qn, (((1,), (1,)), ((), ())),
                                     preferred_element_type=jnp.float32)  # [P, Q]
        # ELU + 1 with clamped exp argument (robust against inf in discarded branch)
        scl = jnp.where(scale_raw > 0, scale_raw,
                        jnp.exp(jnp.minimum(scale_raw, 0.0)) - 1.0) + 1.0
        logits = (logits + shift) * scl
        neg = jnp.float32(np.finfo(np.float32).min)
        logits = jnp.where(qm_ref[...] > 0, logits, neg)   # mask padded text queries

        # box head: Linear->GELU->Linear->GELU->Linear + box bias -> sigmoid
        h0 = _gelu_exact(jnp.dot(feat, bw0_ref[...],
                                 preferred_element_type=jnp.float32) + bb0_ref[...])
        h1 = _gelu_exact(jnp.dot(h0, bw1_ref[...],
                                 preferred_element_type=jnp.float32) + bb1_ref[...])
        boxes = jax.nn.sigmoid(jnp.dot(h1, bw2_ref[...],
                                       preferred_element_type=jnp.float32)
                               + bb2_ref[...] + bias_ref[...])

        # lane-dense packed output slab: cols [0:Q]=logits, [Q:Q+4]=boxes, rest 0
        o_ref[...] = jnp.zeros_like(o_ref)
        o_ref[:, 0:num_queries + 4] = jnp.concatenate([logits, boxes], axis=-1)


def vision_det_stack(patches, query_embeds, query_mask, box_bias, p):
    Bx, S_v, Cpp = patches.shape
    P = S_v - 1
    D = p["patch_w"].shape[1]
    vp = p["vis_layers"]
    LV = vp["ln1_g"].shape[0]
    H = vp["q_w"].shape[1]
    Dh = vp["q_w"].shape[3]
    FF = vp["fc1_w"].shape[2]
    Q, Ed = query_embeds.shape[1], query_embeds.shape[2]

    def full(shape):
        nd = len(shape)
        return pl.BlockSpec(shape, lambda b, l: (0,) * nd)

    def per_layer(shape):
        nd = len(shape)
        return pl.BlockSpec((pl.Squeezed(),) + shape, lambda b, l: (l,) + (0,) * nd)

    def per_batch(shape):
        nd = len(shape)
        return pl.BlockSpec((pl.Squeezed(),) + shape, lambda b, l: (b,) + (0,) * nd)

    packed = pl.pallas_call(
        functools.partial(_vision_det_kernel, heads=H, n_layers=LV,
                          num_queries=Q, e_dim=Ed),
        out_shape=jax.ShapeDtypeStruct((Bx, P, OUT_PAD), jnp.float32),
        grid=(Bx, LV),
        in_specs=[
            per_batch((S_v, Cpp)),                              # patches (+zero cls row)
            full((Cpp, D)), full((S_v, D)), full((1, D)), full((1, D)),
            per_layer((1, D)), per_layer((1, D)),
            per_layer((H, D, Dh)), per_layer((H, 1, Dh)),
            per_layer((H, D, Dh)), per_layer((H, 1, Dh)),
            per_layer((H, D, Dh)), per_layer((H, 1, Dh)),
            per_layer((H, Dh, D)), per_layer((1, D)),
            per_layer((1, D)), per_layer((1, D)),
            per_layer((D, FF)), per_layer((1, FF)),
            per_layer((FF, D)), per_layer((1, D)),
            full((1, D)), full((1, D)), full((1, D)), full((1, D)),
            full((D, Ed + 2)), full((1, Ed + 2)),
            full((D, D)), full((1, D)), full((D, D)), full((1, D)),
            full((D, 4)), full((1, 4)),
            full((P, 4)),
            per_batch((Q, Ed)),
            per_batch((1, Q)),
        ],
        out_specs=per_batch((P, OUT_PAD)),
        scratch_shapes=[pltpu.VMEM((S_v, D), jnp.float32)],
        compiler_params=pltpu.CompilerParams(
            dimension_semantics=("parallel", "arbitrary")),
    )(patches,
      p["patch_w"], p["vis_pos_cls"], p["pre_ln_g"], p["pre_ln_b"],
      vp["ln1_g"], vp["ln1_b"],
      vp["q_w"], vp["q_b"], vp["k_w"], vp["k_b"], vp["v_w"], vp["v_b"],
      vp["o_w"], vp["o_b"], vp["ln2_g"], vp["ln2_b"],
      vp["fc1_w"], vp["fc1_b"], vp["fc2_w"], vp["fc2_b"],
      p["post_ln_g"], p["post_ln_b"], p["det_ln_g"], p["det_ln_b"],
      p["cls_w_ext"], p["cls_b_ext"],
      p["box_w0"], p["box_b0"], p["box_w1"], p["box_b1"], p["box_w2"], p["box_b2"],
      box_bias,
      query_embeds, query_mask)

    logits = packed[:, :, :Q]
    pred_boxes = packed[:, :, Q:Q + 4]
    return logits, pred_boxes


# ----------------------------- plain-JAX glue ---------------------------------
def patchify(pixel_values, patch):
    # NCHW -> [B, 1+P, C*ps*ps] with per-patch flatten order (c, ky, kx), matching
    # Conv2d(patch, stride=patch) weight flattening. Row 0 is all-zero so the
    # class-token slot comes out of the same matmul (class embedding is folded
    # into row 0 of the position embedding).
    Bp, C, H, W = pixel_values.shape
    gh, gw = H // patch, W // patch
    x = pixel_values.reshape(Bp, C, gh, patch, gw, patch)
    x = x.transpose(0, 2, 4, 1, 3, 5).reshape(Bp, gh * gw, C * patch * patch)
    zero = jnp.zeros((Bp, 1, x.shape[-1]), x.dtype)
    return jnp.concatenate([zero, x], axis=1)


def compute_box_bias(g):
    # OwlViTForObjectDetection.compute_box_bias (square grid), returns [g*g, 4]
    coords = np.stack(np.meshgrid(np.arange(1, g + 1), np.arange(1, g + 1)),
                      axis=-1).astype(np.float32)
    coords = coords / np.array([g, g], np.float32)
    coords = np.clip(coords.reshape(-1, 2), 0.0, 1.0)
    coord_bias = np.log(coords + 1e-4) - np.log1p(-coords + 1e-4)
    size = np.full_like(coord_bias, 1.0 / g)
    size_bias = np.log(size + 1e-4) - np.log1p(-size + 1e-4)
    return jnp.asarray(np.concatenate([coord_bias, size_bias], axis=-1))


# ----------------------------- full forward -----------------------------------
def owlvit_forward(params, pixel_values, input_ids, attention_mask):
    Bi = pixel_values.shape[0]
    BT, Lx = input_ids.shape
    Q = BT // Bi

    # ---- text tower (single fused pallas_call over all layers & queries) ----
    te = params["tok_emb"][input_ids] + params["txt_pos"][None]    # [BT, L, DT]
    x_flat = te.reshape(BT * Lx, DT)
    # block-diagonal causal + key-padding additive mask, [BT*L, BT*L]
    seg = jnp.repeat(jnp.arange(BT), Lx)
    pos = jnp.tile(jnp.arange(Lx), BT)
    key_ok = attention_mask.reshape(-1) > 0
    allowed = ((seg[:, None] == seg[None, :])
               & (pos[None, :] <= pos[:, None])
               & key_ok[None, :])
    mask2d = jnp.where(allowed, 0.0, -1e9).astype(jnp.float32)
    t_flat = text_stack(x_flat, mask2d, params)                    # final-LN'd
    t = t_flat.reshape(BT, Lx, DT)
    # pooled output = hidden state at argmax(input_ids) (EOS = highest token id)
    eos_idx = jnp.argmax(input_ids, axis=-1)
    pooled = t[jnp.arange(BT), eos_idx]                            # [BT, DT]
    text_embeds = pooled @ params["text_proj"]                     # [BT, E]
    text_embeds = text_embeds / jnp.linalg.norm(text_embeds, axis=-1, keepdims=True)

    query_embeds = text_embeds.reshape(Bi, Q, E)
    query_mask = (input_ids.reshape(Bi, Q, Lx)[..., 0] > 0).astype(jnp.float32)
    query_mask = query_mask.reshape(Bi, 1, Q)

    # ---- vision tower + detection heads (single fused pallas_call) ----
    patches = patchify(pixel_values, PATCH)                        # [B, 1+P, C*ps*ps]
    logits, pred_boxes = vision_det_stack(patches, query_embeds, query_mask,
                                          compute_box_bias(GRID), params)
    return logits, pred_boxes


# ----------------------------- deterministic parameter init --------------------
def init_params(key):
    keys = iter(jax.random.split(key, 64))

    def nrm(shape, scale=0.02):
        return (scale * jax.random.normal(next(keys), shape)).astype(jnp.float32)

    def zeros(shape):
        return jnp.zeros(shape, jnp.float32)

    def ones(shape):
        return jnp.ones(shape, jnp.float32)

    def tower_layers(d, ff, n):
        # per-layer weights stacked with a leading layer axis; q/k/v/o carry a
        # leading head axis; CLIP q-scale (head_dim**-0.5) folded into q_w/q_b.
        dh = d // HEADS
        qscale = float(dh) ** -0.5
        return dict(
            ln1_g=ones((n, 1, d)), ln1_b=zeros((n, 1, d)),
            q_w=nrm((n, HEADS, d, dh)) * qscale, q_b=zeros((n, HEADS, 1, dh)),
            k_w=nrm((n, HEADS, d, dh)), k_b=zeros((n, HEADS, 1, dh)),
            v_w=nrm((n, HEADS, d, dh)), v_b=zeros((n, HEADS, 1, dh)),
            o_w=nrm((n, HEADS, dh, d)), o_b=zeros((n, 1, d)),
            ln2_g=ones((n, 1, d)), ln2_b=zeros((n, 1, d)),
            fc1_w=nrm((n, d, ff)), fc1_b=zeros((n, 1, ff)),
            fc2_w=nrm((n, ff, d)), fc2_b=zeros((n, 1, d)),
        )

    class_emb = nrm((1, DV))
    vis_pos = nrm((1 + NUM_PATCHES, DV))
    # fold class embedding into row 0 of the position embedding (row 0 of the
    # padded patch matrix is all-zero, so x0 = 0 @ W + (pos0 + cls) = cls + pos0)
    vis_pos_cls = vis_pos.at[0].add(class_emb[0])

    cls_w0 = nrm((DV, E))          # class-head dense0
    shift_w = nrm((DV, 1))         # logit_shift (D -> 1)
    scale_w = nrm((DV, 1))         # logit_scale (D -> 1)

    return dict(
        patch_w=nrm((CHANNELS * PATCH * PATCH, DV)),   # Conv2d(patch, stride=patch, bias=False)
        vis_pos_cls=vis_pos_cls,
        pre_ln_g=ones((1, DV)), pre_ln_b=zeros((1, DV)),
        vis_layers=tower_layers(DV, FFV, LAYERS_V),
        post_ln_g=ones((1, DV)), post_ln_b=zeros((1, DV)),
        tok_emb=nrm((VOCAB, DT)),
        txt_pos=nrm((L, DT)),
        txt_layers=tower_layers(DT, FFT, LAYERS_T),
        final_ln_g=ones((1, DT)), final_ln_b=zeros((1, DT)),
        text_proj=nrm((DT, E)),
        det_ln_g=ones((1, DV)), det_ln_b=zeros((1, DV)),
        # class head weight with logit_shift / logit_scale folded as 2 extra cols
        cls_w_ext=jnp.concatenate([cls_w0, shift_w, scale_w], axis=1),   # [DV, E+2]
        cls_b_ext=zeros((1, E + 2)),
        box_w0=nrm((DV, DV)), box_b0=zeros((1, DV)),
        box_w1=nrm((DV, DV)), box_b1=zeros((1, DV)),
        box_w2=nrm((DV, 4)), box_b2=zeros((1, 4)),
    )


# ----------------------------- main -------------------------------------------
if __name__ == "__main__":
    root = jax.random.PRNGKey(0)
    kp, kx, kt = jax.random.split(root, 3)
    params = init_params(kp)

    pixel_values = jax.random.normal(kx, (B, CHANNELS, IMG, IMG), dtype=jnp.float32)
    # input_ids / attention_mask follow the OWL-ViT convention:
    # [batch_size * num_text_queries, seq_len]
    input_ids = jax.random.randint(kt, (B * NUM_TXT_QUERIES, L), 1, VOCAB).astype(jnp.int32)
    # make the last text query a padded (empty) query to exercise query_mask
    input_ids = input_ids.at[-1, 0].set(0)
    attention_mask = jnp.concatenate(
        [jnp.ones((B * NUM_TXT_QUERIES, L - 2), jnp.int32),
         jnp.zeros((B * NUM_TXT_QUERIES, 2), jnp.int32)], axis=-1)

    fwd = jax.jit(owlvit_forward)
    logits, pred_boxes = fwd(params, pixel_values, input_ids, attention_mask)
    jax.block_until_ready((logits, pred_boxes))

    assert logits.shape == (B, NUM_PATCHES, NUM_TXT_QUERIES), logits.shape
    assert pred_boxes.shape == (B, NUM_PATCHES, 4), pred_boxes.shape
    assert bool(jnp.all(jnp.isfinite(pred_boxes)))
    assert bool(jnp.all(jnp.isfinite(logits)))
    print("KERNEL_OK")
</pallas_src>

<mosaic_0001>
module attributes {stable_mosaic.version = 11 : i64} {
  func.func @_text_stack_kernel(%arg0: i32, %arg1: memref<32x32xf32, #tpu.memory_space<vmem>>, %arg2: memref<32x32xf32, #tpu.memory_space<vmem>>, %arg3: memref<1x1x32xf32, #tpu.memory_space<vmem>>, %arg4: memref<1x1x32xf32, #tpu.memory_space<vmem>>, %arg5: memref<1x4x32x8xf32, #tpu.memory_space<vmem>>, %arg6: memref<1x4x1x8xf32, #tpu.memory_space<vmem>>, %arg7: memref<1x4x32x8xf32, #tpu.memory_space<vmem>>, %arg8: memref<1x4x1x8xf32, #tpu.memory_space<vmem>>, %arg9: memref<1x4x32x8xf32, #tpu.memory_space<vmem>>, %arg10: memref<1x4x1x8xf32, #tpu.memory_space<vmem>>, %arg11: memref<1x4x8x32xf32, #tpu.memory_space<vmem>>, %arg12: memref<1x1x32xf32, #tpu.memory_space<vmem>>, %arg13: memref<1x1x32xf32, #tpu.memory_space<vmem>>, %arg14: memref<1x1x32xf32, #tpu.memory_space<vmem>>, %arg15: memref<1x32x64xf32, #tpu.memory_space<vmem>>, %arg16: memref<1x1x64xf32, #tpu.memory_space<vmem>>, %arg17: memref<1x64x32xf32, #tpu.memory_space<vmem>>, %arg18: memref<1x1x32xf32, #tpu.memory_space<vmem>>, %arg19: memref<1x32xf32, #tpu.memory_space<vmem>>, %arg20: memref<1x32xf32, #tpu.memory_space<vmem>>, %arg21: memref<32x32xf32, #tpu.memory_space<vmem>>, %arg22: memref<32x32xf32, #tpu.memory_space<vmem>>) attributes {dimension_semantics = [#tpu.dimension_semantics<arbitrary>], iteration_bounds = array<i64: 2>, scalar_prefetch = 0 : i64, scratch_operands = 1 : i64, tpu.core_type = #tpu.core_type<tc>, window_params = [{pipeline_mode = #tpu.pipeline_mode<synchronous>, transform_indices = @transform_0, window_bounds = array<i64: 32, 32>}, {pipeline_mode = #tpu.pipeline_mode<synchronous>, transform_indices = @transform_1, window_bounds = array<i64: 32, 32>}, {transform_indices = @transform_2, window_bounds = array<i64: 1, 1, 32>}, {transform_indices = @transform_3, window_bounds = array<i64: 1, 1, 32>}, {transform_indices = @transform_4, window_bounds = array<i64: 1, 4, 32, 8>}, {transform_indices = @transform_5, window_bounds = array<i64: 1, 4, 1, 8>}, {transform_indices = @transform_6, window_bounds = array<i64: 1, 4, 32, 8>}, {transform_indices = @transform_7, window_bounds = array<i64: 1, 4, 1, 8>}, {transform_indices = @transform_8, window_bounds = array<i64: 1, 4, 32, 8>}, {transform_indices = @transform_9, window_bounds = array<i64: 1, 4, 1, 8>}, {transform_indices = @transform_10, window_bounds = array<i64: 1, 4, 8, 32>}, {transform_indices = @transform_11, window_bounds = array<i64: 1, 1, 32>}, {transform_indices = @transform_12, window_bounds = array<i64: 1, 1, 32>}, {transform_indices = @transform_13, window_bounds = array<i64: 1, 1, 32>}, {transform_indices = @transform_14, window_bounds = array<i64: 1, 32, 64>}, {transform_indices = @transform_15, window_bounds = array<i64: 1, 1, 64>}, {transform_indices = @transform_16, window_bounds = array<i64: 1, 64, 32>}, {transform_indices = @transform_17, window_bounds = array<i64: 1, 1, 32>}, {pipeline_mode = #tpu.pipeline_mode<synchronous>, transform_indices = @transform_18, window_bounds = array<i64: 1, 32>}, {pipeline_mode = #tpu.pipeline_mode<synchronous>, transform_indices = @transform_19, window_bounds = array<i64: 1, 32>}, {pipeline_mode = #tpu.pipeline_mode<synchronous>, transform_indices = @transform_20, window_bounds = array<i64: 32, 32>}]} {
    %c0_i32 = arith.constant 0 : i32
    %0 = arith.cmpi eq, %arg0, %c0_i32 : i32
    %1 = arith.extui %0 : i1 to i32
    %c0_i32_0 = arith.constant 0 : i32
    %2 = arith.cmpi ne, %1, %c0_i32_0 : i32
    scf.if %2 {
      %c0_188 = arith.constant 0 : index
      %c0_189 = arith.constant 0 : index
      %232 = vector.load %arg1[%c0_188, %c0_189] : memref<32x32xf32, #tpu.memory_space<vmem>>, vector<32x32xf32>
      %c0_190 = arith.constant 0 : index
      %c0_191 = arith.constant 0 : index
      %233 = vector.load %arg22[%c0_190, %c0_191] : memref<32x32xf32, #tpu.memory_space<vmem>>, vector<32x32xf32>
      tpu.vector_store %arg22[%c0_190, %c0_191], %232 {strides = array<i32>} : memref<32x32xf32, #tpu.memory_space<vmem>>, vector<32x32xf32>,
    } else {
    }
    %c0 = arith.constant 0 : index
    %c0_1 = arith.constant 0 : index
    %3 = vector.load %arg2[%c0, %c0_1] : memref<32x32xf32, #tpu.memory_space<vmem>>, vector<32x32xf32>
    %c0_2 = arith.constant 0 : index
    %c0_3 = arith.constant 0 : index
    %4 = vector.load %arg22[%c0_2, %c0_3] : memref<32x32xf32, #tpu.memory_space<vmem>>, vector<32x32xf32>
    %c0_4 = arith.constant 0 : index
    %c0_5 = arith.constant 0 : index
    %c0_6 = arith.constant 0 : index
    %5 = vector.load %arg3[%c0_4, %c0_5, %c0_6] : memref<1x1x32xf32, #tpu.memory_space<vmem>>, vector<1x1x32xf32>
    %6 = vector.shape_cast %5 : vector<1x1x32xf32> to vector<1x32xf32>
    %c0_7 = arith.constant 0 : index
    %c0_8 = arith.constant 0 : index
    %c0_9 = arith.constant 0 : index
    %7 = vector.load %arg4[%c0_7, %c0_8, %c0_9] : memref<1x1x32xf32, #tpu.memory_space<vmem>>, vector<1x1x32xf32>
    %8 = vector.shape_cast %7 : vector<1x1x32xf32> to vector<1x32xf32>
    %c0_10 = arith.constant 0 : index
    %c0_11 = arith.constant 0 : index
    %c0_12 = arith.constant 0 : index
    %9 = vector.load %arg12[%c0_10, %c0_11, %c0_12] : memref<1x1x32xf32, #tpu.memory_space<vmem>>, vector<1x1x32xf32>
    %10 = vector.shape_cast %9 : vector<1x1x32xf32> to vector<1x32xf32>
    %c0_13 = arith.constant 0 : index
    %c0_14 = arith.constant 0 : index
    %c0_15 = arith.constant 0 : index
    %11 = vector.load %arg13[%c0_13, %c0_14, %c0_15] : memref<1x1x32xf32, #tpu.memory_space<vmem>>, vector<1x1x32xf32>
    %12 = vector.shape_cast %11 : vector<1x1x32xf32> to vector<1x32xf32>
    %c0_16 = arith.constant 0 : index
    %c0_17 = arith.constant 0 : index
    %c0_18 = arith.constant 0 : index
    %13 = vector.load %arg14[%c0_16, %c0_17, %c0_18] : memref<1x1x32xf32, #tpu.memory_space<vmem>>, vector<1x1x32xf32>
    %14 = vector.shape_cast %13 : vector<1x1x32xf32> to vector<1x32xf32>
    %c0_19 = arith.constant 0 : index
    %c0_20 = arith.constant 0 : index
    %c0_21 = arith.constant 0 : index
    %15 = vector.load %arg15[%c0_19, %c0_20, %c0_21] : memref<1x32x64xf32, #tpu.memory_space<vmem>>, vector<1x32x64xf32>
    %16 = vector.shape_cast %15 : vector<1x32x64xf32> to vector<32x64xf32>
    %c0_22 = arith.constant 0 : index
    %c0_23 = arith.constant 0 : index
    %c0_24 = arith.constant 0 : index
    %17 = vector.load %arg16[%c0_22, %c0_23, %c0_24] : memref<1x1x64xf32, #tpu.memory_space<vmem>>, vector<1x1x64xf32>
    %18 = vector.shape_cast %17 : vector<1x1x64xf32> to vector<1x64xf32>
    %c0_25 = arith.constant 0 : index
    %c0_26 = arith.constant 0 : index
    %c0_27 = arith.constant 0 : index
    %19 = vector.load %arg17[%c0_25, %c0_26, %c0_27] : memref<1x64x32xf32, #tpu.memory_space<vmem>>, vector<1x64x32xf32>
    %20 = vector.shape_cast %19 : vector<1x64x32xf32> to vector<64x32xf32>
    %c0_28 = arith.constant 0 : index
    %c0_29 = arith.constant 0 : index
    %c0_30 = arith.constant 0 : index
    %21 = vector.load %arg18[%c0_28, %c0_29, %c0_30] : memref<1x1x32xf32, #tpu.memory_space<vmem>>, vector<1x1x32xf32>
    %22 = vector.shape_cast %21 : vector<1x1x32xf32> to vector<1x32xf32>
    %cst = arith.constant dense<0.000000e+00> : vector<32xf32>
    %23 = vector.multi_reduction <add>, %4, %cst [1] : vector<32x32xf32> to vector<32xf32>
    %24 = vector.shape_cast %23 : vector<32xf32> to vector<32x1xf32>
    %cst_31 = arith.constant 3.200000e+01 : f32
    %25 = vector.broadcast %cst_31 : f32 to vector<32x1xf32>
    %26 = arith.divf %24, %25 : vector<32x1xf32>
    %27 = vector.broadcast %26 : vector<32x1xf32> to vector<32x32xf32>
    %28 = arith.subf %4, %27 : vector<32x32xf32>
    %29 = arith.mulf %28, %28 : vector<32x32xf32>
    %cst_32 = arith.constant dense<0.000000e+00> : vector<32xf32>
    %30 = vector.multi_reduction <add>, %29, %cst_32 [1] : vector<32x32xf32> to vector<32xf32>
    %31 = vector.shape_cast %30 : vector<32xf32> to vector<32x1xf32>
    %cst_33 = arith.constant 3.200000e+01 : f32
    %32 = vector.broadcast %cst_33 : f32 to vector<32x1xf32>
    %33 = arith.divf %31, %32 : vector<32x1xf32>
    %cst_34 = arith.constant 9.99999974E-6 : f32
    %34 = vector.broadcast %cst_34 : f32 to vector<32x1xf32>
    %35 = arith.addf %33, %34 : vector<32x1xf32>
    %36 = math.rsqrt %35 : vector<32x1xf32>
    %37 = vector.broadcast %36 : vector<32x1xf32> to vector<32x32xf32>
    %38 = arith.mulf %28, %37 : vector<32x32xf32>
    %39 = vector.broadcast %6 : vector<1x32xf32> to vector<32x32xf32>
    %40 = arith.mulf %38, %39 : vector<32x32xf32>
    %41 = vector.broadcast %8 : vector<1x32xf32> to vector<32x32xf32>
    %42 = arith.addf %40, %41 : vector<32x32xf32>
    %c0_35 = arith.constant 0 : index
    %c0_36 = arith.constant 0 : index
    %c0_37 = arith.constant 0 : index
    %c0_38 = arith.constant 0 : index
    %43 = vector.load %arg5[%c0_35, %c0_36, %c0_37, %c0_38] : memref<1x4x32x8xf32, #tpu.memory_space<vmem>>, vector<1x1x32x8xf32>
    %44 = vector.shape_cast %43 : vector<1x1x32x8xf32> to vector<32x8xf32>
    %cst_39 = arith.constant dense<0.000000e+00> : vector<32x8xf32>
    %45 = tpu.matmul %42, %44, %cst_39 {dimension_numbers = #tpu.dot_dimension_numbers<[1], [0], [0], [1], [0, 0, 1, 1], [], []>} : vector<32x32xf32>, vector<32x8xf32>, vector<32x8xf32> -> vector<32x8xf32>
    %c0_40 = arith.constant 0 : index
    %c0_41 = arith.constant 0 : index
    %c0_42 = arith.constant 0 : index
    %c0_43 = arith.constant 0 : index
    %46 = vector.load %arg6[%c0_40, %c0_41, %c0_42, %c0_43] : memref<1x4x1x8xf32, #tpu.memory_space<vmem>>, vector<1x1x1x8xf32>
    %47 = vector.shape_cast %46 : vector<1x1x1x8xf32> to vector<1x8xf32>
    %48 = vector.broadcast %47 : vector<1x8xf32> to vector<32x8xf32>
    %49 = arith.addf %45, %48 : vector<32x8xf32>
    %c0_44 = arith.constant 0 : index
    %c0_45 = arith.constant 0 : index
    %c0_46 = arith.constant 0 : index
    %c0_47 = arith.constant 0 : index
    %50 = vector.load %arg7[%c0_44, %c0_45, %c0_46, %c0_47] : memref<1x4x32x8xf32, #tpu.memory_space<vmem>>, vector<1x1x32x8xf32>
    %51 = vector.shape_cast %50 : vector<1x1x32x8xf32> to vector<32x8xf32>
    %cst_48 = arith.constant dense<0.000000e+00> : vector<32x8xf32>
    %52 = tpu.matmul %42, %51, %cst_48 {dimension_numbers = #tpu.dot_dimension_numbers<[1], [0], [0], [1], [0, 0, 1, 1], [], []>} : vector<32x32xf32>, vector<32x8xf32>, vector<32x8xf32> -> vector<32x8xf32>
    %c0_49 = arith.constant 0 : index
    %c0_50 = arith.constant 0 : index
    %c0_51 = arith.constant 0 : index
    %c0_52 = arith.constant 0 : index
    %53 = vector.load %arg8[%c0_49, %c0_50, %c0_51, %c0_52] : memref<1x4x1x8xf32, #tpu.memory_space<vmem>>, vector<1x1x1x8xf32>
    %54 = vector.shape_cast %53 : vector<1x1x1x8xf32> to vector<1x8xf32>
    %55 = vector.broadcast %54 : vector<1x8xf32> to vector<32x8xf32>
    %56 = arith.addf %52, %55 : vector<32x8xf32>
    %c0_53 = arith.constant 0 : index
    %c0_54 = arith.constant 0 : index
    %c0_55 = arith.constant 0 : index
    %c0_56 = arith.constant 0 : index
    %57 = vector.load %arg9[%c0_53, %c0_54, %c0_55, %c0_56] : memref<1x4x32x8xf32, #tpu.memory_space<vmem>>, vector<1x1x32x8xf32>
    %58 = vector.shape_cast %57 : vector<1x1x32x8xf32> to vector<32x8xf32>
    %cst_57 = arith.constant dense<0.000000e+00> : vector<32x8xf32>
    %59 = tpu.matmul %42, %58, %cst_57 {dimension_numbers = #tpu.dot_dimension_numbers<[1], [0], [0], [1], [0, 0, 1, 1], [], []>} : vector<32x32xf32>, vector<32x8xf32>, vector<32x8xf32> -> vector<32x8xf32>
    %c0_58 = arith.constant 0 : index
    %c0_59 = arith.constant 0 : index
    %c0_60 = arith.constant 0 : index
    %c0_61 = arith.constant 0 : index
    %60 = vector.load %arg10[%c0_58, %c0_59, %c0_60, %c0_61] : memref<1x4x1x8xf32, #tpu.memory_space<vmem>>, vector<1x1x1x8xf32>
    %61 = vector.shape_cast %60 : vector<1x1x1x8xf32> to vector<1x8xf32>
    %62 = vector.broadcast %61 : vector<1x8xf32> to vector<32x8xf32>
    %63 = arith.addf %59, %62 : vector<32x8xf32>
    %cst_62 = arith.constant dense<0.000000e+00> : vector<32x32xf32>
    %64 = tpu.matmul %49, %56, %cst_62 {dimension_numbers = #tpu.dot_dimension_numbers<[1], [1], [0], [0], [0, 0, 1, 0], [], []>} : vector<32x8xf32>, vector<32x8xf32>, vector<32x32xf32> -> vector<32x32xf32>
    %65 = arith.addf %64, %3 : vector<32x32xf32>
    %cst_63 = arith.constant dense<0xFF800000> : vector<32xf32>
    %66 = vector.multi_reduction <maximumf>, %65, %cst_63 [1] : vector<32x32xf32> to vector<32xf32>
    %67 = vector.shape_cast %66 : vector<32xf32> to vector<32x1xf32>
    %68 = vector.broadcast %67 : vector<32x1xf32> to vector<32x32xf32>
    %69 = arith.subf %65, %68 : vector<32x32xf32>
    %70 = math.exp %69 : vector<32x32xf32>
    %cst_64 = arith.constant dense<0.000000e+00> : vector<32xf32>
    %71 = vector.multi_reduction <add>, %70, %cst_64 [1] : vector<32x32xf32> to vector<32xf32>
    %72 = vector.shape_cast %71 : vector<32xf32> to vector<32x1xf32>
    %73 = vector.broadcast %72 : vector<32x1xf32> to vector<32x32xf32>
    %74 = arith.divf %70, %73 : vector<32x32xf32>
    %cst_65 = arith.constant dense<0.000000e+00> : vector<32x8xf32>
    %75 = tpu.matmul %74, %63, %cst_65 {dimension_numbers = #tpu.dot_dimension_numbers<[1], [0], [0], [1], [0, 0, 1, 1], [], []>} : vector<32x32xf32>, vector<32x8xf32>, vector<32x8xf32> -> vector<32x8xf32>
    %c0_66 = arith.constant 0 : index
    %c0_67 = arith.constant 0 : index
    %c0_68 = arith.constant 0 : index
    %c0_69 = arith.constant 0 : index
    %76 = vector.load %arg11[%c0_66, %c0_67, %c0_68, %c0_69] : memref<1x4x8x32xf32, #tpu.memory_space<vmem>>, vector<1x1x8x32xf32>
    %77 = vector.shape_cast %76 : vector<1x1x8x32xf32> to vector<8x32xf32>
    %cst_70 = arith.constant dense<0.000000e+00> : vector<32x32xf32>
    %78 = tpu.matmul %75, %77, %cst_70 {dimension_numbers = #tpu.dot_dimension_numbers<[1], [0], [0], [1], [0, 0, 1, 1], [], []>} : vector<32x8xf32>, vector<8x32xf32>, vector<32x32xf32> -> vector<32x32xf32>
    %c0_71 = arith.constant 0 : index
    %c1 = arith.constant 1 : index
    %c0_72 = arith.constant 0 : index
    %c0_73 = arith.constant 0 : index
    %79 = vector.load %arg5[%c0_71, %c1, %c0_72, %c0_73] : memref<1x4x32x8xf32, #tpu.memory_space<vmem>>, vector<1x1x32x8xf32>
    %80 = vector.shape_cast %79 : vector<1x1x32x8xf32> to vector<32x8xf32>
    %cst_74 = arith.constant dense<0.000000e+00> : vector<32x8xf32>
    %81 = tpu.matmul %42, %80, %cst_74 {dimension_numbers = #tpu.dot_dimension_numbers<[1], [0], [0], [1], [0, 0, 1, 1], [], []>} : vector<32x32xf32>, vector<32x8xf32>, vector<32x8xf32> -> vector<32x8xf32>
    %c0_75 = arith.constant 0 : index
    %c1_76 = arith.constant 1 : index
    %c0_77 = arith.constant 0 : index
    %c0_78 = arith.constant 0 : index
    %82 = vector.load %arg6[%c0_75, %c1_76, %c0_77, %c0_78] : memref<1x4x1x8xf32, #tpu.memory_space<vmem>>, vector<1x1x1x8xf32>
    %83 = vector.shape_cast %82 : vector<1x1x1x8xf32> to vector<1x8xf32>
    %84 = vector.broadcast %83 : vector<1x8xf32> to vector<32x8xf32>
    %85 = arith.addf %81, %84 : vector<32x8xf32>
    %c0_79 = arith.constant 0 : index
    %c1_80 = arith.constant 1 : index
    %c0_81 = arith.constant 0 : index
    %c0_82 = arith.constant 0 : index
    %86 = vector.load %arg7[%c0_79, %c1_80, %c0_81, %c0_82] : memref<1x4x32x8xf32, #tpu.memory_space<vmem>>, vector<1x1x32x8xf32>
    %87 = vector.shape_cast %86 : vector<1x1x32x8xf32> to vector<32x8xf32>
    %cst_83 = arith.constant dense<0.000000e+00> : vector<32x8xf32>
    %88 = tpu.matmul %42, %87, %cst_83 {dimension_numbers = #tpu.dot_dimension_numbers<[1], [0], [0], [1], [0, 0, 1, 1], [], []>} : vector<32x32xf32>, vector<32x8xf32>, vector<32x8xf32> -> vector<32x8xf32>
    %c0_84 = arith.constant 0 : index
    %c1_85 = arith.constant 1 : index
    %c0_86 = arith.constant 0 : index
    %c0_87 = arith.constant 0 : index
    %89 = vector.load %arg8[%c0_84, %c1_85, %c0_86, %c0_87] : memref<1x4x1x8xf32, #tpu.memory_space<vmem>>, vector<1x1x1x8xf32>
    %90 = vector.shape_cast %89 : vector<1x1x1x8xf32> to vector<1x8xf32>
    %91 = vector.broadcast %90 : vector<1x8xf32> to vector<32x8xf32>
    %92 = arith.addf %88, %91 : vector<32x8xf32>
    %c0_88 = arith.constant 0 : index
    %c1_89 = arith.constant 1 : index
    %c0_90 = arith.constant 0 : index
    %c0_91 = arith.constant 0 : index
    %93 = vector.load %arg9[%c0_88, %c1_89, %c0_90, %c0_91] : memref<1x4x32x8xf32, #tpu.memory_space<vmem>>, vector<1x1x32x8xf32>
    %94 = vector.shape_cast %93 : vector<1x1x32x8xf32> to vector<32x8xf32>
    %cst_92 = arith.constant dense<0.000000e+00> : vector<32x8xf32>
    %95 = tpu.matmul %42, %94, %cst_92 {dimension_numbers = #tpu.dot_dimension_numbers<[1], [0], [0], [1], [0, 0, 1, 1], [], []>} : vector<32x32xf32>, vector<32x8xf32>, vector<32x8xf32> -> vector<32x8xf32>
    %c0_93 = arith.constant 0 : index
    %c1_94 = arith.constant 1 : index
    %c0_95 = arith.constant 0 : index
    %c0_96 = arith.constant 0 : index
    %96 = vector.load %arg10[%c0_93, %c1_94, %c0_95, %c0_96] : memref<1x4x1x8xf32, #tpu.memory_space<vmem>>, vector<1x1x1x8xf32>
    %97 = vector.shape_cast %96 : vector<1x1x1x8xf32> to vector<1x8xf32>
    %98 = vector.broadcast %97 : vector<1x8xf32> to vector<32x8xf32>
    %99 = arith.addf %95, %98 : vector<32x8xf32>
    %cst_97 = arith.constant dense<0.000000e+00> : vector<32x32xf32>
    %100 = tpu.matmul %85, %92, %cst_97 {dimension_numbers = #tpu.dot_dimension_numbers<[1], [1], [0], [0], [0, 0, 1, 0], [], []>} : vector<32x8xf32>, vector<32x8xf32>, vector<32x32xf32> -> vector<32x32xf32>
    %101 = arith.addf %100, %3 : vector<32x32xf32>
    %cst_98 = arith.constant dense<0xFF800000> : vector<32xf32>
    %102 = vector.multi_reduction <maximumf>, %101, %cst_98 [1] : vector<32x32xf32> to vector<32xf32>
    %103 = vector.shape_cast %102 : vector<32xf32> to vector<32x1xf32>
    %104 = vector.broadcast %103 : vector<32x1xf32> to vector<32x32xf32>
    %105 = arith.subf %101, %104 : vector<32x32xf32>
    %106 = math.exp %105 : vector<32x32xf32>
    %cst_99 = arith.constant dense<0.000000e+00> : vector<32xf32>
    %107 = vector.multi_reduction <add>, %106, %cst_99 [1] : vector<32x32xf32> to vector<32xf32>
    %108 = vector.shape_cast %107 : vector<32xf32> to vector<32x1xf32>
    %109 = vector.broadcast %108 : vector<32x1xf32> to vector<32x32xf32>
    %110 = arith.divf %106, %109 : vector<32x32xf32>
    %cst_100 = arith.constant dense<0.000000e+00> : vector<32x8xf32>
    %111 = tpu.matmul %110, %99, %cst_100 {dimension_numbers = #tpu.dot_dimension_numbers<[1], [0], [0], [1], [0, 0, 1, 1], [], []>} : vector<32x32xf32>, vector<32x8xf32>, vector<32x8xf32> -> vector<32x8xf32>
    %c0_101 = arith.constant 0 : index
    %c1_102 = arith.constant 1 : index
    %c0_103 = arith.constant 0 : index
    %c0_104 = arith.constant 0 : index
    %112 = vector.load %arg11[%c0_101, %c1_102, %c0_103, %c0_104] : memref<1x4x8x32xf32, #tpu.memory_space<vmem>>, vector<1x1x8x32xf32>
    %113 = vector.shape_cast %112 : vector<1x1x8x32xf32> to vector<8x32xf32>
    %cst_105 = arith.constant dense<0.000000e+00> : vector<32x32xf32>
    %114 = tpu.matmul %111, %113, %cst_105 {dimension_numbers = #tpu.dot_dimension_numbers<[1], [0], [0], [1], [0, 0, 1, 1], [], []>} : vector<32x8xf32>, vector<8x32xf32>, vector<32x32xf32> -> vector<32x32xf32>
    %115 = arith.addf %78, %114 : vector<32x32xf32>
    %c0_106 = arith.constant 0 : index
    %c2 = arith.constant 2 : index
    %c0_107 = arith.constant 0 : index
    %c0_108 = arith.constant 0 : index
    %116 = vector.load %arg5[%c0_106, %c2, %c0_107, %c0_108] : memref<1x4x32x8xf32, #tpu.memory_space<vmem>>, vector<1x1x32x8xf32>
    %117 = vector.shape_cast %116 : vector<1x1x32x8xf32> to vector<32x8xf32>
    %cst_109 = arith.constant dense<0.000000e+00> : vector<32x8xf32>
    %118 = tpu.matmul %42, %117, %cst_109 {dimension_numbers = #tpu.dot_dimension_numbers<[1], [0], [0], [1], [0, 0, 1, 1], [], []>} : vector<32x32xf32>, vector<32x8xf32>, vector<32x8xf32> -> vector<32x8xf32>
    %c0_110 = arith.constant 0 : index
    %c2_111 = arith.constant 2 : index
    %c0_112 = arith.constant 0 : index
    %c0_113 = arith.constant 0 : index
    %119 = vector.load %arg6[%c0_110, %c2_111, %c0_112, %c0_113] : memref<1x4x1x8xf32, #tpu.memory_space<vmem>>, vector<1x1x1x8xf32>
    %120 = vector.shape_cast %119 : vector<1x1x1x8xf32> to vector<1x8xf32>
    %121 = vector.broadcast %120 : vector<1x8xf32> to vector<32x8xf32>
    %122 = arith.addf %118, %121 : vector<32x8xf32>
    %c0_114 = arith.constant 0 : index
    %c2_115 = arith.constant 2 : index
    %c0_116 = arith.constant 0 : index
    %c0_117 = arith.constant 0 : index
    %123 = vector.load %arg7[%c0_114, %c2_115, %c0_116, %c0_117] : memref<1x4x32x8xf32, #tpu.memory_space<vmem>>, vector<1x1x32x8xf32>
    %124 = vector.shape_cast %123 : vector<1x1x32x8xf32> to vector<32x8xf32>
    %cst_118 = arith.constant dense<0.000000e+00> : vector<32x8xf32>
    %125 = tpu.matmul %42, %124, %cst_118 {dimension_numbers = #tpu.dot_dimension_numbers<[1], [0], [0], [1], [0, 0, 1, 1], [], []>} : vector<32x32xf32>, vector<32x8xf32>, vector<32x8xf32> -> vector<32x8xf32>
    %c0_119 = arith.constant 0 : index
    %c2_120 = arith.constant 2 : index
    %c0_121 = arith.constant 0 : index
    %c0_122 = arith.constant 0 : index
    %126 = vector.load %arg8[%c0_119, %c2_120, %c0_121, %c0_122] : memref<1x4x1x8xf32, #tpu.memory_space<vmem>>, vector<1x1x1x8xf32>
    %127 = vector.shape_cast %126 : vector<1x1x1x8xf32> to vector<1x8xf32>
    %128 = vector.broadcast %127 : vector<1x8xf32> to vector<32x8xf32>
    %129 = arith.addf %125, %128 : vector<32x8xf32>
    %c0_123 = arith.constant 0 : index
    %c2_124 = arith.constant 2 : index
    %c0_125 = arith.constant 0 : index
    %c0_126 = arith.constant 0 : index
    %130 = vector.load %arg9[%c0_123, %c2_124, %c0_125, %c0_126] : memref<1x4x32x8xf32, #tpu.memory_space<vmem>>, vector<1x1x32x8xf32>
    %131 = vector.shape_cast %130 : vector<1x1x32x8xf32> to vector<32x8xf32>
    %cst_127 = arith.constant dense<0.000000e+00> : vector<32x8xf32>
    %132 = tpu.matmul %42, %131, %cst_127 {dimension_numbers = #tpu.dot_dimension_numbers<[1], [0], [0], [1], [0, 0, 1, 1], [], []>} : vector<32x32xf32>, vector<32x8xf32>, vector<32x8xf32> -> vector<32x8xf32>
    %c0_128 = arith.constant 0 : index
    %c2_129 = arith.constant 2 : index
    %c0_130 = arith.constant 0 : index
    %c0_131 = arith.constant 0 : index
    %133 = vector.load %arg10[%c0_128, %c2_129, %c0_130, %c0_131] : memref<1x4x1x8xf32, #tpu.memory_space<vmem>>, vector<1x1x1x8xf32>
    %134 = vector.shape_cast %133 : vector<1x1x1x8xf32> to vector<1x8xf32>
    %135 = vector.broadcast %134 : vector<1x8xf32> to vector<32x8xf32>
    %136 = arith.addf %132, %135 : vector<32x8xf32>
    %cst_132 = arith.constant dense<0.000000e+00> : vector<32x32xf32>
    %137 = tpu.matmul %122, %129, %cst_132 {dimension_numbers = #tpu.dot_dimension_numbers<[1], [1], [0], [0], [0, 0, 1, 0], [], []>} : vector<32x8xf32>, vector<32x8xf32>, vector<32x32xf32> -> vector<32x32xf32>
    %138 = arith.addf %137, %3 : vector<32x32xf32>
    %cst_133 = arith.constant dense<0xFF800000> : vector<32xf32>
    %139 = vector.multi_reduction <maximumf>, %138, %cst_133 [1] : vector<32x32xf32> to vector<32xf32>
    %140 = vector.shape_cast %139 : vector<32xf32> to vector<32x1xf32>
    %141 = vector.broadcast %140 : vector<32x1xf32> to vector<32x32xf32>
    %142 = arith.subf %138, %141 : vector<32x32xf32>
    %143 = math.exp %142 : vector<32x32xf32>
    %cst_134 = arith.constant dense<0.000000e+00> : vector<32xf32>
    %144 = vector.multi_reduction <add>, %143, %cst_134 [1] : vector<32x32xf32> to vector<32xf32>
    %145 = vector.shape_cast %144 : vector<32xf32> to vector<32x1xf32>
    %146 = vector.broadcast %145 : vector<32x1xf32> to vector<32x32xf32>
    %147 = arith.divf %143, %146 : vector<32x32xf32>
    %cst_135 = arith.constant dense<0.000000e+00> : vector<32x8xf32>
    %148 = tpu.matmul %147, %136, %cst_135 {dimension_numbers = #tpu.dot_dimension_numbers<[1], [0], [0], [1], [0, 0, 1, 1], [], []>} : vector<32x32xf32>, vector<32x8xf32>, vector<32x8xf32> -> vector<32x8xf32>
    %c0_136 = arith.constant 0 : index
    %c2_137 = arith.constant 2 : index
    %c0_138 = arith.constant 0 : index
    %c0_139 = arith.constant 0 : index
    %149 = vector.load %arg11[%c0_136, %c2_137, %c0_138, %c0_139] : memref<1x4x8x32xf32, #tpu.memory_space<vmem>>, vector<1x1x8x32xf32>
    %150 = vector.shape_cast %149 : vector<1x1x8x32xf32> to vector<8x32xf32>
    %cst_140 = arith.constant dense<0.000000e+00> : vector<32x32xf32>
    %151 = tpu.matmul %148, %150, %cst_140 {dimension_numbers = #tpu.dot_dimension_numbers<[1], [0], [0], [1], [0, 0, 1, 1], [], []>} : vector<32x8xf32>, vector<8x32xf32>, vector<32x32xf32> -> vector<32x32xf32>
    %152 = arith.addf %115, %151 : vector<32x32xf32>
    %c0_141 = arith.constant 0 : index
    %c3 = arith.constant 3 : index
    %c0_142 = arith.constant 0 : index
    %c0_143 = arith.constant 0 : index
    %153 = vector.load %arg5[%c0_141, %c3, %c0_142, %c0_143] : memref<1x4x32x8xf32, #tpu.memory_space<vmem>>, vector<1x1x32x8xf32>
    %154 = vector.shape_cast %153 : vector<1x1x32x8xf32> to vector<32x8xf32>
    %cst_144 = arith.constant dense<0.000000e+00> : vector<32x8xf32>
    %155 = tpu.matmul %42, %154, %cst_144 {dimension_numbers = #tpu.dot_dimension_numbers<[1], [0], [0], [1], [0, 0, 1, 1], [], []>} : vector<32x32xf32>, vector<32x8xf32>, vector<32x8xf32> -> vector<32x8xf32>
    %c0_145 = arith.constant 0 : index
    %c3_146 = arith.constant 3 : index
    %c0_147 = arith.constant 0 : index
    %c0_148 = arith.constant 0 : index
    %156 = vector.load %arg6[%c0_145, %c3_146, %c0_147, %c0_148] : memref<1x4x1x8xf32, #tpu.memory_space<vmem>>, vector<1x1x1x8xf32>
    %157 = vector.shape_cast %156 : vector<1x1x1x8xf32> to vector<1x8xf32>
    %158 = vector.broadcast %157 : vector<1x8xf32> to vector<32x8xf32>
    %159 = arith.addf %155, %158 : vector<32x8xf32>
    %c0_149 = arith.constant 0 : index
    %c3_150 = arith.constant 3 : index
    %c0_151 = arith.constant 0 : index
    %c0_152 = arith.constant 0 : index
    %160 = vector.load %arg7[%c0_149, %c3_150, %c0_151, %c0_152] : memref<1x4x32x8xf32, #tpu.memory_space<vmem>>, vector<1x1x32x8xf32>
    %161 = vector.shape_cast %160 : vector<1x1x32x8xf32> to vector<32x8xf32>
    %cst_153 = arith.constant dense<0.000000e+00> : vector<32x8xf32>
    %162 = tpu.matmul %42, %161, %cst_153 {dimension_numbers = #tpu.dot_dimension_numbers<[1], [0], [0], [1], [0, 0, 1, 1], [], []>} : vector<32x32xf32>, vector<32x8xf32>, vector<32x8xf32> -> vector<32x8xf32>
    %c0_154 = arith.constant 0 : index
    %c3_155 = arith.constant 3 : index
    %c0_156 = arith.constant 0 : index
    %c0_157 = arith.constant 0 : index
    %163 = vector.load %arg8[%c0_154, %c3_155, %c0_156, %c0_157] : memref<1x4x1x8xf32, #tpu.memory_space<vmem>>, vector<1x1x1x8xf32>
    %164 = vector.shape_cast %163 : vector<1x1x1x8xf32> to vector<1x8xf32>
    %165 = vector.broadcast %164 : vector<1x8xf32> to vector<32x8xf32>
    %166 = arith.addf %162, %165 : vector<32x8xf32>
    %c0_158 = arith.constant 0 : index
    %c3_159 = arith.constant 3 : index
    %c0_160 = arith.constant 0 : index
    %c0_161 = arith.constant 0 : index
    %167 = vector.load %arg9[%c0_158, %c3_159, %c0_160, %c0_161] : memref<1x4x32x8xf32, #tpu.memory_space<vmem>>, vector<1x1x32x8xf32>
    %168 = vector.shape_cast %167 : vector<1x1x32x8xf32> to vector<32x8xf32>
    %cst_162 = arith.constant dense<0.000000e+00> : vector<32x8xf32>
    %169 = tpu.matmul %42, %168, %cst_162 {dimension_numbers = #tpu.dot_dimension_numbers<[1], [0], [0], [1], [0, 0, 1, 1], [], []>} : vector<32x32xf32>, vector<32x8xf32>, vector<32x8xf32> -> vector<32x8xf32>
    %c0_163 = arith.constant 0 : index
    %c3_164 = arith.constant 3 : index
    %c0_165 = arith.constant 0 : index
    %c0_166 = arith.constant 0 : index
    %170 = vector.load %arg10[%c0_163, %c3_164, %c0_165, %c0_166] : memref<1x4x1x8xf32, #tpu.memory_space<vmem>>, vector<1x1x1x8xf32>
    %171 = vector.shape_cast %170 : vector<1x1x1x8xf32> to vector<1x8xf32>
    %172 = vector.broadcast %171 : vector<1x8xf32> to vector<32x8xf32>
    %173 = arith.addf %169, %172 : vector<32x8xf32>
    %cst_167 = arith.constant dense<0.000000e+00> : vector<32x32xf32>
    %174 = tpu.matmul %159, %166, %cst_167 {dimension_numbers = #tpu.dot_dimension_numbers<[1], [1], [0], [0], [0, 0, 1, 0], [], []>} : vector<32x8xf32>, vector<32x8xf32>, vector<32x32xf32> -> vector<32x32xf32>
    %175 = arith.addf %174, %3 : vector<32x32xf32>
    %cst_168 = arith.constant dense<0xFF800000> : vector<32xf32>
    %176 = vector.multi_reduction <maximumf>, %175, %cst_168 [1] : vector<32x32xf32> to vector<32xf32>
    %177 = vector.shape_cast %176 : vector<32xf32> to vector<32x1xf32>
    %178 = vector.broadcast %177 : vector<32x1xf32> to vector<32x32xf32>
    %179 = arith.subf %175, %178 : vector<32x32xf32>
    %180 = math.exp %179 : vector<32x32xf32>
    %cst_169 = arith.constant dense<0.000000e+00> : vector<32xf32>
    %181 = vector.multi_reduction <add>, %180, %cst_169 [1] : vector<32x32xf32> to vector<32xf32>
    %182 = vector.shape_cast %181 : vector<32xf32> to vector<32x1xf32>
    %183 = vector.broadcast %182 : vector<32x1xf32> to vector<32x32xf32>
    %184 = arith.divf %180, %183 : vector<32x32xf32>
    %cst_170 = arith.constant dense<0.000000e+00> : vector<32x8xf32>
    %185 = tpu.matmul %184, %173, %cst_170 {dimension_numbers = #tpu.dot_dimension_numbers<[1], [0], [0], [1], [0, 0, 1, 1], [], []>} : vector<32x32xf32>, vector<32x8xf32>, vector<32x8xf32> -> vector<32x8xf32>
    %c0_171 = arith.constant 0 : index
    %c3_172 = arith.constant 3 : index
    %c0_173 = arith.constant 0 : index
    %c0_174 = arith.constant 0 : index
    %186 = vector.load %arg11[%c0_171, %c3_172, %c0_173, %c0_174] : memref<1x4x8x32xf32, #tpu.memory_space<vmem>>, vector<1x1x8x32xf32>
    %187 = vector.shape_cast %186 : vector<1x1x8x32xf32> to vector<8x32xf32>
    %cst_175 = arith.constant dense<0.000000e+00> : vector<32x32xf32>
    %188 = tpu.matmul %185, %187, %cst_175 {dimension_numbers = #tpu.dot_dimension_numbers<[1], [0], [0], [1], [0, 0, 1, 1], [], []>} : vector<32x8xf32>, vector<8x32xf32>, vector<32x32xf32> -> vector<32x32xf32>
    %189 = arith.addf %152, %188 : vector<32x32xf32>
    %190 = arith.addf %4, %189 : vector<32x32xf32>
    %191 = vector.broadcast %10 : vector<1x32xf32> to vector<32x32xf32>
    %192 = arith.addf %190, %191 : vector<32x32xf32>
    %cst_176 = arith.constant dense<0.000000e+00> : vector<32xf32>
    %193 = vector.multi_reduction <add>, %192, %cst_176 [1] : vector<32x32xf32> to vector<32xf32>
    %194 = vector.shape_cast %193 : vector<32xf32> to vector<32x1xf32>
    %cst_177 = arith.constant 3.200000e+01 : f32
    %195 = vector.broadcast %cst_177 : f32 to vector<32x1xf32>
    %196 = arith.divf %194, %195 : vector<32x1xf32>
    %197 = vector.broadcast %196 : vector<32x1xf32> to vector<32x32xf32>
    %198 = arith.subf %192, %197 : vector<32x32xf32>
    %199 = arith.mulf %198, %198 : vector<32x32xf32>
    %cst_178 = arith.constant dense<0.000000e+00> : vector<32xf32>
    %200 = vector.multi_reduction <add>, %199, %cst_178 [1] : vector<32x32xf32> to vector<32xf32>
    %201 = vector.shape_cast %200 : vector<32xf32> to vector<32x1xf32>
    %cst_179 = arith.constant 3.200000e+01 : f32
    %202 = vector.broadcast %cst_179 : f32 to vector<32x1xf32>
    %203 = arith.divf %201, %202 : vector<32x1xf32>
    %cst_180 = arith.constant 9.99999974E-6 : f32
    %204 = vector.broadcast %cst_180 : f32 to vector<32x1xf32>
    %205 = arith.addf %203, %204 : vector<32x1xf32>
    %206 = math.rsqrt %205 : vector<32x1xf32>
    %207 = vector.broadcast %206 : vector<32x1xf32> to vector<32x32xf32>
    %208 = arith.mulf %198, %207 : vector<32x32xf32>
    %209 = vector.broadcast %12 : vector<1x32xf32> to vector<32x32xf32>
    %210 = arith.mulf %208, %209 : vector<32x32xf32>
    %211 = vector.broadcast %14 : vector<1x32xf32> to vector<32x32xf32>
    %212 = arith.addf %210, %211 : vector<32x32xf32>
    %cst_181 = arith.constant dense<0.000000e+00> : vector<32x64xf32>
    %213 = tpu.matmul %212, %16, %cst_181 {dimension_numbers = #tpu.dot_dimension_numbers<[1], [0], [0], [1], [0, 0, 1, 1], [], []>} : vector<32x32xf32>, vector<32x64xf32>, vector<32x64xf32> -> vector<32x64xf32>
    %214 = vector.broadcast %18 : vector<1x64xf32> to vector<32x64xf32>
    %215 = arith.addf %213, %214 : vector<32x64xf32>
    %cst_182 = arith.constant 1.702000e+00 : f32
    %216 = vector.broadcast %cst_182 : f32 to vector<32x64xf32>
    %217 = arith.mulf %216, %215 : vector<32x64xf32>
    %218 = arith.negf %217 : vector<32x64xf32>
    %219 = math.exp %218 : vector<32x64xf32>
    %cst_183 = arith.constant 1.000000e+00 : f32
    %220 = vector.broadcast %cst_183 : f32 to vector<32x64xf32>
    %221 = arith.addf %220, %219 : vector<32x64xf32>
    %222 = arith.divf %220, %221 : vector<32x64xf32>
    %223 = arith.mulf %215, %222 : vector<32x64xf32>
    %cst_184 = arith.constant dense<0.000000e+00> : vector<32x32xf32>
    %224 = tpu.matmul %223, %20, %cst_184 {dimension_numbers = #tpu.dot_dimension_numbers<[1], [0], [0], [1], [0, 0, 1, 1], [], []>} : vector<32x64xf32>, vector<64x32xf32>, vector<32x32xf32> -> vector<32x32xf32>
    %225 = vector.broadcast %22 : vector<1x32xf32> to vector<32x32xf32>
    %226 = arith.addf %224, %225 : vector<32x32xf32>
    %227 = arith.addf %192, %226 : vector<32x32xf32>
    %c0_185 = arith.constant 0 : index
    %c0_186 = arith.constant 0 : index
    %228 = vector.load %arg22[%c0_185, %c0_186] : memref<32x32xf32, #tpu.memory_space<vmem>>, vector<32x32xf32>
    tpu.vector_store %arg22[%c0_185, %c0_186], %227 {strides = array<i32>} : memref<32x32xf32, #tpu.memory_space<vmem>>, vector<32x32xf32>,
    %c1_i32 = arith.constant 1 : i32
    %229 = arith.cmpi eq, %arg0, %c1_i32 : i32
    %230 = arith.extui %229 : i1 to i32
    %c0_i32_187 = arith.constant 0 : i32
    %231 = arith.cmpi ne, %230, %c0_i32_187 : i32
    scf.if %231 {
      %c0_188 = arith.constant 0 : index
      %c0_189 = arith.constant 0 : index
      %232 = vector.load %arg19[%c0_188, %c0_189] : memref<1x32xf32, #tpu.memory_space<vmem>>, vector<1x32xf32>
      %c0_190 = arith.constant 0 : index
      %c0_191 = arith.constant 0 : index
      %233 = vector.load %arg20[%c0_190, %c0_191] : memref<1x32xf32, #tpu.memory_space<vmem>>, vector<1x32xf32>
      %cst_192 = arith.constant dense<0.000000e+00> : vector<32xf32>
      %234 = vector.multi_reduction <add>, %227, %cst_192 [1] : vector<32x32xf32> to vector<32xf32>
      %235 = vector.shape_cast %234 : vector<32xf32> to vector<32x1xf32>
      %cst_193 = arith.constant 3.200000e+01 : f32
      %236 = vector.broadcast %cst_193 : f32 to vector<32x1xf32>
      %237 = arith.divf %235, %236 : vector<32x1xf32>
      %238 = vector.broadcast %237 : vector<32x1xf32> to vector<32x32xf32>
      %239 = arith.subf %227, %238 : vector<32x32xf32>
      %240 = arith.mulf %239, %239 : vector<32x32xf32>
      %cst_194 = arith.constant dense<0.000000e+00> : vector<32xf32>
      %241 = vector.multi_reduction <add>, %240, %cst_194 [1] : vector<32x32xf32> to vector<32xf32>
      %242 = vector.shape_cast %241 : vector<32xf32> to vector<32x1xf32>
      %cst_195 = arith.constant 3.200000e+01 : f32
      %243 = vector.broadcast %cst_195 : f32 to vector<32x1xf32>
      %244 = arith.divf %242, %243 : vector<32x1xf32>
      %cst_196 = arith.constant 9.99999974E-6 : f32
      %245 = vector.broadcast %cst_196 : f32 to vector<32x1xf32>
      %246 = arith.addf %244, %245 : vector<32x1xf32>
      %247 = math.rsqrt %246 : vector<32x1xf32>
      %248 = vector.broadcast %247 : vector<32x1xf32> to vector<32x32xf32>
      %249 = arith.mulf %239, %248 : vector<32x32xf32>
      %250 = vector.broadcast %232 : vector<1x32xf32> to vector<32x32xf32>
      %251 = arith.mulf %249, %250 : vector<32x32xf32>
      %252 = vector.broadcast %233 : vector<1x32xf32> to vector<32x32xf32>
      %253 = arith.addf %251, %252 : vector<32x32xf32>
      %c0_197 = arith.constant 0 : index
      %c0_198 = arith.constant 0 : index
      %254 = vector.load %arg21[%c0_197, %c0_198] : memref<32x32xf32, #tpu.memory_space<vmem>>, vector<32x32xf32>
      tpu.vector_store %arg21[%c0_197, %c0_198], %253 {strides = array<i32>} : memref<32x32xf32, #tpu.memory_space<vmem>>, vector<32x32xf32>,
    } else {
    }
    return
  }
  func.func @transform_0(%arg0: i32) -> (i32, i32) {
    %c0_i32 = arith.constant 0 : i32
    %c0_i32_0 = arith.constant 0 : i32
    %c0_i32_1 = arith.constant 0 : i32
    return %c0_i32, %c0_i32_0 : i32, i32
  }
  func.func @transform_1(%arg0: i32) -> (i32, i32) {
    %c0_i32 = arith.constant 0 : i32
    %c0_i32_0 = arith.constant 0 : i32
    %c0_i32_1 = arith.constant 0 : i32
    return %c0_i32, %c0_i32_0 : i32, i32
  }
  func.func @transform_2(%arg0: i32) -> (i32, i32, i32) {
    %c0_i32 = arith.constant 0 : i32
    %c0_i32_0 = arith.constant 0 : i32
    %c0_i32_1 = arith.constant 0 : i32
    return %arg0, %c0_i32, %c0_i32_0 : i32, i32, i32
  }
  func.func @transform_3(%arg0: i32) -> (i32, i32, i32) {
    %c0_i32 = arith.constant 0 : i32
    %c0_i32_0 = arith.constant 0 : i32
    %c0_i32_1 = arith.constant 0 : i32
    return %arg0, %c0_i32, %c0_i32_0 : i32, i32, i32
  }
  func.func @transform_4(%arg0: i32) -> (i32, i32, i32, i32) {
    %c0_i32 = arith.constant 0 : i32
    %c0_i32_0 = arith.constant 0 : i32
    %c0_i32_1 = arith.constant 0 : i32
    %c0_i32_2 = arith.constant 0 : i32
    return %arg0, %c0_i32, %c0_i32_0, %c0_i32_1 : i32, i32, i32, i32
  }
  func.func @transform_5(%arg0: i32) -> (i32, i32, i32, i32) {
    %c0_i32 = arith.constant 0 : i32
    %c0_i32_0 = arith.constant 0 : i32
    %c0_i32_1 = arith.constant 0 : i32
    %c0_i32_2 = arith.constant 0 : i32
    return %arg0, %c0_i32, %c0_i32_0, %c0_i32_1 : i32, i32, i32, i32
  }
  func.func @transform_6(%arg0: i32) -> (i32, i32, i32, i32) {
    %c0_i32 = arith.constant 0 : i32
    %c0_i32_0 = arith.constant 0 : i32
    %c0_i32_1 = arith.constant 0 : i32
    %c0_i32_2 = arith.constant 0 : i32
    return %arg0, %c0_i32, %c0_i32_0, %c0_i32_1 : i32, i32, i32, i32
  }
  func.func @transform_7(%arg0: i32) -> (i32, i32, i32, i32) {
    %c0_i32 = arith.constant 0 : i32
    %c0_i32_0 = arith.constant 0 : i32
    %c0_i32_1 = arith.constant 0 : i32
    %c0_i32_2 = arith.constant 0 : i32
    return %arg0, %c0_i32, %c0_i32_0, %c0_i32_1 : i32, i32, i32, i32
  }
  func.func @transform_8(%arg0: i32) -> (i32, i32, i32, i32) {
    %c0_i32 = arith.constant 0 : i32
    %c0_i32_0 = arith.constant 0 : i32
    %c0_i32_1 = arith.constant 0 : i32
    %c0_i32_2 = arith.constant 0 : i32
    return %arg0, %c0_i32, %c0_i32_0, %c0_i32_1 : i32, i32, i32, i32
  }
  func.func @transform_9(%arg0: i32) -> (i32, i32, i32, i32) {
    %c0_i32 = arith.constant 0 : i32
    %c0_i32_0 = arith.constant 0 : i32
    %c0_i32_1 = arith.constant 0 : i32
    %c0_i32_2 = arith.constant 0 : i32
    return %arg0, %c0_i32, %c0_i32_0, %c0_i32_1 : i32, i32, i32, i32
  }
  func.func @transform_10(%arg0: i32) -> (i32, i32, i32, i32) {
    %c0_i32 = arith.constant 0 : i32
    %c0_i32_0 = arith.constant 0 : i32
    %c0_i32_1 = arith.constant 0 : i32
    %c0_i32_2 = arith.constant 0 : i32
    return %arg0, %c0_i32, %c0_i32_0, %c0_i32_1 : i32, i32, i32, i32
  }
  func.func @transform_11(%arg0: i32) -> (i32, i32, i32) {
    %c0_i32 = arith.constant 0 : i32
    %c0_i32_0 = arith.constant 0 : i32
    %c0_i32_1 = arith.constant 0 : i32
    return %arg0, %c0_i32, %c0_i32_0 : i32, i32, i32
  }
  func.func @transform_12(%arg0: i32) -> (i32, i32, i32) {
    %c0_i32 = arith.constant 0 : i32
    %c0_i32_0 = arith.constant 0 : i32
    %c0_i32_1 = arith.constant 0 : i32
    return %arg0, %c0_i32, %c0_i32_0 : i32, i32, i32
  }
  func.func @transform_13(%arg0: i32) -> (i32, i32, i32) {
    %c0_i32 = arith.constant 0 : i32
    %c0_i32_0 = arith.constant 0 : i32
    %c0_i32_1 = arith.constant 0 : i32
    return %arg0, %c0_i32, %c0_i32_0 : i32, i32, i32
  }
  func.func @transform_14(%arg0: i32) -> (i32, i32, i32) {
    %c0_i32 = arith.constant 0 : i32
    %c0_i32_0 = arith.constant 0 : i32
    %c0_i32_1 = arith.constant 0 : i32
    return %arg0, %c0_i32, %c0_i32_0 : i32, i32, i32
  }
  func.func @transform_15(%arg0: i32) -> (i32, i32, i32) {
    %c0_i32 = arith.constant 0 : i32
    %c0_i32_0 = arith.constant 0 : i32
    %c0_i32_1 = arith.constant 0 : i32
    return %arg0, %c0_i32, %c0_i32_0 : i32, i32, i32
  }
  func.func @transform_16(%arg0: i32) -> (i32, i32, i32) {
    %c0_i32 = arith.constant 0 : i32
    %c0_i32_0 = arith.constant 0 : i32
    %c0_i32_1 = arith.constant 0 : i32
    return %arg0, %c0_i32, %c0_i32_0 : i32, i32, i32
  }
  func.func @transform_17(%arg0: i32) -> (i32, i32, i32) {
    %c0_i32 = arith.constant 0 : i32
    %c0_i32_0 = arith.constant 0 : i32
    %c0_i32_1 = arith.constant 0 : i32
    return %arg0, %c0_i32, %c0_i32_0 : i32, i32, i32
  }
  func.func @transform_18(%arg0: i32) -> (i32, i32) {
    %c0_i32 = arith.constant 0 : i32
    %c0_i32_0 = arith.constant 0 : i32
    %c0_i32_1 = arith.constant 0 : i32
    return %c0_i32, %c0_i32_0 : i32, i32
  }
  func.func @transform_19(%arg0: i32) -> (i32, i32) {
    %c0_i32 = arith.constant 0 : i32
    %c0_i32_0 = arith.constant 0 : i32
    %c0_i32_1 = arith.constant 0 : i32
    return %c0_i32, %c0_i32_0 : i32, i32
  }
  func.func @transform_20(%arg0: i32) -> (i32, i32) {
    %c0_i32 = arith.constant 0 : i32
    %c0_i32_0 = arith.constant 0 : i32
    %c0_i32_1 = arith.constant 0 : i32
    return %c0_i32, %c0_i32_0 : i32, i32
  }
}

module attributes {stable_mosaic.version = 11 : i64} {
  func.func @_vision_det_kernel(%arg0: i32, %arg1: i32, %arg2: memref<1x17x192xf32, #tpu.memory_space<vmem>>, %arg3: memref<192x32xf32, #tpu.memory_space<vmem>>, %arg4: memref<17x32xf32, #tpu.memory_space<vmem>>, %arg5: memref<1x32xf32, #tpu.memory_space<vmem>>, %arg6: memref<1x32xf32, #tpu.memory_space<vmem>>, %arg7: memref<1x1x32xf32, #tpu.memory_space<vmem>>, %arg8: memref<1x1x32xf32, #tpu.memory_space<vmem>>, %arg9: memref<1x4x32x8xf32, #tpu.memory_space<vmem>>, %arg10: memref<1x4x1x8xf32, #tpu.memory_space<vmem>>, %arg11: memref<1x4x32x8xf32, #tpu.memory_space<vmem>>, %arg12: memref<1x4x1x8xf32, #tpu.memory_space<vmem>>, %arg13: memref<1x4x32x8xf32, #tpu.memory_space<vmem>>, %arg14: memref<1x4x1x8xf32, #tpu.memory_space<vmem>>, %arg15: memref<1x4x8x32xf32, #tpu.memory_space<vmem>>, %arg16: memref<1x1x32xf32, #tpu.memory_space<vmem>>, %arg17: memref<1x1x32xf32, #tpu.memory_space<vmem>>, %arg18: memref<1x1x32xf32, #tpu.memory_space<vmem>>, %arg19: memref<1x32x64xf32, #tpu.memory_space<vmem>>, %arg20: memref<1x1x64xf32, #tpu.memory_space<vmem>>, %arg21: memref<1x64x32xf32, #tpu.memory_space<vmem>>, %arg22: memref<1x1x32xf32, #tpu.memory_space<vmem>>, %arg23: memref<1x32xf32, #tpu.memory_space<vmem>>, %arg24: memref<1x32xf32, #tpu.memory_space<vmem>>, %arg25: memref<1x32xf32, #tpu.memory_space<vmem>>, %arg26: memref<1x32xf32, #tpu.memory_space<vmem>>, %arg27: memref<32x18xf32, #tpu.memory_space<vmem>>, %arg28: memref<1x18xf32, #tpu.memory_space<vmem>>, %arg29: memref<32x32xf32, #tpu.memory_space<vmem>>, %arg30: memref<1x32xf32, #tpu.memory_space<vmem>>, %arg31: memref<32x32xf32, #tpu.memory_space<vmem>>, %arg32: memref<1x32xf32, #tpu.memory_space<vmem>>, %arg33: memref<32x4xf32, #tpu.memory_space<vmem>>, %arg34: memref<1x4xf32, #tpu.memory_space<vmem>>, %arg35: memref<16x4xf32, #tpu.memory_space<vmem>>, %arg36: memref<1x2x16xf32, #tpu.memory_space<vmem>>, %arg37: memref<1x1x2xf32, #tpu.memory_space<vmem>>, %arg38: memref<1x16x128xf32, #tpu.memory_space<vmem>>, %arg39: memref<17x32xf32, #tpu.memory_space<vmem>>) attributes {dimension_semantics = [#tpu.dimension_semantics<parallel>, #tpu.dimension_semantics<arbitrary>], iteration_bounds = array<i64: 2, 2>, scalar_prefetch = 0 : i64, scratch_operands = 1 : i64, tpu.core_type = #tpu.core_type<tc>, window_params = [{transform_indices = @transform_0, window_bounds = array<i64: 1, 17, 192>}, {pipeline_mode = #tpu.pipeline_mode<synchronous>, transform_indices = @transform_1, window_bounds = array<i64: 192, 32>}, {pipeline_mode = #tpu.pipeline_mode<synchronous>, transform_indices = @transform_2, window_bounds = array<i64: 17, 32>}, {pipeline_mode = #tpu.pipeline_mode<synchronous>, transform_indices = @transform_3, window_bounds = array<i64: 1, 32>}, {pipeline_mode = #tpu.pipeline_mode<synchronous>, transform_indices = @transform_4, window_bounds = array<i64: 1, 32>}, {transform_indices = @transform_5, window_bounds = array<i64: 1, 1, 32>}, {transform_indices = @transform_6, window_bounds = array<i64: 1, 1, 32>}, {transform_indices = @transform_7, window_bounds = array<i64: 1, 4, 32, 8>}, {transform_indices = @transform_8, window_bounds = array<i64: 1, 4, 1, 8>}, {transform_indices = @transform_9, window_bounds = array<i64: 1, 4, 32, 8>}, {transform_indices = @transform_10, window_bounds = array<i64: 1, 4, 1, 8>}, {transform_indices = @transform_11, window_bounds = array<i64: 1, 4, 32, 8>}, {transform_indices = @transform_12, window_bounds = array<i64: 1, 4, 1, 8>}, {transform_indices = @transform_13, window_bounds = array<i64: 1, 4, 8, 32>}, {transform_indices = @transform_14, window_bounds = array<i64: 1, 1, 32>}, {transform_indices = @transform_15, window_bounds = array<i64: 1, 1, 32>}, {transform_indices = @transform_16, window_bounds = array<i64: 1, 1, 32>}, {transform_indices = @transform_17, window_bounds = array<i64: 1, 32, 64>}, {transform_indices = @transform_18, window_bounds = array<i64: 1, 1, 64>}, {transform_indices = @transform_19, window_bounds = array<i64: 1, 64, 32>}, {transform_indices = @transform_20, window_bounds = array<i64: 1, 1, 32>}, {pipeline_mode = #tpu.pipeline_mode<synchronous>, transform_indices = @transform_21, window_bounds = array<i64: 1, 32>}, {pipeline_mode = #tpu.pipeline_mode<synchronous>, transform_indices = @transform_22, window_bounds = array<i64: 1, 32>}, {pipeline_mode = #tpu.pipeline_mode<synchronous>, transform_indices = @transform_23, window_bounds = array<i64: 1, 32>}, {pipeline_mode = #tpu.pipeline_mode<synchronous>, transform_indices = @transform_24, window_bounds = array<i64: 1, 32>}, {pipeline_mode = #tpu.pipeline_mode<synchronous>, transform_indices = @transform_25, window_bounds = array<i64: 32, 18>}, {pipeline_mode = #tpu.pipeline_mode<synchronous>, transform_indices = @transform_26, window_bounds = array<i64: 1, 18>}, {pipeline_mode = #tpu.pipeline_mode<synchronous>, transform_indices = @transform_27, window_bounds = array<i64: 32, 32>}, {pipeline_mode = #tpu.pipeline_mode<synchronous>, transform_indices = @transform_28, window_bounds = array<i64: 1, 32>}, {pipeline_mode = #tpu.pipeline_mode<synchronous>, transform_indices = @transform_29, window_bounds = array<i64: 32, 32>}, {pipeline_mode = #tpu.pipeline_mode<synchronous>, transform_indices = @transform_30, window_bounds = array<i64: 1, 32>}, {pipeline_mode = #tpu.pipeline_mode<synchronous>, transform_indices = @transform_31, window_bounds = array<i64: 32, 4>}, {pipeline_mode = #tpu.pipeline_mode<synchronous>, transform_indices = @transform_32, window_bounds = array<i64: 1, 4>}, {pipeline_mode = #tpu.pipeline_mode<synchronous>, transform_indices = @transform_33, window_bounds = array<i64: 16, 4>}, {transform_indices = @transform_34, window_bounds = array<i64: 1, 2, 16>}, {transform_indices = @transform_35, window_bounds = array<i64: 1, 1, 2>}, {transform_indices = @transform_36, window_bounds = array<i64: 1, 16, 128>}]} {
    %c0_i32 = arith.constant 0 : i32
    %0 = arith.cmpi eq, %arg1, %c0_i32 : i32
    %1 = arith.extui %0 : i1 to i32
    %c0_i32_0 = arith.constant 0 : i32
    %2 = arith.cmpi ne, %1, %c0_i32_0 : i32
    scf.if %2 {
      %c0_186 = arith.constant 0 : index
      %c0_187 = arith.constant 0 : index
      %c0_188 = arith.constant 0 : index
      %227 = vector.load %arg2[%c0_186, %c0_187, %c0_188] : memref<1x17x192xf32, #tpu.memory_space<vmem>>, vector<1x17x192xf32>
      %228 = vector.shape_cast %227 : vector<1x17x192xf32> to vector<17x192xf32>
      %c0_189 = arith.constant 0 : index
      %c0_190 = arith.constant 0 : index
      %229 = vector.load %arg3[%c0_189, %c0_190] : memref<192x32xf32, #tpu.memory_space<vmem>>, vector<192x32xf32>
      %cst_191 = arith.constant dense<0.000000e+00> : vector<17x32xf32>
      %230 = tpu.matmul %228, %229, %cst_191 {dimension_numbers = #tpu.dot_dimension_numbers<[1], [0], [0], [1], [0, 0, 1, 1], [], []>} : vector<17x192xf32>, vector<192x32xf32>, vector<17x32xf32> -> vector<17x32xf32>
      %c0_192 = arith.constant 0 : index
      %c0_193 = arith.constant 0 : index
      %231 = vector.load %arg4[%c0_192, %c0_193] : memref<17x32xf32, #tpu.memory_space<vmem>>, vector<17x32xf32>
      %232 = arith.addf %230, %231 : vector<17x32xf32>
      %c0_194 = arith.constant 0 : index
      %c0_195 = arith.constant 0 : index
      %233 = vector.load %arg5[%c0_194, %c0_195] : memref<1x32xf32, #tpu.memory_space<vmem>>, vector<1x32xf32>
      %c0_196 = arith.constant 0 : index
      %c0_197 = arith.constant 0 : index
      %234 = vector.load %arg6[%c0_196, %c0_197] : memref<1x32xf32, #tpu.memory_space<vmem>>, vector<1x32xf32>
      %cst_198 = arith.constant dense<0.000000e+00> : vector<17xf32>
      %235 = vector.multi_reduction <add>, %232, %cst_198 [1] : vector<17x32xf32> to vector<17xf32>
      %236 = vector.shape_cast %235 : vector<17xf32> to vector<17x1xf32>
      %cst_199 = arith.constant 3.200000e+01 : f32
      %237 = vector.broadcast %cst_199 : f32 to vector<17x1xf32>
      %238 = arith.divf %236, %237 : vector<17x1xf32>
      %239 = vector.broadcast %238 : vector<17x1xf32> to vector<17x32xf32>
      %240 = arith.subf %232, %239 : vector<17x32xf32>
      %241 = arith.mulf %240, %240 : vector<17x32xf32>
      %cst_200 = arith.constant dense<0.000000e+00> : vector<17xf32>
      %242 = vector.multi_reduction <add>, %241, %cst_200 [1] : vector<17x32xf32> to vector<17xf32>
      %243 = vector.shape_cast %242 : vector<17xf32> to vector<17x1xf32>
      %cst_201 = arith.constant 3.200000e+01 : f32
      %244 = vector.broadcast %cst_201 : f32 to vector<17x1xf32>
      %245 = arith.divf %243, %244 : vector<17x1xf32>
      %cst_202 = arith.constant 9.99999974E-6 : f32
      %246 = vector.broadcast %cst_202 : f32 to vector<17x1xf32>
      %247 = arith.addf %245, %246 : vector<17x1xf32>
      %248 = math.rsqrt %247 : vector<17x1xf32>
      %249 = vector.broadcast %248 : vector<17x1xf32> to vector<17x32xf32>
      %250 = arith.mulf %240, %249 : vector<17x32xf32>
      %251 = vector.broadcast %233 : vector<1x32xf32> to vector<17x32xf32>
      %252 = arith.mulf %250, %251 : vector<17x32xf32>
      %253 = vector.broadcast %234 : vector<1x32xf32> to vector<17x32xf32>
      %254 = arith.addf %252, %253 : vector<17x32xf32>
      %c0_203 = arith.constant 0 : index
      %c0_204 = arith.constant 0 : index
      %255 = vector.load %arg39[%c0_203, %c0_204] : memref<17x32xf32, #tpu.memory_space<vmem>>, vector<17x32xf32>
      tpu.vector_store %arg39[%c0_203, %c0_204], %254 {strides = array<i32>} : memref<17x32xf32, #tpu.memory_space<vmem>>, vector<17x32xf32>,
    } else {
    }
    %c0 = arith.constant 0 : index
    %c0_1 = arith.constant 0 : index
    %3 = vector.load %arg39[%c0, %c0_1] : memref<17x32xf32, #tpu.memory_space<vmem>>, vector<17x32xf32>
    %c0_2 = arith.constant 0 : index
    %c0_3 = arith.constant 0 : index
    %c0_4 = arith.constant 0 : index
    %4 = vector.load %arg7[%c0_2, %c0_3, %c0_4] : memref<1x1x32xf32, #tpu.memory_space<vmem>>, vector<1x1x32xf32>
    %5 = vector.shape_cast %4 : vector<1x1x32xf32> to vector<1x32xf32>
    %c0_5 = arith.constant 0 : index
    %c0_6 = arith.constant 0 : index
    %c0_7 = arith.constant 0 : index
    %6 = vector.load %arg8[%c0_5, %c0_6, %c0_7] : memref<1x1x32xf32, #tpu.memory_space<vmem>>, vector<1x1x32xf32>
    %7 = vector.shape_cast %6 : vector<1x1x32xf32> to vector<1x32xf32>
    %c0_8 = arith.constant 0 : index
    %c0_9 = arith.constant 0 : index
    %c0_10 = arith.constant 0 : index
    %8 = vector.load %arg16[%c0_8, %c0_9, %c0_10] : memref<1x1x32xf32, #tpu.memory_space<vmem>>, vector<1x1x32xf32>
    %9 = vector.shape_cast %8 : vector<1x1x32xf32> to vector<1x32xf32>
    %c0_11 = arith.constant 0 : index
    %c0_12 = arith.constant 0 : index
    %c0_13 = arith.constant 0 : index
    %10 = vector.load %arg17[%c0_11, %c0_12, %c0_13] : memref<1x1x32xf32, #tpu.memory_space<vmem>>, vector<1x1x32xf32>
    %11 = vector.shape_cast %10 : vector<1x1x32xf32> to vector<1x32xf32>
    %c0_14 = arith.constant 0 : index
    %c0_15 = arith.constant 0 : index
    %c0_16 = arith.constant 0 : index
    %12 = vector.load %arg18[%c0_14, %c0_15, %c0_16] : memref<1x1x32xf32, #tpu.memory_space<vmem>>, vector<1x1x32xf32>
    %13 = vector.shape_cast %12 : vector<1x1x32xf32> to vector<1x32xf32>
    %c0_17 = arith.constant 0 : index
    %c0_18 = arith.constant 0 : index
    %c0_19 = arith.constant 0 : index
    %14 = vector.load %arg19[%c0_17, %c0_18, %c0_19] : memref<1x32x64xf32, #tpu.memory_space<vmem>>, vector<1x32x64xf32>
    %15 = vector.shape_cast %14 : vector<1x32x64xf32> to vector<32x64xf32>
    %c0_20 = arith.constant 0 : index
    %c0_21 = arith.constant 0 : index
    %c0_22 = arith.constant 0 : index
    %16 = vector.load %arg20[%c0_20, %c0_21, %c0_22] : memref<1x1x64xf32, #tpu.memory_space<vmem>>, vector<1x1x64xf32>
    %17 = vector.shape_cast %16 : vector<1x1x64xf32> to vector<1x64xf32>
    %c0_23 = arith.constant 0 : index
    %c0_24 = arith.constant 0 : index
    %c0_25 = arith.constant 0 : index
    %18 = vector.load %arg21[%c0_23, %c0_24, %c0_25] : memref<1x64x32xf32, #tpu.memory_space<vmem>>, vector<1x64x32xf32>
    %19 = vector.shape_cast %18 : vector<1x64x32xf32> to vector<64x32xf32>
    %c0_26 = arith.constant 0 : index
    %c0_27 = arith.constant 0 : index
    %c0_28 = arith.constant 0 : index
    %20 = vector.load %arg22[%c0_26, %c0_27, %c0_28] : memref<1x1x32xf32, #tpu.memory_space<vmem>>, vector<1x1x32xf32>
    %21 = vector.shape_cast %20 : vector<1x1x32xf32> to vector<1x32xf32>
    %cst = arith.constant dense<0.000000e+00> : vector<17xf32>
    %22 = vector.multi_reduction <add>, %3, %cst [1] : vector<17x32xf32> to vector<17xf32>
    %23 = vector.shape_cast %22 : vector<17xf32> to vector<17x1xf32>
    %cst_29 = arith.constant 3.200000e+01 : f32
    %24 = vector.broadcast %cst_29 : f32 to vector<17x1xf32>
    %25 = arith.divf %23, %24 : vector<17x1xf32>
    %26 = vector.broadcast %25 : vector<17x1xf32> to vector<17x32xf32>
    %27 = arith.subf %3, %26 : vector<17x32xf32>
    %28 = arith.mulf %27, %27 : vector<17x32xf32>
    %cst_30 = arith.constant dense<0.000000e+00> : vector<17xf32>
    %29 = vector.multi_reduction <add>, %28, %cst_30 [1] : vector<17x32xf32> to vector<17xf32>
    %30 = vector.shape_cast %29 : vector<17xf32> to vector<17x1xf32>
    %cst_31 = arith.constant 3.200000e+01 : f32
    %31 = vector.broadcast %cst_31 : f32 to vector<17x1xf32>
    %32 = arith.divf %30, %31 : vector<17x1xf32>
    %cst_32 = arith.constant 9.99999974E-6 : f32
    %33 = vector.broadcast %cst_32 : f32 to vector<17x1xf32>
    %34 = arith.addf %32, %33 : vector<17x1xf32>
    %35 = math.rsqrt %34 : vector<17x1xf32>
    %36 = vector.broadcast %35 : vector<17x1xf32> to vector<17x32xf32>
    %37 = arith.mulf %27, %36 : vector<17x32xf32>
    %38 = vector.broadcast %5 : vector<1x32xf32> to vector<17x32xf32>
    %39 = arith.mulf %37, %38 : vector<17x32xf32>
    %40 = vector.broadcast %7 : vector<1x32xf32> to vector<17x32xf32>
    %41 = arith.addf %39, %40 : vector<17x32xf32>
    %c0_33 = arith.constant 0 : index
    %c0_34 = arith.constant 0 : index
    %c0_35 = arith.constant 0 : index
    %c0_36 = arith.constant 0 : index
    %42 = vector.load %arg9[%c0_33, %c0_34, %c0_35, %c0_36] : memref<1x4x32x8xf32, #tpu.memory_space<vmem>>, vector<1x1x32x8xf32>
    %43 = vector.shape_cast %42 : vector<1x1x32x8xf32> to vector<32x8xf32>
    %cst_37 = arith.constant dense<0.000000e+00> : vector<17x8xf32>
    %44 = tpu.matmul %41, %43, %cst_37 {dimension_numbers = #tpu.dot_dimension_numbers<[1], [0], [0], [1], [0, 0, 1, 1], [], []>} : vector<17x32xf32>, vector<32x8xf32>, vector<17x8xf32> -> vector<17x8xf32>
    %c0_38 = arith.constant 0 : index
    %c0_39 = arith.constant 0 : index
    %c0_40 = arith.constant 0 : index
    %c0_41 = arith.constant 0 : index
    %45 = vector.load %arg10[%c0_38, %c0_39, %c0_40, %c0_41] : memref<1x4x1x8xf32, #tpu.memory_space<vmem>>, vector<1x1x1x8xf32>
    %46 = vector.shape_cast %45 : vector<1x1x1x8xf32> to vector<1x8xf32>
    %47 = vector.broadcast %46 : vector<1x8xf32> to vector<17x8xf32>
    %48 = arith.addf %44, %47 : vector<17x8xf32>
    %c0_42 = arith.constant 0 : index
    %c0_43 = arith.constant 0 : index
    %c0_44 = arith.constant 0 : index
    %c0_45 = arith.constant 0 : index
    %49 = vector.load %arg11[%c0_42, %c0_43, %c0_44, %c0_45] : memref<1x4x32x8xf32, #tpu.memory_space<vmem>>, vector<1x1x32x8xf32>
    %50 = vector.shape_cast %49 : vector<1x1x32x8xf32> to vector<32x8xf32>
    %cst_46 = arith.constant dense<0.000000e+00> : vector<17x8xf32>
    %51 = tpu.matmul %41, %50, %cst_46 {dimension_numbers = #tpu.dot_dimension_numbers<[1], [0], [0], [1], [0, 0, 1, 1], [], []>} : vector<17x32xf32>, vector<32x8xf32>, vector<17x8xf32> -> vector<17x8xf32>
    %c0_47 = arith.constant 0 : index
    %c0_48 = arith.constant 0 : index
    %c0_49 = arith.constant 0 : index
    %c0_50 = arith.constant 0 : index
    %52 = vector.load %arg12[%c0_47, %c0_48, %c0_49, %c0_50] : memref<1x4x1x8xf32, #tpu.memory_space<vmem>>, vector<1x1x1x8xf32>
    %53 = vector.shape_cast %52 : vector<1x1x1x8xf32> to vector<1x8xf32>
    %54 = vector.broadcast %53 : vector<1x8xf32> to vector<17x8xf32>
    %55 = arith.addf %51, %54 : vector<17x8xf32>
    %c0_51 = arith.constant 0 : index
    %c0_52 = arith.constant 0 : index
    %c0_53 = arith.constant 0 : index
    %c0_54 = arith.constant 0 : index
    %56 = vector.load %arg13[%c0_51, %c0_52, %c0_53, %c0_54] : memref<1x4x32x8xf32, #tpu.memory_space<vmem>>, vector<1x1x32x8xf32>
    %57 = vector.shape_cast %56 : vector<1x1x32x8xf32> to vector<32x8xf32>
    %cst_55 = arith.constant dense<0.000000e+00> : vector<17x8xf32>
    %58 = tpu.matmul %41, %57, %cst_55 {dimension_numbers = #tpu.dot_dimension_numbers<[1], [0], [0], [1], [0, 0, 1, 1], [], []>} : vector<17x32xf32>, vector<32x8xf32>, vector<17x8xf32> -> vector<17x8xf32>
    %c0_56 = arith.constant 0 : index
    %c0_57 = arith.constant 0 : index
    %c0_58 = arith.constant 0 : index
    %c0_59 = arith.constant 0 : index
    %59 = vector.load %arg14[%c0_56, %c0_57, %c0_58, %c0_59] : memref<1x4x1x8xf32, #tpu.memory_space<vmem>>, vector<1x1x1x8xf32>
    %60 = vector.shape_cast %59 : vector<1x1x1x8xf32> to vector<1x8xf32>
    %61 = vector.broadcast %60 : vector<1x8xf32> to vector<17x8xf32>
    %62 = arith.addf %58, %61 : vector<17x8xf32>
    %cst_60 = arith.constant dense<0.000000e+00> : vector<17x17xf32>
    %63 = tpu.matmul %48, %55, %cst_60 {dimension_numbers = #tpu.dot_dimension_numbers<[1], [1], [0], [0], [0, 0, 1, 0], [], []>} : vector<17x8xf32>, vector<17x8xf32>, vector<17x17xf32> -> vector<17x17xf32>
    %cst_61 = arith.constant dense<0xFF800000> : vector<17xf32>
    %64 = vector.multi_reduction <maximumf>, %63, %cst_61 [1] : vector<17x17xf32> to vector<17xf32>
    %65 = vector.shape_cast %64 : vector<17xf32> to vector<17x1xf32>
    %66 = vector.broadcast %65 : vector<17x1xf32> to vector<17x17xf32>
    %67 = arith.subf %63, %66 : vector<17x17xf32>
    %68 = math.exp %67 : vector<17x17xf32>
    %cst_62 = arith.constant dense<0.000000e+00> : vector<17xf32>
    %69 = vector.multi_reduction <add>, %68, %cst_62 [1] : vector<17x17xf32> to vector<17xf32>
    %70 = vector.shape_cast %69 : vector<17xf32> to vector<17x1xf32>
    %71 = vector.broadcast %70 : vector<17x1xf32> to vector<17x17xf32>
    %72 = arith.divf %68, %71 : vector<17x17xf32>
    %cst_63 = arith.constant dense<0.000000e+00> : vector<17x8xf32>
    %73 = tpu.matmul %72, %62, %cst_63 {dimension_numbers = #tpu.dot_dimension_numbers<[1], [0], [0], [1], [0, 0, 1, 1], [], []>} : vector<17x17xf32>, vector<17x8xf32>, vector<17x8xf32> -> vector<17x8xf32>
    %c0_64 = arith.constant 0 : index
    %c0_65 = arith.constant 0 : index
    %c0_66 = arith.constant 0 : index
    %c0_67 = arith.constant 0 : index
    %74 = vector.load %arg15[%c0_64, %c0_65, %c0_66, %c0_67] : memref<1x4x8x32xf32, #tpu.memory_space<vmem>>, vector<1x1x8x32xf32>
    %75 = vector.shape_cast %74 : vector<1x1x8x32xf32> to vector<8x32xf32>
    %cst_68 = arith.constant dense<0.000000e+00> : vector<17x32xf32>
    %76 = tpu.matmul %73, %75, %cst_68 {dimension_numbers = #tpu.dot_dimension_numbers<[1], [0], [0], [1], [0, 0, 1, 1], [], []>} : vector<17x8xf32>, vector<8x32xf32>, vector<17x32xf32> -> vector<17x32xf32>
    %c0_69 = arith.constant 0 : index
    %c1 = arith.constant 1 : index
    %c0_70 = arith.constant 0 : index
    %c0_71 = arith.constant 0 : index
    %77 = vector.load %arg9[%c0_69, %c1, %c0_70, %c0_71] : memref<1x4x32x8xf32, #tpu.memory_space<vmem>>, vector<1x1x32x8xf32>
    %78 = vector.shape_cast %77 : vector<1x1x32x8xf32> to vector<32x8xf32>
    %cst_72 = arith.constant dense<0.000000e+00> : vector<17x8xf32>
    %79 = tpu.matmul %41, %78, %cst_72 {dimension_numbers = #tpu.dot_dimension_numbers<[1], [0], [0], [1], [0, 0, 1, 1], [], []>} : vector<17x32xf32>, vector<32x8xf32>, vector<17x8xf32> -> vector<17x8xf32>
    %c0_73 = arith.constant 0 : index
    %c1_74 = arith.constant 1 : index
    %c0_75 = arith.constant 0 : index
    %c0_76 = arith.constant 0 : index
    %80 = vector.load %arg10[%c0_73, %c1_74, %c0_75, %c0_76] : memref<1x4x1x8xf32, #tpu.memory_space<vmem>>, vector<1x1x1x8xf32>
    %81 = vector.shape_cast %80 : vector<1x1x1x8xf32> to vector<1x8xf32>
    %82 = vector.broadcast %81 : vector<1x8xf32> to vector<17x8xf32>
    %83 = arith.addf %79, %82 : vector<17x8xf32>
    %c0_77 = arith.constant 0 : index
    %c1_78 = arith.constant 1 : index
    %c0_79 = arith.constant 0 : index
    %c0_80 = arith.constant 0 : index
    %84 = vector.load %arg11[%c0_77, %c1_78, %c0_79, %c0_80] : memref<1x4x32x8xf32, #tpu.memory_space<vmem>>, vector<1x1x32x8xf32>
    %85 = vector.shape_cast %84 : vector<1x1x32x8xf32> to vector<32x8xf32>
    %cst_81 = arith.constant dense<0.000000e+00> : vector<17x8xf32>
    %86 = tpu.matmul %41, %85, %cst_81 {dimension_numbers = #tpu.dot_dimension_numbers<[1], [0], [0], [1], [0, 0, 1, 1], [], []>} : vector<17x32xf32>, vector<32x8xf32>, vector<17x8xf32> -> vector<17x8xf32>
    %c0_82 = arith.constant 0 : index
    %c1_83 = arith.constant 1 : index
    %c0_84 = arith.constant 0 : index
    %c0_85 = arith.constant 0 : index
    %87 = vector.load %arg12[%c0_82, %c1_83, %c0_84, %c0_85] : memref<1x4x1x8xf32, #tpu.memory_space<vmem>>, vector<1x1x1x8xf32>
    %88 = vector.shape_cast %87 : vector<1x1x1x8xf32> to vector<1x8xf32>
    %89 = vector.broadcast %88 : vector<1x8xf32> to vector<17x8xf32>
    %90 = arith.addf %86, %89 : vector<17x8xf32>
    %c0_86 = arith.constant 0 : index
    %c1_87 = arith.constant 1 : index
    %c0_88 = arith.constant 0 : index
    %c0_89 = arith.constant 0 : index
    %91 = vector.load %arg13[%c0_86, %c1_87, %c0_88, %c0_89] : memref<1x4x32x8xf32, #tpu.memory_space<vmem>>, vector<1x1x32x8xf32>
    %92 = vector.shape_cast %91 : vector<1x1x32x8xf32> to vector<32x8xf32>
    %cst_90 = arith.constant dense<0.000000e+00> : vector<17x8xf32>
    %93 = tpu.matmul %41, %92, %cst_90 {dimension_numbers = #tpu.dot_dimension_numbers<[1], [0], [0], [1], [0, 0, 1, 1], [], []>} : vector<17x32xf32>, vector<32x8xf32>, vector<17x8xf32> -> vector<17x8xf32>
    %c0_91 = arith.constant 0 : index
    %c1_92 = arith.constant 1 : index
    %c0_93 = arith.constant 0 : index
    %c0_94 = arith.constant 0 : index
    %94 = vector.load %arg14[%c0_91, %c1_92, %c0_93, %c0_94] : memref<1x4x1x8xf32, #tpu.memory_space<vmem>>, vector<1x1x1x8xf32>
    %95 = vector.shape_cast %94 : vector<1x1x1x8xf32> to vector<1x8xf32>
    %96 = vector.broadcast %95 : vector<1x8xf32> to vector<17x8xf32>
    %97 = arith.addf %93, %96 : vector<17x8xf32>
    %cst_95 = arith.constant dense<0.000000e+00> : vector<17x17xf32>
    %98 = tpu.matmul %83, %90, %cst_95 {dimension_numbers = #tpu.dot_dimension_numbers<[1], [1], [0], [0], [0, 0, 1, 0], [], []>} : vector<17x8xf32>, vector<17x8xf32>, vector<17x17xf32> -> vector<17x17xf32>
    %cst_96 = arith.constant dense<0xFF800000> : vector<17xf32>
    %99 = vector.multi_reduction <maximumf>, %98, %cst_96 [1] : vector<17x17xf32> to vector<17xf32>
    %100 = vector.shape_cast %99 : vector<17xf32> to vector<17x1xf32>
    %101 = vector.broadcast %100 : vector<17x1xf32> to vector<17x17xf32>
    %102 = arith.subf %98, %101 : vector<17x17xf32>
    %103 = math.exp %102 : vector<17x17xf32>
    %cst_97 = arith.constant dense<0.000000e+00> : vector<17xf32>
    %104 = vector.multi_reduction <add>, %103, %cst_97 [1] : vector<17x17xf32> to vector<17xf32>
    %105 = vector.shape_cast %104 : vector<17xf32> to vector<17x1xf32>
    %106 = vector.broadcast %105 : vector<17x1xf32> to vector<17x17xf32>
    %107 = arith.divf %103, %106 : vector<17x17xf32>
    %cst_98 = arith.constant dense<0.000000e+00> : vector<17x8xf32>
    %108 = tpu.matmul %107, %97, %cst_98 {dimension_numbers = #tpu.dot_dimension_numbers<[1], [0], [0], [1], [0, 0, 1, 1], [], []>} : vector<17x17xf32>, vector<17x8xf32>, vector<17x8xf32> -> vector<17x8xf32>
    %c0_99 = arith.constant 0 : index
    %c1_100 = arith.constant 1 : index
    %c0_101 = arith.constant 0 : index
    %c0_102 = arith.constant 0 : index
    %109 = vector.load %arg15[%c0_99, %c1_100, %c0_101, %c0_102] : memref<1x4x8x32xf32, #tpu.memory_space<vmem>>, vector<1x1x8x32xf32>
    %110 = vector.shape_cast %109 : vector<1x1x8x32xf32> to vector<8x32xf32>
    %cst_103 = arith.constant dense<0.000000e+00> : vector<17x32xf32>
    %111 = tpu.matmul %108, %110, %cst_103 {dimension_numbers = #tpu.dot_dimension_numbers<[1], [0], [0], [1], [0, 0, 1, 1], [], []>} : vector<17x8xf32>, vector<8x32xf32>, vector<17x32xf32> -> vector<17x32xf32>
    %112 = arith.addf %76, %111 : vector<17x32xf32>
    %c0_104 = arith.constant 0 : index
    %c2 = arith.constant 2 : index
    %c0_105 = arith.constant 0 : index
    %c0_106 = arith.constant 0 : index
    %113 = vector.load %arg9[%c0_104, %c2, %c0_105, %c0_106] : memref<1x4x32x8xf32, #tpu.memory_space<vmem>>, vector<1x1x32x8xf32>
    %114 = vector.shape_cast %113 : vector<1x1x32x8xf32> to vector<32x8xf32>
    %cst_107 = arith.constant dense<0.000000e+00> : vector<17x8xf32>
    %115 = tpu.matmul %41, %114, %cst_107 {dimension_numbers = #tpu.dot_dimension_numbers<[1], [0], [0], [1], [0, 0, 1, 1], [], []>} : vector<17x32xf32>, vector<32x8xf32>, vector<17x8xf32> -> vector<17x8xf32>
    %c0_108 = arith.constant 0 : index
    %c2_109 = arith.constant 2 : index
    %c0_110 = arith.constant 0 : index
    %c0_111 = arith.constant 0 : index
    %116 = vector.load %arg10[%c0_108, %c2_109, %c0_110, %c0_111] : memref<1x4x1x8xf32, #tpu.memory_space<vmem>>, vector<1x1x1x8xf32>
    %117 = vector.shape_cast %116 : vector<1x1x1x8xf32> to vector<1x8xf32>
    %118 = vector.broadcast %117 : vector<1x8xf32> to vector<17x8xf32>
    %119 = arith.addf %115, %118 : vector<17x8xf32>
    %c0_112 = arith.constant 0 : index
    %c2_113 = arith.constant 2 : index
    %c0_114 = arith.constant 0 : index
    %c0_115 = arith.constant 0 : index
    %120 = vector.load %arg11[%c0_112, %c2_113, %c0_114, %c0_115] : memref<1x4x32x8xf32, #tpu.memory_space<vmem>>, vector<1x1x32x8xf32>
    %121 = vector.shape_cast %120 : vector<1x1x32x8xf32> to vector<32x8xf32>
    %cst_116 = arith.constant dense<0.000000e+00> : vector<17x8xf32>
    %122 = tpu.matmul %41, %121, %cst_116 {dimension_numbers = #tpu.dot_dimension_numbers<[1], [0], [0], [1], [0, 0, 1, 1], [], []>} : vector<17x32xf32>, vector<32x8xf32>, vector<17x8xf32> -> vector<17x8xf32>
    %c0_117 = arith.constant 0 : index
    %c2_118 = arith.constant 2 : index
    %c0_119 = arith.constant 0 : index
    %c0_120 = arith.constant 0 : index
    %123 = vector.load %arg12[%c0_117, %c2_118, %c0_119, %c0_120] : memref<1x4x1x8xf32, #tpu.memory_space<vmem>>, vector<1x1x1x8xf32>
    %124 = vector.shape_cast %123 : vector<1x1x1x8xf32> to vector<1x8xf32>
    %125 = vector.broadcast %124 : vector<1x8xf32> to vector<17x8xf32>
    %126 = arith.addf %122, %125 : vector<17x8xf32>
    %c0_121 = arith.constant 0 : index
    %c2_122 = arith.constant 2 : index
    %c0_123 = arith.constant 0 : index
    %c0_124 = arith.constant 0 : index
    %127 = vector.load %arg13[%c0_121, %c2_122, %c0_123, %c0_124] : memref<1x4x32x8xf32, #tpu.memory_space<vmem>>, vector<1x1x32x8xf32>
    %128 = vector.shape_cast %127 : vector<1x1x32x8xf32> to vector<32x8xf32>
    %cst_125 = arith.constant dense<0.000000e+00> : vector<17x8xf32>
    %129 = tpu.matmul %41, %128, %cst_125 {dimension_numbers = #tpu.dot_dimension_numbers<[1], [0], [0], [1], [0, 0, 1, 1], [], []>} : vector<17x32xf32>, vector<32x8xf32>, vector<17x8xf32> -> vector<17x8xf32>
    %c0_126 = arith.constant 0 : index
    %c2_127 = arith.constant 2 : index
    %c0_128 = arith.constant 0 : index
    %c0_129 = arith.constant 0 : index
    %130 = vector.load %arg14[%c0_126, %c2_127, %c0_128, %c0_129] : memref<1x4x1x8xf32, #tpu.memory_space<vmem>>, vector<1x1x1x8xf32>
    %131 = vector.shape_cast %130 : vector<1x1x1x8xf32> to vector<1x8xf32>
    %132 = vector.broadcast %131 : vector<1x8xf32> to vector<17x8xf32>
    %133 = arith.addf %129, %132 : vector<17x8xf32>
    %cst_130 = arith.constant dense<0.000000e+00> : vector<17x17xf32>
    %134 = tpu.matmul %119, %126, %cst_130 {dimension_numbers = #tpu.dot_dimension_numbers<[1], [1], [0], [0], [0, 0, 1, 0], [], []>} : vector<17x8xf32>, vector<17x8xf32>, vector<17x17xf32> -> vector<17x17xf32>
    %cst_131 = arith.constant dense<0xFF800000> : vector<17xf32>
    %135 = vector.multi_reduction <maximumf>, %134, %cst_131 [1] : vector<17x17xf32> to vector<17xf32>
    %136 = vector.shape_cast %135 : vector<17xf32> to vector<17x1xf32>
    %137 = vector.broadcast %136 : vector<17x1xf32> to vector<17x17xf32>
    %138 = arith.subf %134, %137 : vector<17x17xf32>
    %139 = math.exp %138 : vector<17x17xf32>
    %cst_132 = arith.constant dense<0.000000e+00> : vector<17xf32>
    %140 = vector.multi_reduction <add>, %139, %cst_132 [1] : vector<17x17xf32> to vector<17xf32>
    %141 = vector.shape_cast %140 : vector<17xf32> to vector<17x1xf32>
    %142 = vector.broadcast %141 : vector<17x1xf32> to vector<17x17xf32>
    %143 = arith.divf %139, %142 : vector<17x17xf32>
    %cst_133 = arith.constant dense<0.000000e+00> : vector<17x8xf32>
    %144 = tpu.matmul %143, %133, %cst_133 {dimension_numbers = #tpu.dot_dimension_numbers<[1], [0], [0], [1], [0, 0, 1, 1], [], []>} : vector<17x17xf32>, vector<17x8xf32>, vector<17x8xf32> -> vector<17x8xf32>
    %c0_134 = arith.constant 0 : index
    %c2_135 = arith.constant 2 : index
    %c0_136 = arith.constant 0 : index
    %c0_137 = arith.constant 0 : index
    %145 = vector.load %arg15[%c0_134, %c2_135, %c0_136, %c0_137] : memref<1x4x8x32xf32, #tpu.memory_space<vmem>>, vector<1x1x8x32xf32>
    %146 = vector.shape_cast %145 : vector<1x1x8x32xf32> to vector<8x32xf32>
    %cst_138 = arith.constant dense<0.000000e+00> : vector<17x32xf32>
    %147 = tpu.matmul %144, %146, %cst_138 {dimension_numbers = #tpu.dot_dimension_numbers<[1], [0], [0], [1], [0, 0, 1, 1], [], []>} : vector<17x8xf32>, vector<8x32xf32>, vector<17x32xf32> -> vector<17x32xf32>
    %148 = arith.addf %112, %147 : vector<17x32xf32>
    %c0_139 = arith.constant 0 : index
    %c3 = arith.constant 3 : index
    %c0_140 = arith.constant 0 : index
    %c0_141 = arith.constant 0 : index
    %149 = vector.load %arg9[%c0_139, %c3, %c0_140, %c0_141] : memref<1x4x32x8xf32, #tpu.memory_space<vmem>>, vector<1x1x32x8xf32>
    %150 = vector.shape_cast %149 : vector<1x1x32x8xf32> to vector<32x8xf32>
    %cst_142 = arith.constant dense<0.000000e+00> : vector<17x8xf32>
    %151 = tpu.matmul %41, %150, %cst_142 {dimension_numbers = #tpu.dot_dimension_numbers<[1], [0], [0], [1], [0, 0, 1, 1], [], []>} : vector<17x32xf32>, vector<32x8xf32>, vector<17x8xf32> -> vector<17x8xf32>
    %c0_143 = arith.constant 0 : index
    %c3_144 = arith.constant 3 : index
    %c0_145 = arith.constant 0 : index
    %c0_146 = arith.constant 0 : index
    %152 = vector.load %arg10[%c0_143, %c3_144, %c0_145, %c0_146] : memref<1x4x1x8xf32, #tpu.memory_space<vmem>>, vector<1x1x1x8xf32>
    %153 = vector.shape_cast %152 : vector<1x1x1x8xf32> to vector<1x8xf32>
    %154 = vector.broadcast %153 : vector<1x8xf32> to vector<17x8xf32>
    %155 = arith.addf %151, %154 : vector<17x8xf32>
    %c0_147 = arith.constant 0 : index
    %c3_148 = arith.constant 3 : index
    %c0_149 = arith.constant 0 : index
    %c0_150 = arith.constant 0 : index
    %156 = vector.load %arg11[%c0_147, %c3_148, %c0_149, %c0_150] : memref<1x4x32x8xf32, #tpu.memory_space<vmem>>, vector<1x1x32x8xf32>
    %157 = vector.shape_cast %156 : vector<1x1x32x8xf32> to vector<32x8xf32>
    %cst_151 = arith.constant dense<0.000000e+00> : vector<17x8xf32>
    %158 = tpu.matmul %41, %157, %cst_151 {dimension_numbers = #tpu.dot_dimension_numbers<[1], [0], [0], [1], [0, 0, 1, 1], [], []>} : vector<17x32xf32>, vector<32x8xf32>, vector<17x8xf32> -> vector<17x8xf32>
    %c0_152 = arith.constant 0 : index
    %c3_153 = arith.constant 3 : index
    %c0_154 = arith.constant 0 : index
    %c0_155 = arith.constant 0 : index
    %159 = vector.load %arg12[%c0_152, %c3_153, %c0_154, %c0_155] : memref<1x4x1x8xf32, #tpu.memory_space<vmem>>, vector<1x1x1x8xf32>
    %160 = vector.shape_cast %159 : vector<1x1x1x8xf32> to vector<1x8xf32>
    %161 = vector.broadcast %160 : vector<1x8xf32> to vector<17x8xf32>
    %162 = arith.addf %158, %161 : vector<17x8xf32>
    %c0_156 = arith.constant 0 : index
    %c3_157 = arith.constant 3 : index
    %c0_158 = arith.constant 0 : index
    %c0_159 = arith.constant 0 : index
    %163 = vector.load %arg13[%c0_156, %c3_157, %c0_158, %c0_159] : memref<1x4x32x8xf32, #tpu.memory_space<vmem>>, vector<1x1x32x8xf32>
    %164 = vector.shape_cast %163 : vector<1x1x32x8xf32> to vector<32x8xf32>
    %cst_160 = arith.constant dense<0.000000e+00> : vector<17x8xf32>
    %165 = tpu.matmul %41, %164, %cst_160 {dimension_numbers = #tpu.dot_dimension_numbers<[1], [0], [0], [1], [0, 0, 1, 1], [], []>} : vector<17x32xf32>, vector<32x8xf32>, vector<17x8xf32> -> vector<17x8xf32>
    %c0_161 = arith.constant 0 : index
    %c3_162 = arith.constant 3 : index
    %c0_163 = arith.constant 0 : index
    %c0_164 = arith.constant 0 : index
    %166 = vector.load %arg14[%c0_161, %c3_162, %c0_163, %c0_164] : memref<1x4x1x8xf32, #tpu.memory_space<vmem>>, vector<1x1x1x8xf32>
    %167 = vector.shape_cast %166 : vector<1x1x1x8xf32> to vector<1x8xf32>
    %168 = vector.broadcast %167 : vector<1x8xf32> to vector<17x8xf32>
    %169 = arith.addf %165, %168 : vector<17x8xf32>
    %cst_165 = arith.constant dense<0.000000e+00> : vector<17x17xf32>
    %170 = tpu.matmul %155, %162, %cst_165 {dimension_numbers = #tpu.dot_dimension_numbers<[1], [1], [0], [0], [0, 0, 1, 0], [], []>} : vector<17x8xf32>, vector<17x8xf32>, vector<17x17xf32> -> vector<17x17xf32>
    %cst_166 = arith.constant dense<0xFF800000> : vector<17xf32>
    %171 = vector.multi_reduction <maximumf>, %170, %cst_166 [1] : vector<17x17xf32> to vector<17xf32>
    %172 = vector.shape_cast %171 : vector<17xf32> to vector<17x1xf32>
    %173 = vector.broadcast %172 : vector<17x1xf32> to vector<17x17xf32>
    %174 = arith.subf %170, %173 : vector<17x17xf32>
    %175 = math.exp %174 : vector<17x17xf32>
    %cst_167 = arith.constant dense<0.000000e+00> : vector<17xf32>
    %176 = vector.multi_reduction <add>, %175, %cst_167 [1] : vector<17x17xf32> to vector<17xf32>
    %177 = vector.shape_cast %176 : vector<17xf32> to vector<17x1xf32>
    %178 = vector.broadcast %177 : vector<17x1xf32> to vector<17x17xf32>
    %179 = arith.divf %175, %178 : vector<17x17xf32>
    %cst_168 = arith.constant dense<0.000000e+00> : vector<17x8xf32>
    %180 = tpu.matmul %179, %169, %cst_168 {dimension_numbers = #tpu.dot_dimension_numbers<[1], [0], [0], [1], [0, 0, 1, 1], [], []>} : vector<17x17xf32>, vector<17x8xf32>, vector<17x8xf32> -> vector<17x8xf32>
    %c0_169 = arith.constant 0 : index
    %c3_170 = arith.constant 3 : index
    %c0_171 = arith.constant 0 : index
    %c0_172 = arith.constant 0 : index
    %181 = vector.load %arg15[%c0_169, %c3_170, %c0_171, %c0_172] : memref<1x4x8x32xf32, #tpu.memory_space<vmem>>, vector<1x1x8x32xf32>
    %182 = vector.shape_cast %181 : vector<1x1x8x32xf32> to vector<8x32xf32>
    %cst_173 = arith.constant dense<0.000000e+00> : vector<17x32xf32>
    %183 = tpu.matmul %180, %182, %cst_173 {dimension_numbers = #tpu.dot_dimension_numbers<[1], [0], [0], [1], [0, 0, 1, 1], [], []>} : vector<17x8xf32>, vector<8x32xf32>, vector<17x32xf32> -> vector<17x32xf32>
    %184 = arith.addf %148, %183 : vector<17x32xf32>
    %185 = arith.addf %3, %184 : vector<17x32xf32>
    %186 = vector.broadcast %9 : vector<1x32xf32> to vector<17x32xf32>
    %187 = arith.addf %185, %186 : vector<17x32xf32>
    %cst_174 = arith.constant dense<0.000000e+00> : vector<17xf32>
    %188 = vector.multi_reduction <add>, %187, %cst_174 [1] : vector<17x32xf32> to vector<17xf32>
    %189 = vector.shape_cast %188 : vector<17xf32> to vector<17x1xf32>
    %cst_175 = arith.constant 3.200000e+01 : f32
    %190 = vector.broadcast %cst_175 : f32 to vector<17x1xf32>
    %191 = arith.divf %189, %190 : vector<17x1xf32>
    %192 = vector.broadcast %191 : vector<17x1xf32> to vector<17x32xf32>
    %193 = arith.subf %187, %192 : vector<17x32xf32>
    %194 = arith.mulf %193, %193 : vector<17x32xf32>
    %cst_176 = arith.constant dense<0.000000e+00> : vector<17xf32>
    %195 = vector.multi_reduction <add>, %194, %cst_176 [1] : vector<17x32xf32> to vector<17xf32>
    %196 = vector.shape_cast %195 : vector<17xf32> to vector<17x1xf32>
    %cst_177 = arith.constant 3.200000e+01 : f32
    %197 = vector.broadcast %cst_177 : f32 to vector<17x1xf32>
    %198 = arith.divf %196, %197 : vector<17x1xf32>
    %cst_178 = arith.constant 9.99999974E-6 : f32
    %199 = vector.broadcast %cst_178 : f32 to vector<17x1xf32>
    %200 = arith.addf %198, %199 : vector<17x1xf32>
    %201 = math.rsqrt %200 : vector<17x1xf32>
    %202 = vector.broadcast %201 : vector<17x1xf32> to vector<17x32xf32>
    %203 = arith.mulf %193, %202 : vector<17x32xf32>
    %204 = vector.broadcast %11 : vector<1x32xf32> to vector<17x32xf32>
    %205 = arith.mulf %203, %204 : vector<17x32xf32>
    %206 = vector.broadcast %13 : vector<1x32xf32> to vector<17x32xf32>
    %207 = arith.addf %205, %206 : vector<17x32xf32>
    %cst_179 = arith.constant dense<0.000000e+00> : vector<17x64xf32>
    %208 = tpu.matmul %207, %15, %cst_179 {dimension_numbers = #tpu.dot_dimension_numbers<[1], [0], [0], [1], [0, 0, 1, 1], [], []>} : vector<17x32xf32>, vector<32x64xf32>, vector<17x64xf32> -> vector<17x64xf32>
    %209 = vector.broadcast %17 : vector<1x64xf32> to vector<17x64xf32>
    %210 = arith.addf %208, %209 : vector<17x64xf32>
    %cst_180 = arith.constant 1.702000e+00 : f32
    %211 = vector.broadcast %cst_180 : f32 to vector<17x64xf32>
    %212 = arith.mulf %211, %210 : vector<17x64xf32>
    %213 = arith.negf %212 : vector<17x64xf32>
    %214 = math.exp %213 : vector<17x64xf32>
    %cst_181 = arith.constant 1.000000e+00 : f32
    %215 = vector.broadcast %cst_181 : f32 to vector<17x64xf32>
    %216 = arith.addf %215, %214 : vector<17x64xf32>
    %217 = arith.divf %215, %216 : vector<17x64xf32>
    %218 = arith.mulf %210, %217 : vector<17x64xf32>
    %cst_182 = arith.constant dense<0.000000e+00> : vector<17x32xf32>
    %219 = tpu.matmul %218, %19, %cst_182 {dimension_numbers = #tpu.dot_dimension_numbers<[1], [0], [0], [1], [0, 0, 1, 1], [], []>} : vector<17x64xf32>, vector<64x32xf32>, vector<17x32xf32> -> vector<17x32xf32>
    %220 = vector.broadcast %21 : vector<1x32xf32> to vector<17x32xf32>
    %221 = arith.addf %219, %220 : vector<17x32xf32>
    %222 = arith.addf %187, %221 : vector<17x32xf32>
    %c0_183 = arith.constant 0 : index
    %c0_184 = arith.constant 0 : index
    %223 = vector.load %arg39[%c0_183, %c0_184] : memref<17x32xf32, #tpu.memory_space<vmem>>, vector<17x32xf32>
    tpu.vector_store %arg39[%c0_183, %c0_184], %222 {strides = array<i32>} : memref<17x32xf32, #tpu.memory_space<vmem>>, vector<17x32xf32>,
    %c1_i32 = arith.constant 1 : i32
    %224 = arith.cmpi eq, %arg1, %c1_i32 : i32
    %225 = arith.extui %224 : i1 to i32
    %c0_i32_185 = arith.constant 0 : i32
    %226 = arith.cmpi ne, %225, %c0_i32_185 : i32
    scf.if %226 {
      %c0_186 = arith.constant 0 : index
      %c0_187 = arith.constant 0 : index
      %227 = vector.load %arg23[%c0_186, %c0_187] : memref<1x32xf32, #tpu.memory_space<vmem>>, vector<1x32xf32>
      %c0_188 = arith.constant 0 : index
      %c0_189 = arith.constant 0 : index
      %228 = vector.load %arg24[%c0_188, %c0_189] : memref<1x32xf32, #tpu.memory_space<vmem>>, vector<1x32xf32>
      %cst_190 = arith.constant dense<0.000000e+00> : vector<17xf32>
      %229 = vector.multi_reduction <add>, %222, %cst_190 [1] : vector<17x32xf32> to vector<17xf32>
      %230 = vector.shape_cast %229 : vector<17xf32> to vector<17x1xf32>
      %cst_191 = arith.constant 3.200000e+01 : f32
      %231 = vector.broadcast %cst_191 : f32 to vector<17x1xf32>
      %232 = arith.divf %230, %231 : vector<17x1xf32>
      %233 = vector.broadcast %232 : vector<17x1xf32> to vector<17x32xf32>
      %234 = arith.subf %222, %233 : vector<17x32xf32>
      %235 = arith.mulf %234, %234 : vector<17x32xf32>
      %cst_192 = arith.constant dense<0.000000e+00> : vector<17xf32>
      %236 = vector.multi_reduction <add>, %235, %cst_192 [1] : vector<17x32xf32> to vector<17xf32>
      %237 = vector.shape_cast %236 : vector<17xf32> to vector<17x1xf32>
      %cst_193 = arith.constant 3.200000e+01 : f32
      %238 = vector.broadcast %cst_193 : f32 to vector<17x1xf32>
      %239 = arith.divf %237, %238 : vector<17x1xf32>
      %cst_194 = arith.constant 9.99999974E-6 : f32
      %240 = vector.broadcast %cst_194 : f32 to vector<17x1xf32>
      %241 = arith.addf %239, %240 : vector<17x1xf32>
      %242 = math.rsqrt %241 : vector<17x1xf32>
      %243 = vector.broadcast %242 : vector<17x1xf32> to vector<17x32xf32>
      %244 = arith.mulf %234, %243 : vector<17x32xf32>
      %245 = vector.broadcast %227 : vector<1x32xf32> to vector<17x32xf32>
      %246 = arith.mulf %244, %245 : vector<17x32xf32>
      %247 = vector.broadcast %228 : vector<1x32xf32> to vector<17x32xf32>
      %248 = arith.addf %246, %247 : vector<17x32xf32>
      %249 = vector.extract_strided_slice %248 {offsets = [1, 0], sizes = [16, 32], strides = [1, 1]} : vector<17x32xf32> to vector<16x32xf32>
      %250 = vector.extract_strided_slice %248 {offsets = [0, 0], sizes = [1, 32], strides = [1, 1]} : vector<17x32xf32> to vector<1x32xf32>
      %251 = vector.broadcast %250 : vector<1x32xf32> to vector<16x32xf32>
      %252 = arith.mulf %249, %251 : vector<16x32xf32>
      %c0_195 = arith.constant 0 : index
      %c0_196 = arith.constant 0 : index
      %253 = vector.load %arg25[%c0_195, %c0_196] : memref<1x32xf32, #tpu.memory_space<vmem>>, vector<1x32xf32>
      %c0_197 = arith.constant 0 : index
      %c0_198 = arith.constant 0 : index
      %254 = vector.load %arg26[%c0_197, %c0_198] : memref<1x32xf32, #tpu.memory_space<vmem>>, vector<1x32xf32>
      %cst_199 = arith.constant dense<0.000000e+00> : vector<16xf32>
      %255 = vector.multi_reduction <add>, %252, %cst_199 [1] : vector<16x32xf32> to vector<16xf32>
      %256 = vector.shape_cast %255 : vector<16xf32> to vector<16x1xf32>
      %cst_200 = arith.constant 3.200000e+01 : f32
      %257 = vector.broadcast %cst_200 : f32 to vector<16x1xf32>
      %258 = arith.divf %256, %257 : vector<16x1xf32>
      %259 = vector.broadcast %258 : vector<16x1xf32> to vector<16x32xf32>
      %260 = arith.subf %252, %259 : vector<16x32xf32>
      %261 = arith.mulf %260, %260 : vector<16x32xf32>
      %cst_201 = arith.constant dense<0.000000e+00> : vector<16xf32>
      %262 = vector.multi_reduction <add>, %261, %cst_201 [1] : vector<16x32xf32> to vector<16xf32>
      %263 = vector.shape_cast %262 : vector<16xf32> to vector<16x1xf32>
      %cst_202 = arith.constant 3.200000e+01 : f32
      %264 = vector.broadcast %cst_202 : f32 to vector<16x1xf32>
      %265 = arith.divf %263, %264 : vector<16x1xf32>
      %cst_203 = arith.constant 9.99999974E-6 : f32
      %266 = vector.broadcast %cst_203 : f32 to vector<16x1xf32>
      %267 = arith.addf %265, %266 : vector<16x1xf32>
      %268 = math.rsqrt %267 : vector<16x1xf32>
      %269 = vector.broadcast %268 : vector<16x1xf32> to vector<16x32xf32>
      %270 = arith.mulf %260, %269 : vector<16x32xf32>
      %271 = vector.broadcast %253 : vector<1x32xf32> to vector<16x32xf32>
      %272 = arith.mulf %270, %271 : vector<16x32xf32>
      %273 = vector.broadcast %254 : vector<1x32xf32> to vector<16x32xf32>
      %274 = arith.addf %272, %273 : vector<16x32xf32>
      %c0_204 = arith.constant 0 : index
      %c0_205 = arith.constant 0 : index
      %275 = vector.load %arg27[%c0_204, %c0_205] : memref<32x18xf32, #tpu.memory_space<vmem>>, vector<32x18xf32>
      %cst_206 = arith.constant dense<0.000000e+00> : vector<16x18xf32>
      %276 = tpu.matmul %274, %275, %cst_206 {dimension_numbers = #tpu.dot_dimension_numbers<[1], [0], [0], [1], [0, 0, 1, 1], [], []>} : vector<16x32xf32>, vector<32x18xf32>, vector<16x18xf32> -> vector<16x18xf32>
      %c0_207 = arith.constant 0 : index
      %c0_208 = arith.constant 0 : index
      %277 = vector.load %arg28[%c0_207, %c0_208] : memref<1x18xf32, #tpu.memory_space<vmem>>, vector<1x18xf32>
      %278 = vector.broadcast %277 : vector<1x18xf32> to vector<16x18xf32>
      %279 = arith.addf %276, %278 : vector<16x18xf32>
      %280 = vector.extract_strided_slice %279 {offsets = [0, 0], sizes = [16, 16], strides = [1, 1]} : vector<16x18xf32> to vector<16x16xf32>
      %281 = vector.extract_strided_slice %279 {offsets = [0, 16], sizes = [16, 1], strides = [1, 1]} : vector<16x18xf32> to vector<16x1xf32>
      %282 = vector.extract_strided_slice %279 {offsets = [0, 17], sizes = [16, 1], strides = [1, 1]} : vector<16x18xf32> to vector<16x1xf32>
      %283 = arith.mulf %280, %280 : vector<16x16xf32>
      %cst_209 = arith.constant dense<0.000000e+00> : vector<16xf32>
      %284 = vector.multi_reduction <add>, %283, %cst_209 [1] : vector<16x16xf32> to vector<16xf32>
      %285 = vector.shape_cast %284 : vector<16xf32> to vector<16x1xf32>
      %cst_210 = arith.constant 9.99999997E-7 : f32
      %286 = vector.broadcast %cst_210 : f32 to vector<16x1xf32>
      %287 = arith.addf %285, %286 : vector<16x1xf32>
      %288 = math.rsqrt %287 : vector<16x1xf32>
      %289 = vector.broadcast %288 : vector<16x1xf32> to vector<16x16xf32>
      %290 = arith.mulf %280, %289 : vector<16x16xf32>
      %c0_211 = arith.constant 0 : index
      %c0_212 = arith.constant 0 : index
      %c0_213 = arith.constant 0 : index
      %291 = vector.load %arg36[%c0_211, %c0_212, %c0_213] : memref<1x2x16xf32, #tpu.memory_space<vmem>>, vector<1x2x16xf32>
      %292 = vector.shape_cast %291 : vector<1x2x16xf32> to vector<2x16xf32>
      %293 = arith.mulf %292, %292 : vector<2x16xf32>
      %cst_214 = arith.constant dense<0.000000e+00> : vector<2xf32>
      %294 = vector.multi_reduction <add>, %293, %cst_214 [1] : vector<2x16xf32> to vector<2xf32>
      %295 = vector.shape_cast %294 : vector<2xf32> to vector<2x1xf32>
      %cst_215 = arith.constant 9.99999997E-7 : f32
      %296 = vector.broadcast %cst_215 : f32 to vector<2x1xf32>
      %297 = arith.addf %295, %296 : vector<2x1xf32>
      %298 = math.rsqrt %297 : vector<2x1xf32>
      %299 = vector.broadcast %298 : vector<2x1xf32> to vector<2x16xf32>
      %300 = arith.mulf %292, %299 : vector<2x16xf32>
      %cst_216 = arith.constant dense<0.000000e+00> : vector<16x2xf32>
      %301 = tpu.matmul %290, %300, %cst_216 {dimension_numbers = #tpu.dot_dimension_numbers<[1], [1], [0], [0], [0, 0, 1, 0], [], []>} : vector<16x16xf32>, vector<2x16xf32>, vector<16x2xf32> -> vector<16x2xf32>
      %cst_217 = arith.constant 0.000000e+00 : f32
      %302 = vector.broadcast %cst_217 : f32 to vector<16x1xf32>
      %303 = arith.cmpf ogt, %282, %302 : vector<16x1xf32>
      %cst_218 = arith.constant 0.000000e+00 : f32
      %304 = vector.broadcast %cst_218 : f32 to vector<16x1xf32>
      %305 = arith.minimumf %282, %304 : vector<16x1xf32>
      %306 = math.exp %305 : vector<16x1xf32>
      %cst_219 = arith.constant 1.000000e+00 : f32
      %307 = vector.broadcast %cst_219 : f32 to vector<16x1xf32>
      %308 = arith.subf %306, %307 : vector<16x1xf32>
      %309 = arith.select %303, %282, %308 : vector<16x1xi1>, vector<16x1xf32>
      %cst_220 = arith.constant 1.000000e+00 : f32
      %310 = vector.broadcast %cst_220 : f32 to vector<16x1xf32>
      %311 = arith.addf %309, %310 : vector<16x1xf32>
      %312 = vector.broadcast %281 : vector<16x1xf32> to vector<16x2xf32>
      %313 = arith.addf %301, %312 : vector<16x2xf32>
      %314 = vector.broadcast %311 : vector<16x1xf32> to vector<16x2xf32>
      %315 = arith.mulf %313, %314 : vector<16x2xf32>
      %c0_221 = arith.constant 0 : index
      %c0_222 = arith.constant 0 : index
      %c0_223 = arith.constant 0 : index
      %316 = vector.load %arg37[%c0_221, %c0_222, %c0_223] : memref<1x1x2xf32, #tpu.memory_space<vmem>>, vector<1x1x2xf32>
      %317 = vector.shape_cast %316 : vector<1x1x2xf32> to vector<1x2xf32>
      %cst_224 = arith.constant 0.000000e+00 : f32
      %318 = vector.broadcast %cst_224 : f32 to vector<1x2xf32>
      %319 = arith.cmpf ogt, %317, %318 : vector<1x2xf32>
      %cst_225 = arith.constant -3.40282347E+38 : f32
      %320 = vector.shape_cast %319 : vector<1x2xi1> to vector<1x2xi1>
      %321 = vector.broadcast %320 : vector<1x2xi1> to vector<16x2xi1>
      %322 = vector.broadcast %cst_225 : f32 to vector<16x2xf32>
      %323 = arith.select %321, %315, %322 : vector<16x2xi1>, vector<16x2xf32>
      %c0_226 = arith.constant 0 : index
      %c0_227 = arith.constant 0 : index
      %324 = vector.load %arg29[%c0_226, %c0_227] : memref<32x32xf32, #tpu.memory_space<vmem>>, vector<32x32xf32>
      %cst_228 = arith.constant dense<0.000000e+00> : vector<16x32xf32>
      %325 = tpu.matmul %274, %324, %cst_228 {dimension_numbers = #tpu.dot_dimension_numbers<[1], [0], [0], [1], [0, 0, 1, 1], [], []>} : vector<16x32xf32>, vector<32x32xf32>, vector<16x32xf32> -> vector<16x32xf32>
      %c0_229 = arith.constant 0 : index
      %c0_230 = arith.constant 0 : index
      %326 = vector.load %arg30[%c0_229, %c0_230] : memref<1x32xf32, #tpu.memory_space<vmem>>, vector<1x32xf32>
      %327 = vector.broadcast %326 : vector<1x32xf32> to vector<16x32xf32>
      %328 = arith.addf %325, %327 : vector<16x32xf32>
      %cst_231 = arith.constant 5.000000e-01 : f32
      %329 = vector.broadcast %cst_231 : f32 to vector<16x32xf32>
      %330 = arith.mulf %329, %328 : vector<16x32xf32>
      %cst_232 = arith.constant 0.707106769 : f32
      %331 = vector.broadcast %cst_232 : f32 to vector<16x32xf32>
      %332 = arith.mulf %328, %331 : vector<16x32xf32>
      %333 = math.absf %332 : vector<16x32xf32>
      %cst_233 = arith.constant 0.327591091 : f32
      %334 = vector.broadcast %cst_233 : f32 to vector<16x32xf32>
      %335 = arith.mulf %334, %333 : vector<16x32xf32>
      %cst_234 = arith.constant 1.000000e+00 : f32
      %336 = vector.broadcast %cst_234 : f32 to vector<16x32xf32>
      %337 = arith.addf %336, %335 : vector<16x32xf32>
      %cst_235 = arith.constant 1.000000e+00 : f32
      %338 = vector.broadcast %cst_235 : f32 to vector<16x32xf32>
      %339 = arith.divf %338, %337 : vector<16x32xf32>
      %cst_236 = arith.constant 1.06140542 : f32
      %340 = vector.broadcast %cst_236 : f32 to vector<16x32xf32>
      %341 = arith.mulf %340, %339 : vector<16x32xf32>
      %cst_237 = arith.constant -1.45315206 : f32
      %342 = vector.broadcast %cst_237 : f32 to vector<16x32xf32>
      %343 = arith.addf %341, %342 : vector<16x32xf32>
      %344 = arith.mulf %343, %339 : vector<16x32xf32>
      %cst_238 = arith.constant 1.42141378 : f32
      %345 = vector.broadcast %cst_238 : f32 to vector<16x32xf32>
      %346 = arith.addf %344, %345 : vector<16x32xf32>
      %347 = arith.mulf %346, %339 : vector<16x32xf32>
      %cst_239 = arith.constant -0.284496725 : f32
      %348 = vector.broadcast %cst_239 : f32 to vector<16x32xf32>
      %349 = arith.addf %347, %348 : vector<16x32xf32>
      %350 = arith.mulf %349, %339 : vector<16x32xf32>
      %cst_240 = arith.constant 0.254829586 : f32
      %351 = vector.broadcast %cst_240 : f32 to vector<16x32xf32>
      %352 = arith.addf %350, %351 : vector<16x32xf32>
      %353 = arith.mulf %352, %339 : vector<16x32xf32>
      %cst_241 = arith.constant 0.000000e+00 : f32
      %354 = vector.broadcast %cst_241 : f32 to vector<16x32xf32>
      %355 = arith.subf %354, %333 : vector<16x32xf32>
      %356 = arith.mulf %355, %333 : vector<16x32xf32>
      %357 = math.exp %356 : vector<16x32xf32>
      %358 = arith.mulf %353, %357 : vector<16x32xf32>
      %cst_242 = arith.constant 1.000000e+00 : f32
      %359 = vector.broadcast %cst_242 : f32 to vector<16x32xf32>
      %360 = arith.subf %359, %358 : vector<16x32xf32>
      %cst_243 = arith.constant 0.000000e+00 : f32
      %361 = vector.broadcast %cst_243 : f32 to vector<16x32xf32>
      %362 = arith.cmpf oge, %332, %361 : vector<16x32xf32>
      %cst_244 = arith.constant 0.000000e+00 : f32
      %363 = vector.broadcast %cst_244 : f32 to vector<16x32xf32>
      %364 = arith.subf %363, %360 : vector<16x32xf32>
      %365 = arith.select %362, %360, %364 : vector<16x32xi1>, vector<16x32xf32>
      %cst_245 = arith.constant 1.000000e+00 : f32
      %366 = vector.broadcast %cst_245 : f32 to vector<16x32xf32>
      %367 = arith.addf %366, %365 : vector<16x32xf32>
      %368 = arith.mulf %330, %367 : vector<16x32xf32>
      %c0_246 = arith.constant 0 : index
      %c0_247 = arith.constant 0 : index
      %369 = vector.load %arg31[%c0_246, %c0_247] : memref<32x32xf32, #tpu.memory_space<vmem>>, vector<32x32xf32>
      %cst_248 = arith.constant dense<0.000000e+00> : vector<16x32xf32>
      %370 = tpu.matmul %368, %369, %cst_248 {dimension_numbers = #tpu.dot_dimension_numbers<[1], [0], [0], [1], [0, 0, 1, 1], [], []>} : vector<16x32xf32>, vector<32x32xf32>, vector<16x32xf32> -> vector<16x32xf32>
      %c0_249 = arith.constant 0 : index
      %c0_250 = arith.constant 0 : index
      %371 = vector.load %arg32[%c0_249, %c0_250] : memref<1x32xf32, #tpu.memory_space<vmem>>, vector<1x32xf32>
      %372 = vector.broadcast %371 : vector<1x32xf32> to vector<16x32xf32>
      %373 = arith.addf %370, %372 : vector<16x32xf32>
      %cst_251 = arith.constant 5.000000e-01 : f32
      %374 = vector.broadcast %cst_251 : f32 to vector<16x32xf32>
      %375 = arith.mulf %374, %373 : vector<16x32xf32>
      %cst_252 = arith.constant 0.707106769 : f32
      %376 = vector.broadcast %cst_252 : f32 to vector<16x32xf32>
      %377 = arith.mulf %373, %376 : vector<16x32xf32>
      %378 = math.absf %377 : vector<16x32xf32>
      %cst_253 = arith.constant 0.327591091 : f32
      %379 = vector.broadcast %cst_253 : f32 to vector<16x32xf32>
      %380 = arith.mulf %379, %378 : vector<16x32xf32>
      %cst_254 = arith.constant 1.000000e+00 : f32
      %381 = vector.broadcast %cst_254 : f32 to vector<16x32xf32>
      %382 = arith.addf %381, %380 : vector<16x32xf32>
      %cst_255 = arith.constant 1.000000e+00 : f32
      %383 = vector.broadcast %cst_255 : f32 to vector<16x32xf32>
      %384 = arith.divf %383, %382 : vector<16x32xf32>
      %cst_256 = arith.constant 1.06140542 : f32
      %385 = vector.broadcast %cst_256 : f32 to vector<16x32xf32>
      %386 = arith.mulf %385, %384 : vector<16x32xf32>
      %cst_257 = arith.constant -1.45315206 : f32
      %387 = vector.broadcast %cst_257 : f32 to vector<16x32xf32>
      %388 = arith.addf %386, %387 : vector<16x32xf32>
      %389 = arith.mulf %388, %384 : vector<16x32xf32>
      %cst_258 = arith.constant 1.42141378 : f32
      %390 = vector.broadcast %cst_258 : f32 to vector<16x32xf32>
      %391 = arith.addf %389, %390 : vector<16x32xf32>
      %392 = arith.mulf %391, %384 : vector<16x32xf32>
      %cst_259 = arith.constant -0.284496725 : f32
      %393 = vector.broadcast %cst_259 : f32 to vector<16x32xf32>
      %394 = arith.addf %392, %393 : vector<16x32xf32>
      %395 = arith.mulf %394, %384 : vector<16x32xf32>
      %cst_260 = arith.constant 0.254829586 : f32
      %396 = vector.broadcast %cst_260 : f32 to vector<16x32xf32>
      %397 = arith.addf %395, %396 : vector<16x32xf32>
      %398 = arith.mulf %397, %384 : vector<16x32xf32>
      %cst_261 = arith.constant 0.000000e+00 : f32
      %399 = vector.broadcast %cst_261 : f32 to vector<16x32xf32>
      %400 = arith.subf %399, %378 : vector<16x32xf32>
      %401 = arith.mulf %400, %378 : vector<16x32xf32>
      %402 = math.exp %401 : vector<16x32xf32>
      %403 = arith.mulf %398, %402 : vector<16x32xf32>
      %cst_262 = arith.constant 1.000000e+00 : f32
      %404 = vector.broadcast %cst_262 : f32 to vector<16x32xf32>
      %405 = arith.subf %404, %403 : vector<16x32xf32>
      %cst_263 = arith.constant 0.000000e+00 : f32
      %406 = vector.broadcast %cst_263 : f32 to vector<16x32xf32>
      %407 = arith.cmpf oge, %377, %406 : vector<16x32xf32>
      %cst_264 = arith.constant 0.000000e+00 : f32
      %408 = vector.broadcast %cst_264 : f32 to vector<16x32xf32>
      %409 = arith.subf %408, %405 : vector<16x32xf32>
      %410 = arith.select %407, %405, %409 : vector<16x32xi1>, vector<16x32xf32>
      %cst_265 = arith.constant 1.000000e+00 : f32
      %411 = vector.broadcast %cst_265 : f32 to vector<16x32xf32>
      %412 = arith.addf %411, %410 : vector<16x32xf32>
      %413 = arith.mulf %375, %412 : vector<16x32xf32>
      %c0_266 = arith.constant 0 : index
      %c0_267 = arith.constant 0 : index
      %414 = vector.load %arg33[%c0_266, %c0_267] : memref<32x4xf32, #tpu.memory_space<vmem>>, vector<32x4xf32>
      %cst_268 = arith.constant dense<0.000000e+00> : vector<16x4xf32>
      %415 = tpu.matmul %413, %414, %cst_268 {dimension_numbers = #tpu.dot_dimension_numbers<[1], [0], [0], [1], [0, 0, 1, 1], [], []>} : vector<16x32xf32>, vector<32x4xf32>, vector<16x4xf32> -> vector<16x4xf32>
      %c0_269 = arith.constant 0 : index
      %c0_270 = arith.constant 0 : index
      %416 = vector.load %arg34[%c0_269, %c0_270] : memref<1x4xf32, #tpu.memory_space<vmem>>, vector<1x4xf32>
      %417 = vector.broadcast %416 : vector<1x4xf32> to vector<16x4xf32>
      %418 = arith.addf %415, %417 : vector<16x4xf32>
      %c0_271 = arith.constant 0 : index
      %c0_272 = arith.constant 0 : index
      %419 = vector.load %arg35[%c0_271, %c0_272] : memref<16x4xf32, #tpu.memory_space<vmem>>, vector<16x4xf32>
      %420 = arith.addf %418, %419 : vector<16x4xf32>
      %421 = arith.negf %420 : vector<16x4xf32>
      %422 = math.exp %421 : vector<16x4xf32>
      %cst_273 = arith.constant 1.000000e+00 : f32
      %423 = vector.broadcast %cst_273 : f32 to vector<16x4xf32>
      %424 = arith.addf %423, %422 : vector<16x4xf32>
      %425 = arith.divf %423, %424 : vector<16x4xf32>
      %cst_274 = arith.constant 0.000000e+00 : f32
      %426 = vector.broadcast %cst_274 : f32 to vector<16x128xf32>
      %c0_275 = arith.constant 0 : index
      %c0_276 = arith.constant 0 : index
      %c0_277 = arith.constant 0 : index
      %427 = vector.load %arg38[%c0_275, %c0_276, %c0_277] : memref<1x16x128xf32, #tpu.memory_space<vmem>>, vector<1x16x128xf32>
      %428 = vector.shape_cast %427 : vector<1x16x128xf32> to vector<16x128xf32>
      %429 = vector.shape_cast %426 : vector<16x128xf32> to vector<1x16x128xf32>
      tpu.vector_store %arg38[%c0_275, %c0_276, %c0_277], %429 {strides = array<i32>} : memref<1x16x128xf32, #tpu.memory_space<vmem>>, vector<1x16x128xf32>,
      %430 = tpu.concatenate %323, %425 in 1 : vector<16x2xf32>, vector<16x4xf32> -> vector<16x6xf32>
      %c0_278 = arith.constant 0 : index
      %c0_279 = arith.constant 0 : index
      %c0_280 = arith.constant 0 : index
      %431 = vector.load %arg38[%c0_278, %c0_279, %c0_280] : memref<1x16x128xf32, #tpu.memory_space<vmem>>, vector<1x16x6xf32>
      %432 = vector.shape_cast %431 : vector<1x16x6xf32> to vector<16x6xf32>
      %433 = vector.shape_cast %430 : vector<16x6xf32> to vector<1x16x6xf32>
      tpu.vector_store %arg38[%c0_278, %c0_279, %c0_280], %433 {strides = array<i32>} : memref<1x16x128xf32, #tpu.memory_space<vmem>>, vector<1x16x6xf32>,
    } else {
    }
    return
  }
  func.func @transform_0(%arg0: i32, %arg1: i32) -> (i32, i32, i32) {
    %c0_i32 = arith.constant 0 : i32
    %c0_i32_0 = arith.constant 0 : i32
    %c0_i32_1 = arith.constant 0 : i32
    return %arg0, %c0_i32, %c0_i32_0 : i32, i32, i32
  }
  func.func @transform_1(%arg0: i32, %arg1: i32) -> (i32, i32) {
    %c0_i32 = arith.constant 0 : i32
    %c0_i32_0 = arith.constant 0 : i32
    %c0_i32_1 = arith.constant 0 : i32
    return %c0_i32, %c0_i32_0 : i32, i32
  }
  func.func @transform_2(%arg0: i32, %arg1: i32) -> (i32, i32) {
    %c0_i32 = arith.constant 0 : i32
    %c0_i32_0 = arith.constant 0 : i32
    %c0_i32_1 = arith.constant 0 : i32
    return %c0_i32, %c0_i32_0 : i32, i32
  }
  func.func @transform_3(%arg0: i32, %arg1: i32) -> (i32, i32) {
    %c0_i32 = arith.constant 0 : i32
    %c0_i32_0 = arith.constant 0 : i32
    %c0_i32_1 = arith.constant 0 : i32
    return %c0_i32, %c0_i32_0 : i32, i32
  }
  func.func @transform_4(%arg0: i32, %arg1: i32) -> (i32, i32) {
    %c0_i32 = arith.constant 0 : i32
    %c0_i32_0 = arith.constant 0 : i32
    %c0_i32_1 = arith.constant 0 : i32
    return %c0_i32, %c0_i32_0 : i32, i32
  }
  func.func @transform_5(%arg0: i32, %arg1: i32) -> (i32, i32, i32) {
    %c0_i32 = arith.constant 0 : i32
    %c0_i32_0 = arith.constant 0 : i32
    %c0_i32_1 = arith.constant 0 : i32
    return %arg1, %c0_i32, %c0_i32_0 : i32, i32, i32
  }
  func.func @transform_6(%arg0: i32, %arg1: i32) -> (i32, i32, i32) {
    %c0_i32 = arith.constant 0 : i32
    %c0_i32_0 = arith.constant 0 : i32
    %c0_i32_1 = arith.constant 0 : i32
    return %arg1, %c0_i32, %c0_i32_0 : i32, i32, i32
  }
  func.func @transform_7(%arg0: i32, %arg1: i32) -> (i32, i32, i32, i32) {
    %c0_i32 = arith.constant 0 : i32
    %c0_i32_0 = arith.constant 0 : i32
    %c0_i32_1 = arith.constant 0 : i32
    %c0_i32_2 = arith.constant 0 : i32
    return %arg1, %c0_i32, %c0_i32_0, %c0_i32_1 : i32, i32, i32, i32
  }
  func.func @transform_8(%arg0: i32, %arg1: i32) -> (i32, i32, i32, i32) {
    %c0_i32 = arith.constant 0 : i32
    %c0_i32_0 = arith.constant 0 : i32
    %c0_i32_1 = arith.constant 0 : i32
    %c0_i32_2 = arith.constant 0 : i32
    return %arg1, %c0_i32, %c0_i32_0, %c0_i32_1 : i32, i32, i32, i32
  }
  func.func @transform_9(%arg0: i32, %arg1: i32) -> (i32, i32, i32, i32) {
    %c0_i32 = arith.constant 0 : i32
    %c0_i32_0 = arith.constant 0 : i32
    %c0_i32_1 = arith.constant 0 : i32
    %c0_i32_2 = arith.constant 0 : i32
    return %arg1, %c0_i32, %c0_i32_0, %c0_i32_1 : i32, i32, i32, i32
  }
  func.func @transform_10(%arg0: i32, %arg1: i32) -> (i32, i32, i32, i32) {
    %c0_i32 = arith.constant 0 : i32
    %c0_i32_0 = arith.constant 0 : i32
    %c0_i32_1 = arith.constant 0 : i32
    %c0_i32_2 = arith.constant 0 : i32
    return %arg1, %c0_i32, %c0_i32_0, %c0_i32_1 : i32, i32, i32, i32
  }
  func.func @transform_11(%arg0: i32, %arg1: i32) -> (i32, i32, i32, i32) {
    %c0_i32 = arith.constant 0 : i32
    %c0_i32_0 = arith.constant 0 : i32
    %c0_i32_1 = arith.constant 0 : i32
    %c0_i32_2 = arith.constant 0 : i32
    return %arg1, %c0_i32, %c0_i32_0, %c0_i32_1 : i32, i32, i32, i32
  }
  func.func @transform_12(%arg0: i32, %arg1: i32) -> (i32, i32, i32, i32) {
    %c0_i32 = arith.constant 0 : i32
    %c0_i32_0 = arith.constant 0 : i32
    %c0_i32_1 = arith.constant 0 : i32
    %c0_i32_2 = arith.constant 0 : i32
    return %arg1, %c0_i32, %c0_i32_0, %c0_i32_1 : i32, i32, i32, i32
  }
  func.func @transform_13(%arg0: i32, %arg1: i32) -> (i32, i32, i32, i32) {
    %c0_i32 = arith.constant 0 : i32
    %c0_i32_0 = arith.constant 0 : i32
    %c0_i32_1 = arith.constant 0 : i32
    %c0_i32_2 = arith.constant 0 : i32
    return %arg1, %c0_i32, %c0_i32_0, %c0_i32_1 : i32, i32, i32, i32
  }
  func.func @transform_14(%arg0: i32, %arg1: i32) -> (i32, i32, i32) {
    %c0_i32 = arith.constant 0 : i32
    %c0_i32_0 = arith.constant 0 : i32
    %c0_i32_1 = arith.constant 0 : i32
    return %arg1, %c0_i32, %c0_i32_0 : i32, i32, i32
  }
  func.func @transform_15(%arg0: i32, %arg1: i32) -> (i32, i32, i32) {
    %c0_i32 = arith.constant 0 : i32
    %c0_i32_0 = arith.constant 0 : i32
    %c0_i32_1 = arith.constant 0 : i32
    return %arg1, %c0_i32, %c0_i32_0 : i32, i32, i32
  }
  func.func @transform_16(%arg0: i32, %arg1: i32) -> (i32, i32, i32) {
    %c0_i32 = arith.constant 0 : i32
    %c0_i32_0 = arith.constant 0 : i32
    %c0_i32_1 = arith.constant 0 : i32
    return %arg1, %c0_i32, %c0_i32_0 : i32, i32, i32
  }
  func.func @transform_17(%arg0: i32, %arg1: i32) -> (i32, i32, i32) {
    %c0_i32 = arith.constant 0 : i32
    %c0_i32_0 = arith.constant 0 : i32
    %c0_i32_1 = arith.constant 0 : i32
    return %arg1, %c0_i32, %c0_i32_0 : i32, i32, i32
  }
  func.func @transform_18(%arg0: i32, %arg1: i32) -> (i32, i32, i32) {
    %c0_i32 = arith.constant 0 : i32
    %c0_i32_0 = arith.constant 0 : i32
    %c0_i32_1 = arith.constant 0 : i32
    return %arg1, %c0_i32, %c0_i32_0 : i32, i32, i32
  }
  func.func @transform_19(%arg0: i32, %arg1: i32) -> (i32, i32, i32) {
    %c0_i32 = arith.constant 0 : i32
    %c0_i32_0 = arith.constant 0 : i32
    %c0_i32_1 = arith.constant 0 : i32
    return %arg1, %c0_i32, %c0_i32_0 : i32, i32, i32
  }
  func.func @transform_20(%arg0: i32, %arg1: i32) -> (i32, i32, i32) {
    %c0_i32 = arith.constant 0 : i32
    %c0_i32_0 = arith.constant 0 : i32
    %c0_i32_1 = arith.constant 0 : i32
    return %arg1, %c0_i32, %c0_i32_0 : i32, i32, i32
  }
  func.func @transform_21(%arg0: i32, %arg1: i32) -> (i32, i32) {
    %c0_i32 = arith.constant 0 : i32
    %c0_i32_0 = arith.constant 0 : i32
    %c0_i32_1 = arith.constant 0 : i32
    return %c0_i32, %c0_i32_0 : i32, i32
  }
  func.func @transform_22(%arg0: i32, %arg1: i32) -> (i32, i32) {
    %c0_i32 = arith.constant 0 : i32
    %c0_i32_0 = arith.constant 0 : i32
    %c0_i32_1 = arith.constant 0 : i32
    return %c0_i32, %c0_i32_0 : i32, i32
  }
  func.func @transform_23(%arg0: i32, %arg1: i32) -> (i32, i32) {
    %c0_i32 = arith.constant 0 : i32
    %c0_i32_0 = arith.constant 0 : i32
    %c0_i32_1 = arith.constant 0 : i32
    return %c0_i32, %c0_i32_0 : i32, i32
  }
  func.func @transform_24(%arg0: i32, %arg1: i32) -> (i32, i32) {
    %c0_i32 = arith.constant 0 : i32
    %c0_i32_0 = arith.constant 0 : i32
    %c0_i32_1 = arith.constant 0 : i32
    return %c0_i32, %c0_i32_0 : i32, i32
  }
  func.func @transform_25(%arg0: i32, %arg1: i32) -> (i32, i32) {
    %c0_i32 = arith.constant 0 : i32
    %c0_i32_0 = arith.constant 0 : i32
    %c0_i32_1 = arith.constant 0 : i32
    return %c0_i32, %c0_i32_0 : i32, i32
  }
  func.func @transform_26(%arg0: i32, %arg1: i32) -> (i32, i32) {
    %c0_i32 = arith.constant 0 : i32
    %c0_i32_0 = arith.constant 0 : i32
    %c0_i32_1 = arith.constant 0 : i32
    return %c0_i32, %c0_i32_0 : i32, i32
  }
  func.func @transform_27(%arg0: i32, %arg1: i32) -> (i32, i32) {
    %c0_i32 = arith.constant 0 : i32
    %c0_i32_0 = arith.constant 0 : i32
    %c0_i32_1 = arith.constant 0 : i32
    return %c0_i32, %c0_i32_0 : i32, i32
  }
  func.func @transform_28(%arg0: i32, %arg1: i32) -> (i32, i32) {
    %c0_i32 = arith.constant 0 : i32
    %c0_i32_0 = arith.constant 0 : i32
    %c0_i32_1 = arith.constant 0 : i32
    return %c0_i32, %c0_i32_0 : i32, i32
  }
  func.func @transform_29(%arg0: i32, %arg1: i32) -> (i32, i32) {
    %c0_i32 = arith.constant 0 : i32
    %c0_i32_0 = arith.constant 0 : i32
    %c0_i32_1 = arith.constant 0 : i32
    return %c0_i32, %c0_i32_0 : i32, i32
  }
  func.func @transform_30(%arg0: i32, %arg1: i32) -> (i32, i32) {
    %c0_i32 = arith.constant 0 : i32
    %c0_i32_0 = arith.constant 0 : i32
    %c0_i32_1 = arith.constant 0 : i32
    return %c0_i32, %c0_i32_0 : i32, i32
  }
  func.func @transform_31(%arg0: i32, %arg1: i32) -> (i32, i32) {
    %c0_i32 = arith.constant 0 : i32
    %c0_i32_0 = arith.constant 0 : i32
    %c0_i32_1 = arith.constant 0 : i32
    return %c0_i32, %c0_i32_0 : i32, i32
  }
  func.func @transform_32(%arg0: i32, %arg1: i32) -> (i32, i32) {
    %c0_i32 = arith.constant 0 : i32
    %c0_i32_0 = arith.constant 0 : i32
    %c0_i32_1 = arith.constant 0 : i32
    return %c0_i32, %c0_i32_0 : i32, i32
  }
  func.func @transform_33(%arg0: i32, %arg1: i32) -> (i32, i32) {
    %c0_i32 = arith.constant 0 : i32
    %c0_i32_0 = arith.constant 0 : i32
    %c0_i32_1 = arith.constant 0 : i32
    return %c0_i32, %c0_i32_0 : i32, i32
  }
  func.func @transform_34(%arg0: i32, %arg1: i32) -> (i32, i32, i32) {
    %c0_i32 = arith.constant 0 : i32
    %c0_i32_0 = arith.constant 0 : i32
    %c0_i32_1 = arith.constant 0 : i32
    return %arg0, %c0_i32, %c0_i32_0 : i32, i32, i32
  }
  func.func @transform_35(%arg0: i32, %arg1: i32) -> (i32, i32, i32) {
    %c0_i32 = arith.constant 0 : i32
    %c0_i32_0 = arith.constant 0 : i32
    %c0_i32_1 = arith.constant 0 : i32
    return %arg0, %c0_i32, %c0_i32_0 : i32, i32, i32
  }
  func.func @transform_36(%arg0: i32, %arg1: i32) -> (i32, i32, i32) {
    %c0_i32 = arith.constant 0 : i32
    %c0_i32_0 = arith.constant 0 : i32
    %c0_i32_1 = arith.constant 0 : i32
    return %arg0, %c0_i32, %c0_i32_0 : i32, i32, i32
  }
}

</mosaic_0001>

<llo_original>
// kernel: owlvit_forward.2
$region0: #{owlvit_forward.2}
  #allocation0 [shape = 'u32[]', space=smem, size = 0x4, offset = 0x4, fixed_abs, tag = 'smem constant byte address 0x4 - core index']
  #allocation1 [shape = 'u32[144,128]{1,0:T(1,128)}', space=vmem, size = 0x12000, scoped, tag = 'internal scratch']
  #allocation2 [shape = 'f32[32,32]{1,0:T(8,128)}', space=vmem, size = 0x4000, scoped, tag = 'scratch operand']
  %s0 = inlined_call_operand.vmem [shape: f32[32,32], index: 0, kind: input, shape index: {}]
  %s1 = inlined_call_operand.vmem [shape: f32[32,32], index: 1, kind: input, shape index: {}]
  %s2 = inlined_call_operand.vmem [shape: f32[2,1,32], index: 2, kind: input, shape index: {}]
  %s3 = inlined_call_operand.vmem [shape: f32[2,1,32], index: 3, kind: input, shape index: {}]
  %s4 = inlined_call_operand.vmem [shape: f32[2,4,32,8], index: 4, kind: input, shape index: {}]
  %s5 = inlined_call_operand.vmem [shape: f32[2,4,1,8], index: 5, kind: input, shape index: {}]
  %s6 = inlined_call_operand.vmem [shape: f32[2,4,32,8], index: 6, kind: input, shape index: {}]
  %s7 = inlined_call_operand.vmem [shape: f32[2,4,1,8], index: 7, kind: input, shape index: {}]
  %s8 = inlined_call_operand.vmem [shape: f32[2,4,32,8], index: 8, kind: input, shape index: {}]
  %s9 = inlined_call_operand.vmem [shape: f32[2,4,1,8], index: 9, kind: input, shape index: {}]
  %s10 = inlined_call_operand.vmem [shape: f32[2,4,8,32], index: 10, kind: input, shape index: {}]
  %s11 = inlined_call_operand.vmem [shape: f32[2,1,32], index: 11, kind: input, shape index: {}]
  %s12 = inlined_call_operand.vmem [shape: f32[2,1,32], index: 12, kind: input, shape index: {}]
  %s13 = inlined_call_operand.vmem [shape: f32[2,1,32], index: 13, kind: input, shape index: {}]
  %s14 = inlined_call_operand.vmem [shape: f32[2,32,64], index: 14, kind: input, shape index: {}]
  %s15 = inlined_call_operand.vmem [shape: f32[2,1,64], index: 15, kind: input, shape index: {}]
  %s16 = inlined_call_operand.vmem [shape: f32[2,64,32], index: 16, kind: input, shape index: {}]
  %s17 = inlined_call_operand.vmem [shape: f32[2,1,32], index: 17, kind: input, shape index: {}]
  %s18 = inlined_call_operand.vmem [shape: f32[1,32], index: 18, kind: input, shape index: {}]
  %s19 = inlined_call_operand.vmem [shape: f32[1,32], index: 19, kind: input, shape index: {}]
  %s20 = inlined_call_operand.vmem [shape: f32[32,32], index: 20, kind: output, shape index: {}]
  %s21 = sld [smem:[#allocation0]]
  $region121: #{owlvit_forward.2} parent=0
    _
  %s23 = ssub.s32 1, %s21
  %s24 = scalar_select 0, %s23, %s21
  loop: start=0, step=1, limit=4
  $region2: #{owlvit_forward.2} parent=0 // loop_pre_header
    _
  $region3: #{owlvit_forward.2} parent=0 // loop_header
    %s26 = sphi 0, %s30
    %p27 = scmp.ge.s32.totalorder %s26, 4
    %s34 = sphi 0, %s34
    %s36 = sphi 0, %s34
    %s37 = sphi 0, %s36
    %s51 = sphi 0, %s37
    %s55 = sphi 0, %s55
    %s57 = sphi 0, %s55
    %s58 = sphi 0, %s57
    %s72 = sphi 0, %s58
    %s78 = sphi 0, %s80
    %s81 = sphi 0, %s78
    %s82 = sphi 0, %s81
    %s98 = sphi 0, %s82
    %s104 = sphi 0, %s106
    %s107 = sphi 0, %s104
    %s108 = sphi 0, %s107
    %s124 = sphi 0, %s108
    %s130 = sphi 0, %s132
    %s133 = sphi 0, %s130
    %s134 = sphi 0, %s133
    %s150 = sphi 0, %s134
    %s156 = sphi 0, %s158
    %s159 = sphi 0, %s156
    %s160 = sphi 0, %s159
    %s176 = sphi 0, %s160
    %s182 = sphi 0, %s184
    %s185 = sphi 0, %s182
    %s186 = sphi 0, %s185
    %s202 = sphi 0, %s186
    %s208 = sphi 0, %s210
    %s211 = sphi 0, %s208
    %s212 = sphi 0, %s211
    %s228 = sphi 0, %s212
    %s234 = sphi 0, %s236
    %s237 = sphi 0, %s234
    %s238 = sphi 0, %s237
    %s254 = sphi 0, %s238
    %s260 = sphi 0, %s262
    %s263 = sphi 0, %s260
    %s264 = sphi 0, %s263
    %s280 = sphi 0, %s264
    %s286 = sphi 0, %s288
    %s289 = sphi 0, %s286
    %s290 = sphi 0, %s289
    %s306 = sphi 0, %s290
    %s312 = sphi 0, %s314
    %s315 = sphi 0, %s312
    %s316 = sphi 0, %s315
    %s332 = sphi 0, %s316
    %s338 = sphi 0, %s340
    %s341 = sphi 0, %s338
    %s342 = sphi 0, %s341
    %s358 = sphi 0, %s342
    %s364 = sphi 0, %s366
    %s367 = sphi 0, %s364
    %s368 = sphi 0, %s367
    %s384 = sphi 0, %s368
    %s390 = sphi 0, %s392
    %s393 = sphi 0, %s390
    %s394 = sphi 0, %s393
    %s410 = sphi 0, %s394
    %s416 = sphi 0, %s418
    %s419 = sphi 0, %s416
    %s420 = sphi 0, %s419
    %s436 = sphi 0, %s420
    %s442 = sphi 0, %s444
    %s445 = sphi 0, %s442
    %s446 = sphi 0, %s445
    %s462 = sphi 0, %s446
    %s468 = sphi 0, %s470
    %s471 = sphi 0, %s468
    %s472 = sphi 0, %s471
    %s488 = sphi 0, %s472
    %s492 = sphi 0, %s492
    %s494 = sphi 0, %s492
    %s495 = sphi 0, %s494
    %s509 = sphi 0, %s495
    %s513 = sphi 0, %s513
    %s515 = sphi 0, %s513
    %s516 = sphi 0, %s515
    %s530 = sphi 0, %s516
    %s534 = sphi 0, %s534
    %s536 = sphi 0, %s534
    %s537 = sphi 0, %s536
    %s551 = sphi 0, %s537
  $region4: #{owlvit_forward.2} parent=0 // loop_header_branch
    %29 = sbr.rel (%p27) target = $region8
  $region5: #{owlvit_forward.2} parent=0 // loop_body
    %s31 = ssub.s32 %s26, 1
    %s32 = ssub.s32 %s26, 2
    %s33 = sadd.s32 %s26, 1
    %s35 = sadd.s32 %s34, 1
    %p38 = scmp.eq.s32.totalorder %s26, 1
    %p39 = scmp.ne.s32.totalorder %s34, %s36
    %p40 = scmp.eq.s32.totalorder %s26, 0
    %p41 = por %p39, %p40
    %p42 = scmp.ne.s32.totalorder %s34, %s36
    %p43 = scmp.eq.s32.totalorder %s31, 1
    %p44 = por %p42, %p43
    %p45 = scmp.ne.s32.totalorder %s36, %s37
    %p46 = scmp.eq.s32.totalorder %s31, 0
    %p47 = por %p45, %p46
    %p48 = scmp.ne.s32.totalorder %s36, %s37
    %p49 = scmp.eq.s32.totalorder %s32, 1
    %p50 = por %p48, %p49
    %p52 = scmp.ne.s32.totalorder %s37, %s51
    %p53 = scmp.eq.s32.totalorder %s32, 0
    %p54 = por %p52, %p53
    %s56 = sadd.s32 %s55, 1
    %p59 = scmp.eq.s32.totalorder %s26, 1
    %p60 = scmp.ne.s32.totalorder %s55, %s57
    %p61 = scmp.eq.s32.totalorder %s26, 0
    %p62 = por %p60, %p61
    %p63 = scmp.ne.s32.totalorder %s55, %s57
    %p64 = scmp.eq.s32.totalorder %s31, 1
    %p65 = por %p63, %p64
    %p66 = scmp.ne.s32.totalorder %s57, %s58
    %p67 = scmp.eq.s32.totalorder %s31, 0
    %p68 = por %p66, %p67
    %p69 = scmp.ne.s32.totalorder %s57, %s58
    %p70 = scmp.eq.s32.totalorder %s32, 1
    %p71 = por %p69, %p70
    %p73 = scmp.ne.s32.totalorder %s58, %s72
    %p74 = scmp.eq.s32.totalorder %s32, 0
    %p75 = por %p73, %p74
    %s76 = ssub.s32 %s26, %s33
    %p77 = scmp.eq.s32.totalorder %s76, 0
    %s79 = sadd.s32 %s78, 1
    %s80 = scalar_select %p77, %s78, %s79
    %p83 = pneg %p77
    %p84 = scmp.eq.s32.totalorder %s26, 1
    %p85 = por %p83, %p84
    %p86 = scmp.ne.s32.totalorder %s78, %s81
    %p87 = scmp.eq.s32.totalorder %s26, 0
    %p88 = por %p86, %p87
    %p89 = scmp.ne.s32.totalorder %s78, %s81
    %p90 = scmp.eq.s32.totalorder %s31, 1
    %p91 = por %p89, %p90
    %p92 = scmp.ne.s32.totalorder %s81, %s82
    %p93 = scmp.eq.s32.totalorder %s31, 0
    %p94 = por %p92, %p93
    %p95 = scmp.ne.s32.totalorder %s81, %s82
    %p96 = scmp.eq.s32.totalorder %s32, 1
    %p97 = por %p95, %p96
    %p99 = scmp.ne.s32.totalorder %s82, %s98
    %p100 = scmp.eq.s32.totalorder %s32, 0
    %p101 = por %p99, %p100
    %s102 = ssub.s32 %s26, %s33
    %p103 = scmp.eq.s32.totalorder %s102, 0
    %s105 = sadd.s32 %s104, 1
    %s106 = scalar_select %p103, %s104, %s105
    %p109 = pneg %p103
    %p110 = scmp.eq.s32.totalorder %s26, 1
    %p111 = por %p109, %p110
    %p112 = scmp.ne.s32.totalorder %s104, %s107
    %p113 = scmp.eq.s32.totalorder %s26, 0
    %p114 = por %p112, %p113
    %p115 = scmp.ne.s32.totalorder %s104, %s107
    %p116 = scmp.eq.s32.totalorder %s31, 1
    %p117 = por %p115, %p116
    %p118 = scmp.ne.s32.totalorder %s107, %s108
    %p119 = scmp.eq.s32.totalorder %s31, 0
    %p120 = por %p118, %p119
    %p121 = scmp.ne.s32.totalorder %s107, %s108
    %p122 = scmp.eq.s32.totalorder %s32, 1
    %p123 = por %p121, %p122
    %p125 = scmp.ne.s32.totalorder %s108, %s124
    %p126 = scmp.eq.s32.totalorder %s32, 0
    %p127 = por %p125, %p126
    %s128 = ssub.s32 %s26, %s33
    %p129 = scmp.eq.s32.totalorder %s128, 0
    %s131 = sadd.s32 %s130, 1
    %s132 = scalar_select %p129, %s130, %s131
    %p135 = pneg %p129
    %p136 = scmp.eq.s32.totalorder %s26, 1
    %p137 = por %p135, %p136
    %p138 = scmp.ne.s32.totalorder %s130, %s133
    %p139 = scmp.eq.s32.totalorder %s26, 0
    %p140 = por %p138, %p139
    %p141 = scmp.ne.s32.totalorder %s130, %s133
    %p142 = scmp.eq.s32.totalorder %s31, 1
    %p143 = por %p141, %p142
    %p144 = scmp.ne.s32.totalorder %s133, %s134
    %p145 = scmp.eq.s32.totalorder %s31, 0
    %p146 = por %p144, %p145
    %p147 = scmp.ne.s32.totalorder %s133, %s134
    %p148 = scmp.eq.s32.totalorder %s32, 1
    %p149 = por %p147, %p148
    %p151 = scmp.ne.s32.totalorder %s134, %s150
    %p152 = scmp.eq.s32.totalorder %s32, 0
    %p153 = por %p151, %p152
    %s154 = ssub.s32 %s26, %s33
    %p155 = scmp.eq.s32.totalorder %s154, 0
    %s157 = sadd.s32 %s156, 1
    %s158 = scalar_select %p155, %s156, %s157
    %p161 = pneg %p155
    %p162 = scmp.eq.s32.totalorder %s26, 1
    %p163 = por %p161, %p162
    %p164 = scmp.ne.s32.totalorder %s156, %s159
    %p165 = scmp.eq.s32.totalorder %s26, 0
    %p166 = por %p164, %p165
    %p167 = scmp.ne.s32.totalorder %s156, %s159
    %p168 = scmp.eq.s32.totalorder %s31, 1
    %p169 = por %p167, %p168
    %p170 = scmp.ne.s32.totalorder %s159, %s160
    %p171 = scmp.eq.s32.totalorder %s31, 0
    %p172 = por %p170, %p171
    %p173 = scmp.ne.s32.totalorder %s159, %s160
    %p174 = scmp.eq.s32.totalorder %s32, 1
    %p175 = por %p173, %p174
    %p177 = scmp.ne.s32.totalorder %s160, %s176
    %p178 = scmp.eq.s32.totalorder %s32, 0
    %p179 = por %p177, %p178
    %s180 = ssub.s32 %s26, %s33
    %p181 = scmp.eq.s32.totalorder %s180, 0
    %s183 = sadd.s32 %s182, 1
    %s184 = scalar_select %p181, %s182, %s183
    %p187 = pneg %p181
    %p188 = scmp.eq.s32.totalorder %s26, 1
    %p189 = por %p187, %p188
    %p190 = scmp.ne.s32.totalorder %s182, %s185
    %p191 = scmp.eq.s32.totalorder %s26, 0
    %p192 = por %p190, %p191
    %p193 = scmp.ne.s32.totalorder %s182, %s185
    %p194 = scmp.eq.s32.totalorder %s31, 1
    %p195 = por %p193, %p194
    %p196 = scmp.ne.s32.totalorder %s185, %s186
    %p197 = scmp.eq.s32.totalorder %s31, 0
    %p198 = por %p196, %p197
    %p199 = scmp.ne.s32.totalorder %s185, %s186
    %p200 = scmp.eq.s32.totalorder %s32, 1
    %p201 = por %p199, %p200
    %p203 = scmp.ne.s32.totalorder %s186, %s202
    %p204 = scmp.eq.s32.totalorder %s32, 0
    %p205 = por %p203, %p204
    %s206 = ssub.s32 %s26, %s33
    %p207 = scmp.eq.s32.totalorder %s206, 0
    %s209 = sadd.s32 %s208, 1
    %s210 = scalar_select %p207, %s208, %s209
    %p213 = pneg %p207
    %p214 = scmp.eq.s32.totalorder %s26, 1
    %p215 = por %p213, %p214
    %p216 = scmp.ne.s32.totalorder %s208, %s211
    %p217 = scmp.eq.s32.totalorder %s26, 0
    %p218 = por %p216, %p217
    %p219 = scmp.ne.s32.totalorder %s208, %s211
    %p220 = scmp.eq.s32.totalorder %s31, 1
    %p221 = por %p219, %p220
    %p222 = scmp.ne.s32.totalorder %s211, %s212
    %p223 = scmp.eq.s32.totalorder %s31, 0
    %p224 = por %p222, %p223
    %p225 = scmp.ne.s32.totalorder %s211, %s212
    %p226 = scmp.eq.s32.totalorder %s32, 1
    %p227 = por %p225, %p226
    %p229 = scmp.ne.s32.totalorder %s212, %s228
    %p230 = scmp.eq.s32.totalorder %s32, 0
    %p231 = por %p229, %p230
    %s232 = ssub.s32 %s26, %s33
    %p233 = scmp.eq.s32.totalorder %s232, 0
    %s235 = sadd.s32 %s234, 1
    %s236 = scalar_select %p233, %s234, %s235
    %p239 = pneg %p233
    %p240 = scmp.eq.s32.totalorder %s26, 1
    %p241 = por %p239, %p240
    %p242 = scmp.ne.s32.totalorder %s234, %s237
    %p243 = scmp.eq.s32.totalorder %s26, 0
    %p244 = por %p242, %p243
    %p245 = scmp.ne.s32.totalorder %s234, %s237
    %p246 = scmp.eq.s32.totalorder %s31, 1
    %p247 = por %p245, %p246
    %p248 = scmp.ne.s32.totalorder %s237, %s238
    %p249 = scmp.eq.s32.totalorder %s31, 0
    %p250 = por %p248, %p249
    %p251 = scmp.ne.s32.totalorder %s237, %s238
    %p252 = scmp.eq.s32.totalorder %s32, 1
    %p253 = por %p251, %p252
    %p255 = scmp.ne.s32.totalorder %s238, %s254
    %p256 = scmp.eq.s32.totalorder %s32, 0
    %p257 = por %p255, %p256
    %s258 = ssub.s32 %s26, %s33
    %p259 = scmp.eq.s32.totalorder %s258, 0
    %s261 = sadd.s32 %s260, 1
    %s262 = scalar_select %p259, %s260, %s261
    %p265 = pneg %p259
    %p266 = scmp.eq.s32.totalorder %s26, 1
    %p267 = por %p265, %p266
    %p268 = scmp.ne.s32.totalorder %s260, %s263
    %p269 = scmp.eq.s32.totalorder %s26, 0
    %p270 = por %p268, %p269
    %p271 = scmp.ne.s32.totalorder %s260, %s263
    %p272 = scmp.eq.s32.totalorder %s31, 1
    %p273 = por %p271, %p272
    %p274 = scmp.ne.s32.totalorder %s263, %s264
    %p275 = scmp.eq.s32.totalorder %s31, 0
    %p276 = por %p274, %p275
    %p277 = scmp.ne.s32.totalorder %s263, %s264
    %p278 = scmp.eq.s32.totalorder %s32, 1
    %p279 = por %p277, %p278
    %p281 = scmp.ne.s32.totalorder %s264, %s280
    %p282 = scmp.eq.s32.totalorder %s32, 0
    %p283 = por %p281, %p282
    %s284 = ssub.s32 %s26, %s33
    %p285 = scmp.eq.s32.totalorder %s284, 0
    %s287 = sadd.s32 %s286, 1
    %s288 = scalar_select %p285, %s286, %s287
    %p291 = pneg %p285
    %p292 = scmp.eq.s32.totalorder %s26, 1
    %p293 = por %p291, %p292
    %p294 = scmp.ne.s32.totalorder %s286, %s289
    %p295 = scmp.eq.s32.totalorder %s26, 0
    %p296 = por %p294, %p295
    %p297 = scmp.ne.s32.totalorder %s286, %s289
    %p298 = scmp.eq.s32.totalorder %s31, 1
    %p299 = por %p297, %p298
    %p300 = scmp.ne.s32.totalorder %s289, %s290
    %p301 = scmp.eq.s32.totalorder %s31, 0
    %p302 = por %p300, %p301
    %p303 = scmp.ne.s32.totalorder %s289, %s290
    %p304 = scmp.eq.s32.totalorder %s32, 1
    %p305 = por %p303, %p304
    %p307 = scmp.ne.s32.totalorder %s290, %s306
    %p308 = scmp.eq.s32.totalorder %s32, 0
    %p309 = por %p307, %p308
    %s310 = ssub.s32 %s26, %s33
    %p311 = scmp.eq.s32.totalorder %s310, 0
    %s313 = sadd.s32 %s312, 1
    %s314 = scalar_select %p311, %s312, %s313
    %p317 = pneg %p311
    %p318 = scmp.eq.s32.totalorder %s26, 1
    %p319 = por %p317, %p318
    %p320 = scmp.ne.s32.totalorder %s312, %s315
    %p321 = scmp.eq.s32.totalorder %s26, 0
    %p322 = por %p320, %p321
    %p323 = scmp.ne.s32.totalorder %s312, %s315
    %p324 = scmp.eq.s32.totalorder %s31, 1
    %p325 = por %p323, %p324
    %p326 = scmp.ne.s32.totalorder %s315, %s316
    %p327 = scmp.eq.s32.totalorder %s31, 0
    %p328 = por %p326, %p327
    %p329 = scmp.ne.s32.totalorder %s315, %s316
    %p330 = scmp.eq.s32.totalorder %s32, 1
    %p331 = por %p329, %p330
    %p333 = scmp.ne.s32.totalorder %s316, %s332
    %p334 = scmp.eq.s32.totalorder %s32, 0
    %p335 = por %p333, %p334
    %s336 = ssub.s32 %s26, %s33
    %p337 = scmp.eq.s32.totalorder %s336, 0
    %s339 = sadd.s32 %s338, 1
    %s340 = scalar_select %p337, %s338, %s339
    %p343 = pneg %p337
    %p344 = scmp.eq.s32.totalorder %s26, 1
    %p345 = por %p343, %p344
    %p346 = scmp.ne.s32.totalorder %s338, %s341
    %p347 = scmp.eq.s32.totalorder %s26, 0
    %p348 = por %p346, %p347
    %p349 = scmp.ne.s32.totalorder %s338, %s341
    %p350 = scmp.eq.s32.totalorder %s31, 1
    %p351 = por %p349, %p350
    %p352 = scmp.ne.s32.totalorder %s341, %s342
    %p353 = scmp.eq.s32.totalorder %s31, 0
    %p354 = por %p352, %p353
    %p355 = scmp.ne.s32.totalorder %s341, %s342
    %p356 = scmp.eq.s32.totalorder %s32, 1
    %p357 = por %p355, %p356
    %p359 = scmp.ne.s32.totalorder %s342, %s358
    %p360 = scmp.eq.s32.totalorder %s32, 0
    %p361 = por %p359, %p360
    %s362 = ssub.s32 %s26, %s33
    %p363 = scmp.eq.s32.totalorder %s362, 0
    %s365 = sadd.s32 %s364, 1
    %s366 = scalar_select %p363, %s364, %s365
    %p369 = pneg %p363
    %p370 = scmp.eq.s32.totalorder %s26, 1
    %p371 = por %p369, %p370
    %p372 = scmp.ne.s32.totalorder %s364, %s367
    %p373 = scmp.eq.s32.totalorder %s26, 0
    %p374 = por %p372, %p373
    %p375 = scmp.ne.s32.totalorder %s364, %s367
    %p376 = scmp.eq.s32.totalorder %s31, 1
    %p377 = por %p375, %p376
    %p378 = scmp.ne.s32.totalorder %s367, %s368
    %p379 = scmp.eq.s32.totalorder %s31, 0
    %p380 = por %p378, %p379
    %p381 = scmp.ne.s32.totalorder %s367, %s368
    %p382 = scmp.eq.s32.totalorder %s32, 1
    %p383 = por %p381, %p382
    %p385 = scmp.ne.s32.totalorder %s368, %s384
    %p386 = scmp.eq.s32.totalorder %s32, 0
    %p387 = por %p385, %p386
    %s388 = ssub.s32 %s26, %s33
    %p389 = scmp.eq.s32.totalorder %s388, 0
    %s391 = sadd.s32 %s390, 1
    %s392 = scalar_select %p389, %s390, %s391
    %p395 = pneg %p389
    %p396 = scmp.eq.s32.totalorder %s26, 1
    %p397 = por %p395, %p396
    %p398 = scmp.ne.s32.totalorder %s390, %s393
    %p399 = scmp.eq.s32.totalorder %s26, 0
    %p400 = por %p398, %p399
    %p401 = scmp.ne.s32.totalorder %s390, %s393
    %p402 = scmp.eq.s32.totalorder %s31, 1
    %p403 = por %p401, %p402
    %p404 = scmp.ne.s32.totalorder %s393, %s394
    %p405 = scmp.eq.s32.totalorder %s31, 0
    %p406 = por %p404, %p405
    %p407 = scmp.ne.s32.totalorder %s393, %s394
    %p408 = scmp.eq.s32.totalorder %s32, 1
    %p409 = por %p407, %p408
    %p411 = scmp.ne.s32.totalorder %s394, %s410
    %p412 = scmp.eq.s32.totalorder %s32, 0
    %p413 = por %p411, %p412
    %s414 = ssub.s32 %s26, %s33
    %p415 = scmp.eq.s32.totalorder %s414, 0
    %s417 = sadd.s32 %s416, 1
    %s418 = scalar_select %p415, %s416, %s417
    %p421 = pneg %p415
    %p422 = scmp.eq.s32.totalorder %s26, 1
    %p423 = por %p421, %p422
    %p424 = scmp.ne.s32.totalorder %s416, %s419
    %p425 = scmp.eq.s32.totalorder %s26, 0
    %p426 = por %p424, %p425
    %p427 = scmp.ne.s32.totalorder %s416, %s419
    %p428 = scmp.eq.s32.totalorder %s31, 1
    %p429 = por %p427, %p428
    %p430 = scmp.ne.s32.totalorder %s419, %s420
    %p431 = scmp.eq.s32.totalorder %s31, 0
    %p432 = por %p430, %p431
    %p433 = scmp.ne.s32.totalorder %s419, %s420
    %p434 = scmp.eq.s32.totalorder %s32, 1
    %p435 = por %p433, %p434
    %p437 = scmp.ne.s32.totalorder %s420, %s436
    %p438 = scmp.eq.s32.totalorder %s32, 0
    %p439 = por %p437, %p438
    %s440 = ssub.s32 %s26, %s33
    %p441 = scmp.eq.s32.totalorder %s440, 0
    %s443 = sadd.s32 %s442, 1
    %s444 = scalar_select %p441, %s442, %s443
    %p447 = pneg %p441
    %p448 = scmp.eq.s32.totalorder %s26, 1
    %p449 = por %p447, %p448
    %p450 = scmp.ne.s32.totalorder %s442, %s445
    %p451 = scmp.eq.s32.totalorder %s26, 0
    %p452 = por %p450, %p451
    %p453 = scmp.ne.s32.totalorder %s442, %s445
    %p454 = scmp.eq.s32.totalorder %s31, 1
    %p455 = por %p453, %p454
    %p456 = scmp.ne.s32.totalorder %s445, %s446
    %p457 = scmp.eq.s32.totalorder %s31, 0
    %p458 = por %p456, %p457
    %p459 = scmp.ne.s32.totalorder %s445, %s446
    %p460 = scmp.eq.s32.totalorder %s32, 1
    %p461 = por %p459, %p460
    %p463 = scmp.ne.s32.totalorder %s446, %s462
    %p464 = scmp.eq.s32.totalorder %s32, 0
    %p465 = por %p463, %p464
    %s466 = ssub.s32 %s26, %s33
    %p467 = scmp.eq.s32.totalorder %s466, 0
    %s469 = sadd.s32 %s468, 1
    %s470 = scalar_select %p467, %s468, %s469
    %p473 = pneg %p467
    %p474 = scmp.eq.s32.totalorder %s26, 1
    %p475 = por %p473, %p474
    %p476 = scmp.ne.s32.totalorder %s468, %s471
    %p477 = scmp.eq.s32.totalorder %s26, 0
    %p478 = por %p476, %p477
    %p479 = scmp.ne.s32.totalorder %s468, %s471
    %p480 = scmp.eq.s32.totalorder %s31, 1
    %p481 = por %p479, %p480
    %p482 = scmp.ne.s32.totalorder %s471, %s472
    %p483 = scmp.eq.s32.totalorder %s31, 0
    %p484 = por %p482, %p483
    %p485 = scmp.ne.s32.totalorder %s471, %s472
    %p486 = scmp.eq.s32.totalorder %s32, 1
    %p487 = por %p485, %p486
    %p489 = scmp.ne.s32.totalorder %s472, %s488
    %p490 = scmp.eq.s32.totalorder %s32, 0
    %p491 = por %p489, %p490
    %s493 = sadd.s32 %s492, 1
    %p496 = scmp.eq.s32.totalorder %s26, 1
    %p497 = scmp.ne.s32.totalorder %s492, %s494
    %p498 = scmp.eq.s32.totalorder %s26, 0
    %p499 = por %p497, %p498
    %p500 = scmp.ne.s32.totalorder %s492, %s494
    %p501 = scmp.eq.s32.totalorder %s31, 1
    %p502 = por %p500, %p501
    %p503 = scmp.ne.s32.totalorder %s494, %s495
    %p504 = scmp.eq.s32.totalorder %s31, 0
    %p505 = por %p503, %p504
    %p506 = scmp.ne.s32.totalorder %s494, %s495
    %p507 = scmp.eq.s32.totalorder %s32, 1
    %p508 = por %p506, %p507
    %p510 = scmp.ne.s32.totalorder %s495, %s509
    %p511 = scmp.eq.s32.totalorder %s32, 0
    %p512 = por %p510, %p511
    %s514 = sadd.s32 %s513, 1
    %p517 = scmp.eq.s32.totalorder %s26, 1
    %p518 = scmp.ne.s32.totalorder %s513, %s515
    %p519 = scmp.eq.s32.totalorder %s26, 0
    %p520 = por %p518, %p519
    %p521 = scmp.ne.s32.totalorder %s513, %s515
    %p522 = scmp.eq.s32.totalorder %s31, 1
    %p523 = por %p521, %p522
    %p524 = scmp.ne.s32.totalorder %s515, %s516
    %p525 = scmp.eq.s32.totalorder %s31, 0
    %p526 = por %p524, %p525
    %p527 = scmp.ne.s32.totalorder %s515, %s516
    %p528 = scmp.eq.s32.totalorder %s32, 1
    %p529 = por %p527, %p528
    %p531 = scmp.ne.s32.totalorder %s516, %s530
    %p532 = scmp.eq.s32.totalorder %s32, 0
    %p533 = por %p531, %p532
    %s535 = sadd.s32 %s534, 1
    %p538 = scmp.eq.s32.totalorder %s26, 1
    %p539 = scmp.ne.s32.totalorder %s534, %s536
    %p540 = scmp.eq.s32.totalorder %s26, 0
    %p541 = por %p539, %p540
    %p542 = scmp.ne.s32.totalorder %s534, %s536
    %p543 = scmp.eq.s32.totalorder %s31, 1
    %p544 = por %p542, %p543
    %p545 = scmp.ne.s32.totalorder %s536, %s537
    %p546 = scmp.eq.s32.totalorder %s31, 0
    %p547 = por %p545, %p546
    %p548 = scmp.ne.s32.totalorder %s536, %s537
    %p549 = scmp.eq.s32.totalorder %s32, 1
    %p550 = por %p548, %p549
    %p552 = scmp.ne.s32.totalorder %s537, %s551
    %p553 = scmp.eq.s32.totalorder %s32, 0
    %p554 = por %p552, %p553
    %p555 = scmp.le.s32.totalorder 1, %s26
    %p556 = scmp.lt.s32.totalorder %s26, 3
    %p557 = pnand %p555, %p556
    %p558 = pneg %p557
    // Predicated region
    $region9: #{owlvit_forward.2} parent=5 // pred_check
      _
    $region10: #{owlvit_forward.2} parent=5 // pred_check_branch
      %560 = sbr.rel (%p557) target = $region12
    $region11: #{owlvit_forward.2} parent=5 // pred_region
      %s561 = ssub.s32 %s26, 1
      // Predicated region
      $region13: #{owlvit_forward.2} parent=11 // pred_check
        %p562 = pneg %p47
      $region14: #{owlvit_forward.2} parent=11 // pred_check_branch
        %564 = sbr.rel (%p562) target = $region16
      $region15: #{owlvit_forward.2} parent=11 // pred_region
        _
      $region16: #{owlvit_forward.2} parent=11 // pred_fallthru
        _
      // Predicated region
      $region17: #{owlvit_forward.2} parent=11 // pred_check
        %p565 = pneg %p68
      $region18: #{owlvit_forward.2} parent=11 // pred_check_branch
        %567 = sbr.rel (%p565) target = $region20
      $region19: #{owlvit_forward.2} parent=11 // pred_region
        _
      $region20: #{owlvit_forward.2} parent=11 // pred_fallthru
        _
      // Predicated region
      $region21: #{owlvit_forward.2} parent=11 // pred_check
        %p568 = pneg %p505
      $region22: #{owlvit_forward.2} parent=11 // pred_check_branch
        %570 = sbr.rel (%p568) target = $region24
      $region23: #{owlvit_forward.2} parent=11 // pred_region
        _
      $region24: #{owlvit_forward.2} parent=11 // pred_fallthru
        _
      // Predicated region
      $region25: #{owlvit_forward.2} parent=11 // pred_check
        %p571 = pneg %p526
      $region26: #{owlvit_forward.2} parent=11 // pred_check_branch
        %573 = sbr.rel (%p571) target = $region28
      $region27: #{owlvit_forward.2} parent=11 // pred_region
        _
      $region28: #{owlvit_forward.2} parent=11 // pred_fallthru
        _
    $region12: #{owlvit_forward.2} parent=5 // pred_fallthru
      _
    %p574 = scmp.lt.s32.totalorder %s26, 2
    // Predicated region
    $region29: #{owlvit_forward.2} parent=5 // pred_check
      %p575 = pneg %p574
    $region30: #{owlvit_forward.2} parent=5 // pred_check_branch
      %577 = sbr.rel (%p575) target = $region32
    $region31: #{owlvit_forward.2} parent=5 // pred_region
      // Predicated region
      $region33: #{owlvit_forward.2} parent=31 // pred_check
        %p578 = pneg %p88
      $region34: #{owlvit_forward.2} parent=31 // pred_check_branch
        %580 = sbr.rel (%p578) target = $region36
      $region35: #{owlvit_forward.2} parent=31 // pred_region
        %p581 = scmp.lt.s32.totalorder %s26, 1
        %s582 = scalar_select %p581, %s26, 1
        %s583 = scalar_lea.vmem %s2, %s582
      $region36: #{owlvit_forward.2} parent=31 // pred_fallthru
        _
      // Predicated region
      $region37: #{owlvit_forward.2} parent=31 // pred_check
        %p584 = pneg %p114
      $region38: #{owlvit_forward.2} parent=31 // pred_check_branch
        %586 = sbr.rel (%p584) target = $region40
      $region39: #{owlvit_forward.2} parent=31 // pred_region
        %p587 = scmp.lt.s32.totalorder %s26, 1
        %s588 = scalar_select %p587, %s26, 1
        %s589 = scalar_lea.vmem %s3, %s588
      $region40: #{owlvit_forward.2} parent=31 // pred_fallthru
        _
      // Predicated region
      $region41: #{owlvit_forward.2} parent=31 // pred_check
        %p590 = pneg %p140
      $region42: #{owlvit_forward.2} parent=31 // pred_check_branch
        %592 = sbr.rel (%p590) target = $region44
      $region43: #{owlvit_forward.2} parent=31 // pred_region
        %p593 = scmp.lt.s32.totalorder %s26, 1
        %s594 = scalar_select %p593, %s26, 1
        %s595 = smul.addr %s594, 16
        %s596 = smul.addr %s595, 8
        %s597 = scalar_lea.vmem %s4, %s596
      $region44: #{owlvit_forward.2} parent=31 // pred_fallthru
        _
      // Predicated region
      $region45: #{owlvit_forward.2} parent=31 // pred_check
        %p598 = pneg %p166
      $region46: #{owlvit_forward.2} parent=31 // pred_check_branch
        %600 = sbr.rel (%p598) target = $region48
      $region47: #{owlvit_forward.2} parent=31 // pred_region
        %p601 = scmp.lt.s32.totalorder %s26, 1
        %s602 = scalar_select %p601, %s26, 1
        %s603 = smul.addr %s602, 4
        %s604 = scalar_lea.vmem %s5, %s603
      $region48: #{owlvit_forward.2} parent=31 // pred_fallthru
        _
      // Predicated region
      $region49: #{owlvit_forward.2} parent=31 // pred_check
        %p605 = pneg %p192
      $region50: #{owlvit_forward.2} parent=31 // pred_check_branch
        %607 = sbr.rel (%p605) target = $region52
      $region51: #{owlvit_forward.2} parent=31 // pred_region
        %p608 = scmp.lt.s32.totalorder %s26, 1
        %s609 = scalar_select %p608, %s26, 1
        %s610 = smul.addr %s609, 16
        %s611 = smul.addr %s610, 8
        %s612 = scalar_lea.vmem %s6, %s611
      $region52: #{owlvit_forward.2} parent=31 // pred_fallthru
        _
      // Predicated region
      $region53: #{owlvit_forward.2} parent=31 // pred_check
        %p613 = pneg %p218
      $region54: #{owlvit_forward.2} parent=31 // pred_check_branch
        %615 = sbr.rel (%p613) target = $region56
      $region55: #{owlvit_forward.2} parent=31 // pred_region
        %p616 = scmp.lt.s32.totalorder %s26, 1
        %s617 = scalar_select %p616, %s26, 1
        %s618 = smul.addr %s617, 4
        %s619 = scalar_lea.vmem %s7, %s618
      $region56: #{owlvit_forward.2} parent=31 // pred_fallthru
        _
      // Predicated region
      $region57: #{owlvit_forward.2} parent=31 // pred_check
        %p620 = pneg %p244
      $region58: #{owlvit_forward.2} parent=31 // pred_check_branch
        %622 = sbr.rel (%p620) target = $region60
      $region59: #{owlvit_forward.2} parent=31 // pred_region
        %p623 = scmp.lt.s32.totalorder %s26, 1
        %s624 = scalar_select %p623, %s26, 1
        %s625 = smul.addr %s624, 16
        %s626 = smul.addr %s625, 8
        %s627 = scalar_lea.vmem %s8, %s626
      $region60: #{owlvit_forward.2} parent=31 // pred_fallthru
        _
      // Predicated region
      $region61: #{owlvit_forward.2} parent=31 // pred_check
        %p628 = pneg %p270
      $region62: #{owlvit_forward.2} parent=31 // pred_check_branch
        %630 = sbr.rel (%p628) target = $region64
      $region63: #{owlvit_forward.2} parent=31 // pred_region
        %p631 = scmp.lt.s32.totalorder %s26, 1
        %s632 = scalar_select %p631, %s26, 1
        %s633 = smul.addr %s632, 4
        %s634 = scalar_lea.vmem %s9, %s633
      $region64: #{owlvit_forward.2} parent=31 // pred_fallthru
        _
      // Predicated region
      $region65: #{owlvit_forward.2} parent=31 // pred_check
        %p635 = pneg %p296
      $region66: #{owlvit_forward.2} parent=31 // pred_check_branch
        %637 = sbr.rel (%p635) target = $region68
      $region67: #{owlvit_forward.2} parent=31 // pred_region
        %p638 = scmp.lt.s32.totalorder %s26, 1
        %s639 = scalar_select %p638, %s26, 1
        %s640 = smul.addr %s639, 4
        %s641 = smul.addr %s640, 8
        %s642 = scalar_lea.vmem %s10, %s641
      $region68: #{owlvit_forward.2} parent=31 // pred_fallthru
        _
      // Predicated region
      $region69: #{owlvit_forward.2} parent=31 // pred_check
        %p643 = pneg %p322
      $region70: #{owlvit_forward.2} parent=31 // pred_check_branch
        %645 = sbr.rel (%p643) target = $region72
      $region71: #{owlvit_forward.2} parent=31 // pred_region
        %p646 = scmp.lt.s32.totalorder %s26, 1
        %s647 = scalar_select %p646, %s26, 1
        %s648 = scalar_lea.vmem %s11, %s647
      $region72: #{owlvit_forward.2} parent=31 // pred_fallthru
        _
      // Predicated region
      $region73: #{owlvit_forward.2} parent=31 // pred_check
        %p649 = pneg %p348
      $region74: #{owlvit_forward.2} parent=31 // pred_check_branch
        %651 = sbr.rel (%p649) target = $region76
      $region75: #{owlvit_forward.2} parent=31 // pred_region
        %p652 = scmp.lt.s32.totalorder %s26, 1
        %s653 = scalar_select %p652, %s26, 1
        %s654 = scalar_lea.vmem %s12, %s653
      $region76: #{owlvit_forward.2} parent=31 // pred_fallthru
        _
      // Predicated region
      $region77: #{owlvit_forward.2} parent=31 // pred_check
        %p655 = pneg %p374
      $region78: #{owlvit_forward.2} parent=31 // pred_check_branch
        %657 = sbr.rel (%p655) target = $region80
      $region79: #{owlvit_forward.2} parent=31 // pred_region
        %p658 = scmp.lt.s32.totalorder %s26, 1
        %s659 = scalar_select %p658, %s26, 1
        %s660 = scalar_lea.vmem %s13, %s659
      $region80: #{owlvit_forward.2} parent=31 // pred_fallthru
        _
      // Predicated region
      $region81: #{owlvit_forward.2} parent=31 // pred_check
        %p661 = pneg %p400
      $region82: #{owlvit_forward.2} parent=31 // pred_check_branch
        %663 = sbr.rel (%p661) target = $region84
      $region83: #{owlvit_forward.2} parent=31 // pred_region
        %p664 = scmp.lt.s32.totalorder %s26, 1
        %s665 = scalar_select %p664, %s26, 1
        %s666 = smul.addr %s665, 4
        %s667 = smul.addr %s666, 8
        %s668 = scalar_lea.vmem %s14, %s667
      $region84: #{owlvit_forward.2} parent=31 // pred_fallthru
        _
      // Predicated region
      $region85: #{owlvit_forward.2} parent=31 // pred_check
        %p669 = pneg %p426
      $region86: #{owlvit_forward.2} parent=31 // pred_check_branch
        %671 = sbr.rel (%p669) target = $region88
      $region87: #{owlvit_forward.2} parent=31 // pred_region
        %p672 = scmp.lt.s32.totalorder %s26, 1
        %s673 = scalar_select %p672, %s26, 1
        %s674 = scalar_lea.vmem %s15, %s673
      $region88: #{owlvit_forward.2} parent=31 // pred_fallthru
        _
      // Predicated region
      $region89: #{owlvit_forward.2} parent=31 // pred_check
        %p675 = pneg %p452
      $region90: #{owlvit_forward.2} parent=31 // pred_check_branch
        %677 = sbr.rel (%p675) target = $region92
      $region91: #{owlvit_forward.2} parent=31 // pred_region
        %p678 = scmp.lt.s32.totalorder %s26, 1
        %s679 = scalar_select %p678, %s26, 1
        %s680 = smul.addr %s679, 8
        %s681 = smul.addr %s680, 8
        %s682 = scalar_lea.vmem %s16, %s681
      $region92: #{owlvit_forward.2} parent=31 // pred_fallthru
        _
      // Predicated region
      $region93: #{owlvit_forward.2} parent=31 // pred_check
        %p683 = pneg %p478
      $region94: #{owlvit_forward.2} parent=31 // pred_check_branch
        %685 = sbr.rel (%p683) target = $region96
      $region95: #{owlvit_forward.2} parent=31 // pred_region
        %p686 = scmp.lt.s32.totalorder %s26, 1
        %s687 = scalar_select %p686, %s26, 1
        %s688 = scalar_lea.vmem %s17, %s687
      $region96: #{owlvit_forward.2} parent=31 // pred_fallthru
        _
    $region32: #{owlvit_forward.2} parent=5 // pred_fallthru
      _
    %p689 = scmp.le.s32.totalorder 1, %s26
    %p690 = scmp.lt.s32.totalorder %s26, 3
    %p691 = pnand %p689, %p690
    %p692 = pneg %p691
    // Predicated region
    $region97: #{owlvit_forward.2} parent=5 // pred_check
      _
    $region98: #{owlvit_forward.2} parent=5 // pred_check_branch
      %694 = sbr.rel (%p691) target = $region100
    $region99: #{owlvit_forward.2} parent=5 // pred_region
      %s695 = ssub.s32 %s26, 1
      %p696 = pneg %p47
      %p697 = pneg %p44
      %p698 = pneg %p68
      %p699 = pneg %p65
      %p700 = scmp.lt.s32.totalorder %s31, 1
      %s701 = scalar_select %p700, %s31, 1
      %s702 = scalar_lea.vmem %s2, %s701
      %p703 = pneg %p94
      %p704 = pneg %p91
      %p705 = scmp.lt.s32.totalorder %s31, 1
      %s706 = scalar_select %p705, %s31, 1
      %s707 = scalar_lea.vmem %s3, %s706
      %p708 = pneg %p120
      %p709 = pneg %p117
      %p710 = scmp.lt.s32.totalorder %s31, 1
      %s711 = scalar_select %p710, %s31, 1
      %s712 = smul.addr %s711, 16
      %s713 = smul.addr %s712, 8
      %s714 = scalar_lea.vmem %s4, %s713
      %p715 = pneg %p146
      %p716 = pneg %p143
      %p717 = scmp.lt.s32.totalorder %s31, 1
      %s718 = scalar_select %p717, %s31, 1
      %s719 = smul.addr %s718, 4
      %s720 = scalar_lea.vmem %s5, %s719
      %p721 = pneg %p172
      %p722 = pneg %p169
      %p723 = scmp.lt.s32.totalorder %s31, 1
      %s724 = scalar_select %p723, %s31, 1
      %s725 = smul.addr %s724, 16
      %s726 = smul.addr %s725, 8
      %s727 = scalar_lea.vmem %s6, %s726
      %p728 = pneg %p198
      %p729 = pneg %p195
      %p730 = scmp.lt.s32.totalorder %s31, 1
      %s731 = scalar_select %p730, %s31, 1
      %s732 = smul.addr %s731, 4
      %s733 = scalar_lea.vmem %s7, %s732
      %p734 = pneg %p224
      %p735 = pneg %p221
      %p736 = scmp.lt.s32.totalorder %s31, 1
      %s737 = scalar_select %p736, %s31, 1
      %s738 = smul.addr %s737, 16
      %s739 = smul.addr %s738, 8
      %s740 = scalar_lea.vmem %s8, %s739
      %p741 = pneg %p250
      %p742 = pneg %p247
      %p743 = scmp.lt.s32.totalorder %s31, 1
      %s744 = scalar_select %p743, %s31, 1
      %s745 = smul.addr %s744, 4
      %s746 = scalar_lea.vmem %s9, %s745
      %p747 = pneg %p276
      %p748 = pneg %p273
      %p749 = scmp.lt.s32.totalorder %s31, 1
      %s750 = scalar_select %p749, %s31, 1
      %s751 = smul.addr %s750, 4
      %s752 = smul.addr %s751, 8
      %s753 = scalar_lea.vmem %s10, %s752
      %p754 = pneg %p302
      %p755 = pneg %p299
      %p756 = scmp.lt.s32.totalorder %s31, 1
      %s757 = scalar_select %p756, %s31, 1
      %s758 = scalar_lea.vmem %s11, %s757
      %p759 = pneg %p328
      %p760 = pneg %p325
      %p761 = scmp.lt.s32.totalorder %s31, 1
      %s762 = scalar_select %p761, %s31, 1
      %s763 = scalar_lea.vmem %s12, %s762
      %p764 = pneg %p354
      %p765 = pneg %p351
      %p766 = scmp.lt.s32.totalorder %s31, 1
      %s767 = scalar_select %p766, %s31, 1
      %s768 = scalar_lea.vmem %s13, %s767
      %p769 = pneg %p380
      %p770 = pneg %p377
      %p771 = scmp.lt.s32.totalorder %s31, 1
      %s772 = scalar_select %p771, %s31, 1
      %s773 = smul.addr %s772, 4
      %s774 = smul.addr %s773, 8
      %s775 = scalar_lea.vmem %s14, %s774
      %p776 = pneg %p406
      %p777 = pneg %p403
      %p778 = scmp.lt.s32.totalorder %s31, 1
      %s779 = scalar_select %p778, %s31, 1
      %s780 = scalar_lea.vmem %s15, %s779
      %p781 = pneg %p432
      %p782 = pneg %p429
      %p783 = scmp.lt.s32.totalorder %s31, 1
      %s784 = scalar_select %p783, %s31, 1
      %s785 = smul.addr %s784, 8
      %s786 = smul.addr %s785, 8
      %s787 = scalar_lea.vmem %s16, %s786
      %p788 = pneg %p458
      %p789 = pneg %p455
      %p790 = scmp.lt.s32.totalorder %s31, 1
      %s791 = scalar_select %p790, %s31, 1
      %s792 = scalar_lea.vmem %s17, %s791
      %p793 = pneg %p484
      %p794 = pneg %p481
      %p795 = pneg %p505
      %p796 = pneg %p502
      %p797 = pneg %p526
      %p798 = pneg %p523
      %p799 = pneg %p547
      %p800 = pneg %p544
      %p801 = scmp.lt.s32.totalorder %s31, 1
      %s802 = scalar_select %p801, %s31, 1
      %s803 = scalar_lea.vmem %s2, %s802
      %p804 = scmp.lt.s32.totalorder %s31, 1
      %s805 = scalar_select %p804, %s31, 1
      %s806 = scalar_lea.vmem %s3, %s805
      %p807 = scmp.lt.s32.totalorder %s31, 1
      %s808 = scalar_select %p807, %s31, 1
      %s809 = smul.addr %s808, 16
      %s810 = smul.addr %s809, 8
      %s811 = scalar_lea.vmem %s4, %s810
      %p812 = scmp.lt.s32.totalorder %s31, 1
      %s813 = scalar_select %p812, %s31, 1
      %s814 = smul.addr %s813, 4
      %s815 = scalar_lea.vmem %s5, %s814
      %p816 = scmp.lt.s32.totalorder %s31, 1
      %s817 = scalar_select %p816, %s31, 1
      %s818 = smul.addr %s817, 16
      %s819 = smul.addr %s818, 8
      %s820 = scalar_lea.vmem %s6, %s819
      %p821 = scmp.lt.s32.totalorder %s31, 1
      %s822 = scalar_select %p821, %s31, 1
      %s823 = smul.addr %s822, 4
      %s824 = scalar_lea.vmem %s7, %s823
      %p825 = scmp.lt.s32.totalorder %s31, 1
      %s826 = scalar_select %p825, %s31, 1
      %s827 = smul.addr %s826, 16
      %s828 = smul.addr %s827, 8
      %s829 = scalar_lea.vmem %s8, %s828
      %p830 = scmp.lt.s32.totalorder %s31, 1
      %s831 = scalar_select %p830, %s31, 1
      %s832 = smul.addr %s831, 4
      %s833 = scalar_lea.vmem %s9, %s832
      %p834 = scmp.lt.s32.totalorder %s31, 1
      %s835 = scalar_select %p834, %s31, 1
      %s836 = smul.addr %s835, 4
      %s837 = smul.addr %s836, 8
      %s838 = scalar_lea.vmem %s10, %s837
      %p839 = scmp.lt.s32.totalorder %s31, 1
      %s840 = scalar_select %p839, %s31, 1
      %s841 = scalar_lea.vmem %s11, %s840
      %p842 = scmp.lt.s32.totalorder %s31, 1
      %s843 = scalar_select %p842, %s31, 1
      %s844 = scalar_lea.vmem %s12, %s843
      %p845 = scmp.lt.s32.totalorder %s31, 1
      %s846 = scalar_select %p845, %s31, 1
      %s847 = scalar_lea.vmem %s13, %s846
      %p848 = scmp.lt.s32.totalorder %s31, 1
      %s849 = scalar_select %p848, %s31, 1
      %s850 = smul.addr %s849, 4
      %s851 = smul.addr %s850, 8
      %s852 = scalar_lea.vmem %s14, %s851
      %p853 = scmp.lt.s32.totalorder %s31, 1
      %s854 = scalar_select %p853, %s31, 1
      %s855 = scalar_lea.vmem %s15, %s854
      %p856 = scmp.lt.s32.totalorder %s31, 1
      %s857 = scalar_select %p856, %s31, 1
      %s858 = smul.addr %s857, 8
      %s859 = smul.addr %s858, 8
      %s860 = scalar_lea.vmem %s16, %s859
      %p861 = scmp.lt.s32.totalorder %s31, 1
      %s862 = scalar_select %p861, %s31, 1
      %s863 = scalar_lea.vmem %s17, %s862
      %p864 = scmp.eq.s32.totalorder %s31, 0
      // Predicated region
      $region101: #{owlvit_forward.2} parent=99 // pred_check
        %p865 = pneg %p864
      $region102: #{owlvit_forward.2} parent=99 // pred_check_branch
        %867 = sbr.rel (%p865) target = $region104
      $region103: #{owlvit_forward.2} parent=99 // pred_region
        %v868 = vld [vmem:[%s0] sm:$0xff]
        %v869 = vld [vmem:[%s0 + $0x8] sm:$0xff]
        %v870 = vld [vmem:[%s0 + $0x10] sm:$0xff]
        %v871 = vld [vmem:[%s0 + $0x18] sm:$0xff]
        %vm872 = vcmask 261120
        %873 = vst.msk [vmem:[#allocation2] sm:$0xff] %vm872, %v868
        %874 = vst.msk [vmem:[#allocation2 + $0x8] sm:$0xff] %vm872, %v869
        %875 = vst.msk [vmem:[#allocation2 + $0x10] sm:$0xff] %vm872, %v870
        %876 = vst.msk [vmem:[#allocation2 + $0x18] sm:$0xff] %vm872, %v871
      $region104: #{owlvit_forward.2} parent=99 // pred_fallthru
        _
      %v877 = vld [vmem:[%s1] sm:$0xff]
      %v878 = vld [vmem:[%s1 + $0x8] sm:$0xff]
      %v879 = vld [vmem:[%s1 + $0x10] sm:$0xff]
      %v880 = vld [vmem:[%s1 + $0x18] sm:$0xff]
      %v881 = vld [vmem:[#allocation2] sm:$0xff]
      %v882 = vld [vmem:[#allocation2 + $0x8] sm:$0xff]
      %v883 = vld [vmem:[#allocation2 + $0x10] sm:$0xff]
      %v884 = vld [vmem:[#allocation2 + $0x18] sm:$0xff]
      %v885 = vld [vmem:[%s803] sm:$0x1]
      %v886 = vld [vmem:[%s806] sm:$0x1]
      %v887 = vld [vmem:[%s841] sm:$0x1]
      %v888 = vld [vmem:[%s844] sm:$0x1]
      %v889 = vld [vmem:[%s847] sm:$0x1]
      %v890 = vld [vmem:[%s852] sm:$0xff]
      %v891 = vld [vmem:[%s852 + $0x8] sm:$0xff]
      %v892 = vld [vmem:[%s852 + $0x10] sm:$0xff]
      %v893 = vld [vmem:[%s852 + $0x18] sm:$0xff]
      %v894 = vld [vmem:[%s855] sm:$0x1]
      %v895 = vld [vmem:[%s860] sm:$0xff]
      %v896 = vld [vmem:[%s860 + $0x8] sm:$0xff]
      %v897 = vld [vmem:[%s860 + $0x10] sm:$0xff]
      %v898 = vld [vmem:[%s860 + $0x18] sm:$0xff]
      %v899 = vld [vmem:[%s860 + $0x20] sm:$0xff]
      %v900 = vld [vmem:[%s860 + $0x28] sm:$0xff]
      %v901 = vld [vmem:[%s860 + $0x30] sm:$0xff]
      %v902 = vld [vmem:[%s860 + $0x38] sm:$0xff]
      %v903 = vld [vmem:[%s863] sm:$0x1]
      %vm904 = vcmask 261120
      %v905 = vsel %vm904, %v881, 0.0
      %906 = vadd.xlane.f32.xlu0 %v905
      %v907 = vpop.xlane.xlu0 %906
      %v908 = vsel %vm904, %v882, 0.0
      %909 = vadd.xlane.f32.xlu0 %v908
      %v910 = vpop.xlane.xlu0 %909
      %v911 = vsel %vm904, %v883, 0.0
      %912 = vadd.xlane.f32.xlu0 %v911
      %v913 = vpop.xlane.xlu0 %912
      %v914 = vsel %vm904, %v884, 0.0
      %915 = vadd.xlane.f32.xlu0 %v914
      %v916 = vpop.xlane.xlu0 %915
      %v917 = vrcp.pop 32.0
      %v918 = vmul.f32 %v907, %v917
      %v919 = vmul.f32 %v910, %v917
      %v920 = vmul.f32 %v913, %v917
      %v921 = vmul.f32 %v916, %v917
      %v922 = vsub.f32 %v881, %v918
      %v923 = vsub.f32 %v882, %v919
      %v924 = vsub.f32 %v883, %v920
      %v925 = vsub.f32 %v884, %v921
      %v926 = vmul.f32 %v922, %v922
      %v927 = vmul.f32 %v923, %v923
      %v928 = vmul.f32 %v924, %v924
      %v929 = vmul.f32 %v925, %v925
      %v930 = vsel %vm904, %v926, 0.0
      %931 = vadd.xlane.f32.xlu0 %v930
      %v932 = vpop.xlane.xlu0 %931
      %v933 = vsel %vm904, %v927, 0.0
      %934 = vadd.xlane.f32.xlu0 %v933
      %v935 = vpop.xlane.xlu0 %934
      %v936 = vsel %vm904, %v928, 0.0
      %937 = vadd.xlane.f32.xlu0 %v936
      %v938 = vpop.xlane.xlu0 %937
      %v939 = vsel %vm904, %v929, 0.0
      %940 = vadd.xlane.f32.xlu0 %v939
      %v941 = vpop.xlane.xlu0 %940
      %v942 = vmul.f32 %v932, %v917
      %v943 = vmul.f32 %v935, %v917
      %v944 = vmul.f32 %v938, %v917
      %v945 = vmul.f32 %v941, %v917
      %v946 = vadd.f32 %v942, 1e-05
      %v947 = vadd.f32 %v943, 1e-05
      %v948 = vadd.f32 %v944, 1e-05
      %v949 = vadd.f32 %v945, 1e-05
      %v950 = vrsqrt.pop %v946
      %v951 = vrsqrt.pop %v947
      %v952 = vrsqrt.pop %v948
      %v953 = vrsqrt.pop %v949
      %v954 = vmul.f32 %v922, %v950
      %v955 = vmul.f32 %v923, %v951
      %v956 = vmul.f32 %v924, %v952
      %v957 = vmul.f32 %v925, %v953
      %v959 = vlaneseq
      %v960 = vshrl.u32 %v959, 7
      %v961 = vsub.s32 0, %v960
      %v962 = vrot.slane %v885, %v961
      %v964 = vmul.f32 %v954, %v962
      %v965 = vmul.f32 %v955, %v962
      %v966 = vmul.f32 %v956, %v962
      %v967 = vmul.f32 %v957, %v962
      %v969 = vlaneseq
      %v970 = vshrl.u32 %v969, 7
      %v971 = vsub.s32 0, %v970
      %v972 = vrot.slane %v886, %v971
      %v974 = vadd.f32 %v964, %v972
      %v975 = vadd.f32 %v965, %v972
      %v976 = vadd.f32 %v966, %v972
      %v977 = vadd.f32 %v967, %v972
      %v978 = vld [vmem:[%s811] sm:$0xff]
      %v979 = vld [vmem:[%s811 + $0x8] sm:$0xff]
      %v980 = vld [vmem:[%s811 + $0x10] sm:$0xff]
      %v981 = vld [vmem:[%s811 + $0x18] sm:$0xff]
      %v982 = vld [vmem:[%s815] sm:$0x1]
      %v984 = vlaneseq
      %v985 = vshrl.u32 %v984, 7
      %v986 = vsub.s32 0, %v985
      %v987 = vrot.slane %v982, %v986
      %v990 = vsel %vm904, %v974, 0
      %v993 = vsel %vm904, %v975, 0
      %v996 = vsel %vm904, %v976, 0
      %v999 = vsel %vm904, %v977, 0
      %1001 = vmatprep.subr.mxu0 0.0
      %1002 = vmatpush1.msra.mxu0 %v978
      %1003 = vmatprep.subr.mxu0 0.0
      %1004 = vmatpush1.msra.mxu0 %v979
      %1005 = vmatprep.subr.mxu0 0.0
      %1006 = vmatpush1.msra.mxu0 %v980
      %1007 = vmatprep.subr.mxu0 0.0
      %1008 = vmatpush1.msra.mxu0 %v981
      %1009 = vmatprep.subr.mxu0 0.0
      %1010 = vmatpush1.msra.mxu0 0.0
      %1011 = vmatprep.subr.mxu0 0.0
      %1012 = vmatpush1.msra.mxu0 0.0
      %1013 = vmatprep.subr.mxu0 0.0
      %1014 = vmatpush1.msra.mxu0 0.0
      %1015 = vmatprep.subr.mxu0 0.0
      %1016 = vmatpush1.msra.mxu0 0.0
      %1017 = vmatprep.subr.mxu0 0.0
      %1018 = vmatpush1.msra.mxu0 0.0
      %1019 = vmatprep.subr.mxu0 0.0
      %1020 = vmatpush1.msra.mxu0 0.0
      %1021 = vmatprep.subr.mxu0 0.0
      %1022 = vmatpush1.msra.mxu0 0.0
      %1023 = vmatprep.subr.mxu0 0.0
      %1024 = vmatpush1.msra.mxu0 0.0
      %1025 = vmatprep.subr.mxu0 0.0
      %1026 = vmatpush1.msra.mxu0 0.0
      %1027 = vmatprep.subr.mxu0 0.0
      %1028 = vmatpush1.msra.mxu0 0.0
      %1029 = vmatprep.subr.mxu0 0.0
      %1030 = vmatpush1.msra.mxu0 0.0
      %1031 = vmatprep.subr.mxu0 0.0
      %1032 = vmatpush1.msra.mxu0 0.0
      %1033 = vmatprep.subr.mxu0 0.0
      %1034 = vmatpush1.msra.mxu0 0.0
      %1035 = vmatprep.subr.mxu0 0.0
      %1036 = vmatpush1.msra.mxu0 0.0
      %1037 = vmatprep.subr.mxu0 0.0
      %1038 = vmatpush1.msra.mxu0 0.0
      %1039 = vmatprep.subr.mxu0 0.0
      %1040 = vmatpush1.msra.mxu0 0.0
      %1041 = vmatprep.subr.mxu0 0.0
      %1042 = vmatpush1.msra.mxu0 0.0
      %1043 = vmatprep.subr.mxu0 0.0
      %1044 = vmatpush1.msra.mxu0 0.0
      %1045 = vmatprep.subr.mxu0 0.0
      %1046 = vmatpush1.msra.mxu0 0.0
      %1047 = vmatprep.subr.mxu0 0.0
      %1048 = vmatpush1.msra.mxu0 0.0
      %1049 = vmatprep.subr.mxu0 0.0
      %1050 = vmatpush1.msra.mxu0 0.0
      %1051 = vmatprep.subr.mxu0 0.0
      %1052 = vmatpush1.msra.mxu0 0.0
      %1053 = vmatprep.subr.mxu0 0.0
      %1054 = vmatpush1.msra.mxu0 0.0
      %1055 = vmatprep.subr.mxu0 0.0
      %1056 = vmatpush1.msra.mxu0 0.0
      %1057 = vmatprep.subr.mxu0 0.0
      %1058 = vmatpush1.msra.mxu0 0.0
      %1059 = vmatprep.subr.mxu0 0.0
      %1060 = vmatpush1.msra.mxu0 0.0
      %1061 = vmatprep.subr.mxu0 0.0
      %1062 = vmatpush1.msra.mxu0 0.0
      %1063 = vmatprep.subr.mxu0 0.0
      %1064 = vmatpush1.msra.mxu0 0.0
      %1065 = vmatprep.mubr.f32.mxu0 0.0
      %1066 = vmatmul.mubr.f32.gmra.mrb[0].mxu0 %v990
      %v1067 = vpop.f32.mrb[0].mxu0
      %v1068 = vadd.f32 %v987, %v1067
      %v1069 = vpop.f32.mrb[0].mxu0
      %1070 = vmatprep.mubr.f32.mxu0 0.0
      %1071 = vmatmul.mubr.f32.gmra.mrb[0].mxu0 %v993
      %v1072 = vpop.f32.mrb[0].mxu0
      %v1073 = vadd.f32 %v987, %v1072
      %v1074 = vpop.f32.mrb[0].mxu0
      %1075 = vmatprep.mubr.f32.mxu0 0.0
      %1076 = vmatmul.mubr.f32.gmra.mrb[0].mxu0 %v996
      %v1077 = vpop.f32.mrb[0].mxu0
      %v1078 = vadd.f32 %v987, %v1077
      %v1079 = vpop.f32.mrb[0].mxu0
      %1080 = vmatprep.mubr.f32.mxu0 0.0
      %1081 = vmatmul.mubr.f32.gmra.mrb[0].mxu0 %v999
      %v1082 = vpop.f32.mrb[0].mxu0
      %v1083 = vadd.f32 %v987, %v1082
      %v1084 = vpop.f32.mrb[0].mxu0
      %1085 = vdwg.mxu0
      %v1086 = vld [vmem:[%s820] sm:$0xff]
      %v1087 = vld [vmem:[%s820 + $0x8] sm:$0xff]
      %v1088 = vld [vmem:[%s820 + $0x10] sm:$0xff]
      %v1089 = vld [vmem:[%s820 + $0x18] sm:$0xff]
      %v1090 = vld [vmem:[%s824] sm:$0x1]
      %v1092 = vlaneseq
      %v1093 = vshrl.u32 %v1092, 7
      %v1094 = vsub.s32 0, %v1093
      %v1095 = vrot.slane %v1090, %v1094
      %1097 = vmatprep.subr.mxu0 0.0
      %1098 = vmatpush1.msra.mxu0 %v1086
      %1099 = vmatprep.subr.mxu0 0.0
      %1100 = vmatpush1.msra.mxu0 %v1087
      %1101 = vmatprep.subr.mxu0 0.0
      %1102 = vmatpush1.msra.mxu0 %v1088
      %1103 = vmatprep.subr.mxu0 0.0
      %1104 = vmatpush1.msra.mxu0 %v1089
      %1105 = vmatprep.subr.mxu0 0.0
      %1106 = vmatpush1.msra.mxu0 0.0
      %1107 = vmatprep.subr.mxu0 0.0
      %1108 = vmatpush1.msra.mxu0 0.0
      %1109 = vmatprep.subr.mxu0 0.0
      %1110 = vmatpush1.msra.mxu0 0.0
      %1111 = vmatprep.subr.mxu0 0.0
      %1112 = vmatpush1.msra.mxu0 0.0
      %1113 = vmatprep.subr.mxu0 0.0
      %1114 = vmatpush1.msra.mxu0 0.0
      %1115 = vmatprep.subr.mxu0 0.0
      %1116 = vmatpush1.msra.mxu0 0.0
      %1117 = vmatprep.subr.mxu0 0.0
      %1118 = vmatpush1.msra.mxu0 0.0
      %1119 = vmatprep.subr.mxu0 0.0
      %1120 = vmatpush1.msra.mxu0 0.0
      %1121 = vmatprep.subr.mxu0 0.0
      %1122 = vmatpush1.msra.mxu0 0.0
      %1123 = vmatprep.subr.mxu0 0.0
      %1124 = vmatpush1.msra.mxu0 0.0
      %1125 = vmatprep.subr.mxu0 0.0
      %1126 = vmatpush1.msra.mxu0 0.0
      %1127 = vmatprep.subr.mxu0 0.0
      %1128 = vmatpush1.msra.mxu0 0.0
      %1129 = vmatprep.subr.mxu0 0.0
      %1130 = vmatpush1.msra.mxu0 0.0
      %1131 = vmatprep.subr.mxu0 0.0
      %1132 = vmatpush1.msra.mxu0 0.0
      %1133 = vmatprep.subr.mxu0 0.0
      %1134 = vmatpush1.msra.mxu0 0.0
      %1135 = vmatprep.subr.mxu0 0.0
      %1136 = vmatpush1.msra.mxu0 0.0
      %1137 = vmatprep.subr.mxu0 0.0
      %1138 = vmatpush1.msra.mxu0 0.0
      %1139 = vmatprep.subr.mxu0 0.0
      %1140 = vmatpush1.msra.mxu0 0.0
      %1141 = vmatprep.subr.mxu0 0.0
      %1142 = vmatpush1.msra.mxu0 0.0
      %1143 = vmatprep.subr.mxu0 0.0
      %1144 = vmatpush1.msra.mxu0 0.0
      %1145 = vmatprep.subr.mxu0 0.0
      %1146 = vmatpush1.msra.mxu0 0.0
      %1147 = vmatprep.subr.mxu0 0.0
      %1148 = vmatpush1.msra.mxu0 0.0
      %1149 = vmatprep.subr.mxu0 0.0
      %1150 = vmatpush1.msra.mxu0 0.0
      %1151 = vmatprep.subr.mxu0 0.0
      %1152 = vmatpush1.msra.mxu0 0.0
      %1153 = vmatprep.subr.mxu0 0.0
      %1154 = vmatpush1.msra.mxu0 0.0
      %1155 = vmatprep.subr.mxu0 0.0
      %1156 = vmatpush1.msra.mxu0 0.0
      %1157 = vmatprep.subr.mxu0 0.0
      %1158 = vmatpush1.msra.mxu0 0.0
      %1159 = vmatprep.subr.mxu0 0.0
      %1160 = vmatpush1.msra.mxu0 0.0
      %1161 = vmatprep.mubr.f32.mxu0 0.0
      %1162 = vmatmul.mubr.f32.gmra.mrb[0].mxu0 %v990
      %v1163 = vpop.f32.mrb[0].mxu0
      %v1164 = vadd.f32 %v1095, %v1163
      %v1165 = vpop.f32.mrb[0].mxu0
      %1166 = vmatprep.mubr.f32.mxu0 0.0
      %1167 = vmatmul.mubr.f32.gmra.mrb[0].mxu0 %v993
      %v1168 = vpop.f32.mrb[0].mxu0
      %v1169 = vadd.f32 %v1095, %v1168
      %v1170 = vpop.f32.mrb[0].mxu0
      %1171 = vmatprep.mubr.f32.mxu0 0.0
      %1172 = vmatmul.mubr.f32.gmra.mrb[0].mxu0 %v996
      %v1173 = vpop.f32.mrb[0].mxu0
      %v1174 = vadd.f32 %v1095, %v1173
      %v1175 = vpop.f32.mrb[0].mxu0
      %1176 = vmatprep.mubr.f32.mxu0 0.0
      %1177 = vmatmul.mubr.f32.gmra.mrb[0].mxu0 %v999
      %v1178 = vpop.f32.mrb[0].mxu0
      %v1179 = vadd.f32 %v1095, %v1178
      %v1180 = vpop.f32.mrb[0].mxu0
      %1181 = vdwg.mxu0
      %v1182 = vld [vmem:[%s829] sm:$0xff]
      %v1183 = vld [vmem:[%s829 + $0x8] sm:$0xff]
      %v1184 = vld [vmem:[%s829 + $0x10] sm:$0xff]
      %v1185 = vld [vmem:[%s829 + $0x18] sm:$0xff]
      %v1186 = vld [vmem:[%s833] sm:$0x1]
      %v1188 = vlaneseq
      %v1189 = vshrl.u32 %v1188, 7
      %v1190 = vsub.s32 0, %v1189
      %v1191 = vrot.slane %v1186, %v1190
      %1193 = vmatprep.subr.mxu0 0.0
      %1194 = vmatpush1.msra.mxu0 %v1182
      %1195 = vmatprep.subr.mxu0 0.0
      %1196 = vmatpush1.msra.mxu0 %v1183
      %1197 = vmatprep.subr.mxu0 0.0
      %1198 = vmatpush1.msra.mxu0 %v1184
      %1199 = vmatprep.subr.mxu0 0.0
      %1200 = vmatpush1.msra.mxu0 %v1185
      %1201 = vmatprep.subr.mxu0 0.0
      %1202 = vmatpush1.msra.mxu0 0.0
      %1203 = vmatprep.subr.mxu0 0.0
      %1204 = vmatpush1.msra.mxu0 0.0
      %1205 = vmatprep.subr.mxu0 0.0
      %1206 = vmatpush1.msra.mxu0 0.0
      %1207 = vmatprep.subr.mxu0 0.0
      %1208 = vmatpush1.msra.mxu0 0.0
      %1209 = vmatprep.subr.mxu0 0.0
      %1210 = vmatpush1.msra.mxu0 0.0
      %1211 = vmatprep.subr.mxu0 0.0
      %1212 = vmatpush1.msra.mxu0 0.0
      %1213 = vmatprep.subr.mxu0 0.0
      %1214 = vmatpush1.msra.mxu0 0.0
      %1215 = vmatprep.subr.mxu0 0.0
      %1216 = vmatpush1.msra.mxu0 0.0
      %1217 = vmatprep.subr.mxu0 0.0
      %1218 = vmatpush1.msra.mxu0 0.0
      %1219 = vmatprep.subr.mxu0 0.0
      %1220 = vmatpush1.msra.mxu0 0.0
      %1221 = vmatprep.subr.mxu0 0.0
      %1222 = vmatpush1.msra.mxu0 0.0
      %1223 = vmatprep.subr.mxu0 0.0
      %1224 = vmatpush1.msra.mxu0 0.0
      %1225 = vmatprep.subr.mxu0 0.0
      %1226 = vmatpush1.msra.mxu0 0.0
      %1227 = vmatprep.subr.mxu0 0.0
      %1228 = vmatpush1.msra.mxu0 0.0
      %1229 = vmatprep.subr.mxu0 0.0
      %1230 = vmatpush1.msra.mxu0 0.0
      %1231 = vmatprep.subr.mxu0 0.0
      %1232 = vmatpush1.msra.mxu0 0.0
      %1233 = vmatprep.subr.mxu0 0.0
      %1234 = vmatpush1.msra.mxu0 0.0
      %1235 = vmatprep.subr.mxu0 0.0
      %1236 = vmatpush1.msra.mxu0 0.0
      %1237 = vmatprep.subr.mxu0 0.0
      %1238 = vmatpush1.msra.mxu0 0.0
      %1239 = vmatprep.subr.mxu0 0.0
      %1240 = vmatpush1.msra.mxu0 0.0
      %1241 = vmatprep.subr.mxu0 0.0
      %1242 = vmatpush1.msra.mxu0 0.0
      %1243 = vmatprep.subr.mxu0 0.0
      %1244 = vmatpush1.msra.mxu0 0.0
      %1245 = vmatprep.subr.mxu0 0.0
      %1246 = vmatpush1.msra.mxu0 0.0
      %1247 = vmatprep.subr.mxu0 0.0
      %1248 = vmatpush1.msra.mxu0 0.0
      %1249 = vmatprep.subr.mxu0 0.0
      %1250 = vmatpush1.msra.mxu0 0.0
      %1251 = vmatprep.subr.mxu0 0.0
      %1252 = vmatpush1.msra.mxu0 0.0
      %1253 = vmatprep.subr.mxu0 0.0
      %1254 = vmatpush1.msra.mxu0 0.0
      %1255 = vmatprep.subr.mxu0 0.0
      %1256 = vmatpush1.msra.mxu0 0.0
      %1257 = vmatprep.mubr.f32.mxu0 0.0
      %1258 = vmatmul.mubr.f32.gmra.mrb[0].mxu0 %v990
      %v1259 = vpop.f32.mrb[0].mxu0
      %v1260 = vadd.f32 %v1191, %v1259
      %v1261 = vpop.f32.mrb[0].mxu0
      %1262 = vmatprep.mubr.f32.mxu0 0.0
      %1263 = vmatmul.mubr.f32.gmra.mrb[0].mxu0 %v993
      %v1264 = vpop.f32.mrb[0].mxu0
      %v1265 = vadd.f32 %v1191, %v1264
      %v1266 = vpop.f32.mrb[0].mxu0
      %1267 = vmatprep.mubr.f32.mxu0 0.0
      %1268 = vmatmul.mubr.f32.gmra.mrb[0].mxu0 %v996
      %v1269 = vpop.f32.mrb[0].mxu0
      %v1270 = vadd.f32 %v1191, %v1269
      %v1271 = vpop.f32.mrb[0].mxu0
      %1272 = vmatprep.mubr.f32.mxu0 0.0
      %1273 = vmatmul.mubr.f32.gmra.mrb[0].mxu0 %v999
      %v1274 = vpop.f32.mrb[0].mxu0
      %v1275 = vadd.f32 %v1191, %v1274
      %v1276 = vpop.f32.mrb[0].mxu0
      %1277 = vdwg.mxu0
      %vm1278 = vcmask 64512
      %v1280 = vsel %vm1278, %v1068, 0
      %v1283 = vsel %vm1278, %v1073, 0
      %v1286 = vsel %vm1278, %v1078, 0
      %v1289 = vsel %vm1278, %v1083, 0
      %v1292 = vsel %vm1278, %v1164, 0
      %v1295 = vsel %vm1278, %v1169, 0
      %v1298 = vsel %vm1278, %v1174, 0
      %v1301 = vsel %vm1278, %v1179, 0
      %1303 = vmatprep.subr.mxu0 0.0
      %1304 = vmatpush1.xpose.msra.mxu0 %v1292
      %1305 = vmatprep.subr.mxu0 0.0
      %1306 = vmatpush1.xpose.msra.mxu0 %v1295
      %1307 = vmatprep.subr.mxu0 0.0
      %1308 = vmatpush1.xpose.msra.mxu0 %v1298
      %1309 = vmatprep.subr.mxu0 0.0
      %1310 = vmatpush1.xpose.msra.mxu0 %v1301
      %1311 = vmatprep.subr.mxu0 0.0
      %1312 = vmatpush1.xpose.msra.mxu0 0.0
      %1313 = vmatprep.subr.mxu0 0.0
      %1314 = vmatpush1.xpose.msra.mxu0 0.0
      %1315 = vmatprep.subr.mxu0 0.0
      %1316 = vmatpush1.xpose.msra.mxu0 0.0
      %1317 = vmatprep.subr.mxu0 0.0
      %1318 = vmatpush1.xpose.msra.mxu0 0.0
      %1319 = vmatprep.subr.mxu0 0.0
      %1320 = vmatpush1.xpose.msra.mxu0 0.0
      %1321 = vmatprep.subr.mxu0 0.0
      %1322 = vmatpush1.xpose.msra.mxu0 0.0
      %1323 = vmatprep.subr.mxu0 0.0
      %1324 = vmatpush1.xpose.msra.mxu0 0.0
      %1325 = vmatprep.subr.mxu0 0.0
      %1326 = vmatpush1.xpose.msra.mxu0 0.0
      %1327 = vmatprep.subr.mxu0 0.0
      %1328 = vmatpush1.xpose.msra.mxu0 0.0
      %1329 = vmatprep.subr.mxu0 0.0
      %1330 = vmatpush1.xpose.msra.mxu0 0.0
      %1331 = vmatprep.subr.mxu0 0.0
      %1332 = vmatpush1.xpose.msra.mxu0 0.0
      %1333 = vmatprep.subr.mxu0 0.0
      %1334 = vmatpush1.xpose.msra.mxu0 0.0
      %1335 = vmatprep.subr.mxu0 0.0
      %1336 = vmatpush1.xpose.msra.mxu0 0.0
      %1337 = vmatprep.subr.mxu0 0.0
      %1338 = vmatpush1.xpose.msra.mxu0 0.0
      %1339 = vmatprep.subr.mxu0 0.0
      %1340 = vmatpush1.xpose.msra.mxu0 0.0
      %1341 = vmatprep.subr.mxu0 0.0
      %1342 = vmatpush1.xpose.msra.mxu0 0.0
      %1343 = vmatprep.subr.mxu0 0.0
      %1344 = vmatpush1.xpose.msra.mxu0 0.0
      %1345 = vmatprep.subr.mxu0 0.0
      %1346 = vmatpush1.xpose.msra.mxu0 0.0
      %1347 = vmatprep.subr.mxu0 0.0
      %1348 = vmatpush1.xpose.msra.mxu0 0.0
      %1349 = vmatprep.subr.mxu0 0.0
      %1350 = vmatpush1.xpose.msra.mxu0 0.0
      %1351 = vmatprep.subr.mxu0 0.0
      %1352 = vmatpush1.xpose.msra.mxu0 0.0
      %1353 = vmatprep.subr.mxu0 0.0
      %1354 = vmatpush1.xpose.msra.mxu0 0.0
      %1355 = vmatprep.subr.mxu0 0.0
      %1356 = vmatpush1.xpose.msra.mxu0 0.0
      %1357 = vmatprep.subr.mxu0 0.0
      %1358 = vmatpush1.xpose.msra.mxu0 0.0
      %1359 = vmatprep.subr.mxu0 0.0
      %1360 = vmatpush1.xpose.msra.mxu0 0.0
      %1361 = vmatprep.subr.mxu0 0.0
      %1362 = vmatpush1.xpose.msra.mxu0 0.0
      %1363 = vmatprep.subr.mxu0 0.0
      %1364 = vmatpush1.xpose.msra.mxu0 0.0
      %1365 = vmatprep.subr.mxu0 0.0
      %1366 = vmatpush1.xpose.msra.mxu0 0.0
      %1367 = vmatprep.mubr.f32.mxu0 0.0
      %1368 = vmatmul.mubr.f32.gmra.mrb[0].mxu0 %v1280
      %v1369 = vpop.f32.mrb[0].mxu0
      %v1370 = vadd.f32 %v877, %v1369
      %v1371 = vpop.f32.mrb[0].mxu0
      %1372 = vmatprep.mubr.f32.mxu0 0.0
      %1373 = vmatmul.mubr.f32.gmra.mrb[0].mxu0 %v1283
      %v1374 = vpop.f32.mrb[0].mxu0
      %v1375 = vadd.f32 %v878, %v1374
      %v1376 = vpop.f32.mrb[0].mxu0
      %1377 = vmatprep.mubr.f32.mxu0 0.0
      %1378 = vmatmul.mubr.f32.gmra.mrb[0].mxu0 %v1286
      %v1379 = vpop.f32.mrb[0].mxu0
      %v1380 = vadd.f32 %v879, %v1379
      %v1381 = vpop.f32.mrb[0].mxu0
      %1382 = vmatprep.mubr.f32.mxu0 0.0
      %1383 = vmatmul.mubr.f32.gmra.mrb[0].mxu0 %v1289
      %v1384 = vpop.f32.mrb[0].mxu0
      %v1385 = vadd.f32 %v880, %v1384
      %v1386 = vpop.f32.mrb[0].mxu0
      %1387 = vdwg.mxu0
      %v1388 = vsel %vm904, %v1370, -inf
      %1389 = vmax.xlane.f32.xlu0 %v1388
      %v1390 = vpop.xlane.xlu0 %1389
      %v1391 = vsel %vm904, %v1375, -inf
      %1392 = vmax.xlane.f32.xlu0 %v1391
      %v1393 = vpop.xlane.xlu0 %1392
      %v1394 = vsel %vm904, %v1380, -inf
      %1395 = vmax.xlane.f32.xlu0 %v1394
      %v1396 = vpop.xlane.xlu0 %1395
      %v1397 = vsel %vm904, %v1385, -inf
      %1398 = vmax.xlane.f32.xlu0 %v1397
      %v1399 = vpop.xlane.xlu0 %1398
      %v1400 = vsub.f32 %v1370, %v1390
      %v1401 = vsub.f32 %v1375, %v1393
      %v1402 = vsub.f32 %v1380, %v1396
      %v1403 = vsub.f32 %v1385, %v1399
      %v1404 = vmul.f32 %v1400, 1.442695
      %v1405 = vpow.pop %v1404
      %v1406 = vmul.f32 %v1401, 1.442695
      %v1407 = vpow.pop %v1406
      %v1408 = vmul.f32 %v1402, 1.442695
      %v1409 = vpow.pop %v1408
      %v1410 = vmul.f32 %v1403, 1.442695
      %v1411 = vpow.pop %v1410
      %v1412 = vsel %vm904, %v1405, 0.0
      %1413 = vadd.xlane.f32.xlu0 %v1412
      %v1414 = vpop.xlane.xlu0 %1413
      %v1415 = vsel %vm904, %v1407, 0.0
      %1416 = vadd.xlane.f32.xlu0 %v1415
      %v1417 = vpop.xlane.xlu0 %1416
      %v1418 = vsel %vm904, %v1409, 0.0
      %1419 = vadd.xlane.f32.xlu0 %v1418
      %v1420 = vpop.xlane.xlu0 %1419
      %v1421 = vsel %vm904, %v1411, 0.0
      %1422 = vadd.xlane.f32.xlu0 %v1421
      %v1423 = vpop.xlane.xlu0 %1422
      %v1424 = vrcp.pop %v1414
      %v1425 = vmul.f32 %v1405, %v1424
      %v1426 = vrcp.pop %v1417
      %v1427 = vmul.f32 %v1407, %v1426
      %v1428 = vrcp.pop %v1420
      %v1429 = vmul.f32 %v1409, %v1428
      %v1430 = vrcp.pop %v1423
      %v1431 = vmul.f32 %v1411, %v1430
      %v1433 = vsel %vm904, %v1425, 0
      %v1436 = vsel %vm904, %v1427, 0
      %v1439 = vsel %vm904, %v1429, 0
      %v1442 = vsel %vm904, %v1431, 0
      %1444 = vmatprep.subr.mxu0 0.0
      %1445 = vmatpush1.msra.mxu0 %v1260
      %1446 = vmatprep.subr.mxu0 0.0
      %1447 = vmatpush1.msra.mxu0 %v1265
      %1448 = vmatprep.subr.mxu0 0.0
      %1449 = vmatpush1.msra.mxu0 %v1270
      %1450 = vmatprep.subr.mxu0 0.0
      %1451 = vmatpush1.msra.mxu0 %v1275
      %1452 = vmatprep.subr.mxu0 0.0
      %1453 = vmatpush1.msra.mxu0 0.0
      %1454 = vmatprep.subr.mxu0 0.0
      %1455 = vmatpush1.msra.mxu0 0.0
      %1456 = vmatprep.subr.mxu0 0.0
      %1457 = vmatpush1.msra.mxu0 0.0
      %1458 = vmatprep.subr.mxu0 0.0
      %1459 = vmatpush1.msra.mxu0 0.0
      %1460 = vmatprep.subr.mxu0 0.0
      %1461 = vmatpush1.msra.mxu0 0.0
      %1462 = vmatprep.subr.mxu0 0.0
      %1463 = vmatpush1.msra.mxu0 0.0
      %1464 = vmatprep.subr.mxu0 0.0
      %1465 = vmatpush1.msra.mxu0 0.0
      %1466 = vmatprep.subr.mxu0 0.0
      %1467 = vmatpush1.msra.mxu0 0.0
      %1468 = vmatprep.subr.mxu0 0.0
      %1469 = vmatpush1.msra.mxu0 0.0
      %1470 = vmatprep.subr.mxu0 0.0
      %1471 = vmatpush1.msra.mxu0 0.0
      %1472 = vmatprep.subr.mxu0 0.0
      %1473 = vmatpush1.msra.mxu0 0.0
      %1474 = vmatprep.subr.mxu0 0.0
      %1475 = vmatpush1.msra.mxu0 0.0
      %1476 = vmatprep.subr.mxu0 0.0
      %1477 = vmatpush1.msra.mxu0 0.0
      %1478 = vmatprep.subr.mxu0 0.0
      %1479 = vmatpush1.msra.mxu0 0.0
      %1480 = vmatprep.subr.mxu0 0.0
      %1481 = vmatpush1.msra.mxu0 0.0
      %1482 = vmatprep.subr.mxu0 0.0
      %1483 = vmatpush1.msra.mxu0 0.0
      %1484 = vmatprep.subr.mxu0 0.0
      %1485 = vmatpush1.msra.mxu0 0.0
      %1486 = vmatprep.subr.mxu0 0.0
      %1487 = vmatpush1.msra.mxu0 0.0
      %1488 = vmatprep.subr.mxu0 0.0
      %1489 = vmatpush1.msra.mxu0 0.0
      %1490 = vmatprep.subr.mxu0 0.0
      %1491 = vmatpush1.msra.mxu0 0.0
      %1492 = vmatprep.subr.mxu0 0.0
      %1493 = vmatpush1.msra.mxu0 0.0
      %1494 = vmatprep.subr.mxu0 0.0
      %1495 = vmatpush1.msra.mxu0 0.0
      %1496 = vmatprep.subr.mxu0 0.0
      %1497 = vmatpush1.msra.mxu0 0.0
      %1498 = vmatprep.subr.mxu0 0.0
      %1499 = vmatpush1.msra.mxu0 0.0
      %1500 = vmatprep.subr.mxu0 0.0
      %1501 = vmatpush1.msra.mxu0 0.0
      %1502 = vmatprep.subr.mxu0 0.0
      %1503 = vmatpush1.msra.mxu0 0.0
      %1504 = vmatprep.subr.mxu0 0.0
      %1505 = vmatpush1.msra.mxu0 0.0
      %1506 = vmatprep.subr.mxu0 0.0
      %1507 = vmatpush1.msra.mxu0 0.0
      %1508 = vmatprep.mubr.f32.mxu0 0.0
      %1509 = vmatmul.mubr.f32.gmra.mrb[0].mxu0 %v1433
      %v1510 = vpop.f32.mrb[0].mxu0
      %v1511 = vadd.f32 0.0, %v1510
      %v1512 = vpop.f32.mrb[0].mxu0
      %1513 = vmatprep.mubr.f32.mxu0 0.0
      %1514 = vmatmul.mubr.f32.gmra.mrb[0].mxu0 %v1436
      %v1515 = vpop.f32.mrb[0].mxu0
      %v1516 = vadd.f32 0.0, %v1515
      %v1517 = vpop.f32.mrb[0].mxu0
      %1518 = vmatprep.mubr.f32.mxu0 0.0
      %1519 = vmatmul.mubr.f32.gmra.mrb[0].mxu0 %v1439
      %v1520 = vpop.f32.mrb[0].mxu0
      %v1521 = vadd.f32 0.0, %v1520
      %v1522 = vpop.f32.mrb[0].mxu0
      %1523 = vmatprep.mubr.f32.mxu0 0.0
      %1524 = vmatmul.mubr.f32.gmra.mrb[0].mxu0 %v1442
      %v1525 = vpop.f32.mrb[0].mxu0
      %v1526 = vadd.f32 0.0, %v1525
      %v1527 = vpop.f32.mrb[0].mxu0
      %1528 = vdwg.mxu0
      %v1529 = vld [vmem:[%s838] sm:$0xff]
      %s1530 = scalar_lea.vmem %s811, 32
      %v1531 = vld [vmem:[%s1530] sm:$0xff]
      %v1532 = vld [vmem:[%s1530 + $0x8] sm:$0xff]
      %v1533 = vld [vmem:[%s1530 + $0x10] sm:$0xff]
      %v1534 = vld [vmem:[%s1530 + $0x18] sm:$0xff]
      %s1535 = scalar_lea.vmem %s815, 1
      %v1536 = vld [vmem:[%s1535] sm:$0x1]
      %v1538 = vlaneseq
      %v1539 = vshrl.u32 %v1538, 7
      %v1540 = vsub.s32 0, %v1539
      %v1541 = vrot.slane %v1536, %v1540
      %1543 = vmatprep.subr.mxu0 0.0
      %1544 = vmatpush1.msra.mxu0 %v1531
      %1545 = vmatprep.subr.mxu0 0.0
      %1546 = vmatpush1.msra.mxu0 %v1532
      %1547 = vmatprep.subr.mxu0 0.0
      %1548 = vmatpush1.msra.mxu0 %v1533
      %1549 = vmatprep.subr.mxu0 0.0
      %1550 = vmatpush1.msra.mxu0 %v1534
      %1551 = vmatprep.subr.mxu0 0.0
      %1552 = vmatpush1.msra.mxu0 0.0
      %1553 = vmatprep.subr.mxu0 0.0
      %1554 = vmatpush1.msra.mxu0 0.0
      %1555 = vmatprep.subr.mxu0 0.0
      %1556 = vmatpush1.msra.mxu0 0.0
      %1557 = vmatprep.subr.mxu0 0.0
      %1558 = vmatpush1.msra.mxu0 0.0
      %1559 = vmatprep.subr.mxu0 0.0
      %1560 = vmatpush1.msra.mxu0 0.0
      %1561 = vmatprep.subr.mxu0 0.0
      %1562 = vmatpush1.msra.mxu0 0.0
      %1563 = vmatprep.subr.mxu0 0.0
      %1564 = vmatpush1.msra.mxu0 0.0
      %1565 = vmatprep.subr.mxu0 0.0
      %1566 = vmatpush1.msra.mxu0 0.0
      %1567 = vmatprep.subr.mxu0 0.0
      %1568 = vmatpush1.msra.mxu0 0.0
      %1569 = vmatprep.subr.mxu0 0.0
      %1570 = vmatpush1.msra.mxu0 0.0
      %1571 = vmatprep.subr.mxu0 0.0
      %1572 = vmatpush1.msra.mxu0 0.0
      %1573 = vmatprep.subr.mxu0 0.0
      %1574 = vmatpush1.msra.mxu0 0.0
      %1575 = vmatprep.subr.mxu0 0.0
      %1576 = vmatpush1.msra.mxu0 0.0
      %1577 = vmatprep.subr.mxu0 0.0
      %1578 = vmatpush1.msra.mxu0 0.0
      %1579 = vmatprep.subr.mxu0 0.0
      %1580 = vmatpush1.msra.mxu0 0.0
      %1581 = vmatprep.subr.mxu0 0.0
      %1582 = vmatpush1.msra.mxu0 0.0
      %1583 = vmatprep.subr.mxu0 0.0
      %1584 = vmatpush1.msra.mxu0 0.0
      %1585 = vmatprep.subr.mxu0 0.0
      %1586 = vmatpush1.msra.mxu0 0.0
      %1587 = vmatprep.subr.mxu0 0.0
      %1588 = vmatpush1.msra.mxu0 0.0
      %1589 = vmatprep.subr.mxu0 0.0
      %1590 = vmatpush1.msra.mxu0 0.0
      %1591 = vmatprep.subr.mxu0 0.0
      %1592 = vmatpush1.msra.mxu0 0.0
      %1593 = vmatprep.subr.mxu0 0.0
      %1594 = vmatpush1.msra.mxu0 0.0
      %1595 = vmatprep.subr.mxu0 0.0
      %1596 = vmatpush1.msra.mxu0 0.0
      %1597 = vmatprep.subr.mxu0 0.0
      %1598 = vmatpush1.msra.mxu0 0.0
      %1599 = vmatprep.subr.mxu0 0.0
      %1600 = vmatpush1.msra.mxu0 0.0
      %1601 = vmatprep.subr.mxu0 0.0
      %1602 = vmatpush1.msra.mxu0 0.0
      %1603 = vmatprep.subr.mxu0 0.0
      %1604 = vmatpush1.msra.mxu0 0.0
      %1605 = vmatprep.subr.mxu0 0.0
      %1606 = vmatpush1.msra.mxu0 0.0
      %1607 = vmatprep.mubr.f32.mxu0 0.0
      %1608 = vmatmul.mubr.f32.gmra.mrb[0].mxu0 %v990
      %v1609 = vpop.f32.mrb[0].mxu0
      %v1610 = vadd.f32 %v1541, %v1609
      %v1611 = vpop.f32.mrb[0].mxu0
      %1612 = vmatprep.mubr.f32.mxu0 0.0
      %1613 = vmatmul.mubr.f32.gmra.mrb[0].mxu0 %v993
      %v1614 = vpop.f32.mrb[0].mxu0
      %v1615 = vadd.f32 %v1541, %v1614
      %v1616 = vpop.f32.mrb[0].mxu0
      %1617 = vmatprep.mubr.f32.mxu0 0.0
      %1618 = vmatmul.mubr.f32.gmra.mrb[0].mxu0 %v996
      %v1619 = vpop.f32.mrb[0].mxu0
      %v1620 = vadd.f32 %v1541, %v1619
      %v1621 = vpop.f32.mrb[0].mxu0
      %1622 = vmatprep.mubr.f32.mxu0 0.0
      %1623 = vmatmul.mubr.f32.gmra.mrb[0].mxu0 %v999
      %v1624 = vpop.f32.mrb[0].mxu0
      %v1625 = vadd.f32 %v1541, %v1624
      %v1626 = vpop.f32.mrb[0].mxu0
      %1627 = vdwg.mxu0
      %s1628 = scalar_lea.vmem %s820, 32
      %v1629 = vld [vmem:[%s1628] sm:$0xff]
      %v1630 = vld [vmem:[%s1628 + $0x8] sm:$0xff]
      %v1631 = vld [vmem:[%s1628 + $0x10] sm:$0xff]
      %v1632 = vld [vmem:[%s1628 + $0x18] sm:$0xff]
      %s1633 = scalar_lea.vmem %s824, 1
      %v1634 = vld [vmem:[%s1633] sm:$0x1]
      %v1636 = vlaneseq
      %v1637 = vshrl.u32 %v1636, 7
      %v1638 = vsub.s32 0, %v1637
      %v1639 = vrot.slane %v1634, %v1638
      %1641 = vmatprep.subr.mxu0 0.0
      %1642 = vmatpush1.msra.mxu0 %v1629
      %1643 = vmatprep.subr.mxu0 0.0
      %1644 = vmatpush1.msra.mxu0 %v1630
      %1645 = vmatprep.subr.mxu0 0.0
      %1646 = vmatpush1.msra.mxu0 %v1631
      %1647 = vmatprep.subr.mxu0 0.0
      %1648 = vmatpush1.msra.mxu0 %v1632
      %1649 = vmatprep.subr.mxu0 0.0
      %1650 = vmatpush1.msra.mxu0 0.0
      %1651 = vmatprep.subr.mxu0 0.0
      %1652 = vmatpush1.msra.mxu0 0.0
      %1653 = vmatprep.subr.mxu0 0.0
      %1654 = vmatpush1.msra.mxu0 0.0
      %1655 = vmatprep.subr.mxu0 0.0
      %1656 = vmatpush1.msra.mxu0 0.0
      %1657 = vmatprep.subr.mxu0 0.0
      %1658 = vmatpush1.msra.mxu0 0.0
      %1659 = vmatprep.subr.mxu0 0.0
      %1660 = vmatpush1.msra.mxu0 0.0
      %1661 = vmatprep.subr.mxu0 0.0
      %1662 = vmatpush1.msra.mxu0 0.0
      %1663 = vmatprep.subr.mxu0 0.0
      %1664 = vmatpush1.msra.mxu0 0.0
      %1665 = vmatprep.subr.mxu0 0.0
      %1666 = vmatpush1.msra.mxu0 0.0
      %1667 = vmatprep.subr.mxu0 0.0
      %1668 = vmatpush1.msra.mxu0 0.0
      %1669 = vmatprep.subr.mxu0 0.0
      %1670 = vmatpush1.msra.mxu0 0.0
      %1671 = vmatprep.subr.mxu0 0.0
      %1672 = vmatpush1.msra.mxu0 0.0
      %1673 = vmatprep.subr.mxu0 0.0
      %1674 = vmatpush1.msra.mxu0 0.0
      %1675 = vmatprep.subr.mxu0 0.0
      %1676 = vmatpush1.msra.mxu0 0.0
      %1677 = vmatprep.subr.mxu0 0.0
      %1678 = vmatpush1.msra.mxu0 0.0
      %1679 = vmatprep.subr.mxu0 0.0
      %1680 = vmatpush1.msra.mxu0 0.0
      %1681 = vmatprep.subr.mxu0 0.0
      %1682 = vmatpush1.msra.mxu0 0.0
      %1683 = vmatprep.subr.mxu0 0.0
      %1684 = vmatpush1.msra.mxu0 0.0
      %1685 = vmatprep.subr.mxu0 0.0
      %1686 = vmatpush1.msra.mxu0 0.0
      %1687 = vmatprep.subr.mxu0 0.0
      %1688 = vmatpush1.msra.mxu0 0.0
      %1689 = vmatprep.subr.mxu0 0.0
      %1690 = vmatpush1.msra.mxu0 0.0
      %1691 = vmatprep.subr.mxu0 0.0
      %1692 = vmatpush1.msra.mxu0 0.0
      %1693 = vmatprep.subr.mxu0 0.0
      %1694 = vmatpush1.msra.mxu0 0.0
      %1695 = vmatprep.subr.mxu0 0.0
      %1696 = vmatpush1.msra.mxu0 0.0
      %1697 = vmatprep.subr.mxu0 0.0
      %1698 = vmatpush1.msra.mxu0 0.0
      %1699 = vmatprep.subr.mxu0 0.0
      %1700 = vmatpush1.msra.mxu0 0.0
      %1701 = vmatprep.subr.mxu0 0.0
      %1702 = vmatpush1.msra.mxu0 0.0
      %1703 = vmatprep.subr.mxu0 0.0
      %1704 = vmatpush1.msra.mxu0 0.0
      %1705 = vmatprep.mubr.f32.mxu0 0.0
      %1706 = vmatmul.mubr.f32.gmra.mrb[0].mxu0 %v990
      %v1707 = vpop.f32.mrb[0].mxu0
      %v1708 = vadd.f32 %v1639, %v1707
      %v1709 = vpop.f32.mrb[0].mxu0
      %1710 = vmatprep.mubr.f32.mxu0 0.0
      %1711 = vmatmul.mubr.f32.gmra.mrb[0].mxu0 %v993
      %v1712 = vpop.f32.mrb[0].mxu0
      %v1713 = vadd.f32 %v1639, %v1712
      %v1714 = vpop.f32.mrb[0].mxu0
      %1715 = vmatprep.mubr.f32.mxu0 0.0
      %1716 = vmatmul.mubr.f32.gmra.mrb[0].mxu0 %v996
      %v1717 = vpop.f32.mrb[0].mxu0
      %v1718 = vadd.f32 %v1639, %v1717
      %v1719 = vpop.f32.mrb[0].mxu0
      %1720 = vmatprep.mubr.f32.mxu0 0.0
      %1721 = vmatmul.mubr.f32.gmra.mrb[0].mxu0 %v999
      %v1722 = vpop.f32.mrb[0].mxu0
      %v1723 = vadd.f32 %v1639, %v1722
      %v1724 = vpop.f32.mrb[0].mxu0
      %1725 = vdwg.mxu0
      %s1726 = scalar_lea.vmem %s829, 32
      %v1727 = vld [vmem:[%s1726] sm:$0xff]
      %v1728 = vld [vmem:[%s1726 + $0x8] sm:$0xff]
      %v1729 = vld [vmem:[%s1726 + $0x10] sm:$0xff]
      %v1730 = vld [vmem:[%s1726 + $0x18] sm:$0xff]
      %s1731 = scalar_lea.vmem %s833, 1
      %v1732 = vld [vmem:[%s1731] sm:$0x1]
      %v1734 = vlaneseq
      %v1735 = vshrl.u32 %v1734, 7
      %v1736 = vsub.s32 0, %v1735
      %v1737 = vrot.slane %v1732, %v1736
      %1739 = vmatprep.subr.mxu0 0.0
      %1740 = vmatpush1.msra.mxu0 %v1727
      %1741 = vmatprep.subr.mxu0 0.0
      %1742 = vmatpush1.msra.mxu0 %v1728
      %1743 = vmatprep.subr.mxu0 0.0
      %1744 = vmatpush1.msra.mxu0 %v1729
      %1745 = vmatprep.subr.mxu0 0.0
      %1746 = vmatpush1.msra.mxu0 %v1730
      %1747 = vmatprep.subr.mxu0 0.0
      %1748 = vmatpush1.msra.mxu0 0.0
      %1749 = vmatprep.subr.mxu0 0.0
      %1750 = vmatpush1.msra.mxu0 0.0
      %1751 = vmatprep.subr.mxu0 0.0
      %1752 = vmatpush1.msra.mxu0 0.0
      %1753 = vmatprep.subr.mxu0 0.0
      %1754 = vmatpush1.msra.mxu0 0.0
      %1755 = vmatprep.subr.mxu0 0.0
      %1756 = vmatpush1.msra.mxu0 0.0
      %1757 = vmatprep.subr.mxu0 0.0
      %1758 = vmatpush1.msra.mxu0 0.0
      %1759 = vmatprep.subr.mxu0 0.0
      %1760 = vmatpush1.msra.mxu0 0.0
      %1761 = vmatprep.subr.mxu0 0.0
      %1762 = vmatpush1.msra.mxu0 0.0
      %1763 = vmatprep.subr.mxu0 0.0
      %1764 = vmatpush1.msra.mxu0 0.0
      %1765 = vmatprep.subr.mxu0 0.0
      %1766 = vmatpush1.msra.mxu0 0.0
      %1767 = vmatprep.subr.mxu0 0.0
      %1768 = vmatpush1.msra.mxu0 0.0
      %1769 = vmatprep.subr.mxu0 0.0
      %1770 = vmatpush1.msra.mxu0 0.0
      %1771 = vmatprep.subr.mxu0 0.0
      %1772 = vmatpush1.msra.mxu0 0.0
      %1773 = vmatprep.subr.mxu0 0.0
      %1774 = vmatpush1.msra.mxu0 0.0
      %1775 = vmatprep.subr.mxu0 0.0
      %1776 = vmatpush1.msra.mxu0 0.0
      %1777 = vmatprep.subr.mxu0 0.0
      %1778 = vmatpush1.msra.mxu0 0.0
      %1779 = vmatprep.subr.mxu0 0.0
      %1780 = vmatpush1.msra.mxu0 0.0
      %1781 = vmatprep.subr.mxu0 0.0
      %1782 = vmatpush1.msra.mxu0 0.0
      %1783 = vmatprep.subr.mxu0 0.0
      %1784 = vmatpush1.msra.mxu0 0.0
      %1785 = vmatprep.subr.mxu0 0.0
      %1786 = vmatpush1.msra.mxu0 0.0
      %1787 = vmatprep.subr.mxu0 0.0
      %1788 = vmatpush1.msra.mxu0 0.0
      %1789 = vmatprep.subr.mxu0 0.0
      %1790 = vmatpush1.msra.mxu0 0.0
      %1791 = vmatprep.subr.mxu0 0.0
      %1792 = vmatpush1.msra.mxu0 0.0
      %1793 = vmatprep.subr.mxu0 0.0
      %1794 = vmatpush1.msra.mxu0 0.0
      %1795 = vmatprep.subr.mxu0 0.0
      %1796 = vmatpush1.msra.mxu0 0.0
      %1797 = vmatprep.subr.mxu0 0.0
      %1798 = vmatpush1.msra.mxu0 0.0
      %1799 = vmatprep.subr.mxu0 0.0
      %1800 = vmatpush1.msra.mxu0 0.0
      %1801 = vmatprep.subr.mxu0 0.0
      %1802 = vmatpush1.msra.mxu0 0.0
      %1803 = vmatprep.mubr.f32.mxu0 0.0
      %1804 = vmatmul.mubr.f32.gmra.mrb[0].mxu0 %v990
      %v1805 = vpop.f32.mrb[0].mxu0
      %v1806 = vadd.f32 %v1737, %v1805
      %v1807 = vpop.f32.mrb[0].mxu0
      %1808 = vmatprep.mubr.f32.mxu0 0.0
      %1809 = vmatmul.mubr.f32.gmra.mrb[0].mxu0 %v993
      %v1810 = vpop.f32.mrb[0].mxu0
      %v1811 = vadd.f32 %v1737, %v1810
      %v1812 = vpop.f32.mrb[0].mxu0
      %1813 = vmatprep.mubr.f32.mxu0 0.0
      %1814 = vmatmul.mubr.f32.gmra.mrb[0].mxu0 %v996
      %v1815 = vpop.f32.mrb[0].mxu0
      %v1816 = vadd.f32 %v1737, %v1815
      %v1817 = vpop.f32.mrb[0].mxu0
      %1818 = vmatprep.mubr.f32.mxu0 0.0
      %1819 = vmatmul.mubr.f32.gmra.mrb[0].mxu0 %v999
      %v1820 = vpop.f32.mrb[0].mxu0
      %v1821 = vadd.f32 %v1737, %v1820
      %v1822 = vpop.f32.mrb[0].mxu0
      %1823 = vdwg.mxu0
      %v1825 = vsel %vm1278, %v1610, 0
      %v1828 = vsel %vm1278, %v1615, 0
      %v1831 = vsel %vm1278, %v1620, 0
      %v1834 = vsel %vm1278, %v1625, 0
      %v1837 = vsel %vm1278, %v1708, 0
      %v1840 = vsel %vm1278, %v1713, 0
      %v1843 = vsel %vm1278, %v1718, 0
      %v1846 = vsel %vm1278, %v1723, 0
      %1848 = vmatprep.subr.mxu0 0.0
      %1849 = vmatpush1.xpose.msra.mxu0 %v1837
      %1850 = vmatprep.subr.mxu0 0.0
      %1851 = vmatpush1.xpose.msra.mxu0 %v1840
      %1852 = vmatprep.subr.mxu0 0.0
      %1853 = vmatpush1.xpose.msra.mxu0 %v1843
      %1854 = vmatprep.subr.mxu0 0.0
      %1855 = vmatpush1.xpose.msra.mxu0 %v1846
      %1856 = vmatprep.subr.mxu0 0.0
      %1857 = vmatpush1.xpose.msra.mxu0 0.0
      %1858 = vmatprep.subr.mxu0 0.0
      %1859 = vmatpush1.xpose.msra.mxu0 0.0
      %1860 = vmatprep.subr.mxu0 0.0
      %1861 = vmatpush1.xpose.msra.mxu0 0.0
      %1862 = vmatprep.subr.mxu0 0.0
      %1863 = vmatpush1.xpose.msra.mxu0 0.0
      %1864 = vmatprep.subr.mxu0 0.0
      %1865 = vmatpush1.xpose.msra.mxu0 0.0
      %1866 = vmatprep.subr.mxu0 0.0
      %1867 = vmatpush1.xpose.msra.mxu0 0.0
      %1868 = vmatprep.subr.mxu0 0.0
      %1869 = vmatpush1.xpose.msra.mxu0 0.0
      %1870 = vmatprep.subr.mxu0 0.0
      %1871 = vmatpush1.xpose.msra.mxu0 0.0
      %1872 = vmatprep.subr.mxu0 0.0
      %1873 = vmatpush1.xpose.msra.mxu0 0.0
      %1874 = vmatprep.subr.mxu0 0.0
      %1875 = vmatpush1.xpose.msra.mxu0 0.0
      %1876 = vmatprep.subr.mxu0 0.0
      %1877 = vmatpush1.xpose.msra.mxu0 0.0
      %1878 = vmatprep.subr.mxu0 0.0
      %1879 = vmatpush1.xpose.msra.mxu0 0.0
      %1880 = vmatprep.subr.mxu0 0.0
      %1881 = vmatpush1.xpose.msra.mxu0 0.0
      %1882 = vmatprep.subr.mxu0 0.0
      %1883 = vmatpush1.xpose.msra.mxu0 0.0
      %1884 = vmatprep.subr.mxu0 0.0
      %1885 = vmatpush1.xpose.msra.mxu0 0.0
      %1886 = vmatprep.subr.mxu0 0.0
      %1887 = vmatpush1.xpose.msra.mxu0 0.0
      %1888 = vmatprep.subr.mxu0 0.0
      %1889 = vmatpush1.xpose.msra.mxu0 0.0
      %1890 = vmatprep.subr.mxu0 0.0
      %1891 = vmatpush1.xpose.msra.mxu0 0.0
      %1892 = vmatprep.subr.mxu0 0.0
      %1893 = vmatpush1.xpose.msra.mxu0 0.0
      %1894 = vmatprep.subr.mxu0 0.0
      %1895 = vmatpush1.xpose.msra.mxu0 0.0
      %1896 = vmatprep.subr.mxu0 0.0
      %1897 = vmatpush1.xpose.msra.mxu0 0.0
      %1898 = vmatprep.subr.mxu0 0.0
      %1899 = vmatpush1.xpose.msra.mxu0 0.0
      %1900 = vmatprep.subr.mxu0 0.0
      %1901 = vmatpush1.xpose.msra.mxu0 0.0
      %1902 = vmatprep.subr.mxu0 0.0
      %1903 = vmatpush1.xpose.msra.mxu0 0.0
      %1904 = vmatprep.subr.mxu0 0.0
      %1905 = vmatpush1.xpose.msra.mxu0 0.0
      %1906 = vmatprep.subr.mxu0 0.0
      %1907 = vmatpush1.xpose.msra.mxu0 0.0
      %1908 = vmatprep.subr.mxu0 0.0
      %1909 = vmatpush1.xpose.msra.mxu0 0.0
      %1910 = vmatprep.subr.mxu0 0.0
      %1911 = vmatpush1.xpose.msra.mxu0 0.0
      %1912 = vmatprep.mubr.f32.mxu0 0.0
      %1913 = vmatmul.mubr.f32.gmra.mrb[0].mxu0 %v1825
      %v1914 = vpop.f32.mrb[0].mxu0
      %v1915 = vadd.f32 %v877, %v1914
      %v1916 = vpop.f32.mrb[0].mxu0
      %1917 = vmatprep.mubr.f32.mxu0 0.0
      %1918 = vmatmul.mubr.f32.gmra.mrb[0].mxu0 %v1828
      %v1919 = vpop.f32.mrb[0].mxu0
      %v1920 = vadd.f32 %v878, %v1919
      %v1921 = vpop.f32.mrb[0].mxu0
      %1922 = vmatprep.mubr.f32.mxu0 0.0
      %1923 = vmatmul.mubr.f32.gmra.mrb[0].mxu0 %v1831
      %v1924 = vpop.f32.mrb[0].mxu0
      %v1925 = vadd.f32 %v879, %v1924
      %v1926 = vpop.f32.mrb[0].mxu0
      %1927 = vmatprep.mubr.f32.mxu0 0.0
      %1928 = vmatmul.mubr.f32.gmra.mrb[0].mxu0 %v1834
      %v1929 = vpop.f32.mrb[0].mxu0
      %v1930 = vadd.f32 %v880, %v1929
      %v1931 = vpop.f32.mrb[0].mxu0
      %1932 = vdwg.mxu0
      %v1933 = vsel %vm904, %v1915, -inf
      %1934 = vmax.xlane.f32.xlu0 %v1933
      %v1935 = vpop.xlane.xlu0 %1934
      %v1936 = vsel %vm904, %v1920, -inf
      %1937 = vmax.xlane.f32.xlu0 %v1936
      %v1938 = vpop.xlane.xlu0 %1937
      %v1939 = vsel %vm904, %v1925, -inf
      %1940 = vmax.xlane.f32.xlu0 %v1939
      %v1941 = vpop.xlane.xlu0 %1940
      %v1942 = vsel %vm904, %v1930, -inf
      %1943 = vmax.xlane.f32.xlu0 %v1942
      %v1944 = vpop.xlane.xlu0 %1943
      %v1945 = vsub.f32 %v1915, %v1935
      %v1946 = vsub.f32 %v1920, %v1938
      %v1947 = vsub.f32 %v1925, %v1941
      %v1948 = vsub.f32 %v1930, %v1944
      %v1949 = vmul.f32 %v1945, 1.442695
      %v1950 = vpow.pop %v1949
      %v1951 = vmul.f32 %v1946, 1.442695
      %v1952 = vpow.pop %v1951
      %v1953 = vmul.f32 %v1947, 1.442695
      %v1954 = vpow.pop %v1953
      %v1955 = vmul.f32 %v1948, 1.442695
      %v1956 = vpow.pop %v1955
      %v1957 = vsel %vm904, %v1950, 0.0
      %1958 = vadd.xlane.f32.xlu0 %v1957
      %v1959 = vpop.xlane.xlu0 %1958
      %v1960 = vsel %vm904, %v1952, 0.0
      %1961 = vadd.xlane.f32.xlu0 %v1960
      %v1962 = vpop.xlane.xlu0 %1961
      %v1963 = vsel %vm904, %v1954, 0.0
      %1964 = vadd.xlane.f32.xlu0 %v1963
      %v1965 = vpop.xlane.xlu0 %1964
      %v1966 = vsel %vm904, %v1956, 0.0
      %1967 = vadd.xlane.f32.xlu0 %v1966
      %v1968 = vpop.xlane.xlu0 %1967
      %v1969 = vrcp.pop %v1959
      %v1970 = vmul.f32 %v1950, %v1969
      %v1971 = vrcp.pop %v1962
      %v1972 = vmul.f32 %v1952, %v1971
      %v1973 = vrcp.pop %v1965
      %v1974 = vmul.f32 %v1954, %v1973
      %v1975 = vrcp.pop %v1968
      %v1976 = vmul.f32 %v1956, %v1975
      %v1978 = vsel %vm904, %v1970, 0
      %v1981 = vsel %vm904, %v1972, 0
      %v1984 = vsel %vm904, %v1974, 0
      %v1987 = vsel %vm904, %v1976, 0
      %1989 = vmatprep.subr.mxu0 0.0
      %1990 = vmatpush1.msra.mxu0 %v1806
      %1991 = vmatprep.subr.mxu0 0.0
      %1992 = vmatpush1.msra.mxu0 %v1811
      %1993 = vmatprep.subr.mxu0 0.0
      %1994 = vmatpush1.msra.mxu0 %v1816
      %1995 = vmatprep.subr.mxu0 0.0
      %1996 = vmatpush1.msra.mxu0 %v1821
      %1997 = vmatprep.subr.mxu0 0.0
      %1998 = vmatpush1.msra.mxu0 0.0
      %1999 = vmatprep.subr.mxu0 0.0
      %2000 = vmatpush1.msra.mxu0 0.0
      %2001 = vmatprep.subr.mxu0 0.0
      %2002 = vmatpush1.msra.mxu0 0.0
      %2003 = vmatprep.subr.mxu0 0.0
      %2004 = vmatpush1.msra.mxu0 0.0
      %2005 = vmatprep.subr.mxu0 0.0
      %2006 = vmatpush1.msra.mxu0 0.0
      %2007 = vmatprep.subr.mxu0 0.0
      %2008 = vmatpush1.msra.mxu0 0.0
      %2009 = vmatprep.subr.mxu0 0.0
      %2010 = vmatpush1.msra.mxu0 0.0
      %2011 = vmatprep.subr.mxu0 0.0
      %2012 = vmatpush1.msra.mxu0 0.0
      %2013 = vmatprep.subr.mxu0 0.0
      %2014 = vmatpush1.msra.mxu0 0.0
      %2015 = vmatprep.subr.mxu0 0.0
      %2016 = vmatpush1.msra.mxu0 0.0
      %2017 = vmatprep.subr.mxu0 0.0
      %2018 = vmatpush1.msra.mxu0 0.0
      %2019 = vmatprep.subr.mxu0 0.0
      %2020 = vmatpush1.msra.mxu0 0.0
      %2021 = vmatprep.subr.mxu0 0.0
      %2022 = vmatpush1.msra.mxu0 0.0
      %2023 = vmatprep.subr.mxu0 0.0
      %2024 = vmatpush1.msra.mxu0 0.0
      %2025 = vmatprep.subr.mxu0 0.0
      %2026 = vmatpush1.msra.mxu0 0.0
      %2027 = vmatprep.subr.mxu0 0.0
      %2028 = vmatpush1.msra.mxu0 0.0
      %2029 = vmatprep.subr.mxu0 0.0
      %2030 = vmatpush1.msra.mxu0 0.0
      %2031 = vmatprep.subr.mxu0 0.0
      %2032 = vmatpush1.msra.mxu0 0.0
      %2033 = vmatprep.subr.mxu0 0.0
      %2034 = vmatpush1.msra.mxu0 0.0
      %2035 = vmatprep.subr.mxu0 0.0
      %2036 = vmatpush1.msra.mxu0 0.0
      %2037 = vmatprep.subr.mxu0 0.0
      %2038 = vmatpush1.msra.mxu0 0.0
      %2039 = vmatprep.subr.mxu0 0.0
      %2040 = vmatpush1.msra.mxu0 0.0
      %2041 = vmatprep.subr.mxu0 0.0
      %2042 = vmatpush1.msra.mxu0 0.0
      %2043 = vmatprep.subr.mxu0 0.0
      %2044 = vmatpush1.msra.mxu0 0.0
      %2045 = vmatprep.subr.mxu0 0.0
      %2046 = vmatpush1.msra.mxu0 0.0
      %2047 = vmatprep.subr.mxu0 0.0
      %2048 = vmatpush1.msra.mxu0 0.0
      %2049 = vmatprep.subr.mxu0 0.0
      %2050 = vmatpush1.msra.mxu0 0.0
      %2051 = vmatprep.subr.mxu0 0.0
      %2052 = vmatpush1.msra.mxu0 0.0
      %2053 = vmatprep.mubr.f32.mxu0 0.0
      %2054 = vmatmul.mubr.f32.gmra.mrb[0].mxu0 %v1978
      %v2055 = vpop.f32.mrb[0].mxu0
      %v2056 = vadd.f32 0.0, %v2055
      %v2057 = vpop.f32.mrb[0].mxu0
      %2058 = vmatprep.mubr.f32.mxu0 0.0
      %2059 = vmatmul.mubr.f32.gmra.mrb[0].mxu0 %v1981
      %v2060 = vpop.f32.mrb[0].mxu0
      %v2061 = vadd.f32 0.0, %v2060
      %v2062 = vpop.f32.mrb[0].mxu0
      %2063 = vmatprep.mubr.f32.mxu0 0.0
      %2064 = vmatmul.mubr.f32.gmra.mrb[0].mxu0 %v1984
      %v2065 = vpop.f32.mrb[0].mxu0
      %v2066 = vadd.f32 0.0, %v2065
      %v2067 = vpop.f32.mrb[0].mxu0
      %2068 = vmatprep.mubr.f32.mxu0 0.0
      %2069 = vmatmul.mubr.f32.gmra.mrb[0].mxu0 %v1987
      %v2070 = vpop.f32.mrb[0].mxu0
      %v2071 = vadd.f32 0.0, %v2070
      %v2072 = vpop.f32.mrb[0].mxu0
      %2073 = vdwg.mxu0
      %s2074 = scalar_lea.vmem %s838, 8
      %v2075 = vld [vmem:[%s2074] sm:$0xff]
      %v2077 = vsel %vm1278, %v2056, 0
      %v2080 = vsel %vm1278, %v2061, 0
      %v2083 = vsel %vm1278, %v2066, 0
      %v2086 = vsel %vm1278, %v2071, 0
      %2088 = vmatprep.subr.mxu0 0.0
      %2089 = vmatpush1.msra.mxu0 %v2075
      %2090 = vmatprep.subr.mxu0 0.0
      %2091 = vmatpush1.msra.mxu0 0.0
      %2092 = vmatprep.subr.mxu0 0.0
      %2093 = vmatpush1.msra.mxu0 0.0
      %2094 = vmatprep.subr.mxu0 0.0
      %2095 = vmatpush1.msra.mxu0 0.0
      %2096 = vmatprep.subr.mxu0 0.0
      %2097 = vmatpush1.msra.mxu0 0.0
      %2098 = vmatprep.subr.mxu0 0.0
      %2099 = vmatpush1.msra.mxu0 0.0
      %2100 = vmatprep.subr.mxu0 0.0
      %2101 = vmatpush1.msra.mxu0 0.0
      %2102 = vmatprep.subr.mxu0 0.0
      %2103 = vmatpush1.msra.mxu0 0.0
      %2104 = vmatprep.subr.mxu0 0.0
      %2105 = vmatpush1.msra.mxu0 0.0
      %2106 = vmatprep.subr.mxu0 0.0
      %2107 = vmatpush1.msra.mxu0 0.0
      %2108 = vmatprep.subr.mxu0 0.0
      %2109 = vmatpush1.msra.mxu0 0.0
      %2110 = vmatprep.subr.mxu0 0.0
      %2111 = vmatpush1.msra.mxu0 0.0
      %2112 = vmatprep.subr.mxu0 0.0
      %2113 = vmatpush1.msra.mxu0 0.0
      %2114 = vmatprep.subr.mxu0 0.0
      %2115 = vmatpush1.msra.mxu0 0.0
      %2116 = vmatprep.subr.mxu0 0.0
      %2117 = vmatpush1.msra.mxu0 0.0
      %2118 = vmatprep.subr.mxu0 0.0
      %2119 = vmatpush1.msra.mxu0 0.0
      %2120 = vmatprep.subr.mxu0 0.0
      %2121 = vmatpush1.msra.mxu0 0.0
      %2122 = vmatprep.subr.mxu0 0.0
      %2123 = vmatpush1.msra.mxu0 0.0
      %2124 = vmatprep.subr.mxu0 0.0
      %2125 = vmatpush1.msra.mxu0 0.0
      %2126 = vmatprep.subr.mxu0 0.0
      %2127 = vmatpush1.msra.mxu0 0.0
      %2128 = vmatprep.subr.mxu0 0.0
      %2129 = vmatpush1.msra.mxu0 0.0
      %2130 = vmatprep.subr.mxu0 0.0
      %2131 = vmatpush1.msra.mxu0 0.0
      %2132 = vmatprep.subr.mxu0 0.0
      %2133 = vmatpush1.msra.mxu0 0.0
      %2134 = vmatprep.subr.mxu0 0.0
      %2135 = vmatpush1.msra.mxu0 0.0
      %2136 = vmatprep.subr.mxu0 0.0
      %2137 = vmatpush1.msra.mxu0 0.0
      %2138 = vmatprep.subr.mxu0 0.0
      %2139 = vmatpush1.msra.mxu0 0.0
      %2140 = vmatprep.subr.mxu0 0.0
      %2141 = vmatpush1.msra.mxu0 0.0
      %2142 = vmatprep.subr.mxu0 0.0
      %2143 = vmatpush1.msra.mxu0 0.0
      %2144 = vmatprep.subr.mxu0 0.0
      %2145 = vmatpush1.msra.mxu0 0.0
      %2146 = vmatprep.subr.mxu0 0.0
      %2147 = vmatpush1.msra.mxu0 0.0
      %2148 = vmatprep.subr.mxu0 0.0
      %2149 = vmatpush1.msra.mxu0 0.0
      %2150 = vmatprep.subr.mxu0 0.0
      %2151 = vmatpush1.msra.mxu0 0.0
      %2152 = vmatprep.mubr.f32.mxu0 0.0
      %2153 = vmatmul.mubr.f32.gmra.mrb[0].mxu0 %v2077
      %v2154 = vpop.f32.mrb[0].mxu0
      %v2155 = vadd.f32 0.0, %v2154
      %v2156 = vpop.f32.mrb[0].mxu0
      %2157 = vmatprep.mubr.f32.mxu0 0.0
      %2158 = vmatmul.mubr.f32.gmra.mrb[0].mxu0 %v2080
      %v2159 = vpop.f32.mrb[0].mxu0
      %v2160 = vadd.f32 0.0, %v2159
      %v2161 = vpop.f32.mrb[0].mxu0
      %2162 = vmatprep.mubr.f32.mxu0 0.0
      %2163 = vmatmul.mubr.f32.gmra.mrb[0].mxu0 %v2083
      %v2164 = vpop.f32.mrb[0].mxu0
      %v2165 = vadd.f32 0.0, %v2164
      %v2166 = vpop.f32.mrb[0].mxu0
      %2167 = vmatprep.mubr.f32.mxu0 0.0
      %2168 = vmatmul.mubr.f32.gmra.mrb[0].mxu0 %v2086
      %v2169 = vpop.f32.mrb[0].mxu0
      %v2170 = vadd.f32 0.0, %v2169
      %v2171 = vpop.f32.mrb[0].mxu0
      %2172 = vdwg.mxu0
      %v2174 = vsel %vm1278, %v1511, 0
      %v2177 = vsel %vm1278, %v1516, 0
      %v2180 = vsel %vm1278, %v1521, 0
      %v2183 = vsel %vm1278, %v1526, 0
      %2185 = vmatprep.subr.mxu0 0.0
      %2186 = vmatpush1.msra.mxu0 %v1529
      %2187 = vmatprep.subr.mxu0 0.0
      %2188 = vmatpush1.msra.mxu0 0.0
      %2189 = vmatprep.subr.mxu0 0.0
      %2190 = vmatpush1.msra.mxu0 0.0
      %2191 = vmatprep.subr.mxu0 0.0
      %2192 = vmatpush1.msra.mxu0 0.0
      %2193 = vmatprep.subr.mxu0 0.0
      %2194 = vmatpush1.msra.mxu0 0.0
      %2195 = vmatprep.subr.mxu0 0.0
      %2196 = vmatpush1.msra.mxu0 0.0
      %2197 = vmatprep.subr.mxu0 0.0
      %2198 = vmatpush1.msra.mxu0 0.0
      %2199 = vmatprep.subr.mxu0 0.0
      %2200 = vmatpush1.msra.mxu0 0.0
      %2201 = vmatprep.subr.mxu0 0.0
      %2202 = vmatpush1.msra.mxu0 0.0
      %2203 = vmatprep.subr.mxu0 0.0
      %2204 = vmatpush1.msra.mxu0 0.0
      %2205 = vmatprep.subr.mxu0 0.0
      %2206 = vmatpush1.msra.mxu0 0.0
      %2207 = vmatprep.subr.mxu0 0.0
      %2208 = vmatpush1.msra.mxu0 0.0
      %2209 = vmatprep.subr.mxu0 0.0
      %2210 = vmatpush1.msra.mxu0 0.0
      %2211 = vmatprep.subr.mxu0 0.0
      %2212 = vmatpush1.msra.mxu0 0.0
      %2213 = vmatprep.subr.mxu0 0.0
      %2214 = vmatpush1.msra.mxu0 0.0
      %2215 = vmatprep.subr.mxu0 0.0
      %2216 = vmatpush1.msra.mxu0 0.0
      %2217 = vmatprep.subr.mxu0 0.0
      %2218 = vmatpush1.msra.mxu0 0.0
      %2219 = vmatprep.subr.mxu0 0.0
      %2220 = vmatpush1.msra.mxu0 0.0
      %2221 = vmatprep.subr.mxu0 0.0
      %2222 = vmatpush1.msra.mxu0 0.0
      %2223 = vmatprep.subr.mxu0 0.0
      %2224 = vmatpush1.msra.mxu0 0.0
      %2225 = vmatprep.subr.mxu0 0.0
      %2226 = vmatpush1.msra.mxu0 0.0
      %2227 = vmatprep.subr.mxu0 0.0
      %2228 = vmatpush1.msra.mxu0 0.0
      %2229 = vmatprep.subr.mxu0 0.0
      %2230 = vmatpush1.msra.mxu0 0.0
      %2231 = vmatprep.subr.mxu0 0.0
      %2232 = vmatpush1.msra.mxu0 0.0
      %2233 = vmatprep.subr.mxu0 0.0
      %2234 = vmatpush1.msra.mxu0 0.0
      %2235 = vmatprep.subr.mxu0 0.0
      %2236 = vmatpush1.msra.mxu0 0.0
      %2237 = vmatprep.subr.mxu0 0.0
      %2238 = vmatpush1.msra.mxu0 0.0
      %2239 = vmatprep.subr.mxu0 0.0
      %2240 = vmatpush1.msra.mxu0 0.0
      %2241 = vmatprep.subr.mxu0 0.0
      %2242 = vmatpush1.msra.mxu0 0.0
      %2243 = vmatprep.subr.mxu0 0.0
      %2244 = vmatpush1.msra.mxu0 0.0
      %2245 = vmatprep.subr.mxu0 0.0
      %2246 = vmatpush1.msra.mxu0 0.0
      %2247 = vmatprep.subr.mxu0 0.0
      %2248 = vmatpush1.msra.mxu0 0.0
      %2249 = vmatprep.mubr.f32.mxu0 0.0
      %2250 = vmatmul.mubr.f32.gmra.mrb[0].mxu0 %v2174
      %v2251 = vpop.f32.mrb[0].mxu0
      %v2252 = vadd.f32 %v2155, %v2251
      %v2253 = vpop.f32.mrb[0].mxu0
      %2254 = vmatprep.mubr.f32.mxu0 0.0
      %2255 = vmatmul.mubr.f32.gmra.mrb[0].mxu0 %v2177
      %v2256 = vpop.f32.mrb[0].mxu0
      %v2257 = vadd.f32 %v2160, %v2256
      %v2258 = vpop.f32.mrb[0].mxu0
      %2259 = vmatprep.mubr.f32.mxu0 0.0
      %2260 = vmatmul.mubr.f32.gmra.mrb[0].mxu0 %v2180
      %v2261 = vpop.f32.mrb[0].mxu0
      %v2262 = vadd.f32 %v2165, %v2261
      %v2263 = vpop.f32.mrb[0].mxu0
      %2264 = vmatprep.mubr.f32.mxu0 0.0
      %2265 = vmatmul.mubr.f32.gmra.mrb[0].mxu0 %v2183
      %v2266 = vpop.f32.mrb[0].mxu0
      %v2267 = vadd.f32 %v2170, %v2266
      %v2268 = vpop.f32.mrb[0].mxu0
      %2269 = vdwg.mxu0
      %s2270 = scalar_lea.vmem %s811, 64
      %v2271 = vld [vmem:[%s2270] sm:$0xff]
      %v2272 = vld [vmem:[%s2270 + $0x8] sm:$0xff]
      %v2273 = vld [vmem:[%s2270 + $0x10] sm:$0xff]
      %v2274 = vld [vmem:[%s2270 + $0x18] sm:$0xff]
      %s2275 = scalar_lea.vmem %s815, 2
      %v2276 = vld [vmem:[%s2275] sm:$0x1]
      %v2278 = vlaneseq
      %v2279 = vshrl.u32 %v2278, 7
      %v2280 = vsub.s32 0, %v2279
      %v2281 = vrot.slane %v2276, %v2280
      %2283 = vmatprep.subr.mxu0 0.0
      %2284 = vmatpush1.msra.mxu0 %v2271
      %2285 = vmatprep.subr.mxu0 0.0
      %2286 = vmatpush1.msra.mxu0 %v2272
      %2287 = vmatprep.subr.mxu0 0.0
      %2288 = vmatpush1.msra.mxu0 %v2273
      %2289 = vmatprep.subr.mxu0 0.0
      %2290 = vmatpush1.msra.mxu0 %v2274
      %2291 = vmatprep.subr.mxu0 0.0
      %2292 = vmatpush1.msra.mxu0 0.0
      %2293 = vmatprep.subr.mxu0 0.0
      %2294 = vmatpush1.msra.mxu0 0.0
      %2295 = vmatprep.subr.mxu0 0.0
      %2296 = vmatpush1.msra.mxu0 0.0
      %2297 = vmatprep.subr.mxu0 0.0
      %2298 = vmatpush1.msra.mxu0 0.0
      %2299 = vmatprep.subr.mxu0 0.0
      %2300 = vmatpush1.msra.mxu0 0.0
      %2301 = vmatprep.subr.mxu0 0.0
      %2302 = vmatpush1.msra.mxu0 0.0
      %2303 = vmatprep.subr.mxu0 0.0
      %2304 = vmatpush1.msra.mxu0 0.0
      %2305 = vmatprep.subr.mxu0 0.0
      %2306 = vmatpush1.msra.mxu0 0.0
      %2307 = vmatprep.subr.mxu0 0.0
      %2308 = vmatpush1.msra.mxu0 0.0
      %2309 = vmatprep.subr.mxu0 0.0
      %2310 = vmatpush1.msra.mxu0 0.0
      %2311 = vmatprep.subr.mxu0 0.0
      %2312 = vmatpush1.msra.mxu0 0.0
      %2313 = vmatprep.subr.mxu0 0.0
      %2314 = vmatpush1.msra.mxu0 0.0
      %2315 = vmatprep.subr.mxu0 0.0
      %2316 = vmatpush1.msra.mxu0 0.0
      %2317 = vmatprep.subr.mxu0 0.0
      %2318 = vmatpush1.msra.mxu0 0.0
      %2319 = vmatprep.subr.mxu0 0.0
      %2320 = vmatpush1.msra.mxu0 0.0
      %2321 = vmatprep.subr.mxu0 0.0
      %2322 = vmatpush1.msra.mxu0 0.0
      %2323 = vmatprep.subr.mxu0 0.0
      %2324 = vmatpush1.msra.mxu0 0.0
      %2325 = vmatprep.subr.mxu0 0.0
      %2326 = vmatpush1.msra.mxu0 0.0
      %2327 = vmatprep.subr.mxu0 0.0
      %2328 = vmatpush1.msra.mxu0 0.0
      %2329 = vmatprep.subr.mxu0 0.0
      %2330 = vmatpush1.msra.mxu0 0.0
      %2331 = vmatprep.subr.mxu0 0.0
      %2332 = vmatpush1.msra.mxu0 0.0
      %2333 = vmatprep.subr.mxu0 0.0
      %2334 = vmatpush1.msra.mxu0 0.0
      %2335 = vmatprep.subr.mxu0 0.0
      %2336 = vmatpush1.msra.mxu0 0.0
      %2337 = vmatprep.subr.mxu0 0.0
      %2338 = vmatpush1.msra.mxu0 0.0
      %2339 = vmatprep.subr.mxu0 0.0
      %2340 = vmatpush1.msra.mxu0 0.0
      %2341 = vmatprep.subr.mxu0 0.0
      %2342 = vmatpush1.msra.mxu0 0.0
      %2343 = vmatprep.subr.mxu0 0.0
      %2344 = vmatpush1.msra.mxu0 0.0
      %2345 = vmatprep.subr.mxu0 0.0
      %2346 = vmatpush1.msra.mxu0 0.0
      %2347 = vmatprep.mubr.f32.mxu0 0.0
      %2348 = vmatmul.mubr.f32.gmra.mrb[0].mxu0 %v990
      %v2349 = vpop.f32.mrb[0].mxu0
      %v2350 = vadd.f32 %v2281, %v2349
      %v2351 = vpop.f32.mrb[0].mxu0
      %2352 = vmatprep.mubr.f32.mxu0 0.0
      %2353 = vmatmul.mubr.f32.gmra.mrb[0].mxu0 %v993
      %v2354 = vpop.f32.mrb[0].mxu0
      %v2355 = vadd.f32 %v2281, %v2354
      %v2356 = vpop.f32.mrb[0].mxu0
      %2357 = vmatprep.mubr.f32.mxu0 0.0
      %2358 = vmatmul.mubr.f32.gmra.mrb[0].mxu0 %v996
      %v2359 = vpop.f32.mrb[0].mxu0
      %v2360 = vadd.f32 %v2281, %v2359
      %v2361 = vpop.f32.mrb[0].mxu0
      %2362 = vmatprep.mubr.f32.mxu0 0.0
      %2363 = vmatmul.mubr.f32.gmra.mrb[0].mxu0 %v999
      %v2364 = vpop.f32.mrb[0].mxu0
      %v2365 = vadd.f32 %v2281, %v2364
      %v2366 = vpop.f32.mrb[0].mxu0
      %2367 = vdwg.mxu0
      %s2368 = scalar_lea.vmem %s820, 64
      %v2369 = vld [vmem:[%s2368] sm:$0xff]
      %v2370 = vld [vmem:[%s2368 + $0x8] sm:$0xff]
      %v2371 = vld [vmem:[%s2368 + $0x10] sm:$0xff]
      %v2372 = vld [vmem:[%s2368 + $0x18] sm:$0xff]
      %s2373 = scalar_lea.vmem %s824, 2
      %v2374 = vld [vmem:[%s2373] sm:$0x1]
      %v2376 = vlaneseq
      %v2377 = vshrl.u32 %v2376, 7
      %v2378 = vsub.s32 0, %v2377
      %v2379 = vrot.slane %v2374, %v2378
      %2381 = vmatprep.subr.mxu0 0.0
      %2382 = vmatpush1.msra.mxu0 %v2369
      %2383 = vmatprep.subr.mxu0 0.0
      %2384 = vmatpush1.msra.mxu0 %v2370
      %2385 = vmatprep.subr.mxu0 0.0
      %2386 = vmatpush1.msra.mxu0 %v2371
      %2387 = vmatprep.subr.mxu0 0.0
      %2388 = vmatpush1.msra.mxu0 %v2372
      %2389 = vmatprep.subr.mxu0 0.0
      %2390 = vmatpush1.msra.mxu0 0.0
      %2391 = vmatprep.subr.mxu0 0.0
      %2392 = vmatpush1.msra.mxu0 0.0
      %2393 = vmatprep.subr.mxu0 0.0
      %2394 = vmatpush1.msra.mxu0 0.0
      %2395 = vmatprep.subr.mxu0 0.0
      %2396 = vmatpush1.msra.mxu0 0.0
      %2397 = vmatprep.subr.mxu0 0.0
      %2398 = vmatpush1.msra.mxu0 0.0
      %2399 = vmatprep.subr.mxu0 0.0
      %2400 = vmatpush1.msra.mxu0 0.0
      %2401 = vmatprep.subr.mxu0 0.0
      %2402 = vmatpush1.msra.mxu0 0.0
      %2403 = vmatprep.subr.mxu0 0.0
      %2404 = vmatpush1.msra.mxu0 0.0
      %2405 = vmatprep.subr.mxu0 0.0
      %2406 = vmatpush1.msra.mxu0 0.0
      %2407 = vmatprep.subr.mxu0 0.0
      %2408 = vmatpush1.msra.mxu0 0.0
      %2409 = vmatprep.subr.mxu0 0.0
      %2410 = vmatpush1.msra.mxu0 0.0
      %2411 = vmatprep.subr.mxu0 0.0
      %2412 = vmatpush1.msra.mxu0 0.0
      %2413 = vmatprep.subr.mxu0 0.0
      %2414 = vmatpush1.msra.mxu0 0.0
      %2415 = vmatprep.subr.mxu0 0.0
      %2416 = vmatpush1.msra.mxu0 0.0
      %2417 = vmatprep.subr.mxu0 0.0
      %2418 = vmatpush1.msra.mxu0 0.0
      %2419 = vmatprep.subr.mxu0 0.0
      %2420 = vmatpush1.msra.mxu0 0.0
      %2421 = vmatprep.subr.mxu0 0.0
      %2422 = vmatpush1.msra.mxu0 0.0
      %2423 = vmatprep.subr.mxu0 0.0
      %2424 = vmatpush1.msra.mxu0 0.0
      %2425 = vmatprep.subr.mxu0 0.0
      %2426 = vmatpush1.msra.mxu0 0.0
      %2427 = vmatprep.subr.mxu0 0.0
      %2428 = vmatpush1.msra.mxu0 0.0
      %2429 = vmatprep.subr.mxu0 0.0
      %2430 = vmatpush1.msra.mxu0 0.0
      %2431 = vmatprep.subr.mxu0 0.0
      %2432 = vmatpush1.msra.mxu0 0.0
      %2433 = vmatprep.subr.mxu0 0.0
      %2434 = vmatpush1.msra.mxu0 0.0
      %2435 = vmatprep.subr.mxu0 0.0
      %2436 = vmatpush1.msra.mxu0 0.0
      %2437 = vmatprep.subr.mxu0 0.0
      %2438 = vmatpush1.msra.mxu0 0.0
      %2439 = vmatprep.subr.mxu0 0.0
      %2440 = vmatpush1.msra.mxu0 0.0
      %2441 = vmatprep.subr.mxu0 0.0
      %2442 = vmatpush1.msra.mxu0 0.0
      %2443 = vmatprep.subr.mxu0 0.0
      %2444 = vmatpush1.msra.mxu0 0.0
      %2445 = vmatprep.mubr.f32.mxu0 0.0
      %2446 = vmatmul.mubr.f32.gmra.mrb[0].mxu0 %v990
      %v2447 = vpop.f32.mrb[0].mxu0
      %v2448 = vadd.f32 %v2379, %v2447
      %v2449 = vpop.f32.mrb[0].mxu0
      %2450 = vmatprep.mubr.f32.mxu0 0.0
      %2451 = vmatmul.mubr.f32.gmra.mrb[0].mxu0 %v993
      %v2452 = vpop.f32.mrb[0].mxu0
      %v2453 = vadd.f32 %v2379, %v2452
      %v2454 = vpop.f32.mrb[0].mxu0
      %2455 = vmatprep.mubr.f32.mxu0 0.0
      %2456 = vmatmul.mubr.f32.gmra.mrb[0].mxu0 %v996
      %v2457 = vpop.f32.mrb[0].mxu0
      %v2458 = vadd.f32 %v2379, %v2457
      %v2459 = vpop.f32.mrb[0].mxu0
      %2460 = vmatprep.mubr.f32.mxu0 0.0
      %2461 = vmatmul.mubr.f32.gmra.mrb[0].mxu0 %v999
      %v2462 = vpop.f32.mrb[0].mxu0
      %v2463 = vadd.f32 %v2379, %v2462
      %v2464 = vpop.f32.mrb[0].mxu0
      %2465 = vdwg.mxu0
      %s2466 = scalar_lea.vmem %s829, 64
      %v2467 = vld [vmem:[%s2466] sm:$0xff]
      %v2468 = vld [vmem:[%s2466 + $0x8] sm:$0xff]
      %v2469 = vld [vmem:[%s2466 + $0x10] sm:$0xff]
      %v2470 = vld [vmem:[%s2466 + $0x18] sm:$0xff]
      %s2471 = scalar_lea.vmem %s833, 2
      %v2472 = vld [vmem:[%s2471] sm:$0x1]
      %v2474 = vlaneseq
      %v2475 = vshrl.u32 %v2474, 7
      %v2476 = vsub.s32 0, %v2475
      %v2477 = vrot.slane %v2472, %v2476
      %2479 = vmatprep.subr.mxu0 0.0
      %2480 = vmatpush1.msra.mxu0 %v2467
      %2481 = vmatprep.subr.mxu0 0.0
      %2482 = vmatpush1.msra.mxu0 %v2468
      %2483 = vmatprep.subr.mxu0 0.0
      %2484 = vmatpush1.msra.mxu0 %v2469
      %2485 = vmatprep.subr.mxu0 0.0
      %2486 = vmatpush1.msra.mxu0 %v2470
      %2487 = vmatprep.subr.mxu0 0.0
      %2488 = vmatpush1.msra.mxu0 0.0
      %2489 = vmatprep.subr.mxu0 0.0
      %2490 = vmatpush1.msra.mxu0 0.0
      %2491 = vmatprep.subr.mxu0 0.0
      %2492 = vmatpush1.msra.mxu0 0.0
      %2493 = vmatprep.subr.mxu0 0.0
      %2494 = vmatpush1.msra.mxu0 0.0
      %2495 = vmatprep.subr.mxu0 0.0
      %2496 = vmatpush1.msra.mxu0 0.0
      %2497 = vmatprep.subr.mxu0 0.0
      %2498 = vmatpush1.msra.mxu0 0.0
      %2499 = vmatprep.subr.mxu0 0.0
      %2500 = vmatpush1.msra.mxu0 0.0
      %2501 = vmatprep.subr.mxu0 0.0
      %2502 = vmatpush1.msra.mxu0 0.0
      %2503 = vmatprep.subr.mxu0 0.0
      %2504 = vmatpush1.msra.mxu0 0.0
      %2505 = vmatprep.subr.mxu0 0.0
      %2506 = vmatpush1.msra.mxu0 0.0
      %2507 = vmatprep.subr.mxu0 0.0
      %2508 = vmatpush1.msra.mxu0 0.0
      %2509 = vmatprep.subr.mxu0 0.0
      %2510 = vmatpush1.msra.mxu0 0.0
      %2511 = vmatprep.subr.mxu0 0.0
      %2512 = vmatpush1.msra.mxu0 0.0
      %2513 = vmatprep.subr.mxu0 0.0
      %2514 = vmatpush1.msra.mxu0 0.0
      %2515 = vmatprep.subr.mxu0 0.0
      %2516 = vmatpush1.msra.mxu0 0.0
      %2517 = vmatprep.subr.mxu0 0.0
      %2518 = vmatpush1.msra.mxu0 0.0
      %2519 = vmatprep.subr.mxu0 0.0
      %2520 = vmatpush1.msra.mxu0 0.0
      %2521 = vmatprep.subr.mxu0 0.0
      %2522 = vmatpush1.msra.mxu0 0.0
      %2523 = vmatprep.subr.mxu0 0.0
      %2524 = vmatpush1.msra.mxu0 0.0
      %2525 = vmatprep.subr.mxu0 0.0
      %2526 = vmatpush1.msra.mxu0 0.0
      %2527 = vmatprep.subr.mxu0 0.0
      %2528 = vmatpush1.msra.mxu0 0.0
      %2529 = vmatprep.subr.mxu0 0.0
      %2530 = vmatpush1.msra.mxu0 0.0
      %2531 = vmatprep.subr.mxu0 0.0
      %2532 = vmatpush1.msra.mxu0 0.0
      %2533 = vmatprep.subr.mxu0 0.0
      %2534 = vmatpush1.msra.mxu0 0.0
      %2535 = vmatprep.subr.mxu0 0.0
      %2536 = vmatpush1.msra.mxu0 0.0
      %2537 = vmatprep.subr.mxu0 0.0
      %2538 = vmatpush1.msra.mxu0 0.0
      %2539 = vmatprep.subr.mxu0 0.0
      %2540 = vmatpush1.msra.mxu0 0.0
      %2541 = vmatprep.subr.mxu0 0.0
      %2542 = vmatpush1.msra.mxu0 0.0
      %2543 = vmatprep.mubr.f32.mxu0 0.0
      %2544 = vmatmul.mubr.f32.gmra.mrb[0].mxu0 %v990
      %v2545 = vpop.f32.mrb[0].mxu0
      %v2546 = vadd.f32 %v2477, %v2545
      %v2547 = vpop.f32.mrb[0].mxu0
      %2548 = vmatprep.mubr.f32.mxu0 0.0
      %2549 = vmatmul.mubr.f32.gmra.mrb[0].mxu0 %v993
      %v2550 = vpop.f32.mrb[0].mxu0
      %v2551 = vadd.f32 %v2477, %v2550
      %v2552 = vpop.f32.mrb[0].mxu0
      %2553 = vmatprep.mubr.f32.mxu0 0.0
      %2554 = vmatmul.mubr.f32.gmra.mrb[0].mxu0 %v996
      %v2555 = vpop.f32.mrb[0].mxu0
      %v2556 = vadd.f32 %v2477, %v2555
      %v2557 = vpop.f32.mrb[0].mxu0
      %2558 = vmatprep.mubr.f32.mxu0 0.0
      %2559 = vmatmul.mubr.f32.gmra.mrb[0].mxu0 %v999
      %v2560 = vpop.f32.mrb[0].mxu0
      %v2561 = vadd.f32 %v2477, %v2560
      %v2562 = vpop.f32.mrb[0].mxu0
      %2563 = vdwg.mxu0
      %v2565 = vsel %vm1278, %v2350, 0
      %v2568 = vsel %vm1278, %v2355, 0
      %v2571 = vsel %vm1278, %v2360, 0
      %v2574 = vsel %vm1278, %v2365, 0
      %v2577 = vsel %vm1278, %v2448, 0
      %v2580 = vsel %vm1278, %v2453, 0
      %v2583 = vsel %vm1278, %v2458, 0
      %v2586 = vsel %vm1278, %v2463, 0
      %2588 = vmatprep.subr.mxu0 0.0
      %2589 = vmatpush1.xpose.msra.mxu0 %v2577
      %2590 = vmatprep.subr.mxu0 0.0
      %2591 = vmatpush1.xpose.msra.mxu0 %v2580
      %2592 = vmatprep.subr.mxu0 0.0
      %2593 = vmatpush1.xpose.msra.mxu0 %v2583
      %2594 = vmatprep.subr.mxu0 0.0
      %2595 = vmatpush1.xpose.msra.mxu0 %v2586
      %2596 = vmatprep.subr.mxu0 0.0
      %2597 = vmatpush1.xpose.msra.mxu0 0.0
      %2598 = vmatprep.subr.mxu0 0.0
      %2599 = vmatpush1.xpose.msra.mxu0 0.0
      %2600 = vmatprep.subr.mxu0 0.0
      %2601 = vmatpush1.xpose.msra.mxu0 0.0
      %2602 = vmatprep.subr.mxu0 0.0
      %2603 = vmatpush1.xpose.msra.mxu0 0.0
      %2604 = vmatprep.subr.mxu0 0.0
      %2605 = vmatpush1.xpose.msra.mxu0 0.0
      %2606 = vmatprep.subr.mxu0 0.0
      %2607 = vmatpush1.xpose.msra.mxu0 0.0
      %2608 = vmatprep.subr.mxu0 0.0
      %2609 = vmatpush1.xpose.msra.mxu0 0.0
      %2610 = vmatprep.subr.mxu0 0.0
      %2611 = vmatpush1.xpose.msra.mxu0 0.0
      %2612 = vmatprep.subr.mxu0 0.0
      %2613 = vmatpush1.xpose.msra.mxu0 0.0
      %2614 = vmatprep.subr.mxu0 0.0
      %2615 = vmatpush1.xpose.msra.mxu0 0.0
      %2616 = vmatprep.subr.mxu0 0.0
      %2617 = vmatpush1.xpose.msra.mxu0 0.0
      %2618 = vmatprep.subr.mxu0 0.0
      %2619 = vmatpush1.xpose.msra.mxu0 0.0
      %2620 = vmatprep.subr.mxu0 0.0
      %2621 = vmatpush1.xpose.msra.mxu0 0.0
      %2622 = vmatprep.subr.mxu0 0.0
      %2623 = vmatpush1.xpose.msra.mxu0 0.0
      %2624 = vmatprep.subr.mxu0 0.0
      %2625 = vmatpush1.xpose.msra.mxu0 0.0
      %2626 = vmatprep.subr.mxu0 0.0
      %2627 = vmatpush1.xpose.msra.mxu0 0.0
      %2628 = vmatprep.subr.mxu0 0.0
      %2629 = vmatpush1.xpose.msra.mxu0 0.0
      %2630 = vmatprep.subr.mxu0 0.0
      %2631 = vmatpush1.xpose.msra.mxu0 0.0
      %2632 = vmatprep.subr.mxu0 0.0
      %2633 = vmatpush1.xpose.msra.mxu0 0.0
      %2634 = vmatprep.subr.mxu0 0.0
      %2635 = vmatpush1.xpose.msra.mxu0 0.0
      %2636 = vmatprep.subr.mxu0 0.0
      %2637 = vmatpush1.xpose.msra.mxu0 0.0
      %2638 = vmatprep.subr.mxu0 0.0
      %2639 = vmatpush1.xpose.msra.mxu0 0.0
      %2640 = vmatprep.subr.mxu0 0.0
      %2641 = vmatpush1.xpose.msra.mxu0 0.0
      %2642 = vmatprep.subr.mxu0 0.0
      %2643 = vmatpush1.xpose.msra.mxu0 0.0
      %2644 = vmatprep.subr.mxu0 0.0
      %2645 = vmatpush1.xpose.msra.mxu0 0.0
      %2646 = vmatprep.subr.mxu0 0.0
      %2647 = vmatpush1.xpose.msra.mxu0 0.0
      %2648 = vmatprep.subr.mxu0 0.0
      %2649 = vmatpush1.xpose.msra.mxu0 0.0
      %2650 = vmatprep.subr.mxu0 0.0
      %2651 = vmatpush1.xpose.msra.mxu0 0.0
      %2652 = vmatprep.mubr.f32.mxu0 0.0
      %2653 = vmatmul.mubr.f32.gmra.mrb[0].mxu0 %v2565
      %v2654 = vpop.f32.mrb[0].mxu0
      %v2655 = vadd.f32 %v877, %v2654
      %v2656 = vpop.f32.mrb[0].mxu0
      %2657 = vmatprep.mubr.f32.mxu0 0.0
      %2658 = vmatmul.mubr.f32.gmra.mrb[0].mxu0 %v2568
      %v2659 = vpop.f32.mrb[0].mxu0
      %v2660 = vadd.f32 %v878, %v2659
      %v2661 = vpop.f32.mrb[0].mxu0
      %2662 = vmatprep.mubr.f32.mxu0 0.0
      %2663 = vmatmul.mubr.f32.gmra.mrb[0].mxu0 %v2571
      %v2664 = vpop.f32.mrb[0].mxu0
      %v2665 = vadd.f32 %v879, %v2664
      %v2666 = vpop.f32.mrb[0].mxu0
      %2667 = vmatprep.mubr.f32.mxu0 0.0
      %2668 = vmatmul.mubr.f32.gmra.mrb[0].mxu0 %v2574
      %v2669 = vpop.f32.mrb[0].mxu0
      %v2670 = vadd.f32 %v880, %v2669
      %v2671 = vpop.f32.mrb[0].mxu0
      %2672 = vdwg.mxu0
      %v2673 = vsel %vm904, %v2655, -inf
      %2674 = vmax.xlane.f32.xlu0 %v2673
      %v2675 = vpop.xlane.xlu0 %2674
      %v2676 = vsel %vm904, %v2660, -inf
      %2677 = vmax.xlane.f32.xlu0 %v2676
      %v2678 = vpop.xlane.xlu0 %2677
      %v2679 = vsel %vm904, %v2665, -inf
      %2680 = vmax.xlane.f32.xlu0 %v2679
      %v2681 = vpop.xlane.xlu0 %2680
      %v2682 = vsel %vm904, %v2670, -inf
      %2683 = vmax.xlane.f32.xlu0 %v2682
      %v2684 = vpop.xlane.xlu0 %2683
      %v2685 = vsub.f32 %v2655, %v2675
      %v2686 = vsub.f32 %v2660, %v2678
      %v2687 = vsub.f32 %v2665, %v2681
      %v2688 = vsub.f32 %v2670, %v2684
      %v2689 = vmul.f32 %v2685, 1.442695
      %v2690 = vpow.pop %v2689
      %v2691 = vmul.f32 %v2686, 1.442695
      %v2692 = vpow.pop %v2691
      %v2693 = vmul.f32 %v2687, 1.442695
      %v2694 = vpow.pop %v2693
      %v2695 = vmul.f32 %v2688, 1.442695
      %v2696 = vpow.pop %v2695
      %v2697 = vsel %vm904, %v2690, 0.0
      %2698 = vadd.xlane.f32.xlu0 %v2697
      %v2699 = vpop.xlane.xlu0 %2698
      %v2700 = vsel %vm904, %v2692, 0.0
      %2701 = vadd.xlane.f32.xlu0 %v2700
      %v2702 = vpop.xlane.xlu0 %2701
      %v2703 = vsel %vm904, %v2694, 0.0
      %2704 = vadd.xlane.f32.xlu0 %v2703
      %v2705 = vpop.xlane.xlu0 %2704
      %v2706 = vsel %vm904, %v2696, 0.0
      %2707 = vadd.xlane.f32.xlu0 %v2706
      %v2708 = vpop.xlane.xlu0 %2707
      %v2709 = vrcp.pop %v2699
      %v2710 = vmul.f32 %v2690, %v2709
      %v2711 = vrcp.pop %v2702
      %v2712 = vmul.f32 %v2692, %v2711
      %v2713 = vrcp.pop %v2705
      %v2714 = vmul.f32 %v2694, %v2713
      %v2715 = vrcp.pop %v2708
      %v2716 = vmul.f32 %v2696, %v2715
      %v2718 = vsel %vm904, %v2710, 0
      %v2721 = vsel %vm904, %v2712, 0
      %v2724 = vsel %vm904, %v2714, 0
      %v2727 = vsel %vm904, %v2716, 0
      %2729 = vmatprep.subr.mxu0 0.0
      %2730 = vmatpush1.msra.mxu0 %v2546
      %2731 = vmatprep.subr.mxu0 0.0
      %2732 = vmatpush1.msra.mxu0 %v2551
      %2733 = vmatprep.subr.mxu0 0.0
      %2734 = vmatpush1.msra.mxu0 %v2556
      %2735 = vmatprep.subr.mxu0 0.0
      %2736 = vmatpush1.msra.mxu0 %v2561
      %2737 = vmatprep.subr.mxu0 0.0
      %2738 = vmatpush1.msra.mxu0 0.0
      %2739 = vmatprep.subr.mxu0 0.0
      %2740 = vmatpush1.msra.mxu0 0.0
      %2741 = vmatprep.subr.mxu0 0.0
      %2742 = vmatpush1.msra.mxu0 0.0
      %2743 = vmatprep.subr.mxu0 0.0
      %2744 = vmatpush1.msra.mxu0 0.0
      %2745 = vmatprep.subr.mxu0 0.0
      %2746 = vmatpush1.msra.mxu0 0.0
      %2747 = vmatprep.subr.mxu0 0.0
      %2748 = vmatpush1.msra.mxu0 0.0
      %2749 = vmatprep.subr.mxu0 0.0
      %2750 = vmatpush1.msra.mxu0 0.0
      %2751 = vmatprep.subr.mxu0 0.0
      %2752 = vmatpush1.msra.mxu0 0.0
      %2753 = vmatprep.subr.mxu0 0.0
      %2754 = vmatpush1.msra.mxu0 0.0
      %2755 = vmatprep.subr.mxu0 0.0
      %2756 = vmatpush1.msra.mxu0 0.0
      %2757 = vmatprep.subr.mxu0 0.0
      %2758 = vmatpush1.msra.mxu0 0.0
      %2759 = vmatprep.subr.mxu0 0.0
      %2760 = vmatpush1.msra.mxu0 0.0
      %2761 = vmatprep.subr.mxu0 0.0
      %2762 = vmatpush1.msra.mxu0 0.0
      %2763 = vmatprep.subr.mxu0 0.0
      %2764 = vmatpush1.msra.mxu0 0.0
      %2765 = vmatprep.subr.mxu0 0.0
      %2766 = vmatpush1.msra.mxu0 0.0
      %2767 = vmatprep.subr.mxu0 0.0
      %2768 = vmatpush1.msra.mxu0 0.0
      %2769 = vmatprep.subr.mxu0 0.0
      %2770 = vmatpush1.msra.mxu0 0.0
      %2771 = vmatprep.subr.mxu0 0.0
      %2772 = vmatpush1.msra.mxu0 0.0
      %2773 = vmatprep.subr.mxu0 0.0
      %2774 = vmatpush1.msra.mxu0 0.0
      %2775 = vmatprep.subr.mxu0 0.0
      %2776 = vmatpush1.msra.mxu0 0.0
      %2777 = vmatprep.subr.mxu0 0.0
      %2778 = vmatpush1.msra.mxu0 0.0
      %2779 = vmatprep.subr.mxu0 0.0
      %2780 = vmatpush1.msra.mxu0 0.0
      %2781 = vmatprep.subr.mxu0 0.0
      %2782 = vmatpush1.msra.mxu0 0.0
      %2783 = vmatprep.subr.mxu0 0.0
      %2784 = vmatpush1.msra.mxu0 0.0
      %2785 = vmatprep.subr.mxu0 0.0
      %2786 = vmatpush1.msra.mxu0 0.0
      %2787 = vmatprep.subr.mxu0 0.0
      %2788 = vmatpush1.msra.mxu0 0.0
      %2789 = vmatprep.subr.mxu0 0.0
      %2790 = vmatpush1.msra.mxu0 0.0
      %2791 = vmatprep.subr.mxu0 0.0
      %2792 = vmatpush1.msra.mxu0 0.0
      %2793 = vmatprep.mubr.f32.mxu0 0.0
      %2794 = vmatmul.mubr.f32.gmra.mrb[0].mxu0 %v2718
      %v2795 = vpop.f32.mrb[0].mxu0
      %v2796 = vadd.f32 0.0, %v2795
      %v2797 = vpop.f32.mrb[0].mxu0
      %2798 = vmatprep.mubr.f32.mxu0 0.0
      %2799 = vmatmul.mubr.f32.gmra.mrb[0].mxu0 %v2721
      %v2800 = vpop.f32.mrb[0].mxu0
      %v2801 = vadd.f32 0.0, %v2800
      %v2802 = vpop.f32.mrb[0].mxu0
      %2803 = vmatprep.mubr.f32.mxu0 0.0
      %2804 = vmatmul.mubr.f32.gmra.mrb[0].mxu0 %v2724
      %v2805 = vpop.f32.mrb[0].mxu0
      %v2806 = vadd.f32 0.0, %v2805
      %v2807 = vpop.f32.mrb[0].mxu0
      %2808 = vmatprep.mubr.f32.mxu0 0.0
      %2809 = vmatmul.mubr.f32.gmra.mrb[0].mxu0 %v2727
      %v2810 = vpop.f32.mrb[0].mxu0
      %v2811 = vadd.f32 0.0, %v2810
      %v2812 = vpop.f32.mrb[0].mxu0
      %2813 = vdwg.mxu0
      %s2814 = scalar_lea.vmem %s838, 16
      %v2815 = vld [vmem:[%s2814] sm:$0xff]
      %v2817 = vsel %vm1278, %v2796, 0
      %v2820 = vsel %vm1278, %v2801, 0
      %v2823 = vsel %vm1278, %v2806, 0
      %v2826 = vsel %vm1278, %v2811, 0
      %2828 = vmatprep.subr.mxu0 0.0
      %2829 = vmatpush1.msra.mxu0 %v2815
      %2830 = vmatprep.subr.mxu0 0.0
      %2831 = vmatpush1.msra.mxu0 0.0
      %2832 = vmatprep.subr.mxu0 0.0
      %2833 = vmatpush1.msra.mxu0 0.0
      %2834 = vmatprep.subr.mxu0 0.0
      %2835 = vmatpush1.msra.mxu0 0.0
      %2836 = vmatprep.subr.mxu0 0.0
      %2837 = vmatpush1.msra.mxu0 0.0
      %2838 = vmatprep.subr.mxu0 0.0
      %2839 = vmatpush1.msra.mxu0 0.0
      %2840 = vmatprep.subr.mxu0 0.0
      %2841 = vmatpush1.msra.mxu0 0.0
      %2842 = vmatprep.subr.mxu0 0.0
      %2843 = vmatpush1.msra.mxu0 0.0
      %2844 = vmatprep.subr.mxu0 0.0
      %2845 = vmatpush1.msra.mxu0 0.0
      %2846 = vmatprep.subr.mxu0 0.0
      %2847 = vmatpush1.msra.mxu0 0.0
      %2848 = vmatprep.subr.mxu0 0.0
      %2849 = vmatpush1.msra.mxu0 0.0
      %2850 = vmatprep.subr.mxu0 0.0
      %2851 = vmatpush1.msra.mxu0 0.0
      %2852 = vmatprep.subr.mxu0 0.0
      %2853 = vmatpush1.msra.mxu0 0.0
      %2854 = vmatprep.subr.mxu0 0.0
      %2855 = vmatpush1.msra.mxu0 0.0
      %2856 = vmatprep.subr.mxu0 0.0
      %2857 = vmatpush1.msra.mxu0 0.0
      %2858 = vmatprep.subr.mxu0 0.0
      %2859 = vmatpush1.msra.mxu0 0.0
      %2860 = vmatprep.subr.mxu0 0.0
      %2861 = vmatpush1.msra.mxu0 0.0
      %2862 = vmatprep.subr.mxu0 0.0
      %2863 = vmatpush1.msra.mxu0 0.0
      %2864 = vmatprep.subr.mxu0 0.0
      %2865 = vmatpush1.msra.mxu0 0.0
      %2866 = vmatprep.subr.mxu0 0.0
      %2867 = vmatpush1.msra.mxu0 0.0
      %2868 = vmatprep.subr.mxu0 0.0
      %2869 = vmatpush1.msra.mxu0 0.0
      %2870 = vmatprep.subr.mxu0 0.0
      %2871 = vmatpush1.msra.mxu0 0.0
      %2872 = vmatprep.subr.mxu0 0.0
      %2873 = vmatpush1.msra.mxu0 0.0
      %2874 = vmatprep.subr.mxu0 0.0
      %2875 = vmatpush1.msra.mxu0 0.0
      %2876 = vmatprep.subr.mxu0 0.0
      %2877 = vmatpush1.msra.mxu0 0.0
      %2878 = vmatprep.subr.mxu0 0.0
      %2879 = vmatpush1.msra.mxu0 0.0
      %2880 = vmatprep.subr.mxu0 0.0
      %2881 = vmatpush1.msra.mxu0 0.0
      %2882 = vmatprep.subr.mxu0 0.0
      %2883 = vmatpush1.msra.mxu0 0.0
      %2884 = vmatprep.subr.mxu0 0.0
      %2885 = vmatpush1.msra.mxu0 0.0
      %2886 = vmatprep.subr.mxu0 0.0
      %2887 = vmatpush1.msra.mxu0 0.0
      %2888 = vmatprep.subr.mxu0 0.0
      %2889 = vmatpush1.msra.mxu0 0.0
      %2890 = vmatprep.subr.mxu0 0.0
      %2891 = vmatpush1.msra.mxu0 0.0
      %2892 = vmatprep.mubr.f32.mxu0 0.0
      %2893 = vmatmul.mubr.f32.gmra.mrb[0].mxu0 %v2817
      %v2894 = vpop.f32.mrb[0].mxu0
      %v2895 = vadd.f32 0.0, %v2894
      %v2896 = vpop.f32.mrb[0].mxu0
      %2897 = vmatprep.mubr.f32.mxu0 0.0
      %2898 = vmatmul.mubr.f32.gmra.mrb[0].mxu0 %v2820
      %v2899 = vpop.f32.mrb[0].mxu0
      %v2900 = vadd.f32 0.0, %v2899
      %v2901 = vpop.f32.mrb[0].mxu0
      %2902 = vmatprep.mubr.f32.mxu0 0.0
      %2903 = vmatmul.mubr.f32.gmra.mrb[0].mxu0 %v2823
      %v2904 = vpop.f32.mrb[0].mxu0
      %v2905 = vadd.f32 0.0, %v2904
      %v2906 = vpop.f32.mrb[0].mxu0
      %2907 = vmatprep.mubr.f32.mxu0 0.0
      %2908 = vmatmul.mubr.f32.gmra.mrb[0].mxu0 %v2826
      %v2909 = vpop.f32.mrb[0].mxu0
      %v2910 = vadd.f32 0.0, %v2909
      %v2911 = vpop.f32.mrb[0].mxu0
      %2912 = vdwg.mxu0
      %v2913 = vadd.f32 %v2252, %v2895
      %v2914 = vadd.f32 %v2257, %v2900
      %v2915 = vadd.f32 %v2262, %v2905
      %v2916 = vadd.f32 %v2267, %v2910
      %s2917 = scalar_lea.vmem %s811, 96
      %v2918 = vld [vmem:[%s2917] sm:$0xff]
      %v2919 = vld [vmem:[%s2917 + $0x8] sm:$0xff]
      %v2920 = vld [vmem:[%s2917 + $0x10] sm:$0xff]
      %v2921 = vld [vmem:[%s2917 + $0x18] sm:$0xff]
      %s2922 = scalar_lea.vmem %s815, 3
      %v2923 = vld [vmem:[%s2922] sm:$0x1]
      %v2925 = vlaneseq
      %v2926 = vshrl.u32 %v2925, 7
      %v2927 = vsub.s32 0, %v2926
      %v2928 = vrot.slane %v2923, %v2927
      %2930 = vmatprep.subr.mxu0 0.0
      %2931 = vmatpush1.msra.mxu0 %v2918
      %2932 = vmatprep.subr.mxu0 0.0
      %2933 = vmatpush1.msra.mxu0 %v2919
      %2934 = vmatprep.subr.mxu0 0.0
      %2935 = vmatpush1.msra.mxu0 %v2920
      %2936 = vmatprep.subr.mxu0 0.0
      %2937 = vmatpush1.msra.mxu0 %v2921
      %2938 = vmatprep.subr.mxu0 0.0
      %2939 = vmatpush1.msra.mxu0 0.0
      %2940 = vmatprep.subr.mxu0 0.0
      %2941 = vmatpush1.msra.mxu0 0.0
      %2942 = vmatprep.subr.mxu0 0.0
      %2943 = vmatpush1.msra.mxu0 0.0
      %2944 = vmatprep.subr.mxu0 0.0
      %2945 = vmatpush1.msra.mxu0 0.0
      %2946 = vmatprep.subr.mxu0 0.0
      %2947 = vmatpush1.msra.mxu0 0.0
      %2948 = vmatprep.subr.mxu0 0.0
      %2949 = vmatpush1.msra.mxu0 0.0
      %2950 = vmatprep.subr.mxu0 0.0
      %2951 = vmatpush1.msra.mxu0 0.0
      %2952 = vmatprep.subr.mxu0 0.0
      %2953 = vmatpush1.msra.mxu0 0.0
      %2954 = vmatprep.subr.mxu0 0.0
      %2955 = vmatpush1.msra.mxu0 0.0
      %2956 = vmatprep.subr.mxu0 0.0
      %2957 = vmatpush1.msra.mxu0 0.0
      %2958 = vmatprep.subr.mxu0 0.0
      %2959 = vmatpush1.msra.mxu0 0.0
      %2960 = vmatprep.subr.mxu0 0.0
      %2961 = vmatpush1.msra.mxu0 0.0
      %2962 = vmatprep.subr.mxu0 0.0
      %2963 = vmatpush1.msra.mxu0 0.0
      %2964 = vmatprep.subr.mxu0 0.0
      %2965 = vmatpush1.msra.mxu0 0.0
      %2966 = vmatprep.subr.mxu0 0.0
      %2967 = vmatpush1.msra.mxu0 0.0
      %2968 = vmatprep.subr.mxu0 0.0
      %2969 = vmatpush1.msra.mxu0 0.0
      %2970 = vmatprep.subr.mxu0 0.0
      %2971 = vmatpush1.msra.mxu0 0.0
      %2972 = vmatprep.subr.mxu0 0.0
      %2973 = vmatpush1.msra.mxu0 0.0
      %2974 = vmatprep.subr.mxu0 0.0
      %2975 = vmatpush1.msra.mxu0 0.0
      %2976 = vmatprep.subr.mxu0 0.0
      %2977 = vmatpush1.msra.mxu0 0.0
      %2978 = vmatprep.subr.mxu0 0.0
      %2979 = vmatpush1.msra.mxu0 0.0
      %2980 = vmatprep.subr.mxu0 0.0
      %2981 = vmatpush1.msra.mxu0 0.0
      %2982 = vmatprep.subr.mxu0 0.0
      %2983 = vmatpush1.msra.mxu0 0.0
      %2984 = vmatprep.subr.mxu0 0.0
      %2985 = vmatpush1.msra.mxu0 0.0
      %2986 = vmatprep.subr.mxu0 0.0
      %2987 = vmatpush1.msra.mxu0 0.0
      %2988 = vmatprep.subr.mxu0 0.0
      %2989 = vmatpush1.msra.mxu0 0.0
      %2990 = vmatprep.subr.mxu0 0.0
      %2991 = vmatpush1.msra.mxu0 0.0
      %2992 = vmatprep.subr.mxu0 0.0
      %2993 = vmatpush1.msra.mxu0 0.0
      %2994 = vmatprep.mubr.f32.mxu0 0.0
      %2995 = vmatmul.mubr.f32.gmra.mrb[0].mxu0 %v990
      %v2996 = vpop.f32.mrb[0].mxu0
      %v2997 = vadd.f32 %v2928, %v2996
      %v2998 = vpop.f32.mrb[0].mxu0
      %2999 = vmatprep.mubr.f32.mxu0 0.0
      %3000 = vmatmul.mubr.f32.gmra.mrb[0].mxu0 %v993
      %v3001 = vpop.f32.mrb[0].mxu0
      %v3002 = vadd.f32 %v2928, %v3001
      %v3003 = vpop.f32.mrb[0].mxu0
      %3004 = vmatprep.mubr.f32.mxu0 0.0
      %3005 = vmatmul.mubr.f32.gmra.mrb[0].mxu0 %v996
      %v3006 = vpop.f32.mrb[0].mxu0
      %v3007 = vadd.f32 %v2928, %v3006
      %v3008 = vpop.f32.mrb[0].mxu0
      %3009 = vmatprep.mubr.f32.mxu0 0.0
      %3010 = vmatmul.mubr.f32.gmra.mrb[0].mxu0 %v999
      %v3011 = vpop.f32.mrb[0].mxu0
      %v3012 = vadd.f32 %v2928, %v3011
      %v3013 = vpop.f32.mrb[0].mxu0
      %3014 = vdwg.mxu0
      %s3015 = scalar_lea.vmem %s820, 96
      %v3016 = vld [vmem:[%s3015] sm:$0xff]
      %v3017 = vld [vmem:[%s3015 + $0x8] sm:$0xff]
      %v3018 = vld [vmem:[%s3015 + $0x10] sm:$0xff]
      %v3019 = vld [vmem:[%s3015 + $0x18] sm:$0xff]
      %s3020 = scalar_lea.vmem %s824, 3
      %v3021 = vld [vmem:[%s3020] sm:$0x1]
      %v3023 = vlaneseq
      %v3024 = vshrl.u32 %v3023, 7
      %v3025 = vsub.s32 0, %v3024
      %v3026 = vrot.slane %v3021, %v3025
      %3028 = vmatprep.subr.mxu0 0.0
      %3029 = vmatpush1.msra.mxu0 %v3016
      %3030 = vmatprep.subr.mxu0 0.0
      %3031 = vmatpush1.msra.mxu0 %v3017
      %3032 = vmatprep.subr.mxu0 0.0
      %3033 = vmatpush1.msra.mxu0 %v3018
      %3034 = vmatprep.subr.mxu0 0.0
      %3035 = vmatpush1.msra.mxu0 %v3019
      %3036 = vmatprep.subr.mxu0 0.0
      %3037 = vmatpush1.msra.mxu0 0.0
      %3038 = vmatprep.subr.mxu0 0.0
      %3039 = vmatpush1.msra.mxu0 0.0
      %3040 = vmatprep.subr.mxu0 0.0
      %3041 = vmatpush1.msra.mxu0 0.0
      %3042 = vmatprep.subr.mxu0 0.0
      %3043 = vmatpush1.msra.mxu0 0.0
      %3044 = vmatprep.subr.mxu0 0.0
      %3045 = vmatpush1.msra.mxu0 0.0
      %3046 = vmatprep.subr.mxu0 0.0
      %3047 = vmatpush1.msra.mxu0 0.0
      %3048 = vmatprep.subr.mxu0 0.0
      %3049 = vmatpush1.msra.mxu0 0.0
      %3050 = vmatprep.subr.mxu0 0.0
      %3051 = vmatpush1.msra.mxu0 0.0
      %3052 = vmatprep.subr.mxu0 0.0
      %3053 = vmatpush1.msra.mxu0 0.0
      %3054 = vmatprep.subr.mxu0 0.0
      %3055 = vmatpush1.msra.mxu0 0.0
      %3056 = vmatprep.subr.mxu0 0.0
      %3057 = vmatpush1.msra.mxu0 0.0
      %3058 = vmatprep.subr.mxu0 0.0
      %3059 = vmatpush1.msra.mxu0 0.0
      %3060 = vmatprep.subr.mxu0 0.0
      %3061 = vmatpush1.msra.mxu0 0.0
      %3062 = vmatprep.subr.mxu0 0.0
      %3063 = vmatpush1.msra.mxu0 0.0
      %3064 = vmatprep.subr.mxu0 0.0
      %3065 = vmatpush1.msra.mxu0 0.0
      %3066 = vmatprep.subr.mxu0 0.0
      %3067 = vmatpush1.msra.mxu0 0.0
      %3068 = vmatprep.subr.mxu0 0.0
      %3069 = vmatpush1.msra.mxu0 0.0
      %3070 = vmatprep.subr.mxu0 0.0
      %3071 = vmatpush1.msra.mxu0 0.0
      %3072 = vmatprep.subr.mxu0 0.0
      %3073 = vmatpush1.msra.mxu0 0.0
      %3074 = vmatprep.subr.mxu0 0.0
      %3075 = vmatpush1.msra.mxu0 0.0
      %3076 = vmatprep.subr.mxu0 0.0
      %3077 = vmatpush1.msra.mxu0 0.0
      %3078 = vmatprep.subr.mxu0 0.0
      %3079 = vmatpush1.msra.mxu0 0.0
      %3080 = vmatprep.subr.mxu0 0.0
      %3081 = vmatpush1.msra.mxu0 0.0
      %3082 = vmatprep.subr.mxu0 0.0
      %3083 = vmatpush1.msra.mxu0 0.0
      %3084 = vmatprep.subr.mxu0 0.0
      %3085 = vmatpush1.msra.mxu0 0.0
      %3086 = vmatprep.subr.mxu0 0.0
      %3087 = vmatpush1.msra.mxu0 0.0
      %3088 = vmatprep.subr.mxu0 0.0
      %3089 = vmatpush1.msra.mxu0 0.0
      %3090 = vmatprep.subr.mxu0 0.0
      %3091 = vmatpush1.msra.mxu0 0.0
      %3092 = vmatprep.mubr.f32.mxu0 0.0
      %3093 = vmatmul.mubr.f32.gmra.mrb[0].mxu0 %v990
      %v3094 = vpop.f32.mrb[0].mxu0
      %v3095 = vadd.f32 %v3026, %v3094
      %v3096 = vpop.f32.mrb[0].mxu0
      %3097 = vmatprep.mubr.f32.mxu0 0.0
      %3098 = vmatmul.mubr.f32.gmra.mrb[0].mxu0 %v993
      %v3099 = vpop.f32.mrb[0].mxu0
      %v3100 = vadd.f32 %v3026, %v3099
      %v3101 = vpop.f32.mrb[0].mxu0
      %3102 = vmatprep.mubr.f32.mxu0 0.0
      %3103 = vmatmul.mubr.f32.gmra.mrb[0].mxu0 %v996
      %v3104 = vpop.f32.mrb[0].mxu0
      %v3105 = vadd.f32 %v3026, %v3104
      %v3106 = vpop.f32.mrb[0].mxu0
      %3107 = vmatprep.mubr.f32.mxu0 0.0
      %3108 = vmatmul.mubr.f32.gmra.mrb[0].mxu0 %v999
      %v3109 = vpop.f32.mrb[0].mxu0
      %v3110 = vadd.f32 %v3026, %v3109
      %v3111 = vpop.f32.mrb[0].mxu0
      %3112 = vdwg.mxu0
      %s3113 = scalar_lea.vmem %s829, 96
      %v3114 = vld [vmem:[%s3113] sm:$0xff]
      %v3115 = vld [vmem:[%s3113 + $0x8] sm:$0xff]
      %v3116 = vld [vmem:[%s3113 + $0x10] sm:$0xff]
      %v3117 = vld [vmem:[%s3113 + $0x18] sm:$0xff]
      %s3118 = scalar_lea.vmem %s833, 3
      %v3119 = vld [vmem:[%s3118] sm:$0x1]
      %v3121 = vlaneseq
      %v3122 = vshrl.u32 %v3121, 7
      %v3123 = vsub.s32 0, %v3122
      %v3124 = vrot.slane %v3119, %v3123
      %3126 = vmatprep.subr.mxu0 0.0
      %3127 = vmatpush1.msra.mxu0 %v3114
      %3128 = vmatprep.subr.mxu0 0.0
      %3129 = vmatpush1.msra.mxu0 %v3115
      %3130 = vmatprep.subr.mxu0 0.0
      %3131 = vmatpush1.msra.mxu0 %v3116
      %3132 = vmatprep.subr.mxu0 0.0
      %3133 = vmatpush1.msra.mxu0 %v3117
      %3134 = vmatprep.subr.mxu0 0.0
      %3135 = vmatpush1.msra.mxu0 0.0
      %3136 = vmatprep.subr.mxu0 0.0
      %3137 = vmatpush1.msra.mxu0 0.0
      %3138 = vmatprep.subr.mxu0 0.0
      %3139 = vmatpush1.msra.mxu0 0.0
      %3140 = vmatprep.subr.mxu0 0.0
      %3141 = vmatpush1.msra.mxu0 0.0
      %3142 = vmatprep.subr.mxu0 0.0
      %3143 = vmatpush1.msra.mxu0 0.0
      %3144 = vmatprep.subr.mxu0 0.0
      %3145 = vmatpush1.msra.mxu0 0.0
      %3146 = vmatprep.subr.mxu0 0.0
      %3147 = vmatpush1.msra.mxu0 0.0
      %3148 = vmatprep.subr.mxu0 0.0
      %3149 = vmatpush1.msra.mxu0 0.0
      %3150 = vmatprep.subr.mxu0 0.0
      %3151 = vmatpush1.msra.mxu0 0.0
      %3152 = vmatprep.subr.mxu0 0.0
      %3153 = vmatpush1.msra.mxu0 0.0
      %3154 = vmatprep.subr.mxu0 0.0
      %3155 = vmatpush1.msra.mxu0 0.0
      %3156 = vmatprep.subr.mxu0 0.0
      %3157 = vmatpush1.msra.mxu0 0.0
      %3158 = vmatprep.subr.mxu0 0.0
      %3159 = vmatpush1.msra.mxu0 0.0
      %3160 = vmatprep.subr.mxu0 0.0
      %3161 = vmatpush1.msra.mxu0 0.0
      %3162 = vmatprep.subr.mxu0 0.0
      %3163 = vmatpush1.msra.mxu0 0.0
      %3164 = vmatprep.subr.mxu0 0.0
      %3165 = vmatpush1.msra.mxu0 0.0
      %3166 = vmatprep.subr.mxu0 0.0
      %3167 = vmatpush1.msra.mxu0 0.0
      %3168 = vmatprep.subr.mxu0 0.0
      %3169 = vmatpush1.msra.mxu0 0.0
      %3170 = vmatprep.subr.mxu0 0.0
      %3171 = vmatpush1.msra.mxu0 0.0
      %3172 = vmatprep.subr.mxu0 0.0
      %3173 = vmatpush1.msra.mxu0 0.0
      %3174 = vmatprep.subr.mxu0 0.0
      %3175 = vmatpush1.msra.mxu0 0.0
      %3176 = vmatprep.subr.mxu0 0.0
      %3177 = vmatpush1.msra.mxu0 0.0
      %3178 = vmatprep.subr.mxu0 0.0
      %3179 = vmatpush1.msra.mxu0 0.0
      %3180 = vmatprep.subr.mxu0 0.0
      %3181 = vmatpush1.msra.mxu0 0.0
      %3182 = vmatprep.subr.mxu0 0.0
      %3183 = vmatpush1.msra.mxu0 0.0
      %3184 = vmatprep.subr.mxu0 0.0
      %3185 = vmatpush1.msra.mxu0 0.0
      %3186 = vmatprep.subr.mxu0 0.0
      %3187 = vmatpush1.msra.mxu0 0.0
      %3188 = vmatprep.subr.mxu0 0.0
      %3189 = vmatpush1.msra.mxu0 0.0
      %3190 = vmatprep.mubr.f32.mxu0 0.0
      %3191 = vmatmul.mubr.f32.gmra.mrb[0].mxu0 %v990
      %v3192 = vpop.f32.mrb[0].mxu0
      %v3193 = vadd.f32 %v3124, %v3192
      %v3194 = vpop.f32.mrb[0].mxu0
      %3195 = vmatprep.mubr.f32.mxu0 0.0
      %3196 = vmatmul.mubr.f32.gmra.mrb[0].mxu0 %v993
      %v3197 = vpop.f32.mrb[0].mxu0
      %v3198 = vadd.f32 %v3124, %v3197
      %v3199 = vpop.f32.mrb[0].mxu0
      %3200 = vmatprep.mubr.f32.mxu0 0.0
      %3201 = vmatmul.mubr.f32.gmra.mrb[0].mxu0 %v996
      %v3202 = vpop.f32.mrb[0].mxu0
      %v3203 = vadd.f32 %v3124, %v3202
      %v3204 = vpop.f32.mrb[0].mxu0
      %3205 = vmatprep.mubr.f32.mxu0 0.0
      %3206 = vmatmul.mubr.f32.gmra.mrb[0].mxu0 %v999
      %v3207 = vpop.f32.mrb[0].mxu0
      %v3208 = vadd.f32 %v3124, %v3207
      %v3209 = vpop.f32.mrb[0].mxu0
      %3210 = vdwg.mxu0
      %v3212 = vsel %vm1278, %v2997, 0
      %v3215 = vsel %vm1278, %v3002, 0
      %v3218 = vsel %vm1278, %v3007, 0
      %v3221 = vsel %vm1278, %v3012, 0
      %v3224 = vsel %vm1278, %v3095, 0
      %v3227 = vsel %vm1278, %v3100, 0
      %v3230 = vsel %vm1278, %v3105, 0
      %v3233 = vsel %vm1278, %v3110, 0
      %3235 = vmatprep.subr.mxu0 0.0
      %3236 = vmatpush1.xpose.msra.mxu0 %v3224
      %3237 = vmatprep.subr.mxu0 0.0
      %3238 = vmatpush1.xpose.msra.mxu0 %v3227
      %3239 = vmatprep.subr.mxu0 0.0
      %3240 = vmatpush1.xpose.msra.mxu0 %v3230
      %3241 = vmatprep.subr.mxu0 0.0
      %3242 = vmatpush1.xpose.msra.mxu0 %v3233
      %3243 = vmatprep.subr.mxu0 0.0
      %3244 = vmatpush1.xpose.msra.mxu0 0.0
      %3245 = vmatprep.subr.mxu0 0.0
      %3246 = vmatpush1.xpose.msra.mxu0 0.0
      %3247 = vmatprep.subr.mxu0 0.0
      %3248 = vmatpush1.xpose.msra.mxu0 0.0
      %3249 = vmatprep.subr.mxu0 0.0
      %3250 = vmatpush1.xpose.msra.mxu0 0.0
      %3251 = vmatprep.subr.mxu0 0.0
      %3252 = vmatpush1.xpose.msra.mxu0 0.0
      %3253 = vmatprep.subr.mxu0 0.0
      %3254 = vmatpush1.xpose.msra.mxu0 0.0
      %3255 = vmatprep.subr.mxu0 0.0
      %3256 = vmatpush1.xpose.msra.mxu0 0.0
      %3257 = vmatprep.subr.mxu0 0.0
      %3258 = vmatpush1.xpose.msra.mxu0 0.0
      %3259 = vmatprep.subr.mxu0 0.0
      %3260 = vmatpush1.xpose.msra.mxu0 0.0
      %3261 = vmatprep.subr.mxu0 0.0
      %3262 = vmatpush1.xpose.msra.mxu0 0.0
      %3263 = vmatprep.subr.mxu0 0.0
      %3264 = vmatpush1.xpose.msra.mxu0 0.0
      %3265 = vmatprep.subr.mxu0 0.0
      %3266 = vmatpush1.xpose.msra.mxu0 0.0
      %3267 = vmatprep.subr.mxu0 0.0
      %3268 = vmatpush1.xpose.msra.mxu0 0.0
      %3269 = vmatprep.subr.mxu0 0.0
      %3270 = vmatpush1.xpose.msra.mxu0 0.0
      %3271 = vmatprep.subr.mxu0 0.0
      %3272 = vmatpush1.xpose.msra.mxu0 0.0
      %3273 = vmatprep.subr.mxu0 0.0
      %3274 = vmatpush1.xpose.msra.mxu0 0.0
      %3275 = vmatprep.subr.mxu0 0.0
      %3276 = vmatpush1.xpose.msra.mxu0 0.0
      %3277 = vmatprep.subr.mxu0 0.0
      %3278 = vmatpush1.xpose.msra.mxu0 0.0
      %3279 = vmatprep.subr.mxu0 0.0
      %3280 = vmatpush1.xpose.msra.mxu0 0.0
      %3281 = vmatprep.subr.mxu0 0.0
      %3282 = vmatpush1.xpose.msra.mxu0 0.0
      %3283 = vmatprep.subr.mxu0 0.0
      %3284 = vmatpush1.xpose.msra.mxu0 0.0
      %3285 = vmatprep.subr.mxu0 0.0
      %3286 = vmatpush1.xpose.msra.mxu0 0.0
      %3287 = vmatprep.subr.mxu0 0.0
      %3288 = vmatpush1.xpose.msra.mxu0 0.0
      %3289 = vmatprep.subr.mxu0 0.0
      %3290 = vmatpush1.xpose.msra.mxu0 0.0
      %3291 = vmatprep.subr.mxu0 0.0
      %3292 = vmatpush1.xpose.msra.mxu0 0.0
      %3293 = vmatprep.subr.mxu0 0.0
      %3294 = vmatpush1.xpose.msra.mxu0 0.0
      %3295 = vmatprep.subr.mxu0 0.0
      %3296 = vmatpush1.xpose.msra.mxu0 0.0
      %3297 = vmatprep.subr.mxu0 0.0
      %3298 = vmatpush1.xpose.msra.mxu0 0.0
      %3299 = vmatprep.mubr.f32.mxu0 0.0
      %3300 = vmatmul.mubr.f32.gmra.mrb[0].mxu0 %v3212
      %v3301 = vpop.f32.mrb[0].mxu0
      %v3302 = vadd.f32 %v877, %v3301
      %v3303 = vpop.f32.mrb[0].mxu0
      %3304 = vmatprep.mubr.f32.mxu0 0.0
      %3305 = vmatmul.mubr.f32.gmra.mrb[0].mxu0 %v3215
      %v3306 = vpop.f32.mrb[0].mxu0
      %v3307 = vadd.f32 %v878, %v3306
      %v3308 = vpop.f32.mrb[0].mxu0
      %3309 = vmatprep.mubr.f32.mxu0 0.0
      %3310 = vmatmul.mubr.f32.gmra.mrb[0].mxu0 %v3218
      %v3311 = vpop.f32.mrb[0].mxu0
      %v3312 = vadd.f32 %v879, %v3311
      %v3313 = vpop.f32.mrb[0].mxu0
      %3314 = vmatprep.mubr.f32.mxu0 0.0
      %3315 = vmatmul.mubr.f32.gmra.mrb[0].mxu0 %v3221
      %v3316 = vpop.f32.mrb[0].mxu0
      %v3317 = vadd.f32 %v880, %v3316
      %v3318 = vpop.f32.mrb[0].mxu0
      %3319 = vdwg.mxu0
      %v3320 = vsel %vm904, %v3302, -inf
      %3321 = vmax.xlane.f32.xlu0 %v3320
      %v3322 = vpop.xlane.xlu0 %3321
      %v3323 = vsel %vm904, %v3307, -inf
      %3324 = vmax.xlane.f32.xlu0 %v3323
      %v3325 = vpop.xlane.xlu0 %3324
      %v3326 = vsel %vm904, %v3312, -inf
      %3327 = vmax.xlane.f32.xlu0 %v3326
      %v3328 = vpop.xlane.xlu0 %3327
      %v3329 = vsel %vm904, %v3317, -inf
      %3330 = vmax.xlane.f32.xlu0 %v3329
      %v3331 = vpop.xlane.xlu0 %3330
      %v3332 = vsub.f32 %v3302, %v3322
      %v3333 = vsub.f32 %v3307, %v3325
      %v3334 = vsub.f32 %v3312, %v3328
      %v3335 = vsub.f32 %v3317, %v3331
      %v3336 = vmul.f32 %v3332, 1.442695
      %v3337 = vpow.pop %v3336
      %v3338 = vmul.f32 %v3333, 1.442695
      %v3339 = vpow.pop %v3338
      %v3340 = vmul.f32 %v3334, 1.442695
      %v3341 = vpow.pop %v3340
      %v3342 = vmul.f32 %v3335, 1.442695
      %v3343 = vpow.pop %v3342
      %v3344 = vsel %vm904, %v3337, 0.0
      %3345 = vadd.xlane.f32.xlu0 %v3344
      %v3346 = vpop.xlane.xlu0 %3345
      %v3347 = vsel %vm904, %v3339, 0.0
      %3348 = vadd.xlane.f32.xlu0 %v3347
      %v3349 = vpop.xlane.xlu0 %3348
      %v3350 = vsel %vm904, %v3341, 0.0
      %3351 = vadd.xlane.f32.xlu0 %v3350
      %v3352 = vpop.xlane.xlu0 %3351
      %v3353 = vsel %vm904, %v3343, 0.0
      %3354 = vadd.xlane.f32.xlu0 %v3353
      %v3355 = vpop.xlane.xlu0 %3354
      %v3356 = vrcp.pop %v3346
      %v3357 = vmul.f32 %v3337, %v3356
      %v3358 = vrcp.pop %v3349
      %v3359 = vmul.f32 %v3339, %v3358
      %v3360 = vrcp.pop %v3352
      %v3361 = vmul.f32 %v3341, %v3360
      %v3362 = vrcp.pop %v3355
      %v3363 = vmul.f32 %v3343, %v3362
      %v3365 = vsel %vm904, %v3357, 0
      %v3368 = vsel %vm904, %v3359, 0
      %v3371 = vsel %vm904, %v3361, 0
      %v3374 = vsel %vm904, %v3363, 0
      %3376 = vmatprep.subr.mxu0 0.0
      %3377 = vmatpush1.msra.mxu0 %v3193
      %3378 = vmatprep.subr.mxu0 0.0
      %3379 = vmatpush1.msra.mxu0 %v3198
      %3380 = vmatprep.subr.mxu0 0.0
      %3381 = vmatpush1.msra.mxu0 %v3203
      %3382 = vmatprep.subr.mxu0 0.0
      %3383 = vmatpush1.msra.mxu0 %v3208
      %3384 = vmatprep.subr.mxu0 0.0
      %3385 = vmatpush1.msra.mxu0 0.0
      %3386 = vmatprep.subr.mxu0 0.0
      %3387 = vmatpush1.msra.mxu0 0.0
      %3388 = vmatprep.subr.mxu0 0.0
      %3389 = vmatpush1.msra.mxu0 0.0
      %3390 = vmatprep.subr.mxu0 0.0
      %3391 = vmatpush1.msra.mxu0 0.0
      %3392 = vmatprep.subr.mxu0 0.0
      %3393 = vmatpush1.msra.mxu0 0.0
      %3394 = vmatprep.subr.mxu0 0.0
      %3395 = vmatpush1.msra.mxu0 0.0
      %3396 = vmatprep.subr.mxu0 0.0
      %3397 = vmatpush1.msra.mxu0 0.0
      %3398 = vmatprep.subr.mxu0 0.0
      %3399 = vmatpush1.msra.mxu0 0.0
      %3400 = vmatprep.subr.mxu0 0.0
      %3401 = vmatpush1.msra.mxu0 0.0
      %3402 = vmatprep.subr.mxu0 0.0
      %3403 = vmatpush1.msra.mxu0 0.0
      %3404 = vmatprep.subr.mxu0 0.0
      %3405 = vmatpush1.msra.mxu0 0.0
      %3406 = vmatprep.subr.mxu0 0.0
      %3407 = vmatpush1.msra.mxu0 0.0
      %3408 = vmatprep.subr.mxu0 0.0
      %3409 = vmatpush1.msra.mxu0 0.0
      %3410 = vmatprep.subr.mxu0 0.0
      %3411 = vmatpush1.msra.mxu0 0.0
      %3412 = vmatprep.subr.mxu0 0.0
      %3413 = vmatpush1.msra.mxu0 0.0
      %3414 = vmatprep.subr.mxu0 0.0
      %3415 = vmatpush1.msra.mxu0 0.0
      %3416 = vmatprep.subr.mxu0 0.0
      %3417 = vmatpush1.msra.mxu0 0.0
      %3418 = vmatprep.subr.mxu0 0.0
      %3419 = vmatpush1.msra.mxu0 0.0
      %3420 = vmatprep.subr.mxu0 0.0
      %3421 = vmatpush1.msra.mxu0 0.0
      %3422 = vmatprep.subr.mxu0 0.0
      %3423 = vmatpush1.msra.mxu0 0.0
      %3424 = vmatprep.subr.mxu0 0.0
      %3425 = vmatpush1.msra.mxu0 0.0
      %3426 = vmatprep.subr.mxu0 0.0
      %3427 = vmatpush1.msra.mxu0 0.0
      %3428 = vmatprep.subr.mxu0 0.0
      %3429 = vmatpush1.msra.mxu0 0.0
      %3430 = vmatprep.subr.mxu0 0.0
      %3431 = vmatpush1.msra.mxu0 0.0
      %3432 = vmatprep.subr.mxu0 0.0
      %3433 = vmatpush1.msra.mxu0 0.0
      %3434 = vmatprep.subr.mxu0 0.0
      %3435 = vmatpush1.msra.mxu0 0.0
      %3436 = vmatprep.subr.mxu0 0.0
      %3437 = vmatpush1.msra.mxu0 0.0
      %3438 = vmatprep.subr.mxu0 0.0
      %3439 = vmatpush1.msra.mxu0 0.0
      %3440 = vmatprep.mubr.f32.mxu0 0.0
      %3441 = vmatmul.mubr.f32.gmra.mrb[0].mxu0 %v3365
      %v3442 = vpop.f32.mrb[0].mxu0
      %v3443 = vadd.f32 0.0, %v3442
      %v3444 = vpop.f32.mrb[0].mxu0
      %3445 = vmatprep.mubr.f32.mxu0 0.0
      %3446 = vmatmul.mubr.f32.gmra.mrb[0].mxu0 %v3368
      %v3447 = vpop.f32.mrb[0].mxu0
      %v3448 = vadd.f32 0.0, %v3447
      %v3449 = vpop.f32.mrb[0].mxu0
      %3450 = vmatprep.mubr.f32.mxu0 0.0
      %3451 = vmatmul.mubr.f32.gmra.mrb[0].mxu0 %v3371
      %v3452 = vpop.f32.mrb[0].mxu0
      %v3453 = vadd.f32 0.0, %v3452
      %v3454 = vpop.f32.mrb[0].mxu0
      %3455 = vmatprep.mubr.f32.mxu0 0.0
      %3456 = vmatmul.mubr.f32.gmra.mrb[0].mxu0 %v3374
      %v3457 = vpop.f32.mrb[0].mxu0
      %v3458 = vadd.f32 0.0, %v3457
      %v3459 = vpop.f32.mrb[0].mxu0
      %3460 = vdwg.mxu0
      %s3461 = scalar_lea.vmem %s838, 24
      %v3462 = vld [vmem:[%s3461] sm:$0xff]
      %v3464 = vsel %vm1278, %v3443, 0
      %v3467 = vsel %vm1278, %v3448, 0
      %v3470 = vsel %vm1278, %v3453, 0
      %v3473 = vsel %vm1278, %v3458, 0
      %3475 = vmatprep.subr.mxu0 0.0
      %3476 = vmatpush1.msra.mxu0 %v3462
      %3477 = vmatprep.subr.mxu0 0.0
      %3478 = vmatpush1.msra.mxu0 0.0
      %3479 = vmatprep.subr.mxu0 0.0
      %3480 = vmatpush1.msra.mxu0 0.0
      %3481 = vmatprep.subr.mxu0 0.0
      %3482 = vmatpush1.msra.mxu0 0.0
      %3483 = vmatprep.subr.mxu0 0.0
      %3484 = vmatpush1.msra.mxu0 0.0
      %3485 = vmatprep.subr.mxu0 0.0
      %3486 = vmatpush1.msra.mxu0 0.0
      %3487 = vmatprep.subr.mxu0 0.0
      %3488 = vmatpush1.msra.mxu0 0.0
      %3489 = vmatprep.subr.mxu0 0.0
      %3490 = vmatpush1.msra.mxu0 0.0
      %3491 = vmatprep.subr.mxu0 0.0
      %3492 = vmatpush1.msra.mxu0 0.0
      %3493 = vmatprep.subr.mxu0 0.0
      %3494 = vmatpush1.msra.mxu0 0.0
      %3495 = vmatprep.subr.mxu0 0.0
      %3496 = vmatpush1.msra.mxu0 0.0
      %3497 = vmatprep.subr.mxu0 0.0
      %3498 = vmatpush1.msra.mxu0 0.0
      %3499 = vmatprep.subr.mxu0 0.0
      %3500 = vmatpush1.msra.mxu0 0.0
      %3501 = vmatprep.subr.mxu0 0.0
      %3502 = vmatpush1.msra.mxu0 0.0
      %3503 = vmatprep.subr.mxu0 0.0
      %3504 = vmatpush1.msra.mxu0 0.0
      %3505 = vmatprep.subr.mxu0 0.0
      %3506 = vmatpush1.msra.mxu0 0.0
      %3507 = vmatprep.subr.mxu0 0.0
      %3508 = vmatpush1.msra.mxu0 0.0
      %3509 = vmatprep.subr.mxu0 0.0
      %3510 = vmatpush1.msra.mxu0 0.0
      %3511 = vmatprep.subr.mxu0 0.0
      %3512 = vmatpush1.msra.mxu0 0.0
      %3513 = vmatprep.subr.mxu0 0.0
      %3514 = vmatpush1.msra.mxu0 0.0
      %3515 = vmatprep.subr.mxu0 0.0
      %3516 = vmatpush1.msra.mxu0 0.0
      %3517 = vmatprep.subr.mxu0 0.0
      %3518 = vmatpush1.msra.mxu0 0.0
      %3519 = vmatprep.subr.mxu0 0.0
      %3520 = vmatpush1.msra.mxu0 0.0
      %3521 = vmatprep.subr.mxu0 0.0
      %3522 = vmatpush1.msra.mxu0 0.0
      %3523 = vmatprep.subr.mxu0 0.0
      %3524 = vmatpush1.msra.mxu0 0.0
      %3525 = vmatprep.subr.mxu0 0.0
      %3526 = vmatpush1.msra.mxu0 0.0
      %3527 = vmatprep.subr.mxu0 0.0
      %3528 = vmatpush1.msra.mxu0 0.0
      %3529 = vmatprep.subr.mxu0 0.0
      %3530 = vmatpush1.msra.mxu0 0.0
      %3531 = vmatprep.subr.mxu0 0.0
      %3532 = vmatpush1.msra.mxu0 0.0
      %3533 = vmatprep.subr.mxu0 0.0
      %3534 = vmatpush1.msra.mxu0 0.0
      %3535 = vmatprep.subr.mxu0 0.0
      %3536 = vmatpush1.msra.mxu0 0.0
      %3537 = vmatprep.subr.mxu0 0.0
      %3538 = vmatpush1.msra.mxu0 0.0
      %3539 = vmatprep.mubr.f32.mxu0 0.0
      %3540 = vmatmul.mubr.f32.gmra.mrb[0].mxu0 %v3464
      %v3541 = vpop.f32.mrb[0].mxu0
      %v3542 = vadd.f32 0.0, %v3541
      %v3543 = vpop.f32.mrb[0].mxu0
      %3544 = vmatprep.mubr.f32.mxu0 0.0
      %3545 = vmatmul.mubr.f32.gmra.mrb[0].mxu0 %v3467
      %v3546 = vpop.f32.mrb[0].mxu0
      %v3547 = vadd.f32 0.0, %v3546
      %v3548 = vpop.f32.mrb[0].mxu0
      %3549 = vmatprep.mubr.f32.mxu0 0.0
      %3550 = vmatmul.mubr.f32.gmra.mrb[0].mxu0 %v3470
      %v3551 = vpop.f32.mrb[0].mxu0
      %v3552 = vadd.f32 0.0, %v3551
      %v3553 = vpop.f32.mrb[0].mxu0
      %3554 = vmatprep.mubr.f32.mxu0 0.0
      %3555 = vmatmul.mubr.f32.gmra.mrb[0].mxu0 %v3473
      %v3556 = vpop.f32.mrb[0].mxu0
      %v3557 = vadd.f32 0.0, %v3556
      %v3558 = vpop.f32.mrb[0].mxu0
      %3559 = vdwg.mxu0
      %v3560 = vadd.f32 %v2913, %v3542
      %v3561 = vadd.f32 %v2914, %v3547
      %v3562 = vadd.f32 %v2915, %v3552
      %v3563 = vadd.f32 %v2916, %v3557
      %v3564 = vadd.f32 %v881, %v3560
      %v3565 = vadd.f32 %v882, %v3561
      %v3566 = vadd.f32 %v883, %v3562
      %v3567 = vadd.f32 %v884, %v3563
      %v3569 = vlaneseq
      %v3570 = vshrl.u32 %v3569, 7
      %v3571 = vsub.s32 0, %v3570
      %v3572 = vrot.slane %v887, %v3571
      %v3574 = vadd.f32 %v3564, %v3572
      %v3575 = vadd.f32 %v3565, %v3572
      %v3576 = vadd.f32 %v3566, %v3572
      %v3577 = vadd.f32 %v3567, %v3572
      %v3578 = vsel %vm904, %v3574, 0.0
      %3579 = vadd.xlane.f32.xlu0 %v3578
      %v3580 = vpop.xlane.xlu0 %3579
      %v3581 = vsel %vm904, %v3575, 0.0
      %3582 = vadd.xlane.f32.xlu0 %v3581
      %v3583 = vpop.xlane.xlu0 %3582
      %v3584 = vsel %vm904, %v3576, 0.0
      %3585 = vadd.xlane.f32.xlu0 %v3584
      %v3586 = vpop.xlane.xlu0 %3585
      %v3587 = vsel %vm904, %v3577, 0.0
      %3588 = vadd.xlane.f32.xlu0 %v3587
      %v3589 = vpop.xlane.xlu0 %3588
      %v3590 = vmul.f32 %v3580, %v917
      %v3591 = vmul.f32 %v3583, %v917
      %v3592 = vmul.f32 %v3586, %v917
      %v3593 = vmul.f32 %v3589, %v917
      %v3594 = vsub.f32 %v3574, %v3590
      %v3595 = vsub.f32 %v3575, %v3591
      %v3596 = vsub.f32 %v3576, %v3592
      %v3597 = vsub.f32 %v3577, %v3593
      %v3598 = vmul.f32 %v3594, %v3594
      %v3599 = vmul.f32 %v3595, %v3595
      %v3600 = vmul.f32 %v3596, %v3596
      %v3601 = vmul.f32 %v3597, %v3597
      %v3602 = vsel %vm904, %v3598, 0.0
      %3603 = vadd.xlane.f32.xlu0 %v3602
      %v3604 = vpop.xlane.xlu0 %3603
      %v3605 = vsel %vm904, %v3599, 0.0
      %3606 = vadd.xlane.f32.xlu0 %v3605
      %v3607 = vpop.xlane.xlu0 %3606
      %v3608 = vsel %vm904, %v3600, 0.0
      %3609 = vadd.xlane.f32.xlu0 %v3608
      %v3610 = vpop.xlane.xlu0 %3609
      %v3611 = vsel %vm904, %v3601, 0.0
      %3612 = vadd.xlane.f32.xlu0 %v3611
      %v3613 = vpop.xlane.xlu0 %3612
      %v3614 = vmul.f32 %v3604, %v917
      %v3615 = vmul.f32 %v3607, %v917
      %v3616 = vmul.f32 %v3610, %v917
      %v3617 = vmul.f32 %v3613, %v917
      %v3618 = vadd.f32 %v3614, 1e-05
      %v3619 = vadd.f32 %v3615, 1e-05
      %v3620 = vadd.f32 %v3616, 1e-05
      %v3621 = vadd.f32 %v3617, 1e-05
      %v3622 = vrsqrt.pop %v3618
      %v3623 = vrsqrt.pop %v3619
      %v3624 = vrsqrt.pop %v3620
      %v3625 = vrsqrt.pop %v3621
      %v3626 = vmul.f32 %v3594, %v3622
      %v3627 = vmul.f32 %v3595, %v3623
      %v3628 = vmul.f32 %v3596, %v3624
      %v3629 = vmul.f32 %v3597, %v3625
      %v3631 = vlaneseq
      %v3632 = vshrl.u32 %v3631, 7
      %v3633 = vsub.s32 0, %v3632
      %v3634 = vrot.slane %v888, %v3633
      %v3636 = vmul.f32 %v3626, %v3634
      %v3637 = vmul.f32 %v3627, %v3634
      %v3638 = vmul.f32 %v3628, %v3634
      %v3639 = vmul.f32 %v3629, %v3634
      %v3641 = vlaneseq
      %v3642 = vshrl.u32 %v3641, 7
      %v3643 = vsub.s32 0, %v3642
      %v3644 = vrot.slane %v889, %v3643
      %v3646 = vadd.f32 %v3636, %v3644
      %v3647 = vadd.f32 %v3637, %v3644
      %v3648 = vadd.f32 %v3638, %v3644
      %v3649 = vadd.f32 %v3639, %v3644
      %v3651 = vlaneseq
      %v3652 = vshrl.u32 %v3651, 7
      %v3653 = vsub.s32 0, %v3652
      %v3654 = vrot.slane %v894, %v3653
      %v3657 = vsel %vm904, %v3646, 0
      %v3660 = vsel %vm904, %v3647, 0
      %v3663 = vsel %vm904, %v3648, 0
      %v3666 = vsel %vm904, %v3649, 0
      %3668 = vmatprep.subr.mxu0 0.0
      %3669 = vmatpush1.msra.mxu0 %v890
      %3670 = vmatprep.subr.mxu0 0.0
      %3671 = vmatpush1.msra.mxu0 %v891
      %3672 = vmatprep.subr.mxu0 0.0
      %3673 = vmatpush1.msra.mxu0 %v892
      %3674 = vmatprep.subr.mxu0 0.0
      %3675 = vmatpush1.msra.mxu0 %v893
      %3676 = vmatprep.subr.mxu0 0.0
      %3677 = vmatpush1.msra.mxu0 0.0
      %3678 = vmatprep.subr.mxu0 0.0
      %3679 = vmatpush1.msra.mxu0 0.0
      %3680 = vmatprep.subr.mxu0 0.0
      %3681 = vmatpush1.msra.mxu0 0.0
      %3682 = vmatprep.subr.mxu0 0.0
      %3683 = vmatpush1.msra.mxu0 0.0
      %3684 = vmatprep.subr.mxu0 0.0
      %3685 = vmatpush1.msra.mxu0 0.0
      %3686 = vmatprep.subr.mxu0 0.0
      %3687 = vmatpush1.msra.mxu0 0.0
      %3688 = vmatprep.subr.mxu0 0.0
      %3689 = vmatpush1.msra.mxu0 0.0
      %3690 = vmatprep.subr.mxu0 0.0
      %3691 = vmatpush1.msra.mxu0 0.0
      %3692 = vmatprep.subr.mxu0 0.0
      %3693 = vmatpush1.msra.mxu0 0.0
      %3694 = vmatprep.subr.mxu0 0.0
      %3695 = vmatpush1.msra.mxu0 0.0
      %3696 = vmatprep.subr.mxu0 0.0
      %3697 = vmatpush1.msra.mxu0 0.0
      %3698 = vmatprep.subr.mxu0 0.0
      %3699 = vmatpush1.msra.mxu0 0.0
      %3700 = vmatprep.subr.mxu0 0.0
      %3701 = vmatpush1.msra.mxu0 0.0
      %3702 = vmatprep.subr.mxu0 0.0
      %3703 = vmatpush1.msra.mxu0 0.0
      %3704 = vmatprep.subr.mxu0 0.0
      %3705 = vmatpush1.msra.mxu0 0.0
      %3706 = vmatprep.subr.mxu0 0.0
      %3707 = vmatpush1.msra.mxu0 0.0
      %3708 = vmatprep.subr.mxu0 0.0
      %3709 = vmatpush1.msra.mxu0 0.0
      %3710 = vmatprep.subr.mxu0 0.0
      %3711 = vmatpush1.msra.mxu0 0.0
      %3712 = vmatprep.subr.mxu0 0.0
      %3713 = vmatpush1.msra.mxu0 0.0
      %3714 = vmatprep.subr.mxu0 0.0
      %3715 = vmatpush1.msra.mxu0 0.0
      %3716 = vmatprep.subr.mxu0 0.0
      %3717 = vmatpush1.msra.mxu0 0.0
      %3718 = vmatprep.subr.mxu0 0.0
      %3719 = vmatpush1.msra.mxu0 0.0
      %3720 = vmatprep.subr.mxu0 0.0
      %3721 = vmatpush1.msra.mxu0 0.0
      %3722 = vmatprep.subr.mxu0 0.0
      %3723 = vmatpush1.msra.mxu0 0.0
      %3724 = vmatprep.subr.mxu0 0.0
      %3725 = vmatpush1.msra.mxu0 0.0
      %3726 = vmatprep.subr.mxu0 0.0
      %3727 = vmatpush1.msra.mxu0 0.0
      %3728 = vmatprep.subr.mxu0 0.0
      %3729 = vmatpush1.msra.mxu0 0.0
      %3730 = vmatprep.subr.mxu0 0.0
      %3731 = vmatpush1.msra.mxu0 0.0
      %3732 = vmatprep.mubr.f32.mxu0 0.0
      %3733 = vmatmul.mubr.f32.gmra.mrb[0].mxu0 %v3657
      %v3734 = vpop.f32.mrb[0].mxu0
      %v3735 = vadd.f32 %v3654, %v3734
      %v3736 = vpop.f32.mrb[0].mxu0
      %3737 = vmatprep.mubr.f32.mxu0 0.0
      %3738 = vmatmul.mubr.f32.gmra.mrb[0].mxu0 %v3660
      %v3739 = vpop.f32.mrb[0].mxu0
      %v3740 = vadd.f32 %v3654, %v3739
      %v3741 = vpop.f32.mrb[0].mxu0
      %3742 = vmatprep.mubr.f32.mxu0 0.0
      %3743 = vmatmul.mubr.f32.gmra.mrb[0].mxu0 %v3663
      %v3744 = vpop.f32.mrb[0].mxu0
      %v3745 = vadd.f32 %v3654, %v3744
      %v3746 = vpop.f32.mrb[0].mxu0
      %3747 = vmatprep.mubr.f32.mxu0 0.0
      %3748 = vmatmul.mubr.f32.gmra.mrb[0].mxu0 %v3666
      %v3749 = vpop.f32.mrb[0].mxu0
      %v3750 = vadd.f32 %v3654, %v3749
      %v3751 = vpop.f32.mrb[0].mxu0
      %3752 = vdwg.mxu0
      %v3753 = vmul.f32 %v3735, 1.702
      %v3754 = vmul.f32 %v3740, 1.702
      %v3755 = vmul.f32 %v3745, 1.702
      %v3756 = vmul.f32 %v3750, 1.702
      %v3757 = vxor.u32 %v3753, 2147483648
      %v3758 = vxor.u32 %v3754, 2147483648
      %v3759 = vxor.u32 %v3755, 2147483648
      %v3760 = vxor.u32 %v3756, 2147483648
      %v3761 = vmul.f32 %v3757, 1.442695
      %v3762 = vpow.pop %v3761
      %v3763 = vmul.f32 %v3758, 1.442695
      %v3764 = vpow.pop %v3763
      %v3765 = vmul.f32 %v3759, 1.442695
      %v3766 = vpow.pop %v3765
      %v3767 = vmul.f32 %v3760, 1.442695
      %v3768 = vpow.pop %v3767
      %v3769 = vadd.f32 %v3762, 1.0
      %v3770 = vadd.f32 %v3764, 1.0
      %v3771 = vadd.f32 %v3766, 1.0
      %v3772 = vadd.f32 %v3768, 1.0
      %v3773 = vrcp.pop %v3769
      %v3774 = vmul.f32 1.0, %v3773
      %v3775 = vrcp.pop %v3770
      %v3776 = vmul.f32 1.0, %v3775
      %v3777 = vrcp.pop %v3771
      %v3778 = vmul.f32 1.0, %v3777
      %v3779 = vrcp.pop %v3772
      %v3780 = vmul.f32 1.0, %v3779
      %v3781 = vmul.f32 %v3735, %v3774
      %v3782 = vmul.f32 %v3740, %v3776
      %v3783 = vmul.f32 %v3745, %v3778
      %v3784 = vmul.f32 %v3750, %v3780
      %v3786 = vlaneseq
      %v3787 = vshrl.u32 %v3786, 7
      %v3788 = vsub.s32 0, %v3787
      %v3789 = vrot.slane %v903, %v3788
      %vm3791 = vcmask 523264
      %v3793 = vsel %vm3791, %v3781, 0
      %v3796 = vsel %vm3791, %v3782, 0
      %v3799 = vsel %vm3791, %v3783, 0
      %v3802 = vsel %vm3791, %v3784, 0
      %3804 = vmatprep.subr.mxu0 0.0
      %3805 = vmatpush1.msra.mxu0 %v895
      %3806 = vmatprep.subr.mxu0 0.0
      %3807 = vmatpush1.msra.mxu0 %v896
      %3808 = vmatprep.subr.mxu0 0.0
      %3809 = vmatpush1.msra.mxu0 %v897
      %3810 = vmatprep.subr.mxu0 0.0
      %3811 = vmatpush1.msra.mxu0 %v898
      %3812 = vmatprep.subr.mxu0 0.0
      %3813 = vmatpush1.msra.mxu0 %v899
      %3814 = vmatprep.subr.mxu0 0.0
      %3815 = vmatpush1.msra.mxu0 %v900
      %3816 = vmatprep.subr.mxu0 0.0
      %3817 = vmatpush1.msra.mxu0 %v901
      %3818 = vmatprep.subr.mxu0 0.0
      %3819 = vmatpush1.msra.mxu0 %v902
      %3820 = vmatprep.subr.mxu0 0.0
      %3821 = vmatpush1.msra.mxu0 0.0
      %3822 = vmatprep.subr.mxu0 0.0
      %3823 = vmatpush1.msra.mxu0 0.0
      %3824 = vmatprep.subr.mxu0 0.0
      %3825 = vmatpush1.msra.mxu0 0.0
      %3826 = vmatprep.subr.mxu0 0.0
      %3827 = vmatpush1.msra.mxu0 0.0
      %3828 = vmatprep.subr.mxu0 0.0
      %3829 = vmatpush1.msra.mxu0 0.0
      %3830 = vmatprep.subr.mxu0 0.0
      %3831 = vmatpush1.msra.mxu0 0.0
      %3832 = vmatprep.subr.mxu0 0.0
      %3833 = vmatpush1.msra.mxu0 0.0
      %3834 = vmatprep.subr.mxu0 0.0
      %3835 = vmatpush1.msra.mxu0 0.0
      %3836 = vmatprep.subr.mxu0 0.0
      %3837 = vmatpush1.msra.mxu0 0.0
      %3838 = vmatprep.subr.mxu0 0.0
      %3839 = vmatpush1.msra.mxu0 0.0
      %3840 = vmatprep.subr.mxu0 0.0
      %3841 = vmatpush1.msra.mxu0 0.0
      %3842 = vmatprep.subr.mxu0 0.0
      %3843 = vmatpush1.msra.mxu0 0.0
      %3844 = vmatprep.subr.mxu0 0.0
      %3845 = vmatpush1.msra.mxu0 0.0
      %3846 = vmatprep.subr.mxu0 0.0
      %3847 = vmatpush1.msra.mxu0 0.0
      %3848 = vmatprep.subr.mxu0 0.0
      %3849 = vmatpush1.msra.mxu0 0.0
      %3850 = vmatprep.subr.mxu0 0.0
      %3851 = vmatpush1.msra.mxu0 0.0
      %3852 = vmatprep.subr.mxu0 0.0
      %3853 = vmatpush1.msra.mxu0 0.0
      %3854 = vmatprep.subr.mxu0 0.0
      %3855 = vmatpush1.msra.mxu0 0.0
      %3856 = vmatprep.subr.mxu0 0.0
      %3857 = vmatpush1.msra.mxu0 0.0
      %3858 = vmatprep.subr.mxu0 0.0
      %3859 = vmatpush1.msra.mxu0 0.0
      %3860 = vmatprep.subr.mxu0 0.0
      %3861 = vmatpush1.msra.mxu0 0.0
      %3862 = vmatprep.subr.mxu0 0.0
      %3863 = vmatpush1.msra.mxu0 0.0
      %3864 = vmatprep.subr.mxu0 0.0
      %3865 = vmatpush1.msra.mxu0 0.0
      %3866 = vmatprep.subr.mxu0 0.0
      %3867 = vmatpush1.msra.mxu0 0.0
      %3868 = vmatprep.mubr.f32.mxu0 0.0
      %3869 = vmatmul.mubr.f32.gmra.mrb[0].mxu0 %v3793
      %v3870 = vpop.f32.mrb[0].mxu0
      %v3871 = vadd.f32 %v3789, %v3870
      %v3872 = vpop.f32.mrb[0].mxu0
      %3873 = vmatprep.mubr.f32.mxu0 0.0
      %3874 = vmatmul.mubr.f32.gmra.mrb[0].mxu0 %v3796
      %v3875 = vpop.f32.mrb[0].mxu0
      %v3876 = vadd.f32 %v3789, %v3875
      %v3877 = vpop.f32.mrb[0].mxu0
      %3878 = vmatprep.mubr.f32.mxu0 0.0
      %3879 = vmatmul.mubr.f32.gmra.mrb[0].mxu0 %v3799
      %v3880 = vpop.f32.mrb[0].mxu0
      %v3881 = vadd.f32 %v3789, %v3880
      %v3882 = vpop.f32.mrb[0].mxu0
      %3883 = vmatprep.mubr.f32.mxu0 0.0
      %3884 = vmatmul.mubr.f32.gmra.mrb[0].mxu0 %v3802
      %v3885 = vpop.f32.mrb[0].mxu0
      %v3886 = vadd.f32 %v3789, %v3885
      %v3887 = vpop.f32.mrb[0].mxu0
      %3888 = vdwg.mxu0
      %v3889 = vadd.f32 %v3574, %v3871
      %v3890 = vadd.f32 %v3575, %v3876
      %v3891 = vadd.f32 %v3576, %v3881
      %v3892 = vadd.f32 %v3577, %v3886
      %3893 = vst.msk [vmem:[#allocation2] sm:$0xff] %vm904, %v3889
      %3894 = vst.msk [vmem:[#allocation2 + $0x8] sm:$0xff] %vm904, %v3890
      %3895 = vst.msk [vmem:[#allocation2 + $0x10] sm:$0xff] %vm904, %v3891
      %3896 = vst.msk [vmem:[#allocation2 + $0x18] sm:$0xff] %vm904, %v3892
      %p3897 = scmp.eq.s32.totalorder %s31, 1
      // Predicated region
      $region105: #{owlvit_forward.2} parent=99 // pred_check
        %p3898 = pneg %p3897
      $region106: #{owlvit_forward.2} parent=99 // pred_check_branch
        %3900 = sbr.rel (%p3898) target = $region108
      $region107: #{owlvit_forward.2} parent=99 // pred_region
        %v3901 = vld [vmem:[%s18] sm:$0x1]
        %v3902 = vld [vmem:[%s19] sm:$0x1]
        %v3903 = vsel %vm904, %v3889, 0.0
        %3904 = vadd.xlane.f32.xlu0 %v3903
        %v3905 = vpop.xlane.xlu0 %3904
        %v3906 = vsel %vm904, %v3890, 0.0
        %3907 = vadd.xlane.f32.xlu0 %v3906
        %v3908 = vpop.xlane.xlu0 %3907
        %v3909 = vsel %vm904, %v3891, 0.0
        %3910 = vadd.xlane.f32.xlu0 %v3909
        %v3911 = vpop.xlane.xlu0 %3910
        %v3912 = vsel %vm904, %v3892, 0.0
        %3913 = vadd.xlane.f32.xlu0 %v3912
        %v3914 = vpop.xlane.xlu0 %3913
        %v3915 = vmul.f32 %v3905, %v917
        %v3916 = vmul.f32 %v3908, %v917
        %v3917 = vmul.f32 %v3911, %v917
        %v3918 = vmul.f32 %v3914, %v917
        %v3919 = vsub.f32 %v3889, %v3915
        %v3920 = vsub.f32 %v3890, %v3916
        %v3921 = vsub.f32 %v3891, %v3917
        %v3922 = vsub.f32 %v3892, %v3918
        %v3923 = vmul.f32 %v3919, %v3919
        %v3924 = vmul.f32 %v3920, %v3920
        %v3925 = vmul.f32 %v3921, %v3921
        %v3926 = vmul.f32 %v3922, %v3922
        %v3927 = vsel %vm904, %v3923, 0.0
        %3928 = vadd.xlane.f32.xlu0 %v3927
        %v3929 = vpop.xlane.xlu0 %3928
        %v3930 = vsel %vm904, %v3924, 0.0
        %3931 = vadd.xlane.f32.xlu0 %v3930
        %v3932 = vpop.xlane.xlu0 %3931
        %v3933 = vsel %vm904, %v3925, 0.0
        %3934 = vadd.xlane.f32.xlu0 %v3933
        %v3935 = vpop.xlane.xlu0 %3934
        %v3936 = vsel %vm904, %v3926, 0.0
        %3937 = vadd.xlane.f32.xlu0 %v3936
        %v3938 = vpop.xlane.xlu0 %3937
        %v3939 = vmul.f32 %v3929, %v917
        %v3940 = vmul.f32 %v3932, %v917
        %v3941 = vmul.f32 %v3935, %v917
        %v3942 = vmul.f32 %v3938, %v917
        %v3943 = vadd.f32 %v3939, 1e-05
        %v3944 = vadd.f32 %v3940, 1e-05
        %v3945 = vadd.f32 %v3941, 1e-05
        %v3946 = vadd.f32 %v3942, 1e-05
        %v3947 = vrsqrt.pop %v3943
        %v3948 = vrsqrt.pop %v3944
        %v3949 = vrsqrt.pop %v3945
        %v3950 = vrsqrt.pop %v3946
        %v3951 = vmul.f32 %v3919, %v3947
        %v3952 = vmul.f32 %v3920, %v3948
        %v3953 = vmul.f32 %v3921, %v3949
        %v3954 = vmul.f32 %v3922, %v3950
        %v3956 = vlaneseq
        %v3957 = vshrl.u32 %v3956, 7
        %v3958 = vsub.s32 0, %v3957
        %v3959 = vrot.slane %v3901, %v3958
        %v3961 = vmul.f32 %v3951, %v3959
        %v3962 = vmul.f32 %v3952, %v3959
        %v3963 = vmul.f32 %v3953, %v3959
        %v3964 = vmul.f32 %v3954, %v3959
        %v3966 = vlaneseq
        %v3967 = vshrl.u32 %v3966, 7
        %v3968 = vsub.s32 0, %v3967
        %v3969 = vrot.slane %v3902, %v3968
        %v3971 = vadd.f32 %v3961, %v3969
        %v3972 = vadd.f32 %v3962, %v3969
        %v3973 = vadd.f32 %v3963, %v3969
        %v3974 = vadd.f32 %v3964, %v3969
        %3975 = vst.msk [vmem:[%s20] sm:$0xff] %vm904, %v3971
        %3976 = vst.msk [vmem:[%s20 + $0x8] sm:$0xff] %vm904, %v3972
        %3977 = vst.msk [vmem:[%s20 + $0x10] sm:$0xff] %vm904, %v3973
        %3978 = vst.msk [vmem:[%s20 + $0x18] sm:$0xff] %vm904, %v3974
      $region108: #{owlvit_forward.2} parent=99 // pred_fallthru
        _
      // Predicated region
      $region109: #{owlvit_forward.2} parent=99 // pred_check
        %p3979 = pneg %p544
      $region110: #{owlvit_forward.2} parent=99 // pred_check_branch
        %3981 = sbr.rel (%p3979) target = $region112
      $region111: #{owlvit_forward.2} parent=99 // pred_region
        _
      $region112: #{owlvit_forward.2} parent=99 // pred_fallthru
        _
      // Predicated region
      $region113: #{owlvit_forward.2} parent=99 // pred_check
        %p3982 = pneg %p544
      $region114: #{owlvit_forward.2} parent=99 // pred_check_branch
        %3984 = sbr.rel (%p3982) target = $region116
      $region115: #{owlvit_forward.2} parent=99 // pred_region
        _
      $region116: #{owlvit_forward.2} parent=99 // pred_fallthru
        _
    $region100: #{owlvit_forward.2} parent=5 // pred_fallthru
      _
    %p3985 = scmp.le.s32.totalorder 2, %s26
    // Predicated region
    $region117: #{owlvit_forward.2} parent=5 // pred_check
      %p3986 = pneg %p3985
    $region118: #{owlvit_forward.2} parent=5 // pred_check_branch
      %3988 = sbr.rel (%p3986) target = $region120
    $region119: #{owlvit_forward.2} parent=5 // pred_region
      %s3989 = ssub.s32 %s26, 2
    $region120: #{owlvit_forward.2} parent=5 // pred_fallthru
      _
  $region6: #{owlvit_forward.2} parent=0 // loop_footer
    %s30 = sadd.s32 1, %s26
  $region7: #{owlvit_forward.2} parent=0 // loop_footer_branch
    %25 = sbr.rel target = $region3
  $region8: #{owlvit_forward.2} parent=0 // loop_exit
    _

// kernel: owlvit_forward.3
$region0: #{owlvit_forward.3}
  #allocation0 [shape = 'u32[]', space=smem, size = 0x4, offset = 0x4, fixed_abs, tag = 'smem constant byte address 0x4 - core index']
  #allocation1 [shape = 'u32[144,128]{1,0:T(1,128)}', space=vmem, size = 0x12000, scoped, tag = 'internal scratch']
  #allocation2 [shape = 'f32[17,32]{1,0:T(8,128)}', space=vmem, size = 0x3000, scoped, tag = 'scratch operand']
  %s0 = inlined_call_operand.smem [shape: u32[37], index: -1, kind: input, shape index: {}]
  %s1 = sld [smem:[%s0]]
  %s2 = scalar_lea.smem %s0, 1
  %s3 = sld [smem:[%s2]]
  %s4 = scalar_lea.smem %s0, 2
  %s5 = sld [smem:[%s4]]
  %s6 = scalar_lea.smem %s0, 3
  %s7 = sld [smem:[%s6]]
  %s8 = scalar_lea.smem %s0, 4
  %s9 = sld [smem:[%s8]]
  %s10 = scalar_lea.smem %s0, 5
  %s11 = sld [smem:[%s10]]
  %s12 = scalar_lea.smem %s0, 6
  %s13 = sld [smem:[%s12]]
  %s14 = scalar_lea.smem %s0, 7
  %s15 = sld [smem:[%s14]]
  %s16 = scalar_lea.smem %s0, 8
  %s17 = sld [smem:[%s16]]
  %s18 = scalar_lea.smem %s0, 9
  %s19 = sld [smem:[%s18]]
  %s20 = scalar_lea.smem %s0, 10
  %s21 = sld [smem:[%s20]]
  %s22 = scalar_lea.smem %s0, 11
  %s23 = sld [smem:[%s22]]
  %s24 = scalar_lea.smem %s0, 12
  %s25 = sld [smem:[%s24]]
  %s26 = scalar_lea.smem %s0, 13
  %s27 = sld [smem:[%s26]]
  %s28 = scalar_lea.smem %s0, 14
  %s29 = sld [smem:[%s28]]
  %s30 = scalar_lea.smem %s0, 15
  %s31 = sld [smem:[%s30]]
  %s32 = scalar_lea.smem %s0, 16
  %s33 = sld [smem:[%s32]]
  %s34 = scalar_lea.smem %s0, 17
  %s35 = sld [smem:[%s34]]
  %s36 = scalar_lea.smem %s0, 18
  %s37 = sld [smem:[%s36]]
  %s38 = scalar_lea.smem %s0, 19
  %s39 = sld [smem:[%s38]]
  %s40 = scalar_lea.smem %s0, 20
  %s41 = sld [smem:[%s40]]
  %s42 = scalar_lea.smem %s0, 21
  %s43 = sld [smem:[%s42]]
  %s44 = scalar_lea.smem %s0, 22
  %s45 = sld [smem:[%s44]]
  %s46 = scalar_lea.smem %s0, 23
  %s47 = sld [smem:[%s46]]
  %s48 = scalar_lea.smem %s0, 24
  %s49 = sld [smem:[%s48]]
  %s50 = scalar_lea.smem %s0, 25
  %s51 = sld [smem:[%s50]]
  %s52 = scalar_lea.smem %s0, 26
  %s53 = sld [smem:[%s52]]
  %s54 = scalar_lea.smem %s0, 27
  %s55 = sld [smem:[%s54]]
  %s56 = scalar_lea.smem %s0, 28
  %s57 = sld [smem:[%s56]]
  %s58 = scalar_lea.smem %s0, 29
  %s59 = sld [smem:[%s58]]
  %s60 = scalar_lea.smem %s0, 30
  %s61 = sld [smem:[%s60]]
  %s62 = scalar_lea.smem %s0, 31
  %s63 = sld [smem:[%s62]]
  %s64 = scalar_lea.smem %s0, 32
  %s65 = sld [smem:[%s64]]
  %s66 = scalar_lea.smem %s0, 33
  %s67 = sld [smem:[%s66]]
  %s68 = scalar_lea.smem %s0, 34
  %s69 = sld [smem:[%s68]]
  %s70 = scalar_lea.smem %s0, 35
  %s71 = sld [smem:[%s70]]
  %s72 = scalar_lea.smem %s0, 36
  %s73 = sld [smem:[%s72]]
  %s74 = sld [smem:[#allocation0]]
  $region185: #{owlvit_forward.3} parent=0
    _
  %s76 = ssub.s32 1, %s74
  %s77 = scalar_select 0, %s76, %s74
  loop: start=0, step=1, limit=6
  $region2: #{owlvit_forward.3} parent=0 // loop_pre_header
    _
  $region3: #{owlvit_forward.3} parent=0 // loop_header
    %s79 = sphi 0, %s83
    %p80 = scmp.ge.s32.totalorder %s79, 6
    %s86 = sphi 0, %s98
    %s87 = sphi 0, %s94
    %s88 = sphi 0, %s86
    %s89 = sphi 0, %s87
    %s90 = sphi 0, %s88
    %s91 = sphi 0, %s89
    %s101 = sphi 0, %s103
    %s104 = sphi 0, %s101
    %s105 = sphi 0, %s104
    %s121 = sphi 0, %s105
    %s125 = sphi 0, %s125
    %s127 = sphi 0, %s125
    %s128 = sphi 0, %s127
    %s142 = sphi 0, %s128
    %s146 = sphi 0, %s146
    %s148 = sphi 0, %s146
    %s149 = sphi 0, %s148
    %s163 = sphi 0, %s149
    %s167 = sphi 0, %s167
    %s169 = sphi 0, %s167
    %s170 = sphi 0, %s169
    %s184 = sphi 0, %s170
    %s188 = sphi 0, %s188
    %s190 = sphi 0, %s188
    %s191 = sphi 0, %s190
    %s205 = sphi 0, %s191
    %s211 = sphi 0, %s213
    %s214 = sphi 0, %s211
    %s215 = sphi 0, %s214
    %s231 = sphi 0, %s215
    %s237 = sphi 0, %s239
    %s240 = sphi 0, %s237
    %s241 = sphi 0, %s240
    %s257 = sphi 0, %s241
    %s263 = sphi 0, %s265
    %s266 = sphi 0, %s263
    %s267 = sphi 0, %s266
    %s283 = sphi 0, %s267
    %s289 = sphi 0, %s291
    %s292 = sphi 0, %s289
    %s293 = sphi 0, %s292
    %s309 = sphi 0, %s293
    %s315 = sphi 0, %s317
    %s318 = sphi 0, %s315
    %s319 = sphi 0, %s318
    %s335 = sphi 0, %s319
    %s341 = sphi 0, %s343
    %s344 = sphi 0, %s341
    %s345 = sphi 0, %s344
    %s361 = sphi 0, %s345
    %s367 = sphi 0, %s369
    %s370 = sphi 0, %s367
    %s371 = sphi 0, %s370
    %s387 = sphi 0, %s371
    %s393 = sphi 0, %s395
    %s396 = sphi 0, %s393
    %s397 = sphi 0, %s396
    %s413 = sphi 0, %s397
    %s419 = sphi 0, %s421
    %s422 = sphi 0, %s419
    %s423 = sphi 0, %s422
    %s439 = sphi 0, %s423
    %s445 = sphi 0, %s447
    %s448 = sphi 0, %s445
    %s449 = sphi 0, %s448
    %s465 = sphi 0, %s449
    %s471 = sphi 0, %s473
    %s474 = sphi 0, %s471
    %s475 = sphi 0, %s474
    %s491 = sphi 0, %s475
    %s497 = sphi 0, %s499
    %s500 = sphi 0, %s497
    %s501 = sphi 0, %s500
    %s517 = sphi 0, %s501
    %s523 = sphi 0, %s525
    %s526 = sphi 0, %s523
    %s527 = sphi 0, %s526
    %s543 = sphi 0, %s527
    %s549 = sphi 0, %s551
    %s552 = sphi 0, %s549
    %s553 = sphi 0, %s552
    %s569 = sphi 0, %s553
    %s575 = sphi 0, %s577
    %s578 = sphi 0, %s575
    %s579 = sphi 0, %s578
    %s595 = sphi 0, %s579
    %s601 = sphi 0, %s603
    %s604 = sphi 0, %s601
    %s605 = sphi 0, %s604
    %s621 = sphi 0, %s605
    %s625 = sphi 0, %s625
    %s627 = sphi 0, %s625
    %s628 = sphi 0, %s627
    %s642 = sphi 0, %s628
    %s646 = sphi 0, %s646
    %s648 = sphi 0, %s646
    %s649 = sphi 0, %s648
    %s663 = sphi 0, %s649
    %s667 = sphi 0, %s667
    %s669 = sphi 0, %s667
    %s670 = sphi 0, %s669
    %s684 = sphi 0, %s670
    %s688 = sphi 0, %s688
    %s690 = sphi 0, %s688
    %s691 = sphi 0, %s690
    %s705 = sphi 0, %s691
    %s709 = sphi 0, %s709
    %s711 = sphi 0, %s709
    %s712 = sphi 0, %s711
    %s726 = sphi 0, %s712
    %s730 = sphi 0, %s730
    %s732 = sphi 0, %s730
    %s733 = sphi 0, %s732
    %s747 = sphi 0, %s733
    %s751 = sphi 0, %s751
    %s753 = sphi 0, %s751
    %s754 = sphi 0, %s753
    %s768 = sphi 0, %s754
    %s772 = sphi 0, %s772
    %s774 = sphi 0, %s772
    %s775 = sphi 0, %s774
    %s789 = sphi 0, %s775
    %s793 = sphi 0, %s793
    %s795 = sphi 0, %s793
    %s796 = sphi 0, %s795
    %s810 = sphi 0, %s796
    %s814 = sphi 0, %s814
    %s816 = sphi 0, %s814
    %s817 = sphi 0, %s816
    %s831 = sphi 0, %s817
    %s835 = sphi 0, %s835
    %s837 = sphi 0, %s835
    %s838 = sphi 0, %s837
    %s852 = sphi 0, %s838
    %s856 = sphi 0, %s856
    %s858 = sphi 0, %s856
    %s859 = sphi 0, %s858
    %s873 = sphi 0, %s859
    %s877 = sphi 0, %s877
    %s879 = sphi 0, %s877
    %s880 = sphi 0, %s879
    %s894 = sphi 0, %s880
    %s900 = sphi 0, %s902
    %s903 = sphi 0, %s900
    %s904 = sphi 0, %s903
    %s920 = sphi 0, %s904
    %s926 = sphi 0, %s928
    %s929 = sphi 0, %s926
    %s930 = sphi 0, %s929
    %s946 = sphi 0, %s930
    %s952 = sphi 0, %s954
    %s955 = sphi 0, %s952
    %s956 = sphi 0, %s955
    %s972 = sphi 0, %s956
  $region4: #{owlvit_forward.3} parent=0 // loop_header_branch
    %82 = sbr.rel (%p80) target = $region8
  $region5: #{owlvit_forward.3} parent=0 // loop_body
    %s84 = ssub.s32 %s79, 1
    %s85 = ssub.s32 %s79, 2
    %s92 = sadd.s32 1, %s87
    %p93 = scmp.ge.s32.totalorder %s92, 2
    %s94 = scalar_select %p93, 0, %s92
    %s95 = sadd.s32 1, %s86
    %s96 = scalar_select %p93, %s95, %s86
    %p97 = scmp.ge.s32.totalorder %s96, 2
    %s98 = scalar_select %p97, 0, %s96
    %s99 = ssub.s32 %s86, %s98
    %p100 = scmp.eq.s32.totalorder %s99, 0
    %s102 = sadd.s32 %s101, 1
    %s103 = scalar_select %p100, %s101, %s102
    %p106 = pneg %p100
    %p107 = scmp.eq.s32.totalorder %s79, 3
    %p108 = por %p106, %p107
    %p109 = scmp.ne.s32.totalorder %s101, %s104
    %p110 = scmp.eq.s32.totalorder %s79, 0
    %p111 = por %p109, %p110
    %p112 = scmp.ne.s32.totalorder %s101, %s104
    %p113 = scmp.eq.s32.totalorder %s84, 3
    %p114 = por %p112, %p113
    %p115 = scmp.ne.s32.totalorder %s104, %s105
    %p116 = scmp.eq.s32.totalorder %s84, 0
    %p117 = por %p115, %p116
    %p118 = scmp.ne.s32.totalorder %s104, %s105
    %p119 = scmp.eq.s32.totalorder %s85, 3
    %p120 = por %p118, %p119
    %p122 = scmp.ne.s32.totalorder %s105, %s121
    %p123 = scmp.eq.s32.totalorder %s85, 0
    %p124 = por %p122, %p123
    %s126 = sadd.s32 %s125, 1
    %p129 = scmp.eq.s32.totalorder %s79, 3
    %p130 = scmp.ne.s32.totalorder %s125, %s127
    %p131 = scmp.eq.s32.totalorder %s79, 0
    %p132 = por %p130, %p131
    %p133 = scmp.ne.s32.totalorder %s125, %s127
    %p134 = scmp.eq.s32.totalorder %s84, 3
    %p135 = por %p133, %p134
    %p136 = scmp.ne.s32.totalorder %s127, %s128
    %p137 = scmp.eq.s32.totalorder %s84, 0
    %p138 = por %p136, %p137
    %p139 = scmp.ne.s32.totalorder %s127, %s128
    %p140 = scmp.eq.s32.totalorder %s85, 3
    %p141 = por %p139, %p140
    %p143 = scmp.ne.s32.totalorder %s128, %s142
    %p144 = scmp.eq.s32.totalorder %s85, 0
    %p145 = por %p143, %p144
    %s147 = sadd.s32 %s146, 1
    %p150 = scmp.eq.s32.totalorder %s79, 3
    %p151 = scmp.ne.s32.totalorder %s146, %s148
    %p152 = scmp.eq.s32.totalorder %s79, 0
    %p153 = por %p151, %p152
    %p154 = scmp.ne.s32.totalorder %s146, %s148
    %p155 = scmp.eq.s32.totalorder %s84, 3
    %p156 = por %p154, %p155
    %p157 = scmp.ne.s32.totalorder %s148, %s149
    %p158 = scmp.eq.s32.totalorder %s84, 0
    %p159 = por %p157, %p158
    %p160 = scmp.ne.s32.totalorder %s148, %s149
    %p161 = scmp.eq.s32.totalorder %s85, 3
    %p162 = por %p160, %p161
    %p164 = scmp.ne.s32.totalorder %s149, %s163
    %p165 = scmp.eq.s32.totalorder %s85, 0
    %p166 = por %p164, %p165
    %s168 = sadd.s32 %s167, 1
    %p171 = scmp.eq.s32.totalorder %s79, 3
    %p172 = scmp.ne.s32.totalorder %s167, %s169
    %p173 = scmp.eq.s32.totalorder %s79, 0
    %p174 = por %p172, %p173
    %p175 = scmp.ne.s32.totalorder %s167, %s169
    %p176 = scmp.eq.s32.totalorder %s84, 3
    %p177 = por %p175, %p176
    %p178 = scmp.ne.s32.totalorder %s169, %s170
    %p179 = scmp.eq.s32.totalorder %s84, 0
    %p180 = por %p178, %p179
    %p181 = scmp.ne.s32.totalorder %s169, %s170
    %p182 = scmp.eq.s32.totalorder %s85, 3
    %p183 = por %p181, %p182
    %p185 = scmp.ne.s32.totalorder %s170, %s184
    %p186 = scmp.eq.s32.totalorder %s85, 0
    %p187 = por %p185, %p186
    %s189 = sadd.s32 %s188, 1
    %p192 = scmp.eq.s32.totalorder %s79, 3
    %p193 = scmp.ne.s32.totalorder %s188, %s190
    %p194 = scmp.eq.s32.totalorder %s79, 0
    %p195 = por %p193, %p194
    %p196 = scmp.ne.s32.totalorder %s188, %s190
    %p197 = scmp.eq.s32.totalorder %s84, 3
    %p198 = por %p196, %p197
    %p199 = scmp.ne.s32.totalorder %s190, %s191
    %p200 = scmp.eq.s32.totalorder %s84, 0
    %p201 = por %p199, %p200
    %p202 = scmp.ne.s32.totalorder %s190, %s191
    %p203 = scmp.eq.s32.totalorder %s85, 3
    %p204 = por %p202, %p203
    %p206 = scmp.ne.s32.totalorder %s191, %s205
    %p207 = scmp.eq.s32.totalorder %s85, 0
    %p208 = por %p206, %p207
    %s209 = ssub.s32 %s87, %s94
    %p210 = scmp.eq.s32.totalorder %s209, 0
    %s212 = sadd.s32 %s211, 1
    %s213 = scalar_select %p210, %s211, %s212
    %p216 = pneg %p210
    %p217 = scmp.eq.s32.totalorder %s79, 3
    %p218 = por %p216, %p217
    %p219 = scmp.ne.s32.totalorder %s211, %s214
    %p220 = scmp.eq.s32.totalorder %s79, 0
    %p221 = por %p219, %p220
    %p222 = scmp.ne.s32.totalorder %s211, %s214
    %p223 = scmp.eq.s32.totalorder %s84, 3
    %p224 = por %p222, %p223
    %p225 = scmp.ne.s32.totalorder %s214, %s215
    %p226 = scmp.eq.s32.totalorder %s84, 0
    %p227 = por %p225, %p226
    %p228 = scmp.ne.s32.totalorder %s214, %s215
    %p229 = scmp.eq.s32.totalorder %s85, 3
    %p230 = por %p228, %p229
    %p232 = scmp.ne.s32.totalorder %s215, %s231
    %p233 = scmp.eq.s32.totalorder %s85, 0
    %p234 = por %p232, %p233
    %s235 = ssub.s32 %s87, %s94
    %p236 = scmp.eq.s32.totalorder %s235, 0
    %s238 = sadd.s32 %s237, 1
    %s239 = scalar_select %p236, %s237, %s238
    %p242 = pneg %p236
    %p243 = scmp.eq.s32.totalorder %s79, 3
    %p244 = por %p242, %p243
    %p245 = scmp.ne.s32.totalorder %s237, %s240
    %p246 = scmp.eq.s32.totalorder %s79, 0
    %p247 = por %p245, %p246
    %p248 = scmp.ne.s32.totalorder %s237, %s240
    %p249 = scmp.eq.s32.totalorder %s84, 3
    %p250 = por %p248, %p249
    %p251 = scmp.ne.s32.totalorder %s240, %s241
    %p252 = scmp.eq.s32.totalorder %s84, 0
    %p253 = por %p251, %p252
    %p254 = scmp.ne.s32.totalorder %s240, %s241
    %p255 = scmp.eq.s32.totalorder %s85, 3
    %p256 = por %p254, %p255
    %p258 = scmp.ne.s32.totalorder %s241, %s257
    %p259 = scmp.eq.s32.totalorder %s85, 0
    %p260 = por %p258, %p259
    %s261 = ssub.s32 %s87, %s94
    %p262 = scmp.eq.s32.totalorder %s261, 0
    %s264 = sadd.s32 %s263, 1
    %s265 = scalar_select %p262, %s263, %s264
    %p268 = pneg %p262
    %p269 = scmp.eq.s32.totalorder %s79, 3
    %p270 = por %p268, %p269
    %p271 = scmp.ne.s32.totalorder %s263, %s266
    %p272 = scmp.eq.s32.totalorder %s79, 0
    %p273 = por %p271, %p272
    %p274 = scmp.ne.s32.totalorder %s263, %s266
    %p275 = scmp.eq.s32.totalorder %s84, 3
    %p276 = por %p274, %p275
    %p277 = scmp.ne.s32.totalorder %s266, %s267
    %p278 = scmp.eq.s32.totalorder %s84, 0
    %p279 = por %p277, %p278
    %p280 = scmp.ne.s32.totalorder %s266, %s267
    %p281 = scmp.eq.s32.totalorder %s85, 3
    %p282 = por %p280, %p281
    %p284 = scmp.ne.s32.totalorder %s267, %s283
    %p285 = scmp.eq.s32.totalorder %s85, 0
    %p286 = por %p284, %p285
    %s287 = ssub.s32 %s87, %s94
    %p288 = scmp.eq.s32.totalorder %s287, 0
    %s290 = sadd.s32 %s289, 1
    %s291 = scalar_select %p288, %s289, %s290
    %p294 = pneg %p288
    %p295 = scmp.eq.s32.totalorder %s79, 3
    %p296 = por %p294, %p295
    %p297 = scmp.ne.s32.totalorder %s289, %s292
    %p298 = scmp.eq.s32.totalorder %s79, 0
    %p299 = por %p297, %p298
    %p300 = scmp.ne.s32.totalorder %s289, %s292
    %p301 = scmp.eq.s32.totalorder %s84, 3
    %p302 = por %p300, %p301
    %p303 = scmp.ne.s32.totalorder %s292, %s293
    %p304 = scmp.eq.s32.totalorder %s84, 0
    %p305 = por %p303, %p304
    %p306 = scmp.ne.s32.totalorder %s292, %s293
    %p307 = scmp.eq.s32.totalorder %s85, 3
    %p308 = por %p306, %p307
    %p310 = scmp.ne.s32.totalorder %s293, %s309
    %p311 = scmp.eq.s32.totalorder %s85, 0
    %p312 = por %p310, %p311
    %s313 = ssub.s32 %s87, %s94
    %p314 = scmp.eq.s32.totalorder %s313, 0
    %s316 = sadd.s32 %s315, 1
    %s317 = scalar_select %p314, %s315, %s316
    %p320 = pneg %p314
    %p321 = scmp.eq.s32.totalorder %s79, 3
    %p322 = por %p320, %p321
    %p323 = scmp.ne.s32.totalorder %s315, %s318
    %p324 = scmp.eq.s32.totalorder %s79, 0
    %p325 = por %p323, %p324
    %p326 = scmp.ne.s32.totalorder %s315, %s318
    %p327 = scmp.eq.s32.totalorder %s84, 3
    %p328 = por %p326, %p327
    %p329 = scmp.ne.s32.totalorder %s318, %s319
    %p330 = scmp.eq.s32.totalorder %s84, 0
    %p331 = por %p329, %p330
    %p332 = scmp.ne.s32.totalorder %s318, %s319
    %p333 = scmp.eq.s32.totalorder %s85, 3
    %p334 = por %p332, %p333
    %p336 = scmp.ne.s32.totalorder %s319, %s335
    %p337 = scmp.eq.s32.totalorder %s85, 0
    %p338 = por %p336, %p337
    %s339 = ssub.s32 %s87, %s94
    %p340 = scmp.eq.s32.totalorder %s339, 0
    %s342 = sadd.s32 %s341, 1
    %s343 = scalar_select %p340, %s341, %s342
    %p346 = pneg %p340
    %p347 = scmp.eq.s32.totalorder %s79, 3
    %p348 = por %p346, %p347
    %p349 = scmp.ne.s32.totalorder %s341, %s344
    %p350 = scmp.eq.s32.totalorder %s79, 0
    %p351 = por %p349, %p350
    %p352 = scmp.ne.s32.totalorder %s341, %s344
    %p353 = scmp.eq.s32.totalorder %s84, 3
    %p354 = por %p352, %p353
    %p355 = scmp.ne.s32.totalorder %s344, %s345
    %p356 = scmp.eq.s32.totalorder %s84, 0
    %p357 = por %p355, %p356
    %p358 = scmp.ne.s32.totalorder %s344, %s345
    %p359 = scmp.eq.s32.totalorder %s85, 3
    %p360 = por %p358, %p359
    %p362 = scmp.ne.s32.totalorder %s345, %s361
    %p363 = scmp.eq.s32.totalorder %s85, 0
    %p364 = por %p362, %p363
    %s365 = ssub.s32 %s87, %s94
    %p366 = scmp.eq.s32.totalorder %s365, 0
    %s368 = sadd.s32 %s367, 1
    %s369 = scalar_select %p366, %s367, %s368
    %p372 = pneg %p366
    %p373 = scmp.eq.s32.totalorder %s79, 3
    %p374 = por %p372, %p373
    %p375 = scmp.ne.s32.totalorder %s367, %s370
    %p376 = scmp.eq.s32.totalorder %s79, 0
    %p377 = por %p375, %p376
    %p378 = scmp.ne.s32.totalorder %s367, %s370
    %p379 = scmp.eq.s32.totalorder %s84, 3
    %p380 = por %p378, %p379
    %p381 = scmp.ne.s32.totalorder %s370, %s371
    %p382 = scmp.eq.s32.totalorder %s84, 0
    %p383 = por %p381, %p382
    %p384 = scmp.ne.s32.totalorder %s370, %s371
    %p385 = scmp.eq.s32.totalorder %s85, 3
    %p386 = por %p384, %p385
    %p388 = scmp.ne.s32.totalorder %s371, %s387
    %p389 = scmp.eq.s32.totalorder %s85, 0
    %p390 = por %p388, %p389
    %s391 = ssub.s32 %s87, %s94
    %p392 = scmp.eq.s32.totalorder %s391, 0
    %s394 = sadd.s32 %s393, 1
    %s395 = scalar_select %p392, %s393, %s394
    %p398 = pneg %p392
    %p399 = scmp.eq.s32.totalorder %s79, 3
    %p400 = por %p398, %p399
    %p401 = scmp.ne.s32.totalorder %s393, %s396
    %p402 = scmp.eq.s32.totalorder %s79, 0
    %p403 = por %p401, %p402
    %p404 = scmp.ne.s32.totalorder %s393, %s396
    %p405 = scmp.eq.s32.totalorder %s84, 3
    %p406 = por %p404, %p405
    %p407 = scmp.ne.s32.totalorder %s396, %s397
    %p408 = scmp.eq.s32.totalorder %s84, 0
    %p409 = por %p407, %p408
    %p410 = scmp.ne.s32.totalorder %s396, %s397
    %p411 = scmp.eq.s32.totalorder %s85, 3
    %p412 = por %p410, %p411
    %p414 = scmp.ne.s32.totalorder %s397, %s413
    %p415 = scmp.eq.s32.totalorder %s85, 0
    %p416 = por %p414, %p415
    %s417 = ssub.s32 %s87, %s94
    %p418 = scmp.eq.s32.totalorder %s417, 0
    %s420 = sadd.s32 %s419, 1
    %s421 = scalar_select %p418, %s419, %s420
    %p424 = pneg %p418
    %p425 = scmp.eq.s32.totalorder %s79, 3
    %p426 = por %p424, %p425
    %p427 = scmp.ne.s32.totalorder %s419, %s422
    %p428 = scmp.eq.s32.totalorder %s79, 0
    %p429 = por %p427, %p428
    %p430 = scmp.ne.s32.totalorder %s419, %s422
    %p431 = scmp.eq.s32.totalorder %s84, 3
    %p432 = por %p430, %p431
    %p433 = scmp.ne.s32.totalorder %s422, %s423
    %p434 = scmp.eq.s32.totalorder %s84, 0
    %p435 = por %p433, %p434
    %p436 = scmp.ne.s32.totalorder %s422, %s423
    %p437 = scmp.eq.s32.totalorder %s85, 3
    %p438 = por %p436, %p437
    %p440 = scmp.ne.s32.totalorder %s423, %s439
    %p441 = scmp.eq.s32.totalorder %s85, 0
    %p442 = por %p440, %p441
    %s443 = ssub.s32 %s87, %s94
    %p444 = scmp.eq.s32.totalorder %s443, 0
    %s446 = sadd.s32 %s445, 1
    %s447 = scalar_select %p444, %s445, %s446
    %p450 = pneg %p444
    %p451 = scmp.eq.s32.totalorder %s79, 3
    %p452 = por %p450, %p451
    %p453 = scmp.ne.s32.totalorder %s445, %s448
    %p454 = scmp.eq.s32.totalorder %s79, 0
    %p455 = por %p453, %p454
    %p456 = scmp.ne.s32.totalorder %s445, %s448
    %p457 = scmp.eq.s32.totalorder %s84, 3
    %p458 = por %p456, %p457
    %p459 = scmp.ne.s32.totalorder %s448, %s449
    %p460 = scmp.eq.s32.totalorder %s84, 0
    %p461 = por %p459, %p460
    %p462 = scmp.ne.s32.totalorder %s448, %s449
    %p463 = scmp.eq.s32.totalorder %s85, 3
    %p464 = por %p462, %p463
    %p466 = scmp.ne.s32.totalorder %s449, %s465
    %p467 = scmp.eq.s32.totalorder %s85, 0
    %p468 = por %p466, %p467
    %s469 = ssub.s32 %s87, %s94
    %p470 = scmp.eq.s32.totalorder %s469, 0
    %s472 = sadd.s32 %s471, 1
    %s473 = scalar_select %p470, %s471, %s472
    %p476 = pneg %p470
    %p477 = scmp.eq.s32.totalorder %s79, 3
    %p478 = por %p476, %p477
    %p479 = scmp.ne.s32.totalorder %s471, %s474
    %p480 = scmp.eq.s32.totalorder %s79, 0
    %p481 = por %p479, %p480
    %p482 = scmp.ne.s32.totalorder %s471, %s474
    %p483 = scmp.eq.s32.totalorder %s84, 3
    %p484 = por %p482, %p483
    %p485 = scmp.ne.s32.totalorder %s474, %s475
    %p486 = scmp.eq.s32.totalorder %s84, 0
    %p487 = por %p485, %p486
    %p488 = scmp.ne.s32.totalorder %s474, %s475
    %p489 = scmp.eq.s32.totalorder %s85, 3
    %p490 = por %p488, %p489
    %p492 = scmp.ne.s32.totalorder %s475, %s491
    %p493 = scmp.eq.s32.totalorder %s85, 0
    %p494 = por %p492, %p493
    %s495 = ssub.s32 %s87, %s94
    %p496 = scmp.eq.s32.totalorder %s495, 0
    %s498 = sadd.s32 %s497, 1
    %s499 = scalar_select %p496, %s497, %s498
    %p502 = pneg %p496
    %p503 = scmp.eq.s32.totalorder %s79, 3
    %p504 = por %p502, %p503
    %p505 = scmp.ne.s32.totalorder %s497, %s500
    %p506 = scmp.eq.s32.totalorder %s79, 0
    %p507 = por %p505, %p506
    %p508 = scmp.ne.s32.totalorder %s497, %s500
    %p509 = scmp.eq.s32.totalorder %s84, 3
    %p510 = por %p508, %p509
    %p511 = scmp.ne.s32.totalorder %s500, %s501
    %p512 = scmp.eq.s32.totalorder %s84, 0
    %p513 = por %p511, %p512
    %p514 = scmp.ne.s32.totalorder %s500, %s501
    %p515 = scmp.eq.s32.totalorder %s85, 3
    %p516 = por %p514, %p515
    %p518 = scmp.ne.s32.totalorder %s501, %s517
    %p519 = scmp.eq.s32.totalorder %s85, 0
    %p520 = por %p518, %p519
    %s521 = ssub.s32 %s87, %s94
    %p522 = scmp.eq.s32.totalorder %s521, 0
    %s524 = sadd.s32 %s523, 1
    %s525 = scalar_select %p522, %s523, %s524
    %p528 = pneg %p522
    %p529 = scmp.eq.s32.totalorder %s79, 3
    %p530 = por %p528, %p529
    %p531 = scmp.ne.s32.totalorder %s523, %s526
    %p532 = scmp.eq.s32.totalorder %s79, 0
    %p533 = por %p531, %p532
    %p534 = scmp.ne.s32.totalorder %s523, %s526
    %p535 = scmp.eq.s32.totalorder %s84, 3
    %p536 = por %p534, %p535
    %p537 = scmp.ne.s32.totalorder %s526, %s527
    %p538 = scmp.eq.s32.totalorder %s84, 0
    %p539 = por %p537, %p538
    %p540 = scmp.ne.s32.totalorder %s526, %s527
    %p541 = scmp.eq.s32.totalorder %s85, 3
    %p542 = por %p540, %p541
    %p544 = scmp.ne.s32.totalorder %s527, %s543
    %p545 = scmp.eq.s32.totalorder %s85, 0
    %p546 = por %p544, %p545
    %s547 = ssub.s32 %s87, %s94
    %p548 = scmp.eq.s32.totalorder %s547, 0
    %s550 = sadd.s32 %s549, 1
    %s551 = scalar_select %p548, %s549, %s550
    %p554 = pneg %p548
    %p555 = scmp.eq.s32.totalorder %s79, 3
    %p556 = por %p554, %p555
    %p557 = scmp.ne.s32.totalorder %s549, %s552
    %p558 = scmp.eq.s32.totalorder %s79, 0
    %p559 = por %p557, %p558
    %p560 = scmp.ne.s32.totalorder %s549, %s552
    %p561 = scmp.eq.s32.totalorder %s84, 3
    %p562 = por %p560, %p561
    %p563 = scmp.ne.s32.totalorder %s552, %s553
    %p564 = scmp.eq.s32.totalorder %s84, 0
    %p565 = por %p563, %p564
    %p566 = scmp.ne.s32.totalorder %s552, %s553
    %p567 = scmp.eq.s32.totalorder %s85, 3
    %p568 = por %p566, %p567
    %p570 = scmp.ne.s32.totalorder %s553, %s569
    %p571 = scmp.eq.s32.totalorder %s85, 0
    %p572 = por %p570, %p571
    %s573 = ssub.s32 %s87, %s94
    %p574 = scmp.eq.s32.totalorder %s573, 0
    %s576 = sadd.s32 %s575, 1
    %s577 = scalar_select %p574, %s575, %s576
    %p580 = pneg %p574
    %p581 = scmp.eq.s32.totalorder %s79, 3
    %p582 = por %p580, %p581
    %p583 = scmp.ne.s32.totalorder %s575, %s578
    %p584 = scmp.eq.s32.totalorder %s79, 0
    %p585 = por %p583, %p584
    %p586 = scmp.ne.s32.totalorder %s575, %s578
    %p587 = scmp.eq.s32.totalorder %s84, 3
    %p588 = por %p586, %p587
    %p589 = scmp.ne.s32.totalorder %s578, %s579
    %p590 = scmp.eq.s32.totalorder %s84, 0
    %p591 = por %p589, %p590
    %p592 = scmp.ne.s32.totalorder %s578, %s579
    %p593 = scmp.eq.s32.totalorder %s85, 3
    %p594 = por %p592, %p593
    %p596 = scmp.ne.s32.totalorder %s579, %s595
    %p597 = scmp.eq.s32.totalorder %s85, 0
    %p598 = por %p596, %p597
    %s599 = ssub.s32 %s87, %s94
    %p600 = scmp.eq.s32.totalorder %s599, 0
    %s602 = sadd.s32 %s601, 1
    %s603 = scalar_select %p600, %s601, %s602
    %p606 = pneg %p600
    %p607 = scmp.eq.s32.totalorder %s79, 3
    %p608 = por %p606, %p607
    %p609 = scmp.ne.s32.totalorder %s601, %s604
    %p610 = scmp.eq.s32.totalorder %s79, 0
    %p611 = por %p609, %p610
    %p612 = scmp.ne.s32.totalorder %s601, %s604
    %p613 = scmp.eq.s32.totalorder %s84, 3
    %p614 = por %p612, %p613
    %p615 = scmp.ne.s32.totalorder %s604, %s605
    %p616 = scmp.eq.s32.totalorder %s84, 0
    %p617 = por %p615, %p616
    %p618 = scmp.ne.s32.totalorder %s604, %s605
    %p619 = scmp.eq.s32.totalorder %s85, 3
    %p620 = por %p618, %p619
    %p622 = scmp.ne.s32.totalorder %s605, %s621
    %p623 = scmp.eq.s32.totalorder %s85, 0
    %p624 = por %p622, %p623
    %s626 = sadd.s32 %s625, 1
    %p629 = scmp.eq.s32.totalorder %s79, 3
    %p630 = scmp.ne.s32.totalorder %s625, %s627
    %p631 = scmp.eq.s32.totalorder %s79, 0
    %p632 = por %p630, %p631
    %p633 = scmp.ne.s32.totalorder %s625, %s627
    %p634 = scmp.eq.s32.totalorder %s84, 3
    %p635 = por %p633, %p634
    %p636 = scmp.ne.s32.totalorder %s627, %s628
    %p637 = scmp.eq.s32.totalorder %s84, 0
    %p638 = por %p636, %p637
    %p639 = scmp.ne.s32.totalorder %s627, %s628
    %p640 = scmp.eq.s32.totalorder %s85, 3
    %p641 = por %p639, %p640
    %p643 = scmp.ne.s32.totalorder %s628, %s642
    %p644 = scmp.eq.s32.totalorder %s85, 0
    %p645 = por %p643, %p644
    %s647 = sadd.s32 %s646, 1
    %p650 = scmp.eq.s32.totalorder %s79, 3
    %p651 = scmp.ne.s32.totalorder %s646, %s648
    %p652 = scmp.eq.s32.totalorder %s79, 0
    %p653 = por %p651, %p652
    %p654 = scmp.ne.s32.totalorder %s646, %s648
    %p655 = scmp.eq.s32.totalorder %s84, 3
    %p656 = por %p654, %p655
    %p657 = scmp.ne.s32.totalorder %s648, %s649
    %p658 = scmp.eq.s32.totalorder %s84, 0
    %p659 = por %p657, %p658
    %p660 = scmp.ne.s32.totalorder %s648, %s649
    %p661 = scmp.eq.s32.totalorder %s85, 3
    %p662 = por %p660, %p661
    %p664 = scmp.ne.s32.totalorder %s649, %s663
    %p665 = scmp.eq.s32.totalorder %s85, 0
    %p666 = por %p664, %p665
    %s668 = sadd.s32 %s667, 1
    %p671 = scmp.eq.s32.totalorder %s79, 3
    %p672 = scmp.ne.s32.totalorder %s667, %s669
    %p673 = scmp.eq.s32.totalorder %s79, 0
    %p674 = por %p672, %p673
    %p675 = scmp.ne.s32.totalorder %s667, %s669
    %p676 = scmp.eq.s32.totalorder %s84, 3
    %p677 = por %p675, %p676
    %p678 = scmp.ne.s32.totalorder %s669, %s670
    %p679 = scmp.eq.s32.totalorder %s84, 0
    %p680 = por %p678, %p679
    %p681 = scmp.ne.s32.totalorder %s669, %s670
    %p682 = scmp.eq.s32.totalorder %s85, 3
    %p683 = por %p681, %p682
    %p685 = scmp.ne.s32.totalorder %s670, %s684
    %p686 = scmp.eq.s32.totalorder %s85, 0
    %p687 = por %p685, %p686
    %s689 = sadd.s32 %s688, 1
    %p692 = scmp.eq.s32.totalorder %s79, 3
    %p693 = scmp.ne.s32.totalorder %s688, %s690
    %p694 = scmp.eq.s32.totalorder %s79, 0
    %p695 = por %p693, %p694
    %p696 = scmp.ne.s32.totalorder %s688, %s690
    %p697 = scmp.eq.s32.totalorder %s84, 3
    %p698 = por %p696, %p697
    %p699 = scmp.ne.s32.totalorder %s690, %s691
    %p700 = scmp.eq.s32.totalorder %s84, 0
    %p701 = por %p699, %p700
    %p702 = scmp.ne.s32.totalorder %s690, %s691
    %p703 = scmp.eq.s32.totalorder %s85, 3
    %p704 = por %p702, %p703
    %p706 = scmp.ne.s32.totalorder %s691, %s705
    %p707 = scmp.eq.s32.totalorder %s85, 0
    %p708 = por %p706, %p707
    %s710 = sadd.s32 %s709, 1
    %p713 = scmp.eq.s32.totalorder %s79, 3
    %p714 = scmp.ne.s32.totalorder %s709, %s711
    %p715 = scmp.eq.s32.totalorder %s79, 0
    %p716 = por %p714, %p715
    %p717 = scmp.ne.s32.totalorder %s709, %s711
    %p718 = scmp.eq.s32.totalorder %s84, 3
    %p719 = por %p717, %p718
    %p720 = scmp.ne.s32.totalorder %s711, %s712
    %p721 = scmp.eq.s32.totalorder %s84, 0
    %p722 = por %p720, %p721
    %p723 = scmp.ne.s32.totalorder %s711, %s712
    %p724 = scmp.eq.s32.totalorder %s85, 3
    %p725 = por %p723, %p724
    %p727 = scmp.ne.s32.totalorder %s712, %s726
    %p728 = scmp.eq.s32.totalorder %s85, 0
    %p729 = por %p727, %p728
    %s731 = sadd.s32 %s730, 1
    %p734 = scmp.eq.s32.totalorder %s79, 3
    %p735 = scmp.ne.s32.totalorder %s730, %s732
    %p736 = scmp.eq.s32.totalorder %s79, 0
    %p737 = por %p735, %p736
    %p738 = scmp.ne.s32.totalorder %s730, %s732
    %p739 = scmp.eq.s32.totalorder %s84, 3
    %p740 = por %p738, %p739
    %p741 = scmp.ne.s32.totalorder %s732, %s733
    %p742 = scmp.eq.s32.totalorder %s84, 0
    %p743 = por %p741, %p742
    %p744 = scmp.ne.s32.totalorder %s732, %s733
    %p745 = scmp.eq.s32.totalorder %s85, 3
    %p746 = por %p744, %p745
    %p748 = scmp.ne.s32.totalorder %s733, %s747
    %p749 = scmp.eq.s32.totalorder %s85, 0
    %p750 = por %p748, %p749
    %s752 = sadd.s32 %s751, 1
    %p755 = scmp.eq.s32.totalorder %s79, 3
    %p756 = scmp.ne.s32.totalorder %s751, %s753
    %p757 = scmp.eq.s32.totalorder %s79, 0
    %p758 = por %p756, %p757
    %p759 = scmp.ne.s32.totalorder %s751, %s753
    %p760 = scmp.eq.s32.totalorder %s84, 3
    %p761 = por %p759, %p760
    %p762 = scmp.ne.s32.totalorder %s753, %s754
    %p763 = scmp.eq.s32.totalorder %s84, 0
    %p764 = por %p762, %p763
    %p765 = scmp.ne.s32.totalorder %s753, %s754
    %p766 = scmp.eq.s32.totalorder %s85, 3
    %p767 = por %p765, %p766
    %p769 = scmp.ne.s32.totalorder %s754, %s768
    %p770 = scmp.eq.s32.totalorder %s85, 0
    %p771 = por %p769, %p770
    %s773 = sadd.s32 %s772, 1
    %p776 = scmp.eq.s32.totalorder %s79, 3
    %p777 = scmp.ne.s32.totalorder %s772, %s774
    %p778 = scmp.eq.s32.totalorder %s79, 0
    %p779 = por %p777, %p778
    %p780 = scmp.ne.s32.totalorder %s772, %s774
    %p781 = scmp.eq.s32.totalorder %s84, 3
    %p782 = por %p780, %p781
    %p783 = scmp.ne.s32.totalorder %s774, %s775
    %p784 = scmp.eq.s32.totalorder %s84, 0
    %p785 = por %p783, %p784
    %p786 = scmp.ne.s32.totalorder %s774, %s775
    %p787 = scmp.eq.s32.totalorder %s85, 3
    %p788 = por %p786, %p787
    %p790 = scmp.ne.s32.totalorder %s775, %s789
    %p791 = scmp.eq.s32.totalorder %s85, 0
    %p792 = por %p790, %p791
    %s794 = sadd.s32 %s793, 1
    %p797 = scmp.eq.s32.totalorder %s79, 3
    %p798 = scmp.ne.s32.totalorder %s793, %s795
    %p799 = scmp.eq.s32.totalorder %s79, 0
    %p800 = por %p798, %p799
    %p801 = scmp.ne.s32.totalorder %s793, %s795
    %p802 = scmp.eq.s32.totalorder %s84, 3
    %p803 = por %p801, %p802
    %p804 = scmp.ne.s32.totalorder %s795, %s796
    %p805 = scmp.eq.s32.totalorder %s84, 0
    %p806 = por %p804, %p805
    %p807 = scmp.ne.s32.totalorder %s795, %s796
    %p808 = scmp.eq.s32.totalorder %s85, 3
    %p809 = por %p807, %p808
    %p811 = scmp.ne.s32.totalorder %s796, %s810
    %p812 = scmp.eq.s32.totalorder %s85, 0
    %p813 = por %p811, %p812
    %s815 = sadd.s32 %s814, 1
    %p818 = scmp.eq.s32.totalorder %s79, 3
    %p819 = scmp.ne.s32.totalorder %s814, %s816
    %p820 = scmp.eq.s32.totalorder %s79, 0
    %p821 = por %p819, %p820
    %p822 = scmp.ne.s32.totalorder %s814, %s816
    %p823 = scmp.eq.s32.totalorder %s84, 3
    %p824 = por %p822, %p823
    %p825 = scmp.ne.s32.totalorder %s816, %s817
    %p826 = scmp.eq.s32.totalorder %s84, 0
    %p827 = por %p825, %p826
    %p828 = scmp.ne.s32.totalorder %s816, %s817
    %p829 = scmp.eq.s32.totalorder %s85, 3
    %p830 = por %p828, %p829
    %p832 = scmp.ne.s32.totalorder %s817, %s831
    %p833 = scmp.eq.s32.totalorder %s85, 0
    %p834 = por %p832, %p833
    %s836 = sadd.s32 %s835, 1
    %p839 = scmp.eq.s32.totalorder %s79, 3
    %p840 = scmp.ne.s32.totalorder %s835, %s837
    %p841 = scmp.eq.s32.totalorder %s79, 0
    %p842 = por %p840, %p841
    %p843 = scmp.ne.s32.totalorder %s835, %s837
    %p844 = scmp.eq.s32.totalorder %s84, 3
    %p845 = por %p843, %p844
    %p846 = scmp.ne.s32.totalorder %s837, %s838
    %p847 = scmp.eq.s32.totalorder %s84, 0
    %p848 = por %p846, %p847
    %p849 = scmp.ne.s32.totalorder %s837, %s838
    %p850 = scmp.eq.s32.totalorder %s85, 3
    %p851 = por %p849, %p850
    %p853 = scmp.ne.s32.totalorder %s838, %s852
    %p854 = scmp.eq.s32.totalorder %s85, 0
    %p855 = por %p853, %p854
    %s857 = sadd.s32 %s856, 1
    %p860 = scmp.eq.s32.totalorder %s79, 3
    %p861 = scmp.ne.s32.totalorder %s856, %s858
    %p862 = scmp.eq.s32.totalorder %s79, 0
    %p863 = por %p861, %p862
    %p864 = scmp.ne.s32.totalorder %s856, %s858
    %p865 = scmp.eq.s32.totalorder %s84, 3
    %p866 = por %p864, %p865
    %p867 = scmp.ne.s32.totalorder %s858, %s859
    %p868 = scmp.eq.s32.totalorder %s84, 0
    %p869 = por %p867, %p868
    %p870 = scmp.ne.s32.totalorder %s858, %s859
    %p871 = scmp.eq.s32.totalorder %s85, 3
    %p872 = por %p870, %p871
    %p874 = scmp.ne.s32.totalorder %s859, %s873
    %p875 = scmp.eq.s32.totalorder %s85, 0
    %p876 = por %p874, %p875
    %s878 = sadd.s32 %s877, 1
    %p881 = scmp.eq.s32.totalorder %s79, 3
    %p882 = scmp.ne.s32.totalorder %s877, %s879
    %p883 = scmp.eq.s32.totalorder %s79, 0
    %p884 = por %p882, %p883
    %p885 = scmp.ne.s32.totalorder %s877, %s879
    %p886 = scmp.eq.s32.totalorder %s84, 3
    %p887 = por %p885, %p886
    %p888 = scmp.ne.s32.totalorder %s879, %s880
    %p889 = scmp.eq.s32.totalorder %s84, 0
    %p890 = por %p888, %p889
    %p891 = scmp.ne.s32.totalorder %s879, %s880
    %p892 = scmp.eq.s32.totalorder %s85, 3
    %p893 = por %p891, %p892
    %p895 = scmp.ne.s32.totalorder %s880, %s894
    %p896 = scmp.eq.s32.totalorder %s85, 0
    %p897 = por %p895, %p896
    %s898 = ssub.s32 %s86, %s98
    %p899 = scmp.eq.s32.totalorder %s898, 0
    %s901 = sadd.s32 %s900, 1
    %s902 = scalar_select %p899, %s900, %s901
    %p905 = pneg %p899
    %p906 = scmp.eq.s32.totalorder %s79, 3
    %p907 = por %p905, %p906
    %p908 = scmp.ne.s32.totalorder %s900, %s903
    %p909 = scmp.eq.s32.totalorder %s79, 0
    %p910 = por %p908, %p909
    %p911 = scmp.ne.s32.totalorder %s900, %s903
    %p912 = scmp.eq.s32.totalorder %s84, 3
    %p913 = por %p911, %p912
    %p914 = scmp.ne.s32.totalorder %s903, %s904
    %p915 = scmp.eq.s32.totalorder %s84, 0
    %p916 = por %p914, %p915
    %p917 = scmp.ne.s32.totalorder %s903, %s904
    %p918 = scmp.eq.s32.totalorder %s85, 3
    %p919 = por %p917, %p918
    %p921 = scmp.ne.s32.totalorder %s904, %s920
    %p922 = scmp.eq.s32.totalorder %s85, 0
    %p923 = por %p921, %p922
    %s924 = ssub.s32 %s86, %s98
    %p925 = scmp.eq.s32.totalorder %s924, 0
    %s927 = sadd.s32 %s926, 1
    %s928 = scalar_select %p925, %s926, %s927
    %p931 = pneg %p925
    %p932 = scmp.eq.s32.totalorder %s79, 3
    %p933 = por %p931, %p932
    %p934 = scmp.ne.s32.totalorder %s926, %s929
    %p935 = scmp.eq.s32.totalorder %s79, 0
    %p936 = por %p934, %p935
    %p937 = scmp.ne.s32.totalorder %s926, %s929
    %p938 = scmp.eq.s32.totalorder %s84, 3
    %p939 = por %p937, %p938
    %p940 = scmp.ne.s32.totalorder %s929, %s930
    %p941 = scmp.eq.s32.totalorder %s84, 0
    %p942 = por %p940, %p941
    %p943 = scmp.ne.s32.totalorder %s929, %s930
    %p944 = scmp.eq.s32.totalorder %s85, 3
    %p945 = por %p943, %p944
    %p947 = scmp.ne.s32.totalorder %s930, %s946
    %p948 = scmp.eq.s32.totalorder %s85, 0
    %p949 = por %p947, %p948
    %s950 = ssub.s32 %s86, %s98
    %p951 = scmp.eq.s32.totalorder %s950, 0
    %s953 = sadd.s32 %s952, 1
    %s954 = scalar_select %p951, %s952, %s953
    %p957 = pneg %p951
    %p958 = scmp.eq.s32.totalorder %s79, 3
    %p959 = por %p957, %p958
    %p960 = scmp.ne.s32.totalorder %s952, %s955
    %p961 = scmp.eq.s32.totalorder %s79, 0
    %p962 = por %p960, %p961
    %p963 = scmp.ne.s32.totalorder %s952, %s955
    %p964 = scmp.eq.s32.totalorder %s84, 3
    %p965 = por %p963, %p964
    %p966 = scmp.ne.s32.totalorder %s955, %s956
    %p967 = scmp.eq.s32.totalorder %s84, 0
    %p968 = por %p966, %p967
    %p969 = scmp.ne.s32.totalorder %s955, %s956
    %p970 = scmp.eq.s32.totalorder %s85, 3
    %p971 = por %p969, %p970
    %p973 = scmp.ne.s32.totalorder %s956, %s972
    %p974 = scmp.eq.s32.totalorder %s85, 0
    %p975 = por %p973, %p974
    %p976 = scmp.le.s32.totalorder 1, %s79
    %p977 = scmp.lt.s32.totalorder %s79, 5
    %p978 = pnand %p976, %p977
    %p979 = pneg %p978
    // Predicated region
    $region9: #{owlvit_forward.3} parent=5 // pred_check
      _
    $region10: #{owlvit_forward.3} parent=5 // pred_check_branch
      %981 = sbr.rel (%p978) target = $region12
    $region11: #{owlvit_forward.3} parent=5 // pred_region
      %s982 = ssub.s32 %s79, 1
      // Predicated region
      $region13: #{owlvit_forward.3} parent=11 // pred_check
        %p983 = pneg %p138
      $region14: #{owlvit_forward.3} parent=11 // pred_check_branch
        %985 = sbr.rel (%p983) target = $region16
      $region15: #{owlvit_forward.3} parent=11 // pred_region
        _
      $region16: #{owlvit_forward.3} parent=11 // pred_fallthru
        _
      // Predicated region
      $region17: #{owlvit_forward.3} parent=11 // pred_check
        %p986 = pneg %p159
      $region18: #{owlvit_forward.3} parent=11 // pred_check_branch
        %988 = sbr.rel (%p986) target = $region20
      $region19: #{owlvit_forward.3} parent=11 // pred_region
        _
      $region20: #{owlvit_forward.3} parent=11 // pred_fallthru
        _
      // Predicated region
      $region21: #{owlvit_forward.3} parent=11 // pred_check
        %p989 = pneg %p180
      $region22: #{owlvit_forward.3} parent=11 // pred_check_branch
        %991 = sbr.rel (%p989) target = $region24
      $region23: #{owlvit_forward.3} parent=11 // pred_region
        _
      $region24: #{owlvit_forward.3} parent=11 // pred_fallthru
        _
      // Predicated region
      $region25: #{owlvit_forward.3} parent=11 // pred_check
        %p992 = pneg %p201
      $region26: #{owlvit_forward.3} parent=11 // pred_check_branch
        %994 = sbr.rel (%p992) target = $region28
      $region27: #{owlvit_forward.3} parent=11 // pred_region
        _
      $region28: #{owlvit_forward.3} parent=11 // pred_fallthru
        _
      // Predicated region
      $region29: #{owlvit_forward.3} parent=11 // pred_check
        %p995 = pneg %p638
      $region30: #{owlvit_forward.3} parent=11 // pred_check_branch
        %997 = sbr.rel (%p995) target = $region32
      $region31: #{owlvit_forward.3} parent=11 // pred_region
        _
      $region32: #{owlvit_forward.3} parent=11 // pred_fallthru
        _
      // Predicated region
      $region33: #{owlvit_forward.3} parent=11 // pred_check
        %p998 = pneg %p659
      $region34: #{owlvit_forward.3} parent=11 // pred_check_branch
        %1000 = sbr.rel (%p998) target = $region36
      $region35: #{owlvit_forward.3} parent=11 // pred_region
        _
      $region36: #{owlvit_forward.3} parent=11 // pred_fallthru
        _
      // Predicated region
      $region37: #{owlvit_forward.3} parent=11 // pred_check
        %p1001 = pneg %p680
      $region38: #{owlvit_forward.3} parent=11 // pred_check_branch
        %1003 = sbr.rel (%p1001) target = $region40
      $region39: #{owlvit_forward.3} parent=11 // pred_region
        _
      $region40: #{owlvit_forward.3} parent=11 // pred_fallthru
        _
      // Predicated region
      $region41: #{owlvit_forward.3} parent=11 // pred_check
        %p1004 = pneg %p701
      $region42: #{owlvit_forward.3} parent=11 // pred_check_branch
        %1006 = sbr.rel (%p1004) target = $region44
      $region43: #{owlvit_forward.3} parent=11 // pred_region
        _
      $region44: #{owlvit_forward.3} parent=11 // pred_fallthru
        _
      // Predicated region
      $region45: #{owlvit_forward.3} parent=11 // pred_check
        %p1007 = pneg %p722
      $region46: #{owlvit_forward.3} parent=11 // pred_check_branch
        %1009 = sbr.rel (%p1007) target = $region48
      $region47: #{owlvit_forward.3} parent=11 // pred_region
        _
      $region48: #{owlvit_forward.3} parent=11 // pred_fallthru
        _
      // Predicated region
      $region49: #{owlvit_forward.3} parent=11 // pred_check
        %p1010 = pneg %p743
      $region50: #{owlvit_forward.3} parent=11 // pred_check_branch
        %1012 = sbr.rel (%p1010) target = $region52
      $region51: #{owlvit_forward.3} parent=11 // pred_region
        _
      $region52: #{owlvit_forward.3} parent=11 // pred_fallthru
        _
      // Predicated region
      $region53: #{owlvit_forward.3} parent=11 // pred_check
        %p1013 = pneg %p764
      $region54: #{owlvit_forward.3} parent=11 // pred_check_branch
        %1015 = sbr.rel (%p1013) target = $region56
      $region55: #{owlvit_forward.3} parent=11 // pred_region
        _
      $region56: #{owlvit_forward.3} parent=11 // pred_fallthru
        _
      // Predicated region
      $region57: #{owlvit_forward.3} parent=11 // pred_check
        %p1016 = pneg %p785
      $region58: #{owlvit_forward.3} parent=11 // pred_check_branch
        %1018 = sbr.rel (%p1016) target = $region60
      $region59: #{owlvit_forward.3} parent=11 // pred_region
        _
      $region60: #{owlvit_forward.3} parent=11 // pred_fallthru
        _
      // Predicated region
      $region61: #{owlvit_forward.3} parent=11 // pred_check
        %p1019 = pneg %p806
      $region62: #{owlvit_forward.3} parent=11 // pred_check_branch
        %1021 = sbr.rel (%p1019) target = $region64
      $region63: #{owlvit_forward.3} parent=11 // pred_region
        _
      $region64: #{owlvit_forward.3} parent=11 // pred_fallthru
        _
      // Predicated region
      $region65: #{owlvit_forward.3} parent=11 // pred_check
        %p1022 = pneg %p827
      $region66: #{owlvit_forward.3} parent=11 // pred_check_branch
        %1024 = sbr.rel (%p1022) target = $region68
      $region67: #{owlvit_forward.3} parent=11 // pred_region
        _
      $region68: #{owlvit_forward.3} parent=11 // pred_fallthru
        _
      // Predicated region
      $region69: #{owlvit_forward.3} parent=11 // pred_check
        %p1025 = pneg %p848
      $region70: #{owlvit_forward.3} parent=11 // pred_check_branch
        %1027 = sbr.rel (%p1025) target = $region72
      $region71: #{owlvit_forward.3} parent=11 // pred_region
        _
      $region72: #{owlvit_forward.3} parent=11 // pred_fallthru
        _
      // Predicated region
      $region73: #{owlvit_forward.3} parent=11 // pred_check
        %p1028 = pneg %p869
      $region74: #{owlvit_forward.3} parent=11 // pred_check_branch
        %1030 = sbr.rel (%p1028) target = $region76
      $region75: #{owlvit_forward.3} parent=11 // pred_region
        _
      $region76: #{owlvit_forward.3} parent=11 // pred_fallthru
        _
      // Predicated region
      $region77: #{owlvit_forward.3} parent=11 // pred_check
        %p1031 = pneg %p890
      $region78: #{owlvit_forward.3} parent=11 // pred_check_branch
        %1033 = sbr.rel (%p1031) target = $region80
      $region79: #{owlvit_forward.3} parent=11 // pred_region
        _
      $region80: #{owlvit_forward.3} parent=11 // pred_fallthru
        _
    $region12: #{owlvit_forward.3} parent=5 // pred_fallthru
      _
    %p1034 = scmp.lt.s32.totalorder %s79, 4
    // Predicated region
    $region81: #{owlvit_forward.3} parent=5 // pred_check
      %p1035 = pneg %p1034
    $region82: #{owlvit_forward.3} parent=5 // pred_check_branch
      %1037 = sbr.rel (%p1035) target = $region84
    $region83: #{owlvit_forward.3} parent=5 // pred_region
      // Predicated region
      $region85: #{owlvit_forward.3} parent=83 // pred_check
        %p1038 = pneg %p111
      $region86: #{owlvit_forward.3} parent=83 // pred_check_branch
        %1040 = sbr.rel (%p1038) target = $region88
      $region87: #{owlvit_forward.3} parent=83 // pred_region
        %p1041 = scmp.lt.s32.totalorder %s86, 1
        %s1042 = scalar_select %p1041, %s86, 1
        %s1043 = smul.addr %s1042, 6
        %s1044 = smul.addr %s1043, 8
        %s1045 = scalar_lea.vmem %s1, %s1044
      $region88: #{owlvit_forward.3} parent=83 // pred_fallthru
        _
      // Predicated region
      $region89: #{owlvit_forward.3} parent=83 // pred_check
        %p1046 = pneg %p221
      $region90: #{owlvit_forward.3} parent=83 // pred_check_branch
        %1048 = sbr.rel (%p1046) target = $region92
      $region91: #{owlvit_forward.3} parent=83 // pred_region
        %p1049 = scmp.lt.s32.totalorder %s87, 1
        %s1050 = scalar_select %p1049, %s87, 1
        %s1051 = scalar_lea.vmem %s11, %s1050
      $region92: #{owlvit_forward.3} parent=83 // pred_fallthru
        _
      // Predicated region
      $region93: #{owlvit_forward.3} parent=83 // pred_check
        %p1052 = pneg %p247
      $region94: #{owlvit_forward.3} parent=83 // pred_check_branch
        %1054 = sbr.rel (%p1052) target = $region96
      $region95: #{owlvit_forward.3} parent=83 // pred_region
        %p1055 = scmp.lt.s32.totalorder %s87, 1
        %s1056 = scalar_select %p1055, %s87, 1
        %s1057 = scalar_lea.vmem %s13, %s1056
      $region96: #{owlvit_forward.3} parent=83 // pred_fallthru
        _
      // Predicated region
      $region97: #{owlvit_forward.3} parent=83 // pred_check
        %p1058 = pneg %p273
      $region98: #{owlvit_forward.3} parent=83 // pred_check_branch
        %1060 = sbr.rel (%p1058) target = $region100
      $region99: #{owlvit_forward.3} parent=83 // pred_region
        %p1061 = scmp.lt.s32.totalorder %s87, 1
        %s1062 = scalar_select %p1061, %s87, 1
        %s1063 = smul.addr %s1062, 16
        %s1064 = smul.addr %s1063, 8
        %s1065 = scalar_lea.vmem %s15, %s1064
      $region100: #{owlvit_forward.3} parent=83 // pred_fallthru
        _
      // Predicated region
      $region101: #{owlvit_forward.3} parent=83 // pred_check
        %p1066 = pneg %p299
      $region102: #{owlvit_forward.3} parent=83 // pred_check_branch
        %1068 = sbr.rel (%p1066) target = $region104
      $region103: #{owlvit_forward.3} parent=83 // pred_region
        %p1069 = scmp.lt.s32.totalorder %s87, 1
        %s1070 = scalar_select %p1069, %s87, 1
        %s1071 = smul.addr %s1070, 4
        %s1072 = scalar_lea.vmem %s17, %s1071
      $region104: #{owlvit_forward.3} parent=83 // pred_fallthru
        _
      // Predicated region
      $region105: #{owlvit_forward.3} parent=83 // pred_check
        %p1073 = pneg %p325
      $region106: #{owlvit_forward.3} parent=83 // pred_check_branch
        %1075 = sbr.rel (%p1073) target = $region108
      $region107: #{owlvit_forward.3} parent=83 // pred_region
        %p1076 = scmp.lt.s32.totalorder %s87, 1
        %s1077 = scalar_select %p1076, %s87, 1
        %s1078 = smul.addr %s1077, 16
        %s1079 = smul.addr %s1078, 8
        %s1080 = scalar_lea.vmem %s19, %s1079
      $region108: #{owlvit_forward.3} parent=83 // pred_fallthru
        _
      // Predicated region
      $region109: #{owlvit_forward.3} parent=83 // pred_check
        %p1081 = pneg %p351
      $region110: #{owlvit_forward.3} parent=83 // pred_check_branch
        %1083 = sbr.rel (%p1081) target = $region112
      $region111: #{owlvit_forward.3} parent=83 // pred_region
        %p1084 = scmp.lt.s32.totalorder %s87, 1
        %s1085 = scalar_select %p1084, %s87, 1
        %s1086 = smul.addr %s1085, 4
        %s1087 = scalar_lea.vmem %s21, %s1086
      $region112: #{owlvit_forward.3} parent=83 // pred_fallthru
        _
      // Predicated region
      $region113: #{owlvit_forward.3} parent=83 // pred_check
        %p1088 = pneg %p377
      $region114: #{owlvit_forward.3} parent=83 // pred_check_branch
        %1090 = sbr.rel (%p1088) target = $region116
      $region115: #{owlvit_forward.3} parent=83 // pred_region
        %p1091 = scmp.lt.s32.totalorder %s87, 1
        %s1092 = scalar_select %p1091, %s87, 1
        %s1093 = smul.addr %s1092, 16
        %s1094 = smul.addr %s1093, 8
        %s1095 = scalar_lea.vmem %s23, %s1094
      $region116: #{owlvit_forward.3} parent=83 // pred_fallthru
        _
      // Predicated region
      $region117: #{owlvit_forward.3} parent=83 // pred_check
        %p1096 = pneg %p403
      $region118: #{owlvit_forward.3} parent=83 // pred_check_branch
        %1098 = sbr.rel (%p1096) target = $region120
      $region119: #{owlvit_forward.3} parent=83 // pred_region
        %p1099 = scmp.lt.s32.totalorder %s87, 1
        %s1100 = scalar_select %p1099, %s87, 1
        %s1101 = smul.addr %s1100, 4
        %s1102 = scalar_lea.vmem %s25, %s1101
      $region120: #{owlvit_forward.3} parent=83 // pred_fallthru
        _
      // Predicated region
      $region121: #{owlvit_forward.3} parent=83 // pred_check
        %p1103 = pneg %p429
      $region122: #{owlvit_forward.3} parent=83 // pred_check_branch
        %1105 = sbr.rel (%p1103) target = $region124
      $region123: #{owlvit_forward.3} parent=83 // pred_region
        %p1106 = scmp.lt.s32.totalorder %s87, 1
        %s1107 = scalar_select %p1106, %s87, 1
        %s1108 = smul.addr %s1107, 4
        %s1109 = smul.addr %s1108, 8
        %s1110 = scalar_lea.vmem %s27, %s1109
      $region124: #{owlvit_forward.3} parent=83 // pred_fallthru
        _
      // Predicated region
      $region125: #{owlvit_forward.3} parent=83 // pred_check
        %p1111 = pneg %p455
      $region126: #{owlvit_forward.3} parent=83 // pred_check_branch
        %1113 = sbr.rel (%p1111) target = $region128
      $region127: #{owlvit_forward.3} parent=83 // pred_region
        %p1114 = scmp.lt.s32.totalorder %s87, 1
        %s1115 = scalar_select %p1114, %s87, 1
        %s1116 = scalar_lea.vmem %s29, %s1115
      $region128: #{owlvit_forward.3} parent=83 // pred_fallthru
        _
      // Predicated region
      $region129: #{owlvit_forward.3} parent=83 // pred_check
        %p1117 = pneg %p481
      $region130: #{owlvit_forward.3} parent=83 // pred_check_branch
        %1119 = sbr.rel (%p1117) target = $region132
      $region131: #{owlvit_forward.3} parent=83 // pred_region
        %p1120 = scmp.lt.s32.totalorder %s87, 1
        %s1121 = scalar_select %p1120, %s87, 1
        %s1122 = scalar_lea.vmem %s31, %s1121
      $region132: #{owlvit_forward.3} parent=83 // pred_fallthru
        _
      // Predicated region
      $region133: #{owlvit_forward.3} parent=83 // pred_check
        %p1123 = pneg %p507
      $region134: #{owlvit_forward.3} parent=83 // pred_check_branch
        %1125 = sbr.rel (%p1123) target = $region136
      $region135: #{owlvit_forward.3} parent=83 // pred_region
        %p1126 = scmp.lt.s32.totalorder %s87, 1
        %s1127 = scalar_select %p1126, %s87, 1
        %s1128 = scalar_lea.vmem %s33, %s1127
      $region136: #{owlvit_forward.3} parent=83 // pred_fallthru
        _
      // Predicated region
      $region137: #{owlvit_forward.3} parent=83 // pred_check
        %p1129 = pneg %p533
      $region138: #{owlvit_forward.3} parent=83 // pred_check_branch
        %1131 = sbr.rel (%p1129) target = $region140
      $region139: #{owlvit_forward.3} parent=83 // pred_region
        %p1132 = scmp.lt.s32.totalorder %s87, 1
        %s1133 = scalar_select %p1132, %s87, 1
        %s1134 = smul.addr %s1133, 4
        %s1135 = smul.addr %s1134, 8
        %s1136 = scalar_lea.vmem %s35, %s1135
      $region140: #{owlvit_forward.3} parent=83 // pred_fallthru
        _
      // Predicated region
      $region141: #{owlvit_forward.3} parent=83 // pred_check
        %p1137 = pneg %p559
      $region142: #{owlvit_forward.3} parent=83 // pred_check_branch
        %1139 = sbr.rel (%p1137) target = $region144
      $region143: #{owlvit_forward.3} parent=83 // pred_region
        %p1140 = scmp.lt.s32.totalorder %s87, 1
        %s1141 = scalar_select %p1140, %s87, 1
        %s1142 = scalar_lea.vmem %s37, %s1141
      $region144: #{owlvit_forward.3} parent=83 // pred_fallthru
        _
      // Predicated region
      $region145: #{owlvit_forward.3} parent=83 // pred_check
        %p1143 = pneg %p585
      $region146: #{owlvit_forward.3} parent=83 // pred_check_branch
        %1145 = sbr.rel (%p1143) target = $region148
      $region147: #{owlvit_forward.3} parent=83 // pred_region
        %p1146 = scmp.lt.s32.totalorder %s87, 1
        %s1147 = scalar_select %p1146, %s87, 1
        %s1148 = smul.addr %s1147, 8
        %s1149 = smul.addr %s1148, 8
        %s1150 = scalar_lea.vmem %s39, %s1149
      $region148: #{owlvit_forward.3} parent=83 // pred_fallthru
        _
      // Predicated region
      $region149: #{owlvit_forward.3} parent=83 // pred_check
        %p1151 = pneg %p611
      $region150: #{owlvit_forward.3} parent=83 // pred_check_branch
        %1153 = sbr.rel (%p1151) target = $region152
      $region151: #{owlvit_forward.3} parent=83 // pred_region
        %p1154 = scmp.lt.s32.totalorder %s87, 1
        %s1155 = scalar_select %p1154, %s87, 1
        %s1156 = scalar_lea.vmem %s41, %s1155
      $region152: #{owlvit_forward.3} parent=83 // pred_fallthru
        _
      // Predicated region
      $region153: #{owlvit_forward.3} parent=83 // pred_check
        %p1157 = pneg %p910
      $region154: #{owlvit_forward.3} parent=83 // pred_check_branch
        %1159 = sbr.rel (%p1157) target = $region156
      $region155: #{owlvit_forward.3} parent=83 // pred_region
        %p1160 = scmp.lt.s32.totalorder %s86, 1
        %s1161 = scalar_select %p1160, %s86, 1
        %s1162 = smul.addr %s1161, 2
        %s1163 = scalar_lea.vmem %s69, %s1162
      $region156: #{owlvit_forward.3} parent=83 // pred_fallthru
        _
      // Predicated region
      $region157: #{owlvit_forward.3} parent=83 // pred_check
        %p1164 = pneg %p936
      $region158: #{owlvit_forward.3} parent=83 // pred_check_branch
        %1166 = sbr.rel (%p1164) target = $region160
      $region159: #{owlvit_forward.3} parent=83 // pred_region
        %p1167 = scmp.lt.s32.totalorder %s86, 1
        %s1168 = scalar_select %p1167, %s86, 1
        %s1169 = scalar_lea.vmem %s71, %s1168
      $region160: #{owlvit_forward.3} parent=83 // pred_fallthru
        _
    $region84: #{owlvit_forward.3} parent=5 // pred_fallthru
      _
    %p1170 = scmp.le.s32.totalorder 1, %s79
    %p1171 = scmp.lt.s32.totalorder %s79, 5
    %p1172 = pnand %p1170, %p1171
    %p1173 = pneg %p1172
    // Predicated region
    $region161: #{owlvit_forward.3} parent=5 // pred_check
      _
    $region162: #{owlvit_forward.3} parent=5 // pred_check_branch
      %1175 = sbr.rel (%p1172) target = $region164
    $region163: #{owlvit_forward.3} parent=5 // pred_region
      %s1176 = ssub.s32 %s79, 1
      %p1177 = scmp.lt.s32.totalorder %s88, 1
      %s1178 = scalar_select %p1177, %s88, 1
      %s1179 = smul.addr %s1178, 6
      %s1180 = smul.addr %s1179, 8
      %s1181 = scalar_lea.vmem %s1, %s1180
      %p1182 = pneg %p117
      %p1183 = pneg %p114
      %p1184 = pneg %p138
      %p1185 = pneg %p135
      %p1186 = pneg %p159
      %p1187 = pneg %p156
      %p1188 = pneg %p180
      %p1189 = pneg %p177
      %p1190 = pneg %p201
      %p1191 = pneg %p198
      %p1192 = scmp.lt.s32.totalorder %s89, 1
      %s1193 = scalar_select %p1192, %s89, 1
      %s1194 = scalar_lea.vmem %s11, %s1193
      %p1195 = pneg %p227
      %p1196 = pneg %p224
      %p1197 = scmp.lt.s32.totalorder %s89, 1
      %s1198 = scalar_select %p1197, %s89, 1
      %s1199 = scalar_lea.vmem %s13, %s1198
      %p1200 = pneg %p253
      %p1201 = pneg %p250
      %p1202 = scmp.lt.s32.totalorder %s89, 1
      %s1203 = scalar_select %p1202, %s89, 1
      %s1204 = smul.addr %s1203, 16
      %s1205 = smul.addr %s1204, 8
      %s1206 = scalar_lea.vmem %s15, %s1205
      %p1207 = pneg %p279
      %p1208 = pneg %p276
      %p1209 = scmp.lt.s32.totalorder %s89, 1
      %s1210 = scalar_select %p1209, %s89, 1
      %s1211 = smul.addr %s1210, 4
      %s1212 = scalar_lea.vmem %s17, %s1211
      %p1213 = pneg %p305
      %p1214 = pneg %p302
      %p1215 = scmp.lt.s32.totalorder %s89, 1
      %s1216 = scalar_select %p1215, %s89, 1
      %s1217 = smul.addr %s1216, 16
      %s1218 = smul.addr %s1217, 8
      %s1219 = scalar_lea.vmem %s19, %s1218
      %p1220 = pneg %p331
      %p1221 = pneg %p328
      %p1222 = scmp.lt.s32.totalorder %s89, 1
      %s1223 = scalar_select %p1222, %s89, 1
      %s1224 = smul.addr %s1223, 4
      %s1225 = scalar_lea.vmem %s21, %s1224
      %p1226 = pneg %p357
      %p1227 = pneg %p354
      %p1228 = scmp.lt.s32.totalorder %s89, 1
      %s1229 = scalar_select %p1228, %s89, 1
      %s1230 = smul.addr %s1229, 16
      %s1231 = smul.addr %s1230, 8
      %s1232 = scalar_lea.vmem %s23, %s1231
      %p1233 = pneg %p383
      %p1234 = pneg %p380
      %p1235 = scmp.lt.s32.totalorder %s89, 1
      %s1236 = scalar_select %p1235, %s89, 1
      %s1237 = smul.addr %s1236, 4
      %s1238 = scalar_lea.vmem %s25, %s1237
      %p1239 = pneg %p409
      %p1240 = pneg %p406
      %p1241 = scmp.lt.s32.totalorder %s89, 1
      %s1242 = scalar_select %p1241, %s89, 1
      %s1243 = smul.addr %s1242, 4
      %s1244 = smul.addr %s1243, 8
      %s1245 = scalar_lea.vmem %s27, %s1244
      %p1246 = pneg %p435
      %p1247 = pneg %p432
      %p1248 = scmp.lt.s32.totalorder %s89, 1
      %s1249 = scalar_select %p1248, %s89, 1
      %s1250 = scalar_lea.vmem %s29, %s1249
      %p1251 = pneg %p461
      %p1252 = pneg %p458
      %p1253 = scmp.lt.s32.totalorder %s89, 1
      %s1254 = scalar_select %p1253, %s89, 1
      %s1255 = scalar_lea.vmem %s31, %s1254
      %p1256 = pneg %p487
      %p1257 = pneg %p484
      %p1258 = scmp.lt.s32.totalorder %s89, 1
      %s1259 = scalar_select %p1258, %s89, 1
      %s1260 = scalar_lea.vmem %s33, %s1259
      %p1261 = pneg %p513
      %p1262 = pneg %p510
      %p1263 = scmp.lt.s32.totalorder %s89, 1
      %s1264 = scalar_select %p1263, %s89, 1
      %s1265 = smul.addr %s1264, 4
      %s1266 = smul.addr %s1265, 8
      %s1267 = scalar_lea.vmem %s35, %s1266
      %p1268 = pneg %p539
      %p1269 = pneg %p536
      %p1270 = scmp.lt.s32.totalorder %s89, 1
      %s1271 = scalar_select %p1270, %s89, 1
      %s1272 = scalar_lea.vmem %s37, %s1271
      %p1273 = pneg %p565
      %p1274 = pneg %p562
      %p1275 = scmp.lt.s32.totalorder %s89, 1
      %s1276 = scalar_select %p1275, %s89, 1
      %s1277 = smul.addr %s1276, 8
      %s1278 = smul.addr %s1277, 8
      %s1279 = scalar_lea.vmem %s39, %s1278
      %p1280 = pneg %p591
      %p1281 = pneg %p588
      %p1282 = scmp.lt.s32.totalorder %s89, 1
      %s1283 = scalar_select %p1282, %s89, 1
      %s1284 = scalar_lea.vmem %s41, %s1283
      %p1285 = pneg %p617
      %p1286 = pneg %p614
      %p1287 = pneg %p638
      %p1288 = pneg %p635
      %p1289 = pneg %p659
      %p1290 = pneg %p656
      %p1291 = pneg %p680
      %p1292 = pneg %p677
      %p1293 = pneg %p701
      %p1294 = pneg %p698
      %p1295 = pneg %p722
      %p1296 = pneg %p719
      %p1297 = pneg %p743
      %p1298 = pneg %p740
      %p1299 = pneg %p764
      %p1300 = pneg %p761
      %p1301 = pneg %p785
      %p1302 = pneg %p782
      %p1303 = pneg %p806
      %p1304 = pneg %p803
      %p1305 = pneg %p827
      %p1306 = pneg %p824
      %p1307 = pneg %p848
      %p1308 = pneg %p845
      %p1309 = pneg %p869
      %p1310 = pneg %p866
      %p1311 = pneg %p890
      %p1312 = pneg %p887
      %p1313 = scmp.lt.s32.totalorder %s88, 1
      %s1314 = scalar_select %p1313, %s88, 1
      %s1315 = smul.addr %s1314, 2
      %s1316 = scalar_lea.vmem %s69, %s1315
      %p1317 = pneg %p916
      %p1318 = pneg %p913
      %p1319 = scmp.lt.s32.totalorder %s88, 1
      %s1320 = scalar_select %p1319, %s88, 1
      %s1321 = scalar_lea.vmem %s71, %s1320
      %p1322 = pneg %p942
      %p1323 = pneg %p939
      %p1324 = pneg %p968
      %p1325 = pneg %p965
      %p1326 = scmp.lt.s32.totalorder %s88, 1
      %s1327 = scalar_select %p1326, %s88, 1
      %s1328 = smul.addr %s1327, 2
      %s1329 = smul.addr %s1328, 8
      %s1330 = scalar_lea.vmem %s73, %s1329
      %p1331 = scmp.lt.s32.totalorder %s88, 1
      %s1332 = scalar_select %p1331, %s88, 1
      %s1333 = smul.addr %s1332, 6
      %s1334 = smul.addr %s1333, 8
      %s1335 = scalar_lea.vmem %s1, %s1334
      %p1336 = scmp.lt.s32.totalorder %s89, 1
      %s1337 = scalar_select %p1336, %s89, 1
      %s1338 = scalar_lea.vmem %s11, %s1337
      %p1339 = scmp.lt.s32.totalorder %s89, 1
      %s1340 = scalar_select %p1339, %s89, 1
      %s1341 = scalar_lea.vmem %s13, %s1340
      %p1342 = scmp.lt.s32.totalorder %s89, 1
      %s1343 = scalar_select %p1342, %s89, 1
      %s1344 = smul.addr %s1343, 16
      %s1345 = smul.addr %s1344, 8
      %s1346 = scalar_lea.vmem %s15, %s1345
      %p1347 = scmp.lt.s32.totalorder %s89, 1
      %s1348 = scalar_select %p1347, %s89, 1
      %s1349 = smul.addr %s1348, 4
      %s1350 = scalar_lea.vmem %s17, %s1349
      %p1351 = scmp.lt.s32.totalorder %s89, 1
      %s1352 = scalar_select %p1351, %s89, 1
      %s1353 = smul.addr %s1352, 16
      %s1354 = smul.addr %s1353, 8
      %s1355 = scalar_lea.vmem %s19, %s1354
      %p1356 = scmp.lt.s32.totalorder %s89, 1
      %s1357 = scalar_select %p1356, %s89, 1
      %s1358 = smul.addr %s1357, 4
      %s1359 = scalar_lea.vmem %s21, %s1358
      %p1360 = scmp.lt.s32.totalorder %s89, 1
      %s1361 = scalar_select %p1360, %s89, 1
      %s1362 = smul.addr %s1361, 16
      %s1363 = smul.addr %s1362, 8
      %s1364 = scalar_lea.vmem %s23, %s1363
      %p1365 = scmp.lt.s32.totalorder %s89, 1
      %s1366 = scalar_select %p1365, %s89, 1
      %s1367 = smul.addr %s1366, 4
      %s1368 = scalar_lea.vmem %s25, %s1367
      %p1369 = scmp.lt.s32.totalorder %s89, 1
      %s1370 = scalar_select %p1369, %s89, 1
      %s1371 = smul.addr %s1370, 4
      %s1372 = smul.addr %s1371, 8
      %s1373 = scalar_lea.vmem %s27, %s1372
      %p1374 = scmp.lt.s32.totalorder %s89, 1
      %s1375 = scalar_select %p1374, %s89, 1
      %s1376 = scalar_lea.vmem %s29, %s1375
      %p1377 = scmp.lt.s32.totalorder %s89, 1
      %s1378 = scalar_select %p1377, %s89, 1
      %s1379 = scalar_lea.vmem %s31, %s1378
      %p1380 = scmp.lt.s32.totalorder %s89, 1
      %s1381 = scalar_select %p1380, %s89, 1
      %s1382 = scalar_lea.vmem %s33, %s1381
      %p1383 = scmp.lt.s32.totalorder %s89, 1
      %s1384 = scalar_select %p1383, %s89, 1
      %s1385 = smul.addr %s1384, 4
      %s1386 = smul.addr %s1385, 8
      %s1387 = scalar_lea.vmem %s35, %s1386
      %p1388 = scmp.lt.s32.totalorder %s89, 1
      %s1389 = scalar_select %p1388, %s89, 1
      %s1390 = scalar_lea.vmem %s37, %s1389
      %p1391 = scmp.lt.s32.totalorder %s89, 1
      %s1392 = scalar_select %p1391, %s89, 1
      %s1393 = smul.addr %s1392, 8
      %s1394 = smul.addr %s1393, 8
      %s1395 = scalar_lea.vmem %s39, %s1394
      %p1396 = scmp.lt.s32.totalorder %s89, 1
      %s1397 = scalar_select %p1396, %s89, 1
      %s1398 = scalar_lea.vmem %s41, %s1397
      %p1399 = scmp.lt.s32.totalorder %s88, 1
      %s1400 = scalar_select %p1399, %s88, 1
      %s1401 = smul.addr %s1400, 2
      %s1402 = scalar_lea.vmem %s69, %s1401
      %p1403 = scmp.lt.s32.totalorder %s88, 1
      %s1404 = scalar_select %p1403, %s88, 1
      %s1405 = scalar_lea.vmem %s71, %s1404
      %p1406 = scmp.lt.s32.totalorder %s88, 1
      %s1407 = scalar_select %p1406, %s88, 1
      %s1408 = smul.addr %s1407, 2
      %s1409 = smul.addr %s1408, 8
      %s1410 = scalar_lea.vmem %s73, %s1409
      %p1411 = scmp.eq.s32.totalorder %s89, 0
      // Predicated region
      $region165: #{owlvit_forward.3} parent=163 // pred_check
        %p1412 = pneg %p1411
      $region166: #{owlvit_forward.3} parent=163 // pred_check_branch
        %1414 = sbr.rel (%p1412) target = $region168
      $region167: #{owlvit_forward.3} parent=163 // pred_region
        %v1415 = vld [vmem:[%s1335] sm:$0xff]
        %v1416 = vld [vmem:[%s1335 + $0x8] sm:$0xff]
        %v1417 = vld [vmem:[%s1335 + $0x10] sm:$0xff]
        %v1418 = vld [vmem:[%s1335 + $0x18] sm:$0xff]
        %v1419 = vld [vmem:[%s1335 + $0x20] sm:$0x1]
        %v1420 = vld [vmem:[%s1335 + $0x28] sm:$0x1]
        %v1421 = vld [vmem:[%s3] sm:$0xff]
        %v1422 = vld [vmem:[%s3 + $0x8] sm:$0xff]
        %v1423 = vld [vmem:[%s3 + $0x10] sm:$0xff]
        %v1424 = vld [vmem:[%s3 + $0x18] sm:$0xff]
        %v1425 = vld [vmem:[%s3 + $0x20] sm:$0xff]
        %v1426 = vld [vmem:[%s3 + $0x28] sm:$0xff]
        %v1427 = vld [vmem:[%s3 + $0x30] sm:$0xff]
        %v1428 = vld [vmem:[%s3 + $0x38] sm:$0xff]
        %v1429 = vld [vmem:[%s3 + $0x40] sm:$0xff]
        %v1430 = vld [vmem:[%s3 + $0x48] sm:$0xff]
        %v1431 = vld [vmem:[%s3 + $0x50] sm:$0xff]
        %v1432 = vld [vmem:[%s3 + $0x58] sm:$0xff]
        %v1433 = vld [vmem:[%s3 + $0x60] sm:$0xff]
        %v1434 = vld [vmem:[%s3 + $0x68] sm:$0xff]
        %v1435 = vld [vmem:[%s3 + $0x70] sm:$0xff]
        %v1436 = vld [vmem:[%s3 + $0x78] sm:$0xff]
        %v1437 = vld [vmem:[%s3 + $0x80] sm:$0xff]
        %v1438 = vld [vmem:[%s3 + $0x88] sm:$0xff]
        %v1439 = vld [vmem:[%s3 + $0x90] sm:$0xff]
        %v1440 = vld [vmem:[%s3 + $0x98] sm:$0xff]
        %v1441 = vld [vmem:[%s3 + $0xa0] sm:$0xff]
        %v1442 = vld [vmem:[%s3 + $0xa8] sm:$0xff]
        %v1443 = vld [vmem:[%s3 + $0xb0] sm:$0xff]
        %v1444 = vld [vmem:[%s3 + $0xb8] sm:$0xff]
        %v1445 = vld [vmem:[%s5] sm:$0xff]
        %v1446 = vld [vmem:[%s5 + $0x8] sm:$0xff]
        %v1447 = vld [vmem:[%s5 + $0x10] sm:$0x1]
        %vm1448 = vcmask 523264
        %v1450 = vsel %vm1448, %v1416, 0
        %v1453 = vsel %vm1448, %v1418, 0
        %v1456 = vsel %vm1448, %v1420, 0
        %1458 = vmatprep.subr.mxu0 0.0
        %1459 = vmatpush1.msra.mxu0 %v1421
        %1460 = vmatprep.subr.mxu0 0.0
        %1461 = vmatpush1.msra.mxu0 %v1422
        %1462 = vmatprep.subr.mxu0 0.0
        %1463 = vmatpush1.msra.mxu0 %v1423
        %1464 = vmatprep.subr.mxu0 0.0
        %1465 = vmatpush1.msra.mxu0 %v1424
        %1466 = vmatprep.subr.mxu0 0.0
        %1467 = vmatpush1.msra.mxu0 %v1425
        %1468 = vmatprep.subr.mxu0 0.0
        %1469 = vmatpush1.msra.mxu0 %v1426
        %1470 = vmatprep.subr.mxu0 0.0
        %1471 = vmatpush1.msra.mxu0 %v1427
        %1472 = vmatprep.subr.mxu0 0.0
        %1473 = vmatpush1.msra.mxu0 %v1428
        %1474 = vmatprep.subr.mxu0 0.0
        %1475 = vmatpush1.msra.mxu0 %v1429
        %1476 = vmatprep.subr.mxu0 0.0
        %1477 = vmatpush1.msra.mxu0 %v1430
        %1478 = vmatprep.subr.mxu0 0.0
        %1479 = vmatpush1.msra.mxu0 %v1431
        %1480 = vmatprep.subr.mxu0 0.0
        %1481 = vmatpush1.msra.mxu0 %v1432
        %1482 = vmatprep.subr.mxu0 0.0
        %1483 = vmatpush1.msra.mxu0 %v1433
        %1484 = vmatprep.subr.mxu0 0.0
        %1485 = vmatpush1.msra.mxu0 %v1434
        %1486 = vmatprep.subr.mxu0 0.0
        %1487 = vmatpush1.msra.mxu0 %v1435
        %1488 = vmatprep.subr.mxu0 0.0
        %1489 = vmatpush1.msra.mxu0 %v1436
        %1490 = vmatprep.subr.mxu0 0.0
        %1491 = vmatpush1.msra.mxu0 %v1437
        %1492 = vmatprep.subr.mxu0 0.0
        %1493 = vmatpush1.msra.mxu0 %v1438
        %1494 = vmatprep.subr.mxu0 0.0
        %1495 = vmatpush1.msra.mxu0 %v1439
        %1496 = vmatprep.subr.mxu0 0.0
        %1497 = vmatpush1.msra.mxu0 %v1440
        %1498 = vmatprep.subr.mxu0 0.0
        %1499 = vmatpush1.msra.mxu0 %v1441
        %1500 = vmatprep.subr.mxu0 0.0
        %1501 = vmatpush1.msra.mxu0 %v1442
        %1502 = vmatprep.subr.mxu0 0.0
        %1503 = vmatpush1.msra.mxu0 %v1443
        %1504 = vmatprep.subr.mxu0 0.0
        %1505 = vmatpush1.msra.mxu0 %v1444
        %1506 = vmatprep.subr.mxu0 0.0
        %1507 = vmatpush1.msra.mxu0 0.0
        %1508 = vmatprep.subr.mxu0 0.0
        %1509 = vmatpush1.msra.mxu0 0.0
        %1510 = vmatprep.subr.mxu0 0.0
        %1511 = vmatpush1.msra.mxu0 0.0
        %1512 = vmatprep.subr.mxu0 0.0
        %1513 = vmatpush1.msra.mxu0 0.0
        %1514 = vmatprep.subr.mxu0 0.0
        %1515 = vmatpush1.msra.mxu0 0.0
        %1516 = vmatprep.subr.mxu0 0.0
        %1517 = vmatpush1.msra.mxu0 0.0
        %1518 = vmatprep.subr.mxu0 0.0
        %1519 = vmatpush1.msra.mxu0 0.0
        %1520 = vmatprep.subr.mxu0 0.0
        %1521 = vmatpush1.msra.mxu0 0.0
        %1522 = vmatprep.mubr.f32.mxu0 %v1450
        %1523 = vmatmul.mubr.f32.gmra.mrb[0].mxu0 %v1415
        %v1524 = vpop.f32.mrb[0].mxu0
        %v1525 = vadd.f32 %v1445, %v1524
        %v1526 = vpop.f32.mrb[0].mxu0
        %1527 = vmatprep.mubr.f32.mxu0 %v1453
        %1528 = vmatmul.mubr.f32.gmra.mrb[0].mxu0 %v1417
        %v1529 = vpop.f32.mrb[0].mxu0
        %v1530 = vadd.f32 %v1446, %v1529
        %v1531 = vpop.f32.mrb[0].mxu0
        %1532 = vmatprep.mubr.f32.mxu0 %v1456
        %1533 = vmatmul.mubr.f32.gmra.mrb[0].mxu0 %v1419
        %v1534 = vpop.f32.mrb[0].mxu0
        %v1535 = vadd.f32 %v1447, %v1534
        %v1536 = vpop.f32.mrb[0].mxu0
        %1537 = vdwg.mxu0
        %v1538 = vld [vmem:[%s7] sm:$0x1]
        %v1539 = vld [vmem:[%s9] sm:$0x1]
        %vm1540 = vcmask 261120
        %v1541 = vsel %vm1540, %v1525, 0.0
        %1542 = vadd.xlane.f32.xlu0 %v1541
        %v1543 = vpop.xlane.xlu0 %1542
        %v1544 = vsel %vm1540, %v1530, 0.0
        %1545 = vadd.xlane.f32.xlu0 %v1544
        %v1546 = vpop.xlane.xlu0 %1545
        %vm1547 = vcmask 253952
        %v1548 = vsel %vm1547, %v1535, 0.0
        %1549 = vadd.xlane.f32.xlu0 %v1548
        %v1550 = vpop.xlane.xlu0 %1549
        %v1551 = vrcp.pop 32.0
        %v1552 = vmul.f32 %v1543, %v1551
        %v1553 = vmul.f32 %v1546, %v1551
        %v1554 = vmul.f32 %v1550, %v1551
        %v1555 = vsub.f32 %v1525, %v1552
        %v1556 = vsub.f32 %v1530, %v1553
        %v1557 = vsub.f32 %v1535, %v1554
        %v1558 = vmul.f32 %v1555, %v1555
        %v1559 = vmul.f32 %v1556, %v1556
        %v1560 = vmul.f32 %v1557, %v1557
        %v1561 = vsel %vm1540, %v1558, 0.0
        %1562 = vadd.xlane.f32.xlu0 %v1561
        %v1563 = vpop.xlane.xlu0 %1562
        %v1564 = vsel %vm1540, %v1559, 0.0
        %1565 = vadd.xlane.f32.xlu0 %v1564
        %v1566 = vpop.xlane.xlu0 %1565
        %v1567 = vsel %vm1547, %v1560, 0.0
        %1568 = vadd.xlane.f32.xlu0 %v1567
        %v1569 = vpop.xlane.xlu0 %1568
        %v1570 = vmul.f32 %v1563, %v1551
        %v1571 = vmul.f32 %v1566, %v1551
        %v1572 = vmul.f32 %v1569, %v1551
        %v1573 = vadd.f32 %v1570, 1e-05
        %v1574 = vadd.f32 %v1571, 1e-05
        %v1575 = vadd.f32 %v1572, 1e-05
        %v1576 = vrsqrt.pop %v1573
        %v1577 = vrsqrt.pop %v1574
        %v1578 = vrsqrt.pop %v1575
        %v1579 = vmul.f32 %v1555, %v1576
        %v1580 = vmul.f32 %v1556, %v1577
        %v1581 = vmul.f32 %v1557, %v1578
        %v1583 = vlaneseq
        %v1584 = vshrl.u32 %v1583, 7
        %v1585 = vsub.s32 0, %v1584
        %v1586 = vrot.slane %v1538, %v1585
        %v1588 = vmul.f32 %v1579, %v1586
        %v1589 = vmul.f32 %v1580, %v1586
        %v1590 = vmul.f32 %v1581, %v1586
        %v1592 = vlaneseq
        %v1593 = vshrl.u32 %v1592, 7
        %v1594 = vsub.s32 0, %v1593
        %v1595 = vrot.slane %v1539, %v1594
        %v1597 = vadd.f32 %v1588, %v1595
        %v1598 = vadd.f32 %v1589, %v1595
        %v1599 = vadd.f32 %v1590, %v1595
        %1600 = vst.msk [vmem:[#allocation2] sm:$0xff] %vm1540, %v1597
        %1601 = vst.msk [vmem:[#allocation2 + $0x8] sm:$0xff] %vm1540, %v1598
        %1602 = vst.msk [vmem:[#allocation2 + $0x10] sm:$0x1] %vm1547, %v1599
      $region168: #{owlvit_forward.3} parent=163 // pred_fallthru
        _
      %v1603 = vld [vmem:[#allocation2] sm:$0xff]
      %v1604 = vld [vmem:[#allocation2 + $0x8] sm:$0xff]
      %v1605 = vld [vmem:[#allocation2 + $0x10] sm:$0x1]
      %v1606 = vld [vmem:[%s1338] sm:$0x1]
      %v1607 = vld [vmem:[%s1341] sm:$0x1]
      %v1608 = vld [vmem:[%s1376] sm:$0x1]
      %v1609 = vld [vmem:[%s1379] sm:$0x1]
      %v1610 = vld [vmem:[%s1382] sm:$0x1]
      %v1611 = vld [vmem:[%s1387] sm:$0xff]
      %v1612 = vld [vmem:[%s1387 + $0x8] sm:$0xff]
      %v1613 = vld [vmem:[%s1387 + $0x10] sm:$0xff]
      %v1614 = vld [vmem:[%s1387 + $0x18] sm:$0xff]
      %v1615 = vld [vmem:[%s1390] sm:$0x1]
      %v1616 = vld [vmem:[%s1395] sm:$0xff]
      %v1617 = vld [vmem:[%s1395 + $0x8] sm:$0xff]
      %v1618 = vld [vmem:[%s1395 + $0x10] sm:$0xff]
      %v1619 = vld [vmem:[%s1395 + $0x18] sm:$0xff]
      %v1620 = vld [vmem:[%s1395 + $0x20] sm:$0xff]
      %v1621 = vld [vmem:[%s1395 + $0x28] sm:$0xff]
      %v1622 = vld [vmem:[%s1395 + $0x30] sm:$0xff]
      %v1623 = vld [vmem:[%s1395 + $0x38] sm:$0xff]
      %v1624 = vld [vmem:[%s1398] sm:$0x1]
      %vm1625 = vcmask 261120
      %v1626 = vsel %vm1625, %v1603, 0.0
      %1627 = vadd.xlane.f32.xlu0 %v1626
      %v1628 = vpop.xlane.xlu0 %1627
      %v1629 = vsel %vm1625, %v1604, 0.0
      %1630 = vadd.xlane.f32.xlu0 %v1629
      %v1631 = vpop.xlane.xlu0 %1630
      %vm1632 = vcmask 253952
      %v1633 = vsel %vm1632, %v1605, 0.0
      %1634 = vadd.xlane.f32.xlu0 %v1633
      %v1635 = vpop.xlane.xlu0 %1634
      %v1636 = vrcp.pop 32.0
      %v1637 = vmul.f32 %v1628, %v1636
      %v1638 = vmul.f32 %v1631, %v1636
      %v1639 = vmul.f32 %v1635, %v1636
      %v1640 = vsub.f32 %v1603, %v1637
      %v1641 = vsub.f32 %v1604, %v1638
      %v1642 = vsub.f32 %v1605, %v1639
      %v1643 = vmul.f32 %v1640, %v1640
      %v1644 = vmul.f32 %v1641, %v1641
      %v1645 = vmul.f32 %v1642, %v1642
      %v1646 = vsel %vm1625, %v1643, 0.0
      %1647 = vadd.xlane.f32.xlu0 %v1646
      %v1648 = vpop.xlane.xlu0 %1647
      %v1649 = vsel %vm1625, %v1644, 0.0
      %1650 = vadd.xlane.f32.xlu0 %v1649
      %v1651 = vpop.xlane.xlu0 %1650
      %v1652 = vsel %vm1632, %v1645, 0.0
      %1653 = vadd.xlane.f32.xlu0 %v1652
      %v1654 = vpop.xlane.xlu0 %1653
      %v1655 = vmul.f32 %v1648, %v1636
      %v1656 = vmul.f32 %v1651, %v1636
      %v1657 = vmul.f32 %v1654, %v1636
      %v1658 = vadd.f32 %v1655, 1e-05
      %v1659 = vadd.f32 %v1656, 1e-05
      %v1660 = vadd.f32 %v1657, 1e-05
      %v1661 = vrsqrt.pop %v1658
      %v1662 = vrsqrt.pop %v1659
      %v1663 = vrsqrt.pop %v1660
      %v1664 = vmul.f32 %v1640, %v1661
      %v1665 = vmul.f32 %v1641, %v1662
      %v1666 = vmul.f32 %v1642, %v1663
      %v1668 = vlaneseq
      %v1669 = vshrl.u32 %v1668, 7
      %v1670 = vsub.s32 0, %v1669
      %v1671 = vrot.slane %v1606, %v1670
      %v1673 = vmul.f32 %v1664, %v1671
      %v1674 = vmul.f32 %v1665, %v1671
      %v1675 = vmul.f32 %v1666, %v1671
      %v1677 = vlaneseq
      %v1678 = vshrl.u32 %v1677, 7
      %v1679 = vsub.s32 0, %v1678
      %v1680 = vrot.slane %v1607, %v1679
      %v1682 = vadd.f32 %v1673, %v1680
      %v1683 = vadd.f32 %v1674, %v1680
      %v1684 = vadd.f32 %v1675, %v1680
      %v1685 = vld [vmem:[%s1346] sm:$0xff]
      %v1686 = vld [vmem:[%s1346 + $0x8] sm:$0xff]
      %v1687 = vld [vmem:[%s1346 + $0x10] sm:$0xff]
      %v1688 = vld [vmem:[%s1346 + $0x18] sm:$0xff]
      %v1689 = vld [vmem:[%s1350] sm:$0x1]
      %v1691 = vlaneseq
      %v1692 = vshrl.u32 %v1691, 7
      %v1693 = vsub.s32 0, %v1692
      %v1694 = vrot.slane %v1689, %v1693
      %v1697 = vsel %vm1625, %v1682, 0
      %v1700 = vsel %vm1625, %v1683, 0
      %v1703 = vsel %vm1625, %v1684, 0
      %1705 = vmatprep.subr.mxu0 0.0
      %1706 = vmatpush1.msra.mxu0 %v1685
      %1707 = vmatprep.subr.mxu0 0.0
      %1708 = vmatpush1.msra.mxu0 %v1686
      %1709 = vmatprep.subr.mxu0 0.0
      %1710 = vmatpush1.msra.mxu0 %v1687
      %1711 = vmatprep.subr.mxu0 0.0
      %1712 = vmatpush1.msra.mxu0 %v1688
      %1713 = vmatprep.subr.mxu0 0.0
      %1714 = vmatpush1.msra.mxu0 0.0
      %1715 = vmatprep.subr.mxu0 0.0
      %1716 = vmatpush1.msra.mxu0 0.0
      %1717 = vmatprep.subr.mxu0 0.0
      %1718 = vmatpush1.msra.mxu0 0.0
      %1719 = vmatprep.subr.mxu0 0.0
      %1720 = vmatpush1.msra.mxu0 0.0
      %1721 = vmatprep.subr.mxu0 0.0
      %1722 = vmatpush1.msra.mxu0 0.0
      %1723 = vmatprep.subr.mxu0 0.0
      %1724 = vmatpush1.msra.mxu0 0.0
      %1725 = vmatprep.subr.mxu0 0.0
      %1726 = vmatpush1.msra.mxu0 0.0
      %1727 = vmatprep.subr.mxu0 0.0
      %1728 = vmatpush1.msra.mxu0 0.0
      %1729 = vmatprep.subr.mxu0 0.0
      %1730 = vmatpush1.msra.mxu0 0.0
      %1731 = vmatprep.subr.mxu0 0.0
      %1732 = vmatpush1.msra.mxu0 0.0
      %1733 = vmatprep.subr.mxu0 0.0
      %1734 = vmatpush1.msra.mxu0 0.0
      %1735 = vmatprep.subr.mxu0 0.0
      %1736 = vmatpush1.msra.mxu0 0.0
      %1737 = vmatprep.subr.mxu0 0.0
      %1738 = vmatpush1.msra.mxu0 0.0
      %1739 = vmatprep.subr.mxu0 0.0
      %1740 = vmatpush1.msra.mxu0 0.0
      %1741 = vmatprep.subr.mxu0 0.0
      %1742 = vmatpush1.msra.mxu0 0.0
      %1743 = vmatprep.subr.mxu0 0.0
      %1744 = vmatpush1.msra.mxu0 0.0
      %1745 = vmatprep.subr.mxu0 0.0
      %1746 = vmatpush1.msra.mxu0 0.0
      %1747 = vmatprep.subr.mxu0 0.0
      %1748 = vmatpush1.msra.mxu0 0.0
      %1749 = vmatprep.subr.mxu0 0.0
      %1750 = vmatpush1.msra.mxu0 0.0
      %1751 = vmatprep.subr.mxu0 0.0
      %1752 = vmatpush1.msra.mxu0 0.0
      %1753 = vmatprep.subr.mxu0 0.0
      %1754 = vmatpush1.msra.mxu0 0.0
      %1755 = vmatprep.subr.mxu0 0.0
      %1756 = vmatpush1.msra.mxu0 0.0
      %1757 = vmatprep.subr.mxu0 0.0
      %1758 = vmatpush1.msra.mxu0 0.0
      %1759 = vmatprep.subr.mxu0 0.0
      %1760 = vmatpush1.msra.mxu0 0.0
      %1761 = vmatprep.subr.mxu0 0.0
      %1762 = vmatpush1.msra.mxu0 0.0
      %1763 = vmatprep.subr.mxu0 0.0
      %1764 = vmatpush1.msra.mxu0 0.0
      %1765 = vmatprep.subr.mxu0 0.0
      %1766 = vmatpush1.msra.mxu0 0.0
      %1767 = vmatprep.subr.mxu0 0.0
      %1768 = vmatpush1.msra.mxu0 0.0
      %1769 = vmatprep.mubr.f32.mxu0 0.0
      %1770 = vmatmul.mubr.f32.gmra.mrb[0].mxu0 %v1697
      %v1771 = vpop.f32.mrb[0].mxu0
      %v1772 = vadd.f32 %v1694, %v1771
      %v1773 = vpop.f32.mrb[0].mxu0
      %1774 = vmatprep.mubr.f32.mxu0 0.0
      %1775 = vmatmul.mubr.f32.gmra.mrb[0].mxu0 %v1700
      %v1776 = vpop.f32.mrb[0].mxu0
      %v1777 = vadd.f32 %v1694, %v1776
      %v1778 = vpop.f32.mrb[0].mxu0
      %1779 = vmatprep.mubr.f32.mxu0 0.0
      %1780 = vmatmul.mubr.f32.gmra.mrb[0].mxu0 %v1703
      %v1781 = vpop.f32.mrb[0].mxu0
      %v1782 = vadd.f32 %v1694, %v1781
      %v1783 = vpop.f32.mrb[0].mxu0
      %1784 = vdwg.mxu0
      %v1785 = vld [vmem:[%s1355] sm:$0xff]
      %v1786 = vld [vmem:[%s1355 + $0x8] sm:$0xff]
      %v1787 = vld [vmem:[%s1355 + $0x10] sm:$0xff]
      %v1788 = vld [vmem:[%s1355 + $0x18] sm:$0xff]
      %v1789 = vld [vmem:[%s1359] sm:$0x1]
      %v1791 = vlaneseq
      %v1792 = vshrl.u32 %v1791, 7
      %v1793 = vsub.s32 0, %v1792
      %v1794 = vrot.slane %v1789, %v1793
      %1796 = vmatprep.subr.mxu0 0.0
      %1797 = vmatpush1.msra.mxu0 %v1785
      %1798 = vmatprep.subr.mxu0 0.0
      %1799 = vmatpush1.msra.mxu0 %v1786
      %1800 = vmatprep.subr.mxu0 0.0
      %1801 = vmatpush1.msra.mxu0 %v1787
      %1802 = vmatprep.subr.mxu0 0.0
      %1803 = vmatpush1.msra.mxu0 %v1788
      %1804 = vmatprep.subr.mxu0 0.0
      %1805 = vmatpush1.msra.mxu0 0.0
      %1806 = vmatprep.subr.mxu0 0.0
      %1807 = vmatpush1.msra.mxu0 0.0
      %1808 = vmatprep.subr.mxu0 0.0
      %1809 = vmatpush1.msra.mxu0 0.0
      %1810 = vmatprep.subr.mxu0 0.0
      %1811 = vmatpush1.msra.mxu0 0.0
      %1812 = vmatprep.subr.mxu0 0.0
      %1813 = vmatpush1.msra.mxu0 0.0
      %1814 = vmatprep.subr.mxu0 0.0
      %1815 = vmatpush1.msra.mxu0 0.0
      %1816 = vmatprep.subr.mxu0 0.0
      %1817 = vmatpush1.msra.mxu0 0.0
      %1818 = vmatprep.subr.mxu0 0.0
      %1819 = vmatpush1.msra.mxu0 0.0
      %1820 = vmatprep.subr.mxu0 0.0
      %1821 = vmatpush1.msra.mxu0 0.0
      %1822 = vmatprep.subr.mxu0 0.0
      %1823 = vmatpush1.msra.mxu0 0.0
      %1824 = vmatprep.subr.mxu0 0.0
      %1825 = vmatpush1.msra.mxu0 0.0
      %1826 = vmatprep.subr.mxu0 0.0
      %1827 = vmatpush1.msra.mxu0 0.0
      %1828 = vmatprep.subr.mxu0 0.0
      %1829 = vmatpush1.msra.mxu0 0.0
      %1830 = vmatprep.subr.mxu0 0.0
      %1831 = vmatpush1.msra.mxu0 0.0
      %1832 = vmatprep.subr.mxu0 0.0
      %1833 = vmatpush1.msra.mxu0 0.0
      %1834 = vmatprep.subr.mxu0 0.0
      %1835 = vmatpush1.msra.mxu0 0.0
      %1836 = vmatprep.subr.mxu0 0.0
      %1837 = vmatpush1.msra.mxu0 0.0
      %1838 = vmatprep.subr.mxu0 0.0
      %1839 = vmatpush1.msra.mxu0 0.0
      %1840 = vmatprep.subr.mxu0 0.0
      %1841 = vmatpush1.msra.mxu0 0.0
      %1842 = vmatprep.subr.mxu0 0.0
      %1843 = vmatpush1.msra.mxu0 0.0
      %1844 = vmatprep.subr.mxu0 0.0
      %1845 = vmatpush1.msra.mxu0 0.0
      %1846 = vmatprep.subr.mxu0 0.0
      %1847 = vmatpush1.msra.mxu0 0.0
      %1848 = vmatprep.subr.mxu0 0.0
      %1849 = vmatpush1.msra.mxu0 0.0
      %1850 = vmatprep.subr.mxu0 0.0
      %1851 = vmatpush1.msra.mxu0 0.0
      %1852 = vmatprep.subr.mxu0 0.0
      %1853 = vmatpush1.msra.mxu0 0.0
      %1854 = vmatprep.subr.mxu0 0.0
      %1855 = vmatpush1.msra.mxu0 0.0
      %1856 = vmatprep.subr.mxu0 0.0
      %1857 = vmatpush1.msra.mxu0 0.0
      %1858 = vmatprep.subr.mxu0 0.0
      %1859 = vmatpush1.msra.mxu0 0.0
      %1860 = vmatprep.mubr.f32.mxu0 0.0
      %1861 = vmatmul.mubr.f32.gmra.mrb[0].mxu0 %v1697
      %v1862 = vpop.f32.mrb[0].mxu0
      %v1863 = vadd.f32 %v1794, %v1862
      %v1864 = vpop.f32.mrb[0].mxu0
      %1865 = vmatprep.mubr.f32.mxu0 0.0
      %1866 = vmatmul.mubr.f32.gmra.mrb[0].mxu0 %v1700
      %v1867 = vpop.f32.mrb[0].mxu0
      %v1868 = vadd.f32 %v1794, %v1867
      %v1869 = vpop.f32.mrb[0].mxu0
      %1870 = vmatprep.mubr.f32.mxu0 0.0
      %1871 = vmatmul.mubr.f32.gmra.mrb[0].mxu0 %v1703
      %v1872 = vpop.f32.mrb[0].mxu0
      %v1873 = vadd.f32 %v1794, %v1872
      %v1874 = vpop.f32.mrb[0].mxu0
      %1875 = vdwg.mxu0
      %v1876 = vld [vmem:[%s1364] sm:$0xff]
      %v1877 = vld [vmem:[%s1364 + $0x8] sm:$0xff]
      %v1878 = vld [vmem:[%s1364 + $0x10] sm:$0xff]
      %v1879 = vld [vmem:[%s1364 + $0x18] sm:$0xff]
      %v1880 = vld [vmem:[%s1368] sm:$0x1]
      %v1882 = vlaneseq
      %v1883 = vshrl.u32 %v1882, 7
      %v1884 = vsub.s32 0, %v1883
      %v1885 = vrot.slane %v1880, %v1884
      %1887 = vmatprep.subr.mxu0 0.0
      %1888 = vmatpush1.msra.mxu0 %v1876
      %1889 = vmatprep.subr.mxu0 0.0
      %1890 = vmatpush1.msra.mxu0 %v1877
      %1891 = vmatprep.subr.mxu0 0.0
      %1892 = vmatpush1.msra.mxu0 %v1878
      %1893 = vmatprep.subr.mxu0 0.0
      %1894 = vmatpush1.msra.mxu0 %v1879
      %1895 = vmatprep.subr.mxu0 0.0
      %1896 = vmatpush1.msra.mxu0 0.0
      %1897 = vmatprep.subr.mxu0 0.0
      %1898 = vmatpush1.msra.mxu0 0.0
      %1899 = vmatprep.subr.mxu0 0.0
      %1900 = vmatpush1.msra.mxu0 0.0
      %1901 = vmatprep.subr.mxu0 0.0
      %1902 = vmatpush1.msra.mxu0 0.0
      %1903 = vmatprep.subr.mxu0 0.0
      %1904 = vmatpush1.msra.mxu0 0.0
      %1905 = vmatprep.subr.mxu0 0.0
      %1906 = vmatpush1.msra.mxu0 0.0
      %1907 = vmatprep.subr.mxu0 0.0
      %1908 = vmatpush1.msra.mxu0 0.0
      %1909 = vmatprep.subr.mxu0 0.0
      %1910 = vmatpush1.msra.mxu0 0.0
      %1911 = vmatprep.subr.mxu0 0.0
      %1912 = vmatpush1.msra.mxu0 0.0
      %1913 = vmatprep.subr.mxu0 0.0
      %1914 = vmatpush1.msra.mxu0 0.0
      %1915 = vmatprep.subr.mxu0 0.0
      %1916 = vmatpush1.msra.mxu0 0.0
      %1917 = vmatprep.subr.mxu0 0.0
      %1918 = vmatpush1.msra.mxu0 0.0
      %1919 = vmatprep.subr.mxu0 0.0
      %1920 = vmatpush1.msra.mxu0 0.0
      %1921 = vmatprep.subr.mxu0 0.0
      %1922 = vmatpush1.msra.mxu0 0.0
      %1923 = vmatprep.subr.mxu0 0.0
      %1924 = vmatpush1.msra.mxu0 0.0
      %1925 = vmatprep.subr.mxu0 0.0
      %1926 = vmatpush1.msra.mxu0 0.0
      %1927 = vmatprep.subr.mxu0 0.0
      %1928 = vmatpush1.msra.mxu0 0.0
      %1929 = vmatprep.subr.mxu0 0.0
      %1930 = vmatpush1.msra.mxu0 0.0
      %1931 = vmatprep.subr.mxu0 0.0
      %1932 = vmatpush1.msra.mxu0 0.0
      %1933 = vmatprep.subr.mxu0 0.0
      %1934 = vmatpush1.msra.mxu0 0.0
      %1935 = vmatprep.subr.mxu0 0.0
      %1936 = vmatpush1.msra.mxu0 0.0
      %1937 = vmatprep.subr.mxu0 0.0
      %1938 = vmatpush1.msra.mxu0 0.0
      %1939 = vmatprep.subr.mxu0 0.0
      %1940 = vmatpush1.msra.mxu0 0.0
      %1941 = vmatprep.subr.mxu0 0.0
      %1942 = vmatpush1.msra.mxu0 0.0
      %1943 = vmatprep.subr.mxu0 0.0
      %1944 = vmatpush1.msra.mxu0 0.0
      %1945 = vmatprep.subr.mxu0 0.0
      %1946 = vmatpush1.msra.mxu0 0.0
      %1947 = vmatprep.subr.mxu0 0.0
      %1948 = vmatpush1.msra.mxu0 0.0
      %1949 = vmatprep.subr.mxu0 0.0
      %1950 = vmatpush1.msra.mxu0 0.0
      %1951 = vmatprep.mubr.f32.mxu0 0.0
      %1952 = vmatmul.mubr.f32.gmra.mrb[0].mxu0 %v1697
      %v1953 = vpop.f32.mrb[0].mxu0
      %v1954 = vadd.f32 %v1885, %v1953
      %v1955 = vpop.f32.mrb[0].mxu0
      %1956 = vmatprep.mubr.f32.mxu0 0.0
      %1957 = vmatmul.mubr.f32.gmra.mrb[0].mxu0 %v1700
      %v1958 = vpop.f32.mrb[0].mxu0
      %v1959 = vadd.f32 %v1885, %v1958
      %v1960 = vpop.f32.mrb[0].mxu0
      %1961 = vmatprep.mubr.f32.mxu0 0.0
      %1962 = vmatmul.mubr.f32.gmra.mrb[0].mxu0 %v1703
      %v1963 = vpop.f32.mrb[0].mxu0
      %v1964 = vadd.f32 %v1885, %v1963
      %v1965 = vpop.f32.mrb[0].mxu0
      %1966 = vdwg.mxu0
      %vm1967 = vcmask 64512
      %v1969 = vsel %vm1967, %v1772, 0
      %v1972 = vsel %vm1967, %v1777, 0
      %v1975 = vsel %vm1967, %v1782, 0
      %v1978 = vsel %vm1967, %v1863, 0
      %v1981 = vsel %vm1967, %v1868, 0
      %v1984 = vsel %vm1967, %v1873, 0
      %1986 = vmatprep.subr.mxu0 0.0
      %1987 = vmatpush1.xpose.msra.mxu0 %v1978
      %1988 = vmatprep.subr.mxu0 0.0
      %1989 = vmatpush1.xpose.msra.mxu0 %v1981
      %1990 = vmatprep.subr.mxu0 0.0
      %1991 = vmatpush1.xpose.msra.mxu0 %v1984
      %1992 = vmatprep.subr.mxu0 0.0
      %1993 = vmatpush1.xpose.msra.mxu0 0.0
      %1994 = vmatprep.subr.mxu0 0.0
      %1995 = vmatpush1.xpose.msra.mxu0 0.0
      %1996 = vmatprep.subr.mxu0 0.0
      %1997 = vmatpush1.xpose.msra.mxu0 0.0
      %1998 = vmatprep.subr.mxu0 0.0
      %1999 = vmatpush1.xpose.msra.mxu0 0.0
      %2000 = vmatprep.subr.mxu0 0.0
      %2001 = vmatpush1.xpose.msra.mxu0 0.0
      %2002 = vmatprep.subr.mxu0 0.0
      %2003 = vmatpush1.xpose.msra.mxu0 0.0
      %2004 = vmatprep.subr.mxu0 0.0
      %2005 = vmatpush1.xpose.msra.mxu0 0.0
      %2006 = vmatprep.subr.mxu0 0.0
      %2007 = vmatpush1.xpose.msra.mxu0 0.0
      %2008 = vmatprep.subr.mxu0 0.0
      %2009 = vmatpush1.xpose.msra.mxu0 0.0
      %2010 = vmatprep.subr.mxu0 0.0
      %2011 = vmatpush1.xpose.msra.mxu0 0.0
      %2012 = vmatprep.subr.mxu0 0.0
      %2013 = vmatpush1.xpose.msra.mxu0 0.0
      %2014 = vmatprep.subr.mxu0 0.0
      %2015 = vmatpush1.xpose.msra.mxu0 0.0
      %2016 = vmatprep.subr.mxu0 0.0
      %2017 = vmatpush1.xpose.msra.mxu0 0.0
      %2018 = vmatprep.subr.mxu0 0.0
      %2019 = vmatpush1.xpose.msra.mxu0 0.0
      %2020 = vmatprep.subr.mxu0 0.0
      %2021 = vmatpush1.xpose.msra.mxu0 0.0
      %2022 = vmatprep.subr.mxu0 0.0
      %2023 = vmatpush1.xpose.msra.mxu0 0.0
      %2024 = vmatprep.subr.mxu0 0.0
      %2025 = vmatpush1.xpose.msra.mxu0 0.0
      %2026 = vmatprep.subr.mxu0 0.0
      %2027 = vmatpush1.xpose.msra.mxu0 0.0
      %2028 = vmatprep.subr.mxu0 0.0
      %2029 = vmatpush1.xpose.msra.mxu0 0.0
      %2030 = vmatprep.subr.mxu0 0.0
      %2031 = vmatpush1.xpose.msra.mxu0 0.0
      %2032 = vmatprep.subr.mxu0 0.0
      %2033 = vmatpush1.xpose.msra.mxu0 0.0
      %2034 = vmatprep.subr.mxu0 0.0
      %2035 = vmatpush1.xpose.msra.mxu0 0.0
      %2036 = vmatprep.subr.mxu0 0.0
      %2037 = vmatpush1.xpose.msra.mxu0 0.0
      %2038 = vmatprep.subr.mxu0 0.0
      %2039 = vmatpush1.xpose.msra.mxu0 0.0
      %2040 = vmatprep.subr.mxu0 0.0
      %2041 = vmatpush1.xpose.msra.mxu0 0.0
      %2042 = vmatprep.subr.mxu0 0.0
      %2043 = vmatpush1.xpose.msra.mxu0 0.0
      %2044 = vmatprep.subr.mxu0 0.0
      %2045 = vmatpush1.xpose.msra.mxu0 0.0
      %2046 = vmatprep.subr.mxu0 0.0
      %2047 = vmatpush1.xpose.msra.mxu0 0.0
      %2048 = vmatprep.subr.mxu0 0.0
      %2049 = vmatpush1.xpose.msra.mxu0 0.0
      %2050 = vmatprep.mubr.f32.mxu0 0.0
      %2051 = vmatmul.mubr.f32.gmra.mrb[0].mxu0 %v1969
      %v2052 = vpop.f32.mrb[0].mxu0
      %v2053 = vadd.f32 0.0, %v2052
      %v2054 = vpop.f32.mrb[0].mxu0
      %2055 = vmatprep.mubr.f32.mxu0 0.0
      %2056 = vmatmul.mubr.f32.gmra.mrb[0].mxu0 %v1972
      %v2057 = vpop.f32.mrb[0].mxu0
      %v2058 = vadd.f32 0.0, %v2057
      %v2059 = vpop.f32.mrb[0].mxu0
      %2060 = vmatprep.mubr.f32.mxu0 0.0
      %2061 = vmatmul.mubr.f32.gmra.mrb[0].mxu0 %v1975
      %v2062 = vpop.f32.mrb[0].mxu0
      %v2063 = vadd.f32 0.0, %v2062
      %v2064 = vpop.f32.mrb[0].mxu0
      %2065 = vdwg.mxu0
      %vm2066 = vcmask 138240
      %v2067 = vsel %vm2066, %v2053, -inf
      %2068 = vmax.xlane.f32.xlu0 %v2067
      %v2069 = vpop.xlane.xlu0 %2068
      %v2070 = vsel %vm2066, %v2058, -inf
      %2071 = vmax.xlane.f32.xlu0 %v2070
      %v2072 = vpop.xlane.xlu0 %2071
      %vm2073 = vcmask 131072
      %v2074 = vsel %vm2073, %v2063, -inf
      %2075 = vmax.xlane.f32.xlu0 %v2074
      %v2076 = vpop.xlane.xlu0 %2075
      %v2077 = vsub.f32 %v2053, %v2069
      %v2078 = vsub.f32 %v2058, %v2072
      %v2079 = vsub.f32 %v2063, %v2076
      %v2080 = vmul.f32 %v2077, 1.442695
      %v2081 = vpow.pop %v2080
      %v2082 = vmul.f32 %v2078, 1.442695
      %v2083 = vpow.pop %v2082
      %v2084 = vmul.f32 %v2079, 1.442695
      %v2085 = vpow.pop %v2084
      %v2086 = vsel %vm2066, %v2081, 0.0
      %2087 = vadd.xlane.f32.xlu0 %v2086
      %v2088 = vpop.xlane.xlu0 %2087
      %v2089 = vsel %vm2066, %v2083, 0.0
      %2090 = vadd.xlane.f32.xlu0 %v2089
      %v2091 = vpop.xlane.xlu0 %2090
      %v2092 = vsel %vm2073, %v2085, 0.0
      %2093 = vadd.xlane.f32.xlu0 %v2092
      %v2094 = vpop.xlane.xlu0 %2093
      %v2095 = vrcp.pop %v2088
      %v2096 = vmul.f32 %v2081, %v2095
      %v2097 = vrcp.pop %v2091
      %v2098 = vmul.f32 %v2083, %v2097
      %v2099 = vrcp.pop %v2094
      %v2100 = vmul.f32 %v2085, %v2099
      %v2102 = vsel %vm2066, %v2096, 0
      %v2105 = vsel %vm2066, %v2098, 0
      %v2108 = vsel %vm2066, %v2100, 0
      %vm2110 = vcmask 1040384
      %v2112 = vsel %vm2110, %v1964, 0
      %2114 = vmatprep.subr.mxu0 0.0
      %2115 = vmatpush1.msra.mxu0 %v1954
      %2116 = vmatprep.subr.mxu0 0.0
      %2117 = vmatpush1.msra.mxu0 %v1959
      %2118 = vmatprep.subr.mxu0 0.0
      %2119 = vmatpush1.msra.mxu0 %v2112
      %2120 = vmatprep.subr.mxu0 0.0
      %2121 = vmatpush1.msra.mxu0 0.0
      %2122 = vmatprep.subr.mxu0 0.0
      %2123 = vmatpush1.msra.mxu0 0.0
      %2124 = vmatprep.subr.mxu0 0.0
      %2125 = vmatpush1.msra.mxu0 0.0
      %2126 = vmatprep.subr.mxu0 0.0
      %2127 = vmatpush1.msra.mxu0 0.0
      %2128 = vmatprep.subr.mxu0 0.0
      %2129 = vmatpush1.msra.mxu0 0.0
      %2130 = vmatprep.subr.mxu0 0.0
      %2131 = vmatpush1.msra.mxu0 0.0
      %2132 = vmatprep.subr.mxu0 0.0
      %2133 = vmatpush1.msra.mxu0 0.0
      %2134 = vmatprep.subr.mxu0 0.0
      %2135 = vmatpush1.msra.mxu0 0.0
      %2136 = vmatprep.subr.mxu0 0.0
      %2137 = vmatpush1.msra.mxu0 0.0
      %2138 = vmatprep.subr.mxu0 0.0
      %2139 = vmatpush1.msra.mxu0 0.0
      %2140 = vmatprep.subr.mxu0 0.0
      %2141 = vmatpush1.msra.mxu0 0.0
      %2142 = vmatprep.subr.mxu0 0.0
      %2143 = vmatpush1.msra.mxu0 0.0
      %2144 = vmatprep.subr.mxu0 0.0
      %2145 = vmatpush1.msra.mxu0 0.0
      %2146 = vmatprep.subr.mxu0 0.0
      %2147 = vmatpush1.msra.mxu0 0.0
      %2148 = vmatprep.subr.mxu0 0.0
      %2149 = vmatpush1.msra.mxu0 0.0
      %2150 = vmatprep.subr.mxu0 0.0
      %2151 = vmatpush1.msra.mxu0 0.0
      %2152 = vmatprep.subr.mxu0 0.0
      %2153 = vmatpush1.msra.mxu0 0.0
      %2154 = vmatprep.subr.mxu0 0.0
      %2155 = vmatpush1.msra.mxu0 0.0
      %2156 = vmatprep.subr.mxu0 0.0
      %2157 = vmatpush1.msra.mxu0 0.0
      %2158 = vmatprep.subr.mxu0 0.0
      %2159 = vmatpush1.msra.mxu0 0.0
      %2160 = vmatprep.subr.mxu0 0.0
      %2161 = vmatpush1.msra.mxu0 0.0
      %2162 = vmatprep.subr.mxu0 0.0
      %2163 = vmatpush1.msra.mxu0 0.0
      %2164 = vmatprep.subr.mxu0 0.0
      %2165 = vmatpush1.msra.mxu0 0.0
      %2166 = vmatprep.subr.mxu0 0.0
      %2167 = vmatpush1.msra.mxu0 0.0
      %2168 = vmatprep.subr.mxu0 0.0
      %2169 = vmatpush1.msra.mxu0 0.0
      %2170 = vmatprep.subr.mxu0 0.0
      %2171 = vmatpush1.msra.mxu0 0.0
      %2172 = vmatprep.subr.mxu0 0.0
      %2173 = vmatpush1.msra.mxu0 0.0
      %2174 = vmatprep.subr.mxu0 0.0
      %2175 = vmatpush1.msra.mxu0 0.0
      %2176 = vmatprep.subr.mxu0 0.0
      %2177 = vmatpush1.msra.mxu0 0.0
      %2178 = vmatprep.mubr.f32.mxu0 0.0
      %2179 = vmatmul.mubr.f32.gmra.mrb[0].mxu0 %v2102
      %v2180 = vpop.f32.mrb[0].mxu0
      %v2181 = vadd.f32 0.0, %v2180
      %v2182 = vpop.f32.mrb[0].mxu0
      %2183 = vmatprep.mubr.f32.mxu0 0.0
      %2184 = vmatmul.mubr.f32.gmra.mrb[0].mxu0 %v2105
      %v2185 = vpop.f32.mrb[0].mxu0
      %v2186 = vadd.f32 0.0, %v2185
      %v2187 = vpop.f32.mrb[0].mxu0
      %2188 = vmatprep.mubr.f32.mxu0 0.0
      %2189 = vmatmul.mubr.f32.gmra.mrb[0].mxu0 %v2108
      %v2190 = vpop.f32.mrb[0].mxu0
      %v2191 = vadd.f32 0.0, %v2190
      %v2192 = vpop.f32.mrb[0].mxu0
      %2193 = vdwg.mxu0
      %v2194 = vld [vmem:[%s1373] sm:$0xff]
      %s2195 = scalar_lea.vmem %s1346, 32
      %v2196 = vld [vmem:[%s2195] sm:$0xff]
      %v2197 = vld [vmem:[%s2195 + $0x8] sm:$0xff]
      %v2198 = vld [vmem:[%s2195 + $0x10] sm:$0xff]
      %v2199 = vld [vmem:[%s2195 + $0x18] sm:$0xff]
      %s2200 = scalar_lea.vmem %s1350, 1
      %v2201 = vld [vmem:[%s2200] sm:$0x1]
      %v2203 = vlaneseq
      %v2204 = vshrl.u32 %v2203, 7
      %v2205 = vsub.s32 0, %v2204
      %v2206 = vrot.slane %v2201, %v2205
      %2208 = vmatprep.subr.mxu0 0.0
      %2209 = vmatpush1.msra.mxu0 %v2196
      %2210 = vmatprep.subr.mxu0 0.0
      %2211 = vmatpush1.msra.mxu0 %v2197
      %2212 = vmatprep.subr.mxu0 0.0
      %2213 = vmatpush1.msra.mxu0 %v2198
      %2214 = vmatprep.subr.mxu0 0.0
      %2215 = vmatpush1.msra.mxu0 %v2199
      %2216 = vmatprep.subr.mxu0 0.0
      %2217 = vmatpush1.msra.mxu0 0.0
      %2218 = vmatprep.subr.mxu0 0.0
      %2219 = vmatpush1.msra.mxu0 0.0
      %2220 = vmatprep.subr.mxu0 0.0
      %2221 = vmatpush1.msra.mxu0 0.0
      %2222 = vmatprep.subr.mxu0 0.0
      %2223 = vmatpush1.msra.mxu0 0.0
      %2224 = vmatprep.subr.mxu0 0.0
      %2225 = vmatpush1.msra.mxu0 0.0
      %2226 = vmatprep.subr.mxu0 0.0
      %2227 = vmatpush1.msra.mxu0 0.0
      %2228 = vmatprep.subr.mxu0 0.0
      %2229 = vmatpush1.msra.mxu0 0.0
      %2230 = vmatprep.subr.mxu0 0.0
      %2231 = vmatpush1.msra.mxu0 0.0
      %2232 = vmatprep.subr.mxu0 0.0
      %2233 = vmatpush1.msra.mxu0 0.0
      %2234 = vmatprep.subr.mxu0 0.0
      %2235 = vmatpush1.msra.mxu0 0.0
      %2236 = vmatprep.subr.mxu0 0.0
      %2237 = vmatpush1.msra.mxu0 0.0
      %2238 = vmatprep.subr.mxu0 0.0
      %2239 = vmatpush1.msra.mxu0 0.0
      %2240 = vmatprep.subr.mxu0 0.0
      %2241 = vmatpush1.msra.mxu0 0.0
      %2242 = vmatprep.subr.mxu0 0.0
      %2243 = vmatpush1.msra.mxu0 0.0
      %2244 = vmatprep.subr.mxu0 0.0
      %2245 = vmatpush1.msra.mxu0 0.0
      %2246 = vmatprep.subr.mxu0 0.0
      %2247 = vmatpush1.msra.mxu0 0.0
      %2248 = vmatprep.subr.mxu0 0.0
      %2249 = vmatpush1.msra.mxu0 0.0
      %2250 = vmatprep.subr.mxu0 0.0
      %2251 = vmatpush1.msra.mxu0 0.0
      %2252 = vmatprep.subr.mxu0 0.0
      %2253 = vmatpush1.msra.mxu0 0.0
      %2254 = vmatprep.subr.mxu0 0.0
      %2255 = vmatpush1.msra.mxu0 0.0
      %2256 = vmatprep.subr.mxu0 0.0
      %2257 = vmatpush1.msra.mxu0 0.0
      %2258 = vmatprep.subr.mxu0 0.0
      %2259 = vmatpush1.msra.mxu0 0.0
      %2260 = vmatprep.subr.mxu0 0.0
      %2261 = vmatpush1.msra.mxu0 0.0
      %2262 = vmatprep.subr.mxu0 0.0
      %2263 = vmatpush1.msra.mxu0 0.0
      %2264 = vmatprep.subr.mxu0 0.0
      %2265 = vmatpush1.msra.mxu0 0.0
      %2266 = vmatprep.subr.mxu0 0.0
      %2267 = vmatpush1.msra.mxu0 0.0
      %2268 = vmatprep.subr.mxu0 0.0
      %2269 = vmatpush1.msra.mxu0 0.0
      %2270 = vmatprep.subr.mxu0 0.0
      %2271 = vmatpush1.msra.mxu0 0.0
      %2272 = vmatprep.mubr.f32.mxu0 0.0
      %2273 = vmatmul.mubr.f32.gmra.mrb[0].mxu0 %v1697
      %v2274 = vpop.f32.mrb[0].mxu0
      %v2275 = vadd.f32 %v2206, %v2274
      %v2276 = vpop.f32.mrb[0].mxu0
      %2277 = vmatprep.mubr.f32.mxu0 0.0
      %2278 = vmatmul.mubr.f32.gmra.mrb[0].mxu0 %v1700
      %v2279 = vpop.f32.mrb[0].mxu0
      %v2280 = vadd.f32 %v2206, %v2279
      %v2281 = vpop.f32.mrb[0].mxu0
      %2282 = vmatprep.mubr.f32.mxu0 0.0
      %2283 = vmatmul.mubr.f32.gmra.mrb[0].mxu0 %v1703
      %v2284 = vpop.f32.mrb[0].mxu0
      %v2285 = vadd.f32 %v2206, %v2284
      %v2286 = vpop.f32.mrb[0].mxu0
      %2287 = vdwg.mxu0
      %s2288 = scalar_lea.vmem %s1355, 32
      %v2289 = vld [vmem:[%s2288] sm:$0xff]
      %v2290 = vld [vmem:[%s2288 + $0x8] sm:$0xff]
      %v2291 = vld [vmem:[%s2288 + $0x10] sm:$0xff]
      %v2292 = vld [vmem:[%s2288 + $0x18] sm:$0xff]
      %s2293 = scalar_lea.vmem %s1359, 1
      %v2294 = vld [vmem:[%s2293] sm:$0x1]
      %v2296 = vlaneseq
      %v2297 = vshrl.u32 %v2296, 7
      %v2298 = vsub.s32 0, %v2297
      %v2299 = vrot.slane %v2294, %v2298
      %2301 = vmatprep.subr.mxu0 0.0
      %2302 = vmatpush1.msra.mxu0 %v2289
      %2303 = vmatprep.subr.mxu0 0.0
      %2304 = vmatpush1.msra.mxu0 %v2290
      %2305 = vmatprep.subr.mxu0 0.0
      %2306 = vmatpush1.msra.mxu0 %v2291
      %2307 = vmatprep.subr.mxu0 0.0
      %2308 = vmatpush1.msra.mxu0 %v2292
      %2309 = vmatprep.subr.mxu0 0.0
      %2310 = vmatpush1.msra.mxu0 0.0
      %2311 = vmatprep.subr.mxu0 0.0
      %2312 = vmatpush1.msra.mxu0 0.0
      %2313 = vmatprep.subr.mxu0 0.0
      %2314 = vmatpush1.msra.mxu0 0.0
      %2315 = vmatprep.subr.mxu0 0.0
      %2316 = vmatpush1.msra.mxu0 0.0
      %2317 = vmatprep.subr.mxu0 0.0
      %2318 = vmatpush1.msra.mxu0 0.0
      %2319 = vmatprep.subr.mxu0 0.0
      %2320 = vmatpush1.msra.mxu0 0.0
      %2321 = vmatprep.subr.mxu0 0.0
      %2322 = vmatpush1.msra.mxu0 0.0
      %2323 = vmatprep.subr.mxu0 0.0
      %2324 = vmatpush1.msra.mxu0 0.0
      %2325 = vmatprep.subr.mxu0 0.0
      %2326 = vmatpush1.msra.mxu0 0.0
      %2327 = vmatprep.subr.mxu0 0.0
      %2328 = vmatpush1.msra.mxu0 0.0
      %2329 = vmatprep.subr.mxu0 0.0
      %2330 = vmatpush1.msra.mxu0 0.0
      %2331 = vmatprep.subr.mxu0 0.0
      %2332 = vmatpush1.msra.mxu0 0.0
      %2333 = vmatprep.subr.mxu0 0.0
      %2334 = vmatpush1.msra.mxu0 0.0
      %2335 = vmatprep.subr.mxu0 0.0
      %2336 = vmatpush1.msra.mxu0 0.0
      %2337 = vmatprep.subr.mxu0 0.0
      %2338 = vmatpush1.msra.mxu0 0.0
      %2339 = vmatprep.subr.mxu0 0.0
      %2340 = vmatpush1.msra.mxu0 0.0
      %2341 = vmatprep.subr.mxu0 0.0
      %2342 = vmatpush1.msra.mxu0 0.0
      %2343 = vmatprep.subr.mxu0 0.0
      %2344 = vmatpush1.msra.mxu0 0.0
      %2345 = vmatprep.subr.mxu0 0.0
      %2346 = vmatpush1.msra.mxu0 0.0
      %2347 = vmatprep.subr.mxu0 0.0
      %2348 = vmatpush1.msra.mxu0 0.0
      %2349 = vmatprep.subr.mxu0 0.0
      %2350 = vmatpush1.msra.mxu0 0.0
      %2351 = vmatprep.subr.mxu0 0.0
      %2352 = vmatpush1.msra.mxu0 0.0
      %2353 = vmatprep.subr.mxu0 0.0
      %2354 = vmatpush1.msra.mxu0 0.0
      %2355 = vmatprep.subr.mxu0 0.0
      %2356 = vmatpush1.msra.mxu0 0.0
      %2357 = vmatprep.subr.mxu0 0.0
      %2358 = vmatpush1.msra.mxu0 0.0
      %2359 = vmatprep.subr.mxu0 0.0
      %2360 = vmatpush1.msra.mxu0 0.0
      %2361 = vmatprep.subr.mxu0 0.0
      %2362 = vmatpush1.msra.mxu0 0.0
      %2363 = vmatprep.subr.mxu0 0.0
      %2364 = vmatpush1.msra.mxu0 0.0
      %2365 = vmatprep.mubr.f32.mxu0 0.0
      %2366 = vmatmul.mubr.f32.gmra.mrb[0].mxu0 %v1697
      %v2367 = vpop.f32.mrb[0].mxu0
      %v2368 = vadd.f32 %v2299, %v2367
      %v2369 = vpop.f32.mrb[0].mxu0
      %2370 = vmatprep.mubr.f32.mxu0 0.0
      %2371 = vmatmul.mubr.f32.gmra.mrb[0].mxu0 %v1700
      %v2372 = vpop.f32.mrb[0].mxu0
      %v2373 = vadd.f32 %v2299, %v2372
      %v2374 = vpop.f32.mrb[0].mxu0
      %2375 = vmatprep.mubr.f32.mxu0 0.0
      %2376 = vmatmul.mubr.f32.gmra.mrb[0].mxu0 %v1703
      %v2377 = vpop.f32.mrb[0].mxu0
      %v2378 = vadd.f32 %v2299, %v2377
      %v2379 = vpop.f32.mrb[0].mxu0
      %2380 = vdwg.mxu0
      %s2381 = scalar_lea.vmem %s1364, 32
      %v2382 = vld [vmem:[%s2381] sm:$0xff]
      %v2383 = vld [vmem:[%s2381 + $0x8] sm:$0xff]
      %v2384 = vld [vmem:[%s2381 + $0x10] sm:$0xff]
      %v2385 = vld [vmem:[%s2381 + $0x18] sm:$0xff]
      %s2386 = scalar_lea.vmem %s1368, 1
      %v2387 = vld [vmem:[%s2386] sm:$0x1]
      %v2389 = vlaneseq
      %v2390 = vshrl.u32 %v2389, 7
      %v2391 = vsub.s32 0, %v2390
      %v2392 = vrot.slane %v2387, %v2391
      %2394 = vmatprep.subr.mxu0 0.0
      %2395 = vmatpush1.msra.mxu0 %v2382
      %2396 = vmatprep.subr.mxu0 0.0
      %2397 = vmatpush1.msra.mxu0 %v2383
      %2398 = vmatprep.subr.mxu0 0.0
      %2399 = vmatpush1.msra.mxu0 %v2384
      %2400 = vmatprep.subr.mxu0 0.0
      %2401 = vmatpush1.msra.mxu0 %v2385
      %2402 = vmatprep.subr.mxu0 0.0
      %2403 = vmatpush1.msra.mxu0 0.0
      %2404 = vmatprep.subr.mxu0 0.0
      %2405 = vmatpush1.msra.mxu0 0.0
      %2406 = vmatprep.subr.mxu0 0.0
      %2407 = vmatpush1.msra.mxu0 0.0
      %2408 = vmatprep.subr.mxu0 0.0
      %2409 = vmatpush1.msra.mxu0 0.0
      %2410 = vmatprep.subr.mxu0 0.0
      %2411 = vmatpush1.msra.mxu0 0.0
      %2412 = vmatprep.subr.mxu0 0.0
      %2413 = vmatpush1.msra.mxu0 0.0
      %2414 = vmatprep.subr.mxu0 0.0
      %2415 = vmatpush1.msra.mxu0 0.0
      %2416 = vmatprep.subr.mxu0 0.0
      %2417 = vmatpush1.msra.mxu0 0.0
      %2418 = vmatprep.subr.mxu0 0.0
      %2419 = vmatpush1.msra.mxu0 0.0
      %2420 = vmatprep.subr.mxu0 0.0
      %2421 = vmatpush1.msra.mxu0 0.0
      %2422 = vmatprep.subr.mxu0 0.0
      %2423 = vmatpush1.msra.mxu0 0.0
      %2424 = vmatprep.subr.mxu0 0.0
      %2425 = vmatpush1.msra.mxu0 0.0
      %2426 = vmatprep.subr.mxu0 0.0
      %2427 = vmatpush1.msra.mxu0 0.0
      %2428 = vmatprep.subr.mxu0 0.0
      %2429 = vmatpush1.msra.mxu0 0.0
      %2430 = vmatprep.subr.mxu0 0.0
      %2431 = vmatpush1.msra.mxu0 0.0
      %2432 = vmatprep.subr.mxu0 0.0
      %2433 = vmatpush1.msra.mxu0 0.0
      %2434 = vmatprep.subr.mxu0 0.0
      %2435 = vmatpush1.msra.mxu0 0.0
      %2436 = vmatprep.subr.mxu0 0.0
      %2437 = vmatpush1.msra.mxu0 0.0
      %2438 = vmatprep.subr.mxu0 0.0
      %2439 = vmatpush1.msra.mxu0 0.0
      %2440 = vmatprep.subr.mxu0 0.0
      %2441 = vmatpush1.msra.mxu0 0.0
      %2442 = vmatprep.subr.mxu0 0.0
      %2443 = vmatpush1.msra.mxu0 0.0
      %2444 = vmatprep.subr.mxu0 0.0
      %2445 = vmatpush1.msra.mxu0 0.0
      %2446 = vmatprep.subr.mxu0 0.0
      %2447 = vmatpush1.msra.mxu0 0.0
      %2448 = vmatprep.subr.mxu0 0.0
      %2449 = vmatpush1.msra.mxu0 0.0
      %2450 = vmatprep.subr.mxu0 0.0
      %2451 = vmatpush1.msra.mxu0 0.0
      %2452 = vmatprep.subr.mxu0 0.0
      %2453 = vmatpush1.msra.mxu0 0.0
      %2454 = vmatprep.subr.mxu0 0.0
      %2455 = vmatpush1.msra.mxu0 0.0
      %2456 = vmatprep.subr.mxu0 0.0
      %2457 = vmatpush1.msra.mxu0 0.0
      %2458 = vmatprep.mubr.f32.mxu0 0.0
      %2459 = vmatmul.mubr.f32.gmra.mrb[0].mxu0 %v1697
      %v2460 = vpop.f32.mrb[0].mxu0
      %v2461 = vadd.f32 %v2392, %v2460
      %v2462 = vpop.f32.mrb[0].mxu0
      %2463 = vmatprep.mubr.f32.mxu0 0.0
      %2464 = vmatmul.mubr.f32.gmra.mrb[0].mxu0 %v1700
      %v2465 = vpop.f32.mrb[0].mxu0
      %v2466 = vadd.f32 %v2392, %v2465
      %v2467 = vpop.f32.mrb[0].mxu0
      %2468 = vmatprep.mubr.f32.mxu0 0.0
      %2469 = vmatmul.mubr.f32.gmra.mrb[0].mxu0 %v1703
      %v2470 = vpop.f32.mrb[0].mxu0
      %v2471 = vadd.f32 %v2392, %v2470
      %v2472 = vpop.f32.mrb[0].mxu0
      %2473 = vdwg.mxu0
      %v2475 = vsel %vm1967, %v2275, 0
      %v2478 = vsel %vm1967, %v2280, 0
      %v2481 = vsel %vm1967, %v2285, 0
      %v2484 = vsel %vm1967, %v2368, 0
      %v2487 = vsel %vm1967, %v2373, 0
      %v2490 = vsel %vm1967, %v2378, 0
      %2492 = vmatprep.subr.mxu0 0.0
      %2493 = vmatpush1.xpose.msra.mxu0 %v2484
      %2494 = vmatprep.subr.mxu0 0.0
      %2495 = vmatpush1.xpose.msra.mxu0 %v2487
      %2496 = vmatprep.subr.mxu0 0.0
      %2497 = vmatpush1.xpose.msra.mxu0 %v2490
      %2498 = vmatprep.subr.mxu0 0.0
      %2499 = vmatpush1.xpose.msra.mxu0 0.0
      %2500 = vmatprep.subr.mxu0 0.0
      %2501 = vmatpush1.xpose.msra.mxu0 0.0
      %2502 = vmatprep.subr.mxu0 0.0
      %2503 = vmatpush1.xpose.msra.mxu0 0.0
      %2504 = vmatprep.subr.mxu0 0.0
      %2505 = vmatpush1.xpose.msra.mxu0 0.0
      %2506 = vmatprep.subr.mxu0 0.0
      %2507 = vmatpush1.xpose.msra.mxu0 0.0
      %2508 = vmatprep.subr.mxu0 0.0
      %2509 = vmatpush1.xpose.msra.mxu0 0.0
      %2510 = vmatprep.subr.mxu0 0.0
      %2511 = vmatpush1.xpose.msra.mxu0 0.0
      %2512 = vmatprep.subr.mxu0 0.0
      %2513 = vmatpush1.xpose.msra.mxu0 0.0
      %2514 = vmatprep.subr.mxu0 0.0
      %2515 = vmatpush1.xpose.msra.mxu0 0.0
      %2516 = vmatprep.subr.mxu0 0.0
      %2517 = vmatpush1.xpose.msra.mxu0 0.0
      %2518 = vmatprep.subr.mxu0 0.0
      %2519 = vmatpush1.xpose.msra.mxu0 0.0
      %2520 = vmatprep.subr.mxu0 0.0
      %2521 = vmatpush1.xpose.msra.mxu0 0.0
      %2522 = vmatprep.subr.mxu0 0.0
      %2523 = vmatpush1.xpose.msra.mxu0 0.0
      %2524 = vmatprep.subr.mxu0 0.0
      %2525 = vmatpush1.xpose.msra.mxu0 0.0
      %2526 = vmatprep.subr.mxu0 0.0
      %2527 = vmatpush1.xpose.msra.mxu0 0.0
      %2528 = vmatprep.subr.mxu0 0.0
      %2529 = vmatpush1.xpose.msra.mxu0 0.0
      %2530 = vmatprep.subr.mxu0 0.0
      %2531 = vmatpush1.xpose.msra.mxu0 0.0
      %2532 = vmatprep.subr.mxu0 0.0
      %2533 = vmatpush1.xpose.msra.mxu0 0.0
      %2534 = vmatprep.subr.mxu0 0.0
      %2535 = vmatpush1.xpose.msra.mxu0 0.0
      %2536 = vmatprep.subr.mxu0 0.0
      %2537 = vmatpush1.xpose.msra.mxu0 0.0
      %2538 = vmatprep.subr.mxu0 0.0
      %2539 = vmatpush1.xpose.msra.mxu0 0.0
      %2540 = vmatprep.subr.mxu0 0.0
      %2541 = vmatpush1.xpose.msra.mxu0 0.0
      %2542 = vmatprep.subr.mxu0 0.0
      %2543 = vmatpush1.xpose.msra.mxu0 0.0
      %2544 = vmatprep.subr.mxu0 0.0
      %2545 = vmatpush1.xpose.msra.mxu0 0.0
      %2546 = vmatprep.subr.mxu0 0.0
      %2547 = vmatpush1.xpose.msra.mxu0 0.0
      %2548 = vmatprep.subr.mxu0 0.0
      %2549 = vmatpush1.xpose.msra.mxu0 0.0
      %2550 = vmatprep.subr.mxu0 0.0
      %2551 = vmatpush1.xpose.msra.mxu0 0.0
      %2552 = vmatprep.subr.mxu0 0.0
      %2553 = vmatpush1.xpose.msra.mxu0 0.0
      %2554 = vmatprep.subr.mxu0 0.0
      %2555 = vmatpush1.xpose.msra.mxu0 0.0
      %2556 = vmatprep.mubr.f32.mxu0 0.0
      %2557 = vmatmul.mubr.f32.gmra.mrb[0].mxu0 %v2475
      %v2558 = vpop.f32.mrb[0].mxu0
      %v2559 = vadd.f32 0.0, %v2558
      %v2560 = vpop.f32.mrb[0].mxu0
      %2561 = vmatprep.mubr.f32.mxu0 0.0
      %2562 = vmatmul.mubr.f32.gmra.mrb[0].mxu0 %v2478
      %v2563 = vpop.f32.mrb[0].mxu0
      %v2564 = vadd.f32 0.0, %v2563
      %v2565 = vpop.f32.mrb[0].mxu0
      %2566 = vmatprep.mubr.f32.mxu0 0.0
      %2567 = vmatmul.mubr.f32.gmra.mrb[0].mxu0 %v2481
      %v2568 = vpop.f32.mrb[0].mxu0
      %v2569 = vadd.f32 0.0, %v2568
      %v2570 = vpop.f32.mrb[0].mxu0
      %2571 = vdwg.mxu0
      %v2572 = vsel %vm2066, %v2559, -inf
      %2573 = vmax.xlane.f32.xlu0 %v2572
      %v2574 = vpop.xlane.xlu0 %2573
      %v2575 = vsel %vm2066, %v2564, -inf
      %2576 = vmax.xlane.f32.xlu0 %v2575
      %v2577 = vpop.xlane.xlu0 %2576
      %v2578 = vsel %vm2073, %v2569, -inf
      %2579 = vmax.xlane.f32.xlu0 %v2578
      %v2580 = vpop.xlane.xlu0 %2579
      %v2581 = vsub.f32 %v2559, %v2574
      %v2582 = vsub.f32 %v2564, %v2577
      %v2583 = vsub.f32 %v2569, %v2580
      %v2584 = vmul.f32 %v2581, 1.442695
      %v2585 = vpow.pop %v2584
      %v2586 = vmul.f32 %v2582, 1.442695
      %v2587 = vpow.pop %v2586
      %v2588 = vmul.f32 %v2583, 1.442695
      %v2589 = vpow.pop %v2588
      %v2590 = vsel %vm2066, %v2585, 0.0
      %2591 = vadd.xlane.f32.xlu0 %v2590
      %v2592 = vpop.xlane.xlu0 %2591
      %v2593 = vsel %vm2066, %v2587, 0.0
      %2594 = vadd.xlane.f32.xlu0 %v2593
      %v2595 = vpop.xlane.xlu0 %2594
      %v2596 = vsel %vm2073, %v2589, 0.0
      %2597 = vadd.xlane.f32.xlu0 %v2596
      %v2598 = vpop.xlane.xlu0 %2597
      %v2599 = vrcp.pop %v2592
      %v2600 = vmul.f32 %v2585, %v2599
      %v2601 = vrcp.pop %v2595
      %v2602 = vmul.f32 %v2587, %v2601
      %v2603 = vrcp.pop %v2598
      %v2604 = vmul.f32 %v2589, %v2603
      %v2606 = vsel %vm2066, %v2600, 0
      %v2609 = vsel %vm2066, %v2602, 0
      %v2612 = vsel %vm2066, %v2604, 0
      %v2615 = vsel %vm2110, %v2471, 0
      %2617 = vmatprep.subr.mxu0 0.0
      %2618 = vmatpush1.msra.mxu0 %v2461
      %2619 = vmatprep.subr.mxu0 0.0
      %2620 = vmatpush1.msra.mxu0 %v2466
      %2621 = vmatprep.subr.mxu0 0.0
      %2622 = vmatpush1.msra.mxu0 %v2615
      %2623 = vmatprep.subr.mxu0 0.0
      %2624 = vmatpush1.msra.mxu0 0.0
      %2625 = vmatprep.subr.mxu0 0.0
      %2626 = vmatpush1.msra.mxu0 0.0
      %2627 = vmatprep.subr.mxu0 0.0
      %2628 = vmatpush1.msra.mxu0 0.0
      %2629 = vmatprep.subr.mxu0 0.0
      %2630 = vmatpush1.msra.mxu0 0.0
      %2631 = vmatprep.subr.mxu0 0.0
      %2632 = vmatpush1.msra.mxu0 0.0
      %2633 = vmatprep.subr.mxu0 0.0
      %2634 = vmatpush1.msra.mxu0 0.0
      %2635 = vmatprep.subr.mxu0 0.0
      %2636 = vmatpush1.msra.mxu0 0.0
      %2637 = vmatprep.subr.mxu0 0.0
      %2638 = vmatpush1.msra.mxu0 0.0
      %2639 = vmatprep.subr.mxu0 0.0
      %2640 = vmatpush1.msra.mxu0 0.0
      %2641 = vmatprep.subr.mxu0 0.0
      %2642 = vmatpush1.msra.mxu0 0.0
      %2643 = vmatprep.subr.mxu0 0.0
      %2644 = vmatpush1.msra.mxu0 0.0
      %2645 = vmatprep.subr.mxu0 0.0
      %2646 = vmatpush1.msra.mxu0 0.0
      %2647 = vmatprep.subr.mxu0 0.0
      %2648 = vmatpush1.msra.mxu0 0.0
      %2649 = vmatprep.subr.mxu0 0.0
      %2650 = vmatpush1.msra.mxu0 0.0
      %2651 = vmatprep.subr.mxu0 0.0
      %2652 = vmatpush1.msra.mxu0 0.0
      %2653 = vmatprep.subr.mxu0 0.0
      %2654 = vmatpush1.msra.mxu0 0.0
      %2655 = vmatprep.subr.mxu0 0.0
      %2656 = vmatpush1.msra.mxu0 0.0
      %2657 = vmatprep.subr.mxu0 0.0
      %2658 = vmatpush1.msra.mxu0 0.0
      %2659 = vmatprep.subr.mxu0 0.0
      %2660 = vmatpush1.msra.mxu0 0.0
      %2661 = vmatprep.subr.mxu0 0.0
      %2662 = vmatpush1.msra.mxu0 0.0
      %2663 = vmatprep.subr.mxu0 0.0
      %2664 = vmatpush1.msra.mxu0 0.0
      %2665 = vmatprep.subr.mxu0 0.0
      %2666 = vmatpush1.msra.mxu0 0.0
      %2667 = vmatprep.subr.mxu0 0.0
      %2668 = vmatpush1.msra.mxu0 0.0
      %2669 = vmatprep.subr.mxu0 0.0
      %2670 = vmatpush1.msra.mxu0 0.0
      %2671 = vmatprep.subr.mxu0 0.0
      %2672 = vmatpush1.msra.mxu0 0.0
      %2673 = vmatprep.subr.mxu0 0.0
      %2674 = vmatpush1.msra.mxu0 0.0
      %2675 = vmatprep.subr.mxu0 0.0
      %2676 = vmatpush1.msra.mxu0 0.0
      %2677 = vmatprep.subr.mxu0 0.0
      %2678 = vmatpush1.msra.mxu0 0.0
      %2679 = vmatprep.subr.mxu0 0.0
      %2680 = vmatpush1.msra.mxu0 0.0
      %2681 = vmatprep.mubr.f32.mxu0 0.0
      %2682 = vmatmul.mubr.f32.gmra.mrb[0].mxu0 %v2606
      %v2683 = vpop.f32.mrb[0].mxu0
      %v2684 = vadd.f32 0.0, %v2683
      %v2685 = vpop.f32.mrb[0].mxu0
      %2686 = vmatprep.mubr.f32.mxu0 0.0
      %2687 = vmatmul.mubr.f32.gmra.mrb[0].mxu0 %v2609
      %v2688 = vpop.f32.mrb[0].mxu0
      %v2689 = vadd.f32 0.0, %v2688
      %v2690 = vpop.f32.mrb[0].mxu0
      %2691 = vmatprep.mubr.f32.mxu0 0.0
      %2692 = vmatmul.mubr.f32.gmra.mrb[0].mxu0 %v2612
      %v2693 = vpop.f32.mrb[0].mxu0
      %v2694 = vadd.f32 0.0, %v2693
      %v2695 = vpop.f32.mrb[0].mxu0
      %2696 = vdwg.mxu0
      %s2697 = scalar_lea.vmem %s1373, 8
      %v2698 = vld [vmem:[%s2697] sm:$0xff]
      %v2700 = vsel %vm1967, %v2684, 0
      %v2703 = vsel %vm1967, %v2689, 0
      %v2706 = vsel %vm1967, %v2694, 0
      %2708 = vmatprep.subr.mxu0 0.0
      %2709 = vmatpush1.msra.mxu0 %v2698
      %2710 = vmatprep.subr.mxu0 0.0
      %2711 = vmatpush1.msra.mxu0 0.0
      %2712 = vmatprep.subr.mxu0 0.0
      %2713 = vmatpush1.msra.mxu0 0.0
      %2714 = vmatprep.subr.mxu0 0.0
      %2715 = vmatpush1.msra.mxu0 0.0
      %2716 = vmatprep.subr.mxu0 0.0
      %2717 = vmatpush1.msra.mxu0 0.0
      %2718 = vmatprep.subr.mxu0 0.0
      %2719 = vmatpush1.msra.mxu0 0.0
      %2720 = vmatprep.subr.mxu0 0.0
      %2721 = vmatpush1.msra.mxu0 0.0
      %2722 = vmatprep.subr.mxu0 0.0
      %2723 = vmatpush1.msra.mxu0 0.0
      %2724 = vmatprep.subr.mxu0 0.0
      %2725 = vmatpush1.msra.mxu0 0.0
      %2726 = vmatprep.subr.mxu0 0.0
      %2727 = vmatpush1.msra.mxu0 0.0
      %2728 = vmatprep.subr.mxu0 0.0
      %2729 = vmatpush1.msra.mxu0 0.0
      %2730 = vmatprep.subr.mxu0 0.0
      %2731 = vmatpush1.msra.mxu0 0.0
      %2732 = vmatprep.subr.mxu0 0.0
      %2733 = vmatpush1.msra.mxu0 0.0
      %2734 = vmatprep.subr.mxu0 0.0
      %2735 = vmatpush1.msra.mxu0 0.0
      %2736 = vmatprep.subr.mxu0 0.0
      %2737 = vmatpush1.msra.mxu0 0.0
      %2738 = vmatprep.subr.mxu0 0.0
      %2739 = vmatpush1.msra.mxu0 0.0
      %2740 = vmatprep.subr.mxu0 0.0
      %2741 = vmatpush1.msra.mxu0 0.0
      %2742 = vmatprep.subr.mxu0 0.0
      %2743 = vmatpush1.msra.mxu0 0.0
      %2744 = vmatprep.subr.mxu0 0.0
      %2745 = vmatpush1.msra.mxu0 0.0
      %2746 = vmatprep.subr.mxu0 0.0
      %2747 = vmatpush1.msra.mxu0 0.0
      %2748 = vmatprep.subr.mxu0 0.0
      %2749 = vmatpush1.msra.mxu0 0.0
      %2750 = vmatprep.subr.mxu0 0.0
      %2751 = vmatpush1.msra.mxu0 0.0
      %2752 = vmatprep.subr.mxu0 0.0
      %2753 = vmatpush1.msra.mxu0 0.0
      %2754 = vmatprep.subr.mxu0 0.0
      %2755 = vmatpush1.msra.mxu0 0.0
      %2756 = vmatprep.subr.mxu0 0.0
      %2757 = vmatpush1.msra.mxu0 0.0
      %2758 = vmatprep.subr.mxu0 0.0
      %2759 = vmatpush1.msra.mxu0 0.0
      %2760 = vmatprep.subr.mxu0 0.0
      %2761 = vmatpush1.msra.mxu0 0.0
      %2762 = vmatprep.subr.mxu0 0.0
      %2763 = vmatpush1.msra.mxu0 0.0
      %2764 = vmatprep.subr.mxu0 0.0
      %2765 = vmatpush1.msra.mxu0 0.0
      %2766 = vmatprep.subr.mxu0 0.0
      %2767 = vmatpush1.msra.mxu0 0.0
      %2768 = vmatprep.subr.mxu0 0.0
      %2769 = vmatpush1.msra.mxu0 0.0
      %2770 = vmatprep.subr.mxu0 0.0
      %2771 = vmatpush1.msra.mxu0 0.0
      %2772 = vmatprep.mubr.f32.mxu0 0.0
      %2773 = vmatmul.mubr.f32.gmra.mrb[0].mxu0 %v2700
      %v2774 = vpop.f32.mrb[0].mxu0
      %v2775 = vadd.f32 0.0, %v2774
      %v2776 = vpop.f32.mrb[0].mxu0
      %2777 = vmatprep.mubr.f32.mxu0 0.0
      %2778 = vmatmul.mubr.f32.gmra.mrb[0].mxu0 %v2703
      %v2779 = vpop.f32.mrb[0].mxu0
      %v2780 = vadd.f32 0.0, %v2779
      %v2781 = vpop.f32.mrb[0].mxu0
      %2782 = vmatprep.mubr.f32.mxu0 0.0
      %2783 = vmatmul.mubr.f32.gmra.mrb[0].mxu0 %v2706
      %v2784 = vpop.f32.mrb[0].mxu0
      %v2785 = vadd.f32 0.0, %v2784
      %v2786 = vpop.f32.mrb[0].mxu0
      %2787 = vdwg.mxu0
      %v2789 = vsel %vm1967, %v2181, 0
      %v2792 = vsel %vm1967, %v2186, 0
      %v2795 = vsel %vm1967, %v2191, 0
      %2797 = vmatprep.subr.mxu0 0.0
      %2798 = vmatpush1.msra.mxu0 %v2194
      %2799 = vmatprep.subr.mxu0 0.0
      %2800 = vmatpush1.msra.mxu0 0.0
      %2801 = vmatprep.subr.mxu0 0.0
      %2802 = vmatpush1.msra.mxu0 0.0
      %2803 = vmatprep.subr.mxu0 0.0
      %2804 = vmatpush1.msra.mxu0 0.0
      %2805 = vmatprep.subr.mxu0 0.0
      %2806 = vmatpush1.msra.mxu0 0.0
      %2807 = vmatprep.subr.mxu0 0.0
      %2808 = vmatpush1.msra.mxu0 0.0
      %2809 = vmatprep.subr.mxu0 0.0
      %2810 = vmatpush1.msra.mxu0 0.0
      %2811 = vmatprep.subr.mxu0 0.0
      %2812 = vmatpush1.msra.mxu0 0.0
      %2813 = vmatprep.subr.mxu0 0.0
      %2814 = vmatpush1.msra.mxu0 0.0
      %2815 = vmatprep.subr.mxu0 0.0
      %2816 = vmatpush1.msra.mxu0 0.0
      %2817 = vmatprep.subr.mxu0 0.0
      %2818 = vmatpush1.msra.mxu0 0.0
      %2819 = vmatprep.subr.mxu0 0.0
      %2820 = vmatpush1.msra.mxu0 0.0
      %2821 = vmatprep.subr.mxu0 0.0
      %2822 = vmatpush1.msra.mxu0 0.0
      %2823 = vmatprep.subr.mxu0 0.0
      %2824 = vmatpush1.msra.mxu0 0.0
      %2825 = vmatprep.subr.mxu0 0.0
      %2826 = vmatpush1.msra.mxu0 0.0
      %2827 = vmatprep.subr.mxu0 0.0
      %2828 = vmatpush1.msra.mxu0 0.0
      %2829 = vmatprep.subr.mxu0 0.0
      %2830 = vmatpush1.msra.mxu0 0.0
      %2831 = vmatprep.subr.mxu0 0.0
      %2832 = vmatpush1.msra.mxu0 0.0
      %2833 = vmatprep.subr.mxu0 0.0
      %2834 = vmatpush1.msra.mxu0 0.0
      %2835 = vmatprep.subr.mxu0 0.0
      %2836 = vmatpush1.msra.mxu0 0.0
      %2837 = vmatprep.subr.mxu0 0.0
      %2838 = vmatpush1.msra.mxu0 0.0
      %2839 = vmatprep.subr.mxu0 0.0
      %2840 = vmatpush1.msra.mxu0 0.0
      %2841 = vmatprep.subr.mxu0 0.0
      %2842 = vmatpush1.msra.mxu0 0.0
      %2843 = vmatprep.subr.mxu0 0.0
      %2844 = vmatpush1.msra.mxu0 0.0
      %2845 = vmatprep.subr.mxu0 0.0
      %2846 = vmatpush1.msra.mxu0 0.0
      %2847 = vmatprep.subr.mxu0 0.0
      %2848 = vmatpush1.msra.mxu0 0.0
      %2849 = vmatprep.subr.mxu0 0.0
      %2850 = vmatpush1.msra.mxu0 0.0
      %2851 = vmatprep.subr.mxu0 0.0
      %2852 = vmatpush1.msra.mxu0 0.0
      %2853 = vmatprep.subr.mxu0 0.0
      %2854 = vmatpush1.msra.mxu0 0.0
      %2855 = vmatprep.subr.mxu0 0.0
      %2856 = vmatpush1.msra.mxu0 0.0
      %2857 = vmatprep.subr.mxu0 0.0
      %2858 = vmatpush1.msra.mxu0 0.0
      %2859 = vmatprep.subr.mxu0 0.0
      %2860 = vmatpush1.msra.mxu0 0.0
      %2861 = vmatprep.mubr.f32.mxu0 0.0
      %2862 = vmatmul.mubr.f32.gmra.mrb[0].mxu0 %v2789
      %v2863 = vpop.f32.mrb[0].mxu0
      %v2864 = vadd.f32 %v2775, %v2863
      %v2865 = vpop.f32.mrb[0].mxu0
      %2866 = vmatprep.mubr.f32.mxu0 0.0
      %2867 = vmatmul.mubr.f32.gmra.mrb[0].mxu0 %v2792
      %v2868 = vpop.f32.mrb[0].mxu0
      %v2869 = vadd.f32 %v2780, %v2868
      %v2870 = vpop.f32.mrb[0].mxu0
      %2871 = vmatprep.mubr.f32.mxu0 0.0
      %2872 = vmatmul.mubr.f32.gmra.mrb[0].mxu0 %v2795
      %v2873 = vpop.f32.mrb[0].mxu0
      %v2874 = vadd.f32 %v2785, %v2873
      %v2875 = vpop.f32.mrb[0].mxu0
      %2876 = vdwg.mxu0
      %s2877 = scalar_lea.vmem %s1346, 64
      %v2878 = vld [vmem:[%s2877] sm:$0xff]
      %v2879 = vld [vmem:[%s2877 + $0x8] sm:$0xff]
      %v2880 = vld [vmem:[%s2877 + $0x10] sm:$0xff]
      %v2881 = vld [vmem:[%s2877 + $0x18] sm:$0xff]
      %s2882 = scalar_lea.vmem %s1350, 2
      %v2883 = vld [vmem:[%s2882] sm:$0x1]
      %v2885 = vlaneseq
      %v2886 = vshrl.u32 %v2885, 7
      %v2887 = vsub.s32 0, %v2886
      %v2888 = vrot.slane %v2883, %v2887
      %2890 = vmatprep.subr.mxu0 0.0
      %2891 = vmatpush1.msra.mxu0 %v2878
      %2892 = vmatprep.subr.mxu0 0.0
      %2893 = vmatpush1.msra.mxu0 %v2879
      %2894 = vmatprep.subr.mxu0 0.0
      %2895 = vmatpush1.msra.mxu0 %v2880
      %2896 = vmatprep.subr.mxu0 0.0
      %2897 = vmatpush1.msra.mxu0 %v2881
      %2898 = vmatprep.subr.mxu0 0.0
      %2899 = vmatpush1.msra.mxu0 0.0
      %2900 = vmatprep.subr.mxu0 0.0
      %2901 = vmatpush1.msra.mxu0 0.0
      %2902 = vmatprep.subr.mxu0 0.0
      %2903 = vmatpush1.msra.mxu0 0.0
      %2904 = vmatprep.subr.mxu0 0.0
      %2905 = vmatpush1.msra.mxu0 0.0
      %2906 = vmatprep.subr.mxu0 0.0
      %2907 = vmatpush1.msra.mxu0 0.0
      %2908 = vmatprep.subr.mxu0 0.0
      %2909 = vmatpush1.msra.mxu0 0.0
      %2910 = vmatprep.subr.mxu0 0.0
      %2911 = vmatpush1.msra.mxu0 0.0
      %2912 = vmatprep.subr.mxu0 0.0
      %2913 = vmatpush1.msra.mxu0 0.0
      %2914 = vmatprep.subr.mxu0 0.0
      %2915 = vmatpush1.msra.mxu0 0.0
      %2916 = vmatprep.subr.mxu0 0.0
      %2917 = vmatpush1.msra.mxu0 0.0
      %2918 = vmatprep.subr.mxu0 0.0
      %2919 = vmatpush1.msra.mxu0 0.0
      %2920 = vmatprep.subr.mxu0 0.0
      %2921 = vmatpush1.msra.mxu0 0.0
      %2922 = vmatprep.subr.mxu0 0.0
      %2923 = vmatpush1.msra.mxu0 0.0
      %2924 = vmatprep.subr.mxu0 0.0
      %2925 = vmatpush1.msra.mxu0 0.0
      %2926 = vmatprep.subr.mxu0 0.0
      %2927 = vmatpush1.msra.mxu0 0.0
      %2928 = vmatprep.subr.mxu0 0.0
      %2929 = vmatpush1.msra.mxu0 0.0
      %2930 = vmatprep.subr.mxu0 0.0
      %2931 = vmatpush1.msra.mxu0 0.0
      %2932 = vmatprep.subr.mxu0 0.0
      %2933 = vmatpush1.msra.mxu0 0.0
      %2934 = vmatprep.subr.mxu0 0.0
      %2935 = vmatpush1.msra.mxu0 0.0
      %2936 = vmatprep.subr.mxu0 0.0
      %2937 = vmatpush1.msra.mxu0 0.0
      %2938 = vmatprep.subr.mxu0 0.0
      %2939 = vmatpush1.msra.mxu0 0.0
      %2940 = vmatprep.subr.mxu0 0.0
      %2941 = vmatpush1.msra.mxu0 0.0
      %2942 = vmatprep.subr.mxu0 0.0
      %2943 = vmatpush1.msra.mxu0 0.0
      %2944 = vmatprep.subr.mxu0 0.0
      %2945 = vmatpush1.msra.mxu0 0.0
      %2946 = vmatprep.subr.mxu0 0.0
      %2947 = vmatpush1.msra.mxu0 0.0
      %2948 = vmatprep.subr.mxu0 0.0
      %2949 = vmatpush1.msra.mxu0 0.0
      %2950 = vmatprep.subr.mxu0 0.0
      %2951 = vmatpush1.msra.mxu0 0.0
      %2952 = vmatprep.subr.mxu0 0.0
      %2953 = vmatpush1.msra.mxu0 0.0
      %2954 = vmatprep.mubr.f32.mxu0 0.0
      %2955 = vmatmul.mubr.f32.gmra.mrb[0].mxu0 %v1697
      %v2956 = vpop.f32.mrb[0].mxu0
      %v2957 = vadd.f32 %v2888, %v2956
      %v2958 = vpop.f32.mrb[0].mxu0
      %2959 = vmatprep.mubr.f32.mxu0 0.0
      %2960 = vmatmul.mubr.f32.gmra.mrb[0].mxu0 %v1700
      %v2961 = vpop.f32.mrb[0].mxu0
      %v2962 = vadd.f32 %v2888, %v2961
      %v2963 = vpop.f32.mrb[0].mxu0
      %2964 = vmatprep.mubr.f32.mxu0 0.0
      %2965 = vmatmul.mubr.f32.gmra.mrb[0].mxu0 %v1703
      %v2966 = vpop.f32.mrb[0].mxu0
      %v2967 = vadd.f32 %v2888, %v2966
      %v2968 = vpop.f32.mrb[0].mxu0
      %2969 = vdwg.mxu0
      %s2970 = scalar_lea.vmem %s1355, 64
      %v2971 = vld [vmem:[%s2970] sm:$0xff]
      %v2972 = vld [vmem:[%s2970 + $0x8] sm:$0xff]
      %v2973 = vld [vmem:[%s2970 + $0x10] sm:$0xff]
      %v2974 = vld [vmem:[%s2970 + $0x18] sm:$0xff]
      %s2975 = scalar_lea.vmem %s1359, 2
      %v2976 = vld [vmem:[%s2975] sm:$0x1]
      %v2978 = vlaneseq
      %v2979 = vshrl.u32 %v2978, 7
      %v2980 = vsub.s32 0, %v2979
      %v2981 = vrot.slane %v2976, %v2980
      %2983 = vmatprep.subr.mxu0 0.0
      %2984 = vmatpush1.msra.mxu0 %v2971
      %2985 = vmatprep.subr.mxu0 0.0
      %2986 = vmatpush1.msra.mxu0 %v2972
      %2987 = vmatprep.subr.mxu0 0.0
      %2988 = vmatpush1.msra.mxu0 %v2973
      %2989 = vmatprep.subr.mxu0 0.0
      %2990 = vmatpush1.msra.mxu0 %v2974
      %2991 = vmatprep.subr.mxu0 0.0
      %2992 = vmatpush1.msra.mxu0 0.0
      %2993 = vmatprep.subr.mxu0 0.0
      %2994 = vmatpush1.msra.mxu0 0.0
      %2995 = vmatprep.subr.mxu0 0.0
      %2996 = vmatpush1.msra.mxu0 0.0
      %2997 = vmatprep.subr.mxu0 0.0
      %2998 = vmatpush1.msra.mxu0 0.0
      %2999 = vmatprep.subr.mxu0 0.0
      %3000 = vmatpush1.msra.mxu0 0.0
      %3001 = vmatprep.subr.mxu0 0.0
      %3002 = vmatpush1.msra.mxu0 0.0
      %3003 = vmatprep.subr.mxu0 0.0
      %3004 = vmatpush1.msra.mxu0 0.0
      %3005 = vmatprep.subr.mxu0 0.0
      %3006 = vmatpush1.msra.mxu0 0.0
      %3007 = vmatprep.subr.mxu0 0.0
      %3008 = vmatpush1.msra.mxu0 0.0
      %3009 = vmatprep.subr.mxu0 0.0
      %3010 = vmatpush1.msra.mxu0 0.0
      %3011 = vmatprep.subr.mxu0 0.0
      %3012 = vmatpush1.msra.mxu0 0.0
      %3013 = vmatprep.subr.mxu0 0.0
      %3014 = vmatpush1.msra.mxu0 0.0
      %3015 = vmatprep.subr.mxu0 0.0
      %3016 = vmatpush1.msra.mxu0 0.0
      %3017 = vmatprep.subr.mxu0 0.0
      %3018 = vmatpush1.msra.mxu0 0.0
      %3019 = vmatprep.subr.mxu0 0.0
      %3020 = vmatpush1.msra.mxu0 0.0
      %3021 = vmatprep.subr.mxu0 0.0
      %3022 = vmatpush1.msra.mxu0 0.0
      %3023 = vmatprep.subr.mxu0 0.0
      %3024 = vmatpush1.msra.mxu0 0.0
      %3025 = vmatprep.subr.mxu0 0.0
      %3026 = vmatpush1.msra.mxu0 0.0
      %3027 = vmatprep.subr.mxu0 0.0
      %3028 = vmatpush1.msra.mxu0 0.0
      %3029 = vmatprep.subr.mxu0 0.0
      %3030 = vmatpush1.msra.mxu0 0.0
      %3031 = vmatprep.subr.mxu0 0.0
      %3032 = vmatpush1.msra.mxu0 0.0
      %3033 = vmatprep.subr.mxu0 0.0
      %3034 = vmatpush1.msra.mxu0 0.0
      %3035 = vmatprep.subr.mxu0 0.0
      %3036 = vmatpush1.msra.mxu0 0.0
      %3037 = vmatprep.subr.mxu0 0.0
      %3038 = vmatpush1.msra.mxu0 0.0
      %3039 = vmatprep.subr.mxu0 0.0
      %3040 = vmatpush1.msra.mxu0 0.0
      %3041 = vmatprep.subr.mxu0 0.0
      %3042 = vmatpush1.msra.mxu0 0.0
      %3043 = vmatprep.subr.mxu0 0.0
      %3044 = vmatpush1.msra.mxu0 0.0
      %3045 = vmatprep.subr.mxu0 0.0
      %3046 = vmatpush1.msra.mxu0 0.0
      %3047 = vmatprep.mubr.f32.mxu0 0.0
      %3048 = vmatmul.mubr.f32.gmra.mrb[0].mxu0 %v1697
      %v3049 = vpop.f32.mrb[0].mxu0
      %v3050 = vadd.f32 %v2981, %v3049
      %v3051 = vpop.f32.mrb[0].mxu0
      %3052 = vmatprep.mubr.f32.mxu0 0.0
      %3053 = vmatmul.mubr.f32.gmra.mrb[0].mxu0 %v1700
      %v3054 = vpop.f32.mrb[0].mxu0
      %v3055 = vadd.f32 %v2981, %v3054
      %v3056 = vpop.f32.mrb[0].mxu0
      %3057 = vmatprep.mubr.f32.mxu0 0.0
      %3058 = vmatmul.mubr.f32.gmra.mrb[0].mxu0 %v1703
      %v3059 = vpop.f32.mrb[0].mxu0
      %v3060 = vadd.f32 %v2981, %v3059
      %v3061 = vpop.f32.mrb[0].mxu0
      %3062 = vdwg.mxu0
      %s3063 = scalar_lea.vmem %s1364, 64
      %v3064 = vld [vmem:[%s3063] sm:$0xff]
      %v3065 = vld [vmem:[%s3063 + $0x8] sm:$0xff]
      %v3066 = vld [vmem:[%s3063 + $0x10] sm:$0xff]
      %v3067 = vld [vmem:[%s3063 + $0x18] sm:$0xff]
      %s3068 = scalar_lea.vmem %s1368, 2
      %v3069 = vld [vmem:[%s3068] sm:$0x1]
      %v3071 = vlaneseq
      %v3072 = vshrl.u32 %v3071, 7
      %v3073 = vsub.s32 0, %v3072
      %v3074 = vrot.slane %v3069, %v3073
      %3076 = vmatprep.subr.mxu0 0.0
      %3077 = vmatpush1.msra.mxu0 %v3064
      %3078 = vmatprep.subr.mxu0 0.0
      %3079 = vmatpush1.msra.mxu0 %v3065
      %3080 = vmatprep.subr.mxu0 0.0
      %3081 = vmatpush1.msra.mxu0 %v3066
      %3082 = vmatprep.subr.mxu0 0.0
      %3083 = vmatpush1.msra.mxu0 %v3067
      %3084 = vmatprep.subr.mxu0 0.0
      %3085 = vmatpush1.msra.mxu0 0.0
      %3086 = vmatprep.subr.mxu0 0.0
      %3087 = vmatpush1.msra.mxu0 0.0
      %3088 = vmatprep.subr.mxu0 0.0
      %3089 = vmatpush1.msra.mxu0 0.0
      %3090 = vmatprep.subr.mxu0 0.0
      %3091 = vmatpush1.msra.mxu0 0.0
      %3092 = vmatprep.subr.mxu0 0.0
      %3093 = vmatpush1.msra.mxu0 0.0
      %3094 = vmatprep.subr.mxu0 0.0
      %3095 = vmatpush1.msra.mxu0 0.0
      %3096 = vmatprep.subr.mxu0 0.0
      %3097 = vmatpush1.msra.mxu0 0.0
      %3098 = vmatprep.subr.mxu0 0.0
      %3099 = vmatpush1.msra.mxu0 0.0
      %3100 = vmatprep.subr.mxu0 0.0
      %3101 = vmatpush1.msra.mxu0 0.0
      %3102 = vmatprep.subr.mxu0 0.0
      %3103 = vmatpush1.msra.mxu0 0.0
      %3104 = vmatprep.subr.mxu0 0.0
      %3105 = vmatpush1.msra.mxu0 0.0
      %3106 = vmatprep.subr.mxu0 0.0
      %3107 = vmatpush1.msra.mxu0 0.0
      %3108 = vmatprep.subr.mxu0 0.0
      %3109 = vmatpush1.msra.mxu0 0.0
      %3110 = vmatprep.subr.mxu0 0.0
      %3111 = vmatpush1.msra.mxu0 0.0
      %3112 = vmatprep.subr.mxu0 0.0
      %3113 = vmatpush1.msra.mxu0 0.0
      %3114 = vmatprep.subr.mxu0 0.0
      %3115 = vmatpush1.msra.mxu0 0.0
      %3116 = vmatprep.subr.mxu0 0.0
      %3117 = vmatpush1.msra.mxu0 0.0
      %3118 = vmatprep.subr.mxu0 0.0
      %3119 = vmatpush1.msra.mxu0 0.0
      %3120 = vmatprep.subr.mxu0 0.0
      %3121 = vmatpush1.msra.mxu0 0.0
      %3122 = vmatprep.subr.mxu0 0.0
      %3123 = vmatpush1.msra.mxu0 0.0
      %3124 = vmatprep.subr.mxu0 0.0
      %3125 = vmatpush1.msra.mxu0 0.0
      %3126 = vmatprep.subr.mxu0 0.0
      %3127 = vmatpush1.msra.mxu0 0.0
      %3128 = vmatprep.subr.mxu0 0.0
      %3129 = vmatpush1.msra.mxu0 0.0
      %3130 = vmatprep.subr.mxu0 0.0
      %3131 = vmatpush1.msra.mxu0 0.0
      %3132 = vmatprep.subr.mxu0 0.0
      %3133 = vmatpush1.msra.mxu0 0.0
      %3134 = vmatprep.subr.mxu0 0.0
      %3135 = vmatpush1.msra.mxu0 0.0
      %3136 = vmatprep.subr.mxu0 0.0
      %3137 = vmatpush1.msra.mxu0 0.0
      %3138 = vmatprep.subr.mxu0 0.0
      %3139 = vmatpush1.msra.mxu0 0.0
      %3140 = vmatprep.mubr.f32.mxu0 0.0
      %3141 = vmatmul.mubr.f32.gmra.mrb[0].mxu0 %v1697
      %v3142 = vpop.f32.mrb[0].mxu0
      %v3143 = vadd.f32 %v3074, %v3142
      %v3144 = vpop.f32.mrb[0].mxu0
      %3145 = vmatprep.mubr.f32.mxu0 0.0
      %3146 = vmatmul.mubr.f32.gmra.mrb[0].mxu0 %v1700
      %v3147 = vpop.f32.mrb[0].mxu0
      %v3148 = vadd.f32 %v3074, %v3147
      %v3149 = vpop.f32.mrb[0].mxu0
      %3150 = vmatprep.mubr.f32.mxu0 0.0
      %3151 = vmatmul.mubr.f32.gmra.mrb[0].mxu0 %v1703
      %v3152 = vpop.f32.mrb[0].mxu0
      %v3153 = vadd.f32 %v3074, %v3152
      %v3154 = vpop.f32.mrb[0].mxu0
      %3155 = vdwg.mxu0
      %v3157 = vsel %vm1967, %v2957, 0
      %v3160 = vsel %vm1967, %v2962, 0
      %v3163 = vsel %vm1967, %v2967, 0
      %v3166 = vsel %vm1967, %v3050, 0
      %v3169 = vsel %vm1967, %v3055, 0
      %v3172 = vsel %vm1967, %v3060, 0
      %3174 = vmatprep.subr.mxu0 0.0
      %3175 = vmatpush1.xpose.msra.mxu0 %v3166
      %3176 = vmatprep.subr.mxu0 0.0
      %3177 = vmatpush1.xpose.msra.mxu0 %v3169
      %3178 = vmatprep.subr.mxu0 0.0
      %3179 = vmatpush1.xpose.msra.mxu0 %v3172
      %3180 = vmatprep.subr.mxu0 0.0
      %3181 = vmatpush1.xpose.msra.mxu0 0.0
      %3182 = vmatprep.subr.mxu0 0.0
      %3183 = vmatpush1.xpose.msra.mxu0 0.0
      %3184 = vmatprep.subr.mxu0 0.0
      %3185 = vmatpush1.xpose.msra.mxu0 0.0
      %3186 = vmatprep.subr.mxu0 0.0
      %3187 = vmatpush1.xpose.msra.mxu0 0.0
      %3188 = vmatprep.subr.mxu0 0.0
      %3189 = vmatpush1.xpose.msra.mxu0 0.0
      %3190 = vmatprep.subr.mxu0 0.0
      %3191 = vmatpush1.xpose.msra.mxu0 0.0
      %3192 = vmatprep.subr.mxu0 0.0
      %3193 = vmatpush1.xpose.msra.mxu0 0.0
      %3194 = vmatprep.subr.mxu0 0.0
      %3195 = vmatpush1.xpose.msra.mxu0 0.0
      %3196 = vmatprep.subr.mxu0 0.0
      %3197 = vmatpush1.xpose.msra.mxu0 0.0
      %3198 = vmatprep.subr.mxu0 0.0
      %3199 = vmatpush1.xpose.msra.mxu0 0.0
      %3200 = vmatprep.subr.mxu0 0.0
      %3201 = vmatpush1.xpose.msra.mxu0 0.0
      %3202 = vmatprep.subr.mxu0 0.0
      %3203 = vmatpush1.xpose.msra.mxu0 0.0
      %3204 = vmatprep.subr.mxu0 0.0
      %3205 = vmatpush1.xpose.msra.mxu0 0.0
      %3206 = vmatprep.subr.mxu0 0.0
      %3207 = vmatpush1.xpose.msra.mxu0 0.0
      %3208 = vmatprep.subr.mxu0 0.0
      %3209 = vmatpush1.xpose.msra.mxu0 0.0
      %3210 = vmatprep.subr.mxu0 0.0
      %3211 = vmatpush1.xpose.msra.mxu0 0.0
      %3212 = vmatprep.subr.mxu0 0.0
      %3213 = vmatpush1.xpose.msra.mxu0 0.0
      %3214 = vmatprep.subr.mxu0 0.0
      %3215 = vmatpush1.xpose.msra.mxu0 0.0
      %3216 = vmatprep.subr.mxu0 0.0
      %3217 = vmatpush1.xpose.msra.mxu0 0.0
      %3218 = vmatprep.subr.mxu0 0.0
      %3219 = vmatpush1.xpose.msra.mxu0 0.0
      %3220 = vmatprep.subr.mxu0 0.0
      %3221 = vmatpush1.xpose.msra.mxu0 0.0
      %3222 = vmatprep.subr.mxu0 0.0
      %3223 = vmatpush1.xpose.msra.mxu0 0.0
      %3224 = vmatprep.subr.mxu0 0.0
      %3225 = vmatpush1.xpose.msra.mxu0 0.0
      %3226 = vmatprep.subr.mxu0 0.0
      %3227 = vmatpush1.xpose.msra.mxu0 0.0
      %3228 = vmatprep.subr.mxu0 0.0
      %3229 = vmatpush1.xpose.msra.mxu0 0.0
      %3230 = vmatprep.subr.mxu0 0.0
      %3231 = vmatpush1.xpose.msra.mxu0 0.0
      %3232 = vmatprep.subr.mxu0 0.0
      %3233 = vmatpush1.xpose.msra.mxu0 0.0
      %3234 = vmatprep.subr.mxu0 0.0
      %3235 = vmatpush1.xpose.msra.mxu0 0.0
      %3236 = vmatprep.subr.mxu0 0.0
      %3237 = vmatpush1.xpose.msra.mxu0 0.0
      %3238 = vmatprep.mubr.f32.mxu0 0.0
      %3239 = vmatmul.mubr.f32.gmra.mrb[0].mxu0 %v3157
      %v3240 = vpop.f32.mrb[0].mxu0
      %v3241 = vadd.f32 0.0, %v3240
      %v3242 = vpop.f32.mrb[0].mxu0
      %3243 = vmatprep.mubr.f32.mxu0 0.0
      %3244 = vmatmul.mubr.f32.gmra.mrb[0].mxu0 %v3160
      %v3245 = vpop.f32.mrb[0].mxu0
      %v3246 = vadd.f32 0.0, %v3245
      %v3247 = vpop.f32.mrb[0].mxu0
      %3248 = vmatprep.mubr.f32.mxu0 0.0
      %3249 = vmatmul.mubr.f32.gmra.mrb[0].mxu0 %v3163
      %v3250 = vpop.f32.mrb[0].mxu0
      %v3251 = vadd.f32 0.0, %v3250
      %v3252 = vpop.f32.mrb[0].mxu0
      %3253 = vdwg.mxu0
      %v3254 = vsel %vm2066, %v3241, -inf
      %3255 = vmax.xlane.f32.xlu0 %v3254
      %v3256 = vpop.xlane.xlu0 %3255
      %v3257 = vsel %vm2066, %v3246, -inf
      %3258 = vmax.xlane.f32.xlu0 %v3257
      %v3259 = vpop.xlane.xlu0 %3258
      %v3260 = vsel %vm2073, %v3251, -inf
      %3261 = vmax.xlane.f32.xlu0 %v3260
      %v3262 = vpop.xlane.xlu0 %3261
      %v3263 = vsub.f32 %v3241, %v3256
      %v3264 = vsub.f32 %v3246, %v3259
      %v3265 = vsub.f32 %v3251, %v3262
      %v3266 = vmul.f32 %v3263, 1.442695
      %v3267 = vpow.pop %v3266
      %v3268 = vmul.f32 %v3264, 1.442695
      %v3269 = vpow.pop %v3268
      %v3270 = vmul.f32 %v3265, 1.442695
      %v3271 = vpow.pop %v3270
      %v3272 = vsel %vm2066, %v3267, 0.0
      %3273 = vadd.xlane.f32.xlu0 %v3272
      %v3274 = vpop.xlane.xlu0 %3273
      %v3275 = vsel %vm2066, %v3269, 0.0
      %3276 = vadd.xlane.f32.xlu0 %v3275
      %v3277 = vpop.xlane.xlu0 %3276
      %v3278 = vsel %vm2073, %v3271, 0.0
      %3279 = vadd.xlane.f32.xlu0 %v3278
      %v3280 = vpop.xlane.xlu0 %3279
      %v3281 = vrcp.pop %v3274
      %v3282 = vmul.f32 %v3267, %v3281
      %v3283 = vrcp.pop %v3277
      %v3284 = vmul.f32 %v3269, %v3283
      %v3285 = vrcp.pop %v3280
      %v3286 = vmul.f32 %v3271, %v3285
      %v3288 = vsel %vm2066, %v3282, 0
      %v3291 = vsel %vm2066, %v3284, 0
      %v3294 = vsel %vm2066, %v3286, 0
      %v3297 = vsel %vm2110, %v3153, 0
      %3299 = vmatprep.subr.mxu0 0.0
      %3300 = vmatpush1.msra.mxu0 %v3143
      %3301 = vmatprep.subr.mxu0 0.0
      %3302 = vmatpush1.msra.mxu0 %v3148
      %3303 = vmatprep.subr.mxu0 0.0
      %3304 = vmatpush1.msra.mxu0 %v3297
      %3305 = vmatprep.subr.mxu0 0.0
      %3306 = vmatpush1.msra.mxu0 0.0
      %3307 = vmatprep.subr.mxu0 0.0
      %3308 = vmatpush1.msra.mxu0 0.0
      %3309 = vmatprep.subr.mxu0 0.0
      %3310 = vmatpush1.msra.mxu0 0.0
      %3311 = vmatprep.subr.mxu0 0.0
      %3312 = vmatpush1.msra.mxu0 0.0
      %3313 = vmatprep.subr.mxu0 0.0
      %3314 = vmatpush1.msra.mxu0 0.0
      %3315 = vmatprep.subr.mxu0 0.0
      %3316 = vmatpush1.msra.mxu0 0.0
      %3317 = vmatprep.subr.mxu0 0.0
      %3318 = vmatpush1.msra.mxu0 0.0
      %3319 = vmatprep.subr.mxu0 0.0
      %3320 = vmatpush1.msra.mxu0 0.0
      %3321 = vmatprep.subr.mxu0 0.0
      %3322 = vmatpush1.msra.mxu0 0.0
      %3323 = vmatprep.subr.mxu0 0.0
      %3324 = vmatpush1.msra.mxu0 0.0
      %3325 = vmatprep.subr.mxu0 0.0
      %3326 = vmatpush1.msra.mxu0 0.0
      %3327 = vmatprep.subr.mxu0 0.0
      %3328 = vmatpush1.msra.mxu0 0.0
      %3329 = vmatprep.subr.mxu0 0.0
      %3330 = vmatpush1.msra.mxu0 0.0
      %3331 = vmatprep.subr.mxu0 0.0
      %3332 = vmatpush1.msra.mxu0 0.0
      %3333 = vmatprep.subr.mxu0 0.0
      %3334 = vmatpush1.msra.mxu0 0.0
      %3335 = vmatprep.subr.mxu0 0.0
      %3336 = vmatpush1.msra.mxu0 0.0
      %3337 = vmatprep.subr.mxu0 0.0
      %3338 = vmatpush1.msra.mxu0 0.0
      %3339 = vmatprep.subr.mxu0 0.0
      %3340 = vmatpush1.msra.mxu0 0.0
      %3341 = vmatprep.subr.mxu0 0.0
      %3342 = vmatpush1.msra.mxu0 0.0
      %3343 = vmatprep.subr.mxu0 0.0
      %3344 = vmatpush1.msra.mxu0 0.0
      %3345 = vmatprep.subr.mxu0 0.0
      %3346 = vmatpush1.msra.mxu0 0.0
      %3347 = vmatprep.subr.mxu0 0.0
      %3348 = vmatpush1.msra.mxu0 0.0
      %3349 = vmatprep.subr.mxu0 0.0
      %3350 = vmatpush1.msra.mxu0 0.0
      %3351 = vmatprep.subr.mxu0 0.0
      %3352 = vmatpush1.msra.mxu0 0.0
      %3353 = vmatprep.subr.mxu0 0.0
      %3354 = vmatpush1.msra.mxu0 0.0
      %3355 = vmatprep.subr.mxu0 0.0
      %3356 = vmatpush1.msra.mxu0 0.0
      %3357 = vmatprep.subr.mxu0 0.0
      %3358 = vmatpush1.msra.mxu0 0.0
      %3359 = vmatprep.subr.mxu0 0.0
      %3360 = vmatpush1.msra.mxu0 0.0
      %3361 = vmatprep.subr.mxu0 0.0
      %3362 = vmatpush1.msra.mxu0 0.0
      %3363 = vmatprep.mubr.f32.mxu0 0.0
      %3364 = vmatmul.mubr.f32.gmra.mrb[0].mxu0 %v3288
      %v3365 = vpop.f32.mrb[0].mxu0
      %v3366 = vadd.f32 0.0, %v3365
      %v3367 = vpop.f32.mrb[0].mxu0
      %3368 = vmatprep.mubr.f32.mxu0 0.0
      %3369 = vmatmul.mubr.f32.gmra.mrb[0].mxu0 %v3291
      %v3370 = vpop.f32.mrb[0].mxu0
      %v3371 = vadd.f32 0.0, %v3370
      %v3372 = vpop.f32.mrb[0].mxu0
      %3373 = vmatprep.mubr.f32.mxu0 0.0
      %3374 = vmatmul.mubr.f32.gmra.mrb[0].mxu0 %v3294
      %v3375 = vpop.f32.mrb[0].mxu0
      %v3376 = vadd.f32 0.0, %v3375
      %v3377 = vpop.f32.mrb[0].mxu0
      %3378 = vdwg.mxu0
      %s3379 = scalar_lea.vmem %s1373, 16
      %v3380 = vld [vmem:[%s3379] sm:$0xff]
      %v3382 = vsel %vm1967, %v3366, 0
      %v3385 = vsel %vm1967, %v3371, 0
      %v3388 = vsel %vm1967, %v3376, 0
      %3390 = vmatprep.subr.mxu0 0.0
      %3391 = vmatpush1.msra.mxu0 %v3380
      %3392 = vmatprep.subr.mxu0 0.0
      %3393 = vmatpush1.msra.mxu0 0.0
      %3394 = vmatprep.subr.mxu0 0.0
      %3395 = vmatpush1.msra.mxu0 0.0
      %3396 = vmatprep.subr.mxu0 0.0
      %3397 = vmatpush1.msra.mxu0 0.0
      %3398 = vmatprep.subr.mxu0 0.0
      %3399 = vmatpush1.msra.mxu0 0.0
      %3400 = vmatprep.subr.mxu0 0.0
      %3401 = vmatpush1.msra.mxu0 0.0
      %3402 = vmatprep.subr.mxu0 0.0
      %3403 = vmatpush1.msra.mxu0 0.0
      %3404 = vmatprep.subr.mxu0 0.0
      %3405 = vmatpush1.msra.mxu0 0.0
      %3406 = vmatprep.subr.mxu0 0.0
      %3407 = vmatpush1.msra.mxu0 0.0
      %3408 = vmatprep.subr.mxu0 0.0
      %3409 = vmatpush1.msra.mxu0 0.0
      %3410 = vmatprep.subr.mxu0 0.0
      %3411 = vmatpush1.msra.mxu0 0.0
      %3412 = vmatprep.subr.mxu0 0.0
      %3413 = vmatpush1.msra.mxu0 0.0
      %3414 = vmatprep.subr.mxu0 0.0
      %3415 = vmatpush1.msra.mxu0 0.0
      %3416 = vmatprep.subr.mxu0 0.0
      %3417 = vmatpush1.msra.mxu0 0.0
      %3418 = vmatprep.subr.mxu0 0.0
      %3419 = vmatpush1.msra.mxu0 0.0
      %3420 = vmatprep.subr.mxu0 0.0
      %3421 = vmatpush1.msra.mxu0 0.0
      %3422 = vmatprep.subr.mxu0 0.0
      %3423 = vmatpush1.msra.mxu0 0.0
      %3424 = vmatprep.subr.mxu0 0.0
      %3425 = vmatpush1.msra.mxu0 0.0
      %3426 = vmatprep.subr.mxu0 0.0
      %3427 = vmatpush1.msra.mxu0 0.0
      %3428 = vmatprep.subr.mxu0 0.0
      %3429 = vmatpush1.msra.mxu0 0.0
      %3430 = vmatprep.subr.mxu0 0.0
      %3431 = vmatpush1.msra.mxu0 0.0
      %3432 = vmatprep.subr.mxu0 0.0
      %3433 = vmatpush1.msra.mxu0 0.0
      %3434 = vmatprep.subr.mxu0 0.0
      %3435 = vmatpush1.msra.mxu0 0.0
      %3436 = vmatprep.subr.mxu0 0.0
      %3437 = vmatpush1.msra.mxu0 0.0
      %3438 = vmatprep.subr.mxu0 0.0
      %3439 = vmatpush1.msra.mxu0 0.0
      %3440 = vmatprep.subr.mxu0 0.0
      %3441 = vmatpush1.msra.mxu0 0.0
      %3442 = vmatprep.subr.mxu0 0.0
      %3443 = vmatpush1.msra.mxu0 0.0
      %3444 = vmatprep.subr.mxu0 0.0
      %3445 = vmatpush1.msra.mxu0 0.0
      %3446 = vmatprep.subr.mxu0 0.0
      %3447 = vmatpush1.msra.mxu0 0.0
      %3448 = vmatprep.subr.mxu0 0.0
      %3449 = vmatpush1.msra.mxu0 0.0
      %3450 = vmatprep.subr.mxu0 0.0
      %3451 = vmatpush1.msra.mxu0 0.0
      %3452 = vmatprep.subr.mxu0 0.0
      %3453 = vmatpush1.msra.mxu0 0.0
      %3454 = vmatprep.mubr.f32.mxu0 0.0
      %3455 = vmatmul.mubr.f32.gmra.mrb[0].mxu0 %v3382
      %v3456 = vpop.f32.mrb[0].mxu0
      %v3457 = vadd.f32 0.0, %v3456
      %v3458 = vpop.f32.mrb[0].mxu0
      %3459 = vmatprep.mubr.f32.mxu0 0.0
      %3460 = vmatmul.mubr.f32.gmra.mrb[0].mxu0 %v3385
      %v3461 = vpop.f32.mrb[0].mxu0
      %v3462 = vadd.f32 0.0, %v3461
      %v3463 = vpop.f32.mrb[0].mxu0
      %3464 = vmatprep.mubr.f32.mxu0 0.0
      %3465 = vmatmul.mubr.f32.gmra.mrb[0].mxu0 %v3388
      %v3466 = vpop.f32.mrb[0].mxu0
      %v3467 = vadd.f32 0.0, %v3466
      %v3468 = vpop.f32.mrb[0].mxu0
      %3469 = vdwg.mxu0
      %v3470 = vadd.f32 %v2864, %v3457
      %v3471 = vadd.f32 %v2869, %v3462
      %v3472 = vadd.f32 %v2874, %v3467
      %s3473 = scalar_lea.vmem %s1346, 96
      %v3474 = vld [vmem:[%s3473] sm:$0xff]
      %v3475 = vld [vmem:[%s3473 + $0x8] sm:$0xff]
      %v3476 = vld [vmem:[%s3473 + $0x10] sm:$0xff]
      %v3477 = vld [vmem:[%s3473 + $0x18] sm:$0xff]
      %s3478 = scalar_lea.vmem %s1350, 3
      %v3479 = vld [vmem:[%s3478] sm:$0x1]
      %v3481 = vlaneseq
      %v3482 = vshrl.u32 %v3481, 7
      %v3483 = vsub.s32 0, %v3482
      %v3484 = vrot.slane %v3479, %v3483
      %3486 = vmatprep.subr.mxu0 0.0
      %3487 = vmatpush1.msra.mxu0 %v3474
      %3488 = vmatprep.subr.mxu0 0.0
      %3489 = vmatpush1.msra.mxu0 %v3475
      %3490 = vmatprep.subr.mxu0 0.0
      %3491 = vmatpush1.msra.mxu0 %v3476
      %3492 = vmatprep.subr.mxu0 0.0
      %3493 = vmatpush1.msra.mxu0 %v3477
      %3494 = vmatprep.subr.mxu0 0.0
      %3495 = vmatpush1.msra.mxu0 0.0
      %3496 = vmatprep.subr.mxu0 0.0
      %3497 = vmatpush1.msra.mxu0 0.0
      %3498 = vmatprep.subr.mxu0 0.0
      %3499 = vmatpush1.msra.mxu0 0.0
      %3500 = vmatprep.subr.mxu0 0.0
      %3501 = vmatpush1.msra.mxu0 0.0
      %3502 = vmatprep.subr.mxu0 0.0
      %3503 = vmatpush1.msra.mxu0 0.0
      %3504 = vmatprep.subr.mxu0 0.0
      %3505 = vmatpush1.msra.mxu0 0.0
      %3506 = vmatprep.subr.mxu0 0.0
      %3507 = vmatpush1.msra.mxu0 0.0
      %3508 = vmatprep.subr.mxu0 0.0
      %3509 = vmatpush1.msra.mxu0 0.0
      %3510 = vmatprep.subr.mxu0 0.0
      %3511 = vmatpush1.msra.mxu0 0.0
      %3512 = vmatprep.subr.mxu0 0.0
      %3513 = vmatpush1.msra.mxu0 0.0
      %3514 = vmatprep.subr.mxu0 0.0
      %3515 = vmatpush1.msra.mxu0 0.0
      %3516 = vmatprep.subr.mxu0 0.0
      %3517 = vmatpush1.msra.mxu0 0.0
      %3518 = vmatprep.subr.mxu0 0.0
      %3519 = vmatpush1.msra.mxu0 0.0
      %3520 = vmatprep.subr.mxu0 0.0
      %3521 = vmatpush1.msra.mxu0 0.0
      %3522 = vmatprep.subr.mxu0 0.0
      %3523 = vmatpush1.msra.mxu0 0.0
      %3524 = vmatprep.subr.mxu0 0.0
      %3525 = vmatpush1.msra.mxu0 0.0
      %3526 = vmatprep.subr.mxu0 0.0
      %3527 = vmatpush1.msra.mxu0 0.0
      %3528 = vmatprep.subr.mxu0 0.0
      %3529 = vmatpush1.msra.mxu0 0.0
      %3530 = vmatprep.subr.mxu0 0.0
      %3531 = vmatpush1.msra.mxu0 0.0
      %3532 = vmatprep.subr.mxu0 0.0
      %3533 = vmatpush1.msra.mxu0 0.0
      %3534 = vmatprep.subr.mxu0 0.0
      %3535 = vmatpush1.msra.mxu0 0.0
      %3536 = vmatprep.subr.mxu0 0.0
      %3537 = vmatpush1.msra.mxu0 0.0
      %3538 = vmatprep.subr.mxu0 0.0
      %3539 = vmatpush1.msra.mxu0 0.0
      %3540 = vmatprep.subr.mxu0 0.0
      %3541 = vmatpush1.msra.mxu0 0.0
      %3542 = vmatprep.subr.mxu0 0.0
      %3543 = vmatpush1.msra.mxu0 0.0
      %3544 = vmatprep.subr.mxu0 0.0
      %3545 = vmatpush1.msra.mxu0 0.0
      %3546 = vmatprep.subr.mxu0 0.0
      %3547 = vmatpush1.msra.mxu0 0.0
      %3548 = vmatprep.subr.mxu0 0.0
      %3549 = vmatpush1.msra.mxu0 0.0
      %3550 = vmatprep.mubr.f32.mxu0 0.0
      %3551 = vmatmul.mubr.f32.gmra.mrb[0].mxu0 %v1697
      %v3552 = vpop.f32.mrb[0].mxu0
      %v3553 = vadd.f32 %v3484, %v3552
      %v3554 = vpop.f32.mrb[0].mxu0
      %3555 = vmatprep.mubr.f32.mxu0 0.0
      %3556 = vmatmul.mubr.f32.gmra.mrb[0].mxu0 %v1700
      %v3557 = vpop.f32.mrb[0].mxu0
      %v3558 = vadd.f32 %v3484, %v3557
      %v3559 = vpop.f32.mrb[0].mxu0
      %3560 = vmatprep.mubr.f32.mxu0 0.0
      %3561 = vmatmul.mubr.f32.gmra.mrb[0].mxu0 %v1703
      %v3562 = vpop.f32.mrb[0].mxu0
      %v3563 = vadd.f32 %v3484, %v3562
      %v3564 = vpop.f32.mrb[0].mxu0
      %3565 = vdwg.mxu0
      %s3566 = scalar_lea.vmem %s1355, 96
      %v3567 = vld [vmem:[%s3566] sm:$0xff]
      %v3568 = vld [vmem:[%s3566 + $0x8] sm:$0xff]
      %v3569 = vld [vmem:[%s3566 + $0x10] sm:$0xff]
      %v3570 = vld [vmem:[%s3566 + $0x18] sm:$0xff]
      %s3571 = scalar_lea.vmem %s1359, 3
      %v3572 = vld [vmem:[%s3571] sm:$0x1]
      %v3574 = vlaneseq
      %v3575 = vshrl.u32 %v3574, 7
      %v3576 = vsub.s32 0, %v3575
      %v3577 = vrot.slane %v3572, %v3576
      %3579 = vmatprep.subr.mxu0 0.0
      %3580 = vmatpush1.msra.mxu0 %v3567
      %3581 = vmatprep.subr.mxu0 0.0
      %3582 = vmatpush1.msra.mxu0 %v3568
      %3583 = vmatprep.subr.mxu0 0.0
      %3584 = vmatpush1.msra.mxu0 %v3569
      %3585 = vmatprep.subr.mxu0 0.0
      %3586 = vmatpush1.msra.mxu0 %v3570
      %3587 = vmatprep.subr.mxu0 0.0
      %3588 = vmatpush1.msra.mxu0 0.0
      %3589 = vmatprep.subr.mxu0 0.0
      %3590 = vmatpush1.msra.mxu0 0.0
      %3591 = vmatprep.subr.mxu0 0.0
      %3592 = vmatpush1.msra.mxu0 0.0
      %3593 = vmatprep.subr.mxu0 0.0
      %3594 = vmatpush1.msra.mxu0 0.0
      %3595 = vmatprep.subr.mxu0 0.0
      %3596 = vmatpush1.msra.mxu0 0.0
      %3597 = vmatprep.subr.mxu0 0.0
      %3598 = vmatpush1.msra.mxu0 0.0
      %3599 = vmatprep.subr.mxu0 0.0
      %3600 = vmatpush1.msra.mxu0 0.0
      %3601 = vmatprep.subr.mxu0 0.0
      %3602 = vmatpush1.msra.mxu0 0.0
      %3603 = vmatprep.subr.mxu0 0.0
      %3604 = vmatpush1.msra.mxu0 0.0
      %3605 = vmatprep.subr.mxu0 0.0
      %3606 = vmatpush1.msra.mxu0 0.0
      %3607 = vmatprep.subr.mxu0 0.0
      %3608 = vmatpush1.msra.mxu0 0.0
      %3609 = vmatprep.subr.mxu0 0.0
      %3610 = vmatpush1.msra.mxu0 0.0
      %3611 = vmatprep.subr.mxu0 0.0
      %3612 = vmatpush1.msra.mxu0 0.0
      %3613 = vmatprep.subr.mxu0 0.0
      %3614 = vmatpush1.msra.mxu0 0.0
      %3615 = vmatprep.subr.mxu0 0.0
      %3616 = vmatpush1.msra.mxu0 0.0
      %3617 = vmatprep.subr.mxu0 0.0
      %3618 = vmatpush1.msra.mxu0 0.0
      %3619 = vmatprep.subr.mxu0 0.0
      %3620 = vmatpush1.msra.mxu0 0.0
      %3621 = vmatprep.subr.mxu0 0.0
      %3622 = vmatpush1.msra.mxu0 0.0
      %3623 = vmatprep.subr.mxu0 0.0
      %3624 = vmatpush1.msra.mxu0 0.0
      %3625 = vmatprep.subr.mxu0 0.0
      %3626 = vmatpush1.msra.mxu0 0.0
      %3627 = vmatprep.subr.mxu0 0.0
      %3628 = vmatpush1.msra.mxu0 0.0
      %3629 = vmatprep.subr.mxu0 0.0
      %3630 = vmatpush1.msra.mxu0 0.0
      %3631 = vmatprep.subr.mxu0 0.0
      %3632 = vmatpush1.msra.mxu0 0.0
      %3633 = vmatprep.subr.mxu0 0.0
      %3634 = vmatpush1.msra.mxu0 0.0
      %3635 = vmatprep.subr.mxu0 0.0
      %3636 = vmatpush1.msra.mxu0 0.0
      %3637 = vmatprep.subr.mxu0 0.0
      %3638 = vmatpush1.msra.mxu0 0.0
      %3639 = vmatprep.subr.mxu0 0.0
      %3640 = vmatpush1.msra.mxu0 0.0
      %3641 = vmatprep.subr.mxu0 0.0
      %3642 = vmatpush1.msra.mxu0 0.0
      %3643 = vmatprep.mubr.f32.mxu0 0.0
      %3644 = vmatmul.mubr.f32.gmra.mrb[0].mxu0 %v1697
      %v3645 = vpop.f32.mrb[0].mxu0
      %v3646 = vadd.f32 %v3577, %v3645
      %v3647 = vpop.f32.mrb[0].mxu0
      %3648 = vmatprep.mubr.f32.mxu0 0.0
      %3649 = vmatmul.mubr.f32.gmra.mrb[0].mxu0 %v1700
      %v3650 = vpop.f32.mrb[0].mxu0
      %v3651 = vadd.f32 %v3577, %v3650
      %v3652 = vpop.f32.mrb[0].mxu0
      %3653 = vmatprep.mubr.f32.mxu0 0.0
      %3654 = vmatmul.mubr.f32.gmra.mrb[0].mxu0 %v1703
      %v3655 = vpop.f32.mrb[0].mxu0
      %v3656 = vadd.f32 %v3577, %v3655
      %v3657 = vpop.f32.mrb[0].mxu0
      %3658 = vdwg.mxu0
      %s3659 = scalar_lea.vmem %s1364, 96
      %v3660 = vld [vmem:[%s3659] sm:$0xff]
      %v3661 = vld [vmem:[%s3659 + $0x8] sm:$0xff]
      %v3662 = vld [vmem:[%s3659 + $0x10] sm:$0xff]
      %v3663 = vld [vmem:[%s3659 + $0x18] sm:$0xff]
      %s3664 = scalar_lea.vmem %s1368, 3
      %v3665 = vld [vmem:[%s3664] sm:$0x1]
      %v3667 = vlaneseq
      %v3668 = vshrl.u32 %v3667, 7
      %v3669 = vsub.s32 0, %v3668
      %v3670 = vrot.slane %v3665, %v3669
      %3672 = vmatprep.subr.mxu0 0.0
      %3673 = vmatpush1.msra.mxu0 %v3660
      %3674 = vmatprep.subr.mxu0 0.0
      %3675 = vmatpush1.msra.mxu0 %v3661
      %3676 = vmatprep.subr.mxu0 0.0
      %3677 = vmatpush1.msra.mxu0 %v3662
      %3678 = vmatprep.subr.mxu0 0.0
      %3679 = vmatpush1.msra.mxu0 %v3663
      %3680 = vmatprep.subr.mxu0 0.0
      %3681 = vmatpush1.msra.mxu0 0.0
      %3682 = vmatprep.subr.mxu0 0.0
      %3683 = vmatpush1.msra.mxu0 0.0
      %3684 = vmatprep.subr.mxu0 0.0
      %3685 = vmatpush1.msra.mxu0 0.0
      %3686 = vmatprep.subr.mxu0 0.0
      %3687 = vmatpush1.msra.mxu0 0.0
      %3688 = vmatprep.subr.mxu0 0.0
      %3689 = vmatpush1.msra.mxu0 0.0
      %3690 = vmatprep.subr.mxu0 0.0
      %3691 = vmatpush1.msra.mxu0 0.0
      %3692 = vmatprep.subr.mxu0 0.0
      %3693 = vmatpush1.msra.mxu0 0.0
      %3694 = vmatprep.subr.mxu0 0.0
      %3695 = vmatpush1.msra.mxu0 0.0
      %3696 = vmatprep.subr.mxu0 0.0
      %3697 = vmatpush1.msra.mxu0 0.0
      %3698 = vmatprep.subr.mxu0 0.0
      %3699 = vmatpush1.msra.mxu0 0.0
      %3700 = vmatprep.subr.mxu0 0.0
      %3701 = vmatpush1.msra.mxu0 0.0
      %3702 = vmatprep.subr.mxu0 0.0
      %3703 = vmatpush1.msra.mxu0 0.0
      %3704 = vmatprep.subr.mxu0 0.0
      %3705 = vmatpush1.msra.mxu0 0.0
      %3706 = vmatprep.subr.mxu0 0.0
      %3707 = vmatpush1.msra.mxu0 0.0
      %3708 = vmatprep.subr.mxu0 0.0
      %3709 = vmatpush1.msra.mxu0 0.0
      %3710 = vmatprep.subr.mxu0 0.0
      %3711 = vmatpush1.msra.mxu0 0.0
      %3712 = vmatprep.subr.mxu0 0.0
      %3713 = vmatpush1.msra.mxu0 0.0
      %3714 = vmatprep.subr.mxu0 0.0
      %3715 = vmatpush1.msra.mxu0 0.0
      %3716 = vmatprep.subr.mxu0 0.0
      %3717 = vmatpush1.msra.mxu0 0.0
      %3718 = vmatprep.subr.mxu0 0.0
      %3719 = vmatpush1.msra.mxu0 0.0
      %3720 = vmatprep.subr.mxu0 0.0
      %3721 = vmatpush1.msra.mxu0 0.0
      %3722 = vmatprep.subr.mxu0 0.0
      %3723 = vmatpush1.msra.mxu0 0.0
      %3724 = vmatprep.subr.mxu0 0.0
      %3725 = vmatpush1.msra.mxu0 0.0
      %3726 = vmatprep.subr.mxu0 0.0
      %3727 = vmatpush1.msra.mxu0 0.0
      %3728 = vmatprep.subr.mxu0 0.0
      %3729 = vmatpush1.msra.mxu0 0.0
      %3730 = vmatprep.subr.mxu0 0.0
      %3731 = vmatpush1.msra.mxu0 0.0
      %3732 = vmatprep.subr.mxu0 0.0
      %3733 = vmatpush1.msra.mxu0 0.0
      %3734 = vmatprep.subr.mxu0 0.0
      %3735 = vmatpush1.msra.mxu0 0.0
      %3736 = vmatprep.mubr.f32.mxu0 0.0
      %3737 = vmatmul.mubr.f32.gmra.mrb[0].mxu0 %v1697
      %v3738 = vpop.f32.mrb[0].mxu0
      %v3739 = vadd.f32 %v3670, %v3738
      %v3740 = vpop.f32.mrb[0].mxu0
      %3741 = vmatprep.mubr.f32.mxu0 0.0
      %3742 = vmatmul.mubr.f32.gmra.mrb[0].mxu0 %v1700
      %v3743 = vpop.f32.mrb[0].mxu0
      %v3744 = vadd.f32 %v3670, %v3743
      %v3745 = vpop.f32.mrb[0].mxu0
      %3746 = vmatprep.mubr.f32.mxu0 0.0
      %3747 = vmatmul.mubr.f32.gmra.mrb[0].mxu0 %v1703
      %v3748 = vpop.f32.mrb[0].mxu0
      %v3749 = vadd.f32 %v3670, %v3748
      %v3750 = vpop.f32.mrb[0].mxu0
      %3751 = vdwg.mxu0
      %v3753 = vsel %vm1967, %v3553, 0
      %v3756 = vsel %vm1967, %v3558, 0
      %v3759 = vsel %vm1967, %v3563, 0
      %v3762 = vsel %vm1967, %v3646, 0
      %v3765 = vsel %vm1967, %v3651, 0
      %v3768 = vsel %vm1967, %v3656, 0
      %3770 = vmatprep.subr.mxu0 0.0
      %3771 = vmatpush1.xpose.msra.mxu0 %v3762
      %3772 = vmatprep.subr.mxu0 0.0
      %3773 = vmatpush1.xpose.msra.mxu0 %v3765
      %3774 = vmatprep.subr.mxu0 0.0
      %3775 = vmatpush1.xpose.msra.mxu0 %v3768
      %3776 = vmatprep.subr.mxu0 0.0
      %3777 = vmatpush1.xpose.msra.mxu0 0.0
      %3778 = vmatprep.subr.mxu0 0.0
      %3779 = vmatpush1.xpose.msra.mxu0 0.0
      %3780 = vmatprep.subr.mxu0 0.0
      %3781 = vmatpush1.xpose.msra.mxu0 0.0
      %3782 = vmatprep.subr.mxu0 0.0
      %3783 = vmatpush1.xpose.msra.mxu0 0.0
      %3784 = vmatprep.subr.mxu0 0.0
      %3785 = vmatpush1.xpose.msra.mxu0 0.0
      %3786 = vmatprep.subr.mxu0 0.0
      %3787 = vmatpush1.xpose.msra.mxu0 0.0
      %3788 = vmatprep.subr.mxu0 0.0
      %3789 = vmatpush1.xpose.msra.mxu0 0.0
      %3790 = vmatprep.subr.mxu0 0.0
      %3791 = vmatpush1.xpose.msra.mxu0 0.0
      %3792 = vmatprep.subr.mxu0 0.0
      %3793 = vmatpush1.xpose.msra.mxu0 0.0
      %3794 = vmatprep.subr.mxu0 0.0
      %3795 = vmatpush1.xpose.msra.mxu0 0.0
      %3796 = vmatprep.subr.mxu0 0.0
      %3797 = vmatpush1.xpose.msra.mxu0 0.0
      %3798 = vmatprep.subr.mxu0 0.0
      %3799 = vmatpush1.xpose.msra.mxu0 0.0
      %3800 = vmatprep.subr.mxu0 0.0
      %3801 = vmatpush1.xpose.msra.mxu0 0.0
      %3802 = vmatprep.subr.mxu0 0.0
      %3803 = vmatpush1.xpose.msra.mxu0 0.0
      %3804 = vmatprep.subr.mxu0 0.0
      %3805 = vmatpush1.xpose.msra.mxu0 0.0
      %3806 = vmatprep.subr.mxu0 0.0
      %3807 = vmatpush1.xpose.msra.mxu0 0.0
      %3808 = vmatprep.subr.mxu0 0.0
      %3809 = vmatpush1.xpose.msra.mxu0 0.0
      %3810 = vmatprep.subr.mxu0 0.0
      %3811 = vmatpush1.xpose.msra.mxu0 0.0
      %3812 = vmatprep.subr.mxu0 0.0
      %3813 = vmatpush1.xpose.msra.mxu0 0.0
      %3814 = vmatprep.subr.mxu0 0.0
      %3815 = vmatpush1.xpose.msra.mxu0 0.0
      %3816 = vmatprep.subr.mxu0 0.0
      %3817 = vmatpush1.xpose.msra.mxu0 0.0
      %3818 = vmatprep.subr.mxu0 0.0
      %3819 = vmatpush1.xpose.msra.mxu0 0.0
      %3820 = vmatprep.subr.mxu0 0.0
      %3821 = vmatpush1.xpose.msra.mxu0 0.0
      %3822 = vmatprep.subr.mxu0 0.0
      %3823 = vmatpush1.xpose.msra.mxu0 0.0
      %3824 = vmatprep.subr.mxu0 0.0
      %3825 = vmatpush1.xpose.msra.mxu0 0.0
      %3826 = vmatprep.subr.mxu0 0.0
      %3827 = vmatpush1.xpose.msra.mxu0 0.0
      %3828 = vmatprep.subr.mxu0 0.0
      %3829 = vmatpush1.xpose.msra.mxu0 0.0
      %3830 = vmatprep.subr.mxu0 0.0
      %3831 = vmatpush1.xpose.msra.mxu0 0.0
      %3832 = vmatprep.subr.mxu0 0.0
      %3833 = vmatpush1.xpose.msra.mxu0 0.0
      %3834 = vmatprep.mubr.f32.mxu0 0.0
      %3835 = vmatmul.mubr.f32.gmra.mrb[0].mxu0 %v3753
      %v3836 = vpop.f32.mrb[0].mxu0
      %v3837 = vadd.f32 0.0, %v3836
      %v3838 = vpop.f32.mrb[0].mxu0
      %3839 = vmatprep.mubr.f32.mxu0 0.0
      %3840 = vmatmul.mubr.f32.gmra.mrb[0].mxu0 %v3756
      %v3841 = vpop.f32.mrb[0].mxu0
      %v3842 = vadd.f32 0.0, %v3841
      %v3843 = vpop.f32.mrb[0].mxu0
      %3844 = vmatprep.mubr.f32.mxu0 0.0
      %3845 = vmatmul.mubr.f32.gmra.mrb[0].mxu0 %v3759
      %v3846 = vpop.f32.mrb[0].mxu0
      %v3847 = vadd.f32 0.0, %v3846
      %v3848 = vpop.f32.mrb[0].mxu0
      %3849 = vdwg.mxu0
      %v3850 = vsel %vm2066, %v3837, -inf
      %3851 = vmax.xlane.f32.xlu0 %v3850
      %v3852 = vpop.xlane.xlu0 %3851
      %v3853 = vsel %vm2066, %v3842, -inf
      %3854 = vmax.xlane.f32.xlu0 %v3853
      %v3855 = vpop.xlane.xlu0 %3854
      %v3856 = vsel %vm2073, %v3847, -inf
      %3857 = vmax.xlane.f32.xlu0 %v3856
      %v3858 = vpop.xlane.xlu0 %3857
      %v3859 = vsub.f32 %v3837, %v3852
      %v3860 = vsub.f32 %v3842, %v3855
      %v3861 = vsub.f32 %v3847, %v3858
      %v3862 = vmul.f32 %v3859, 1.442695
      %v3863 = vpow.pop %v3862
      %v3864 = vmul.f32 %v3860, 1.442695
      %v3865 = vpow.pop %v3864
      %v3866 = vmul.f32 %v3861, 1.442695
      %v3867 = vpow.pop %v3866
      %v3868 = vsel %vm2066, %v3863, 0.0
      %3869 = vadd.xlane.f32.xlu0 %v3868
      %v3870 = vpop.xlane.xlu0 %3869
      %v3871 = vsel %vm2066, %v3865, 0.0
      %3872 = vadd.xlane.f32.xlu0 %v3871
      %v3873 = vpop.xlane.xlu0 %3872
      %v3874 = vsel %vm2073, %v3867, 0.0
      %3875 = vadd.xlane.f32.xlu0 %v3874
      %v3876 = vpop.xlane.xlu0 %3875
      %v3877 = vrcp.pop %v3870
      %v3878 = vmul.f32 %v3863, %v3877
      %v3879 = vrcp.pop %v3873
      %v3880 = vmul.f32 %v3865, %v3879
      %v3881 = vrcp.pop %v3876
      %v3882 = vmul.f32 %v3867, %v3881
      %v3884 = vsel %vm2066, %v3878, 0
      %v3887 = vsel %vm2066, %v3880, 0
      %v3890 = vsel %vm2066, %v3882, 0
      %v3893 = vsel %vm2110, %v3749, 0
      %3895 = vmatprep.subr.mxu0 0.0
      %3896 = vmatpush1.msra.mxu0 %v3739
      %3897 = vmatprep.subr.mxu0 0.0
      %3898 = vmatpush1.msra.mxu0 %v3744
      %3899 = vmatprep.subr.mxu0 0.0
      %3900 = vmatpush1.msra.mxu0 %v3893
      %3901 = vmatprep.subr.mxu0 0.0
      %3902 = vmatpush1.msra.mxu0 0.0
      %3903 = vmatprep.subr.mxu0 0.0
      %3904 = vmatpush1.msra.mxu0 0.0
      %3905 = vmatprep.subr.mxu0 0.0
      %3906 = vmatpush1.msra.mxu0 0.0
      %3907 = vmatprep.subr.mxu0 0.0
      %3908 = vmatpush1.msra.mxu0 0.0
      %3909 = vmatprep.subr.mxu0 0.0
      %3910 = vmatpush1.msra.mxu0 0.0
      %3911 = vmatprep.subr.mxu0 0.0
      %3912 = vmatpush1.msra.mxu0 0.0
      %3913 = vmatprep.subr.mxu0 0.0
      %3914 = vmatpush1.msra.mxu0 0.0
      %3915 = vmatprep.subr.mxu0 0.0
      %3916 = vmatpush1.msra.mxu0 0.0
      %3917 = vmatprep.subr.mxu0 0.0
      %3918 = vmatpush1.msra.mxu0 0.0
      %3919 = vmatprep.subr.mxu0 0.0
      %3920 = vmatpush1.msra.mxu0 0.0
      %3921 = vmatprep.subr.mxu0 0.0
      %3922 = vmatpush1.msra.mxu0 0.0
      %3923 = vmatprep.subr.mxu0 0.0
      %3924 = vmatpush1.msra.mxu0 0.0
      %3925 = vmatprep.subr.mxu0 0.0
      %3926 = vmatpush1.msra.mxu0 0.0
      %3927 = vmatprep.subr.mxu0 0.0
      %3928 = vmatpush1.msra.mxu0 0.0
      %3929 = vmatprep.subr.mxu0 0.0
      %3930 = vmatpush1.msra.mxu0 0.0
      %3931 = vmatprep.subr.mxu0 0.0
      %3932 = vmatpush1.msra.mxu0 0.0
      %3933 = vmatprep.subr.mxu0 0.0
      %3934 = vmatpush1.msra.mxu0 0.0
      %3935 = vmatprep.subr.mxu0 0.0
      %3936 = vmatpush1.msra.mxu0 0.0
      %3937 = vmatprep.subr.mxu0 0.0
      %3938 = vmatpush1.msra.mxu0 0.0
      %3939 = vmatprep.subr.mxu0 0.0
      %3940 = vmatpush1.msra.mxu0 0.0
      %3941 = vmatprep.subr.mxu0 0.0
      %3942 = vmatpush1.msra.mxu0 0.0
      %3943 = vmatprep.subr.mxu0 0.0
      %3944 = vmatpush1.msra.mxu0 0.0
      %3945 = vmatprep.subr.mxu0 0.0
      %3946 = vmatpush1.msra.mxu0 0.0
      %3947 = vmatprep.subr.mxu0 0.0
      %3948 = vmatpush1.msra.mxu0 0.0
      %3949 = vmatprep.subr.mxu0 0.0
      %3950 = vmatpush1.msra.mxu0 0.0
      %3951 = vmatprep.subr.mxu0 0.0
      %3952 = vmatpush1.msra.mxu0 0.0
      %3953 = vmatprep.subr.mxu0 0.0
      %3954 = vmatpush1.msra.mxu0 0.0
      %3955 = vmatprep.subr.mxu0 0.0
      %3956 = vmatpush1.msra.mxu0 0.0
      %3957 = vmatprep.subr.mxu0 0.0
      %3958 = vmatpush1.msra.mxu0 0.0
      %3959 = vmatprep.mubr.f32.mxu0 0.0
      %3960 = vmatmul.mubr.f32.gmra.mrb[0].mxu0 %v3884
      %v3961 = vpop.f32.mrb[0].mxu0
      %v3962 = vadd.f32 0.0, %v3961
      %v3963 = vpop.f32.mrb[0].mxu0
      %3964 = vmatprep.mubr.f32.mxu0 0.0
      %3965 = vmatmul.mubr.f32.gmra.mrb[0].mxu0 %v3887
      %v3966 = vpop.f32.mrb[0].mxu0
      %v3967 = vadd.f32 0.0, %v3966
      %v3968 = vpop.f32.mrb[0].mxu0
      %3969 = vmatprep.mubr.f32.mxu0 0.0
      %3970 = vmatmul.mubr.f32.gmra.mrb[0].mxu0 %v3890
      %v3971 = vpop.f32.mrb[0].mxu0
      %v3972 = vadd.f32 0.0, %v3971
      %v3973 = vpop.f32.mrb[0].mxu0
      %3974 = vdwg.mxu0
      %s3975 = scalar_lea.vmem %s1373, 24
      %v3976 = vld [vmem:[%s3975] sm:$0xff]
      %v3978 = vsel %vm1967, %v3962, 0
      %v3981 = vsel %vm1967, %v3967, 0
      %v3984 = vsel %vm1967, %v3972, 0
      %3986 = vmatprep.subr.mxu0 0.0
      %3987 = vmatpush1.msra.mxu0 %v3976
      %3988 = vmatprep.subr.mxu0 0.0
      %3989 = vmatpush1.msra.mxu0 0.0
      %3990 = vmatprep.subr.mxu0 0.0
      %3991 = vmatpush1.msra.mxu0 0.0
      %3992 = vmatprep.subr.mxu0 0.0
      %3993 = vmatpush1.msra.mxu0 0.0
      %3994 = vmatprep.subr.mxu0 0.0
      %3995 = vmatpush1.msra.mxu0 0.0
      %3996 = vmatprep.subr.mxu0 0.0
      %3997 = vmatpush1.msra.mxu0 0.0
      %3998 = vmatprep.subr.mxu0 0.0
      %3999 = vmatpush1.msra.mxu0 0.0
      %4000 = vmatprep.subr.mxu0 0.0
      %4001 = vmatpush1.msra.mxu0 0.0
      %4002 = vmatprep.subr.mxu0 0.0
      %4003 = vmatpush1.msra.mxu0 0.0
      %4004 = vmatprep.subr.mxu0 0.0
      %4005 = vmatpush1.msra.mxu0 0.0
      %4006 = vmatprep.subr.mxu0 0.0
      %4007 = vmatpush1.msra.mxu0 0.0
      %4008 = vmatprep.subr.mxu0 0.0
      %4009 = vmatpush1.msra.mxu0 0.0
      %4010 = vmatprep.subr.mxu0 0.0
      %4011 = vmatpush1.msra.mxu0 0.0
      %4012 = vmatprep.subr.mxu0 0.0
      %4013 = vmatpush1.msra.mxu0 0.0
      %4014 = vmatprep.subr.mxu0 0.0
      %4015 = vmatpush1.msra.mxu0 0.0
      %4016 = vmatprep.subr.mxu0 0.0
      %4017 = vmatpush1.msra.mxu0 0.0
      %4018 = vmatprep.subr.mxu0 0.0
      %4019 = vmatpush1.msra.mxu0 0.0
      %4020 = vmatprep.subr.mxu0 0.0
      %4021 = vmatpush1.msra.mxu0 0.0
      %4022 = vmatprep.subr.mxu0 0.0
      %4023 = vmatpush1.msra.mxu0 0.0
      %4024 = vmatprep.subr.mxu0 0.0
      %4025 = vmatpush1.msra.mxu0 0.0
      %4026 = vmatprep.subr.mxu0 0.0
      %4027 = vmatpush1.msra.mxu0 0.0
      %4028 = vmatprep.subr.mxu0 0.0
      %4029 = vmatpush1.msra.mxu0 0.0
      %4030 = vmatprep.subr.mxu0 0.0
      %4031 = vmatpush1.msra.mxu0 0.0
      %4032 = vmatprep.subr.mxu0 0.0
      %4033 = vmatpush1.msra.mxu0 0.0
      %4034 = vmatprep.subr.mxu0 0.0
      %4035 = vmatpush1.msra.mxu0 0.0
      %4036 = vmatprep.subr.mxu0 0.0
      %4037 = vmatpush1.msra.mxu0 0.0
      %4038 = vmatprep.subr.mxu0 0.0
      %4039 = vmatpush1.msra.mxu0 0.0
      %4040 = vmatprep.subr.mxu0 0.0
      %4041 = vmatpush1.msra.mxu0 0.0
      %4042 = vmatprep.subr.mxu0 0.0
      %4043 = vmatpush1.msra.mxu0 0.0
      %4044 = vmatprep.subr.mxu0 0.0
      %4045 = vmatpush1.msra.mxu0 0.0
      %4046 = vmatprep.subr.mxu0 0.0
      %4047 = vmatpush1.msra.mxu0 0.0
      %4048 = vmatprep.subr.mxu0 0.0
      %4049 = vmatpush1.msra.mxu0 0.0
      %4050 = vmatprep.mubr.f32.mxu0 0.0
      %4051 = vmatmul.mubr.f32.gmra.mrb[0].mxu0 %v3978
      %v4052 = vpop.f32.mrb[0].mxu0
      %v4053 = vadd.f32 0.0, %v4052
      %v4054 = vpop.f32.mrb[0].mxu0
      %4055 = vmatprep.mubr.f32.mxu0 0.0
      %4056 = vmatmul.mubr.f32.gmra.mrb[0].mxu0 %v3981
      %v4057 = vpop.f32.mrb[0].mxu0
      %v4058 = vadd.f32 0.0, %v4057
      %v4059 = vpop.f32.mrb[0].mxu0
      %4060 = vmatprep.mubr.f32.mxu0 0.0
      %4061 = vmatmul.mubr.f32.gmra.mrb[0].mxu0 %v3984
      %v4062 = vpop.f32.mrb[0].mxu0
      %v4063 = vadd.f32 0.0, %v4062
      %v4064 = vpop.f32.mrb[0].mxu0
      %4065 = vdwg.mxu0
      %v4066 = vadd.f32 %v3470, %v4053
      %v4067 = vadd.f32 %v3471, %v4058
      %v4068 = vadd.f32 %v3472, %v4063
      %v4069 = vadd.f32 %v1603, %v4066
      %v4070 = vadd.f32 %v1604, %v4067
      %v4071 = vadd.f32 %v1605, %v4068
      %v4073 = vlaneseq
      %v4074 = vshrl.u32 %v4073, 7
      %v4075 = vsub.s32 0, %v4074
      %v4076 = vrot.slane %v1608, %v4075
      %v4078 = vadd.f32 %v4069, %v4076
      %v4079 = vadd.f32 %v4070, %v4076
      %v4080 = vadd.f32 %v4071, %v4076
      %v4081 = vsel %vm1625, %v4078, 0.0
      %4082 = vadd.xlane.f32.xlu0 %v4081
      %v4083 = vpop.xlane.xlu0 %4082
      %v4084 = vsel %vm1625, %v4079, 0.0
      %4085 = vadd.xlane.f32.xlu0 %v4084
      %v4086 = vpop.xlane.xlu0 %4085
      %v4087 = vsel %vm1632, %v4080, 0.0
      %4088 = vadd.xlane.f32.xlu0 %v4087
      %v4089 = vpop.xlane.xlu0 %4088
      %v4090 = vmul.f32 %v4083, %v1636
      %v4091 = vmul.f32 %v4086, %v1636
      %v4092 = vmul.f32 %v4089, %v1636
      %v4093 = vsub.f32 %v4078, %v4090
      %v4094 = vsub.f32 %v4079, %v4091
      %v4095 = vsub.f32 %v4080, %v4092
      %v4096 = vmul.f32 %v4093, %v4093
      %v4097 = vmul.f32 %v4094, %v4094
      %v4098 = vmul.f32 %v4095, %v4095
      %v4099 = vsel %vm1625, %v4096, 0.0
      %4100 = vadd.xlane.f32.xlu0 %v4099
      %v4101 = vpop.xlane.xlu0 %4100
      %v4102 = vsel %vm1625, %v4097, 0.0
      %4103 = vadd.xlane.f32.xlu0 %v4102
      %v4104 = vpop.xlane.xlu0 %4103
      %v4105 = vsel %vm1632, %v4098, 0.0
      %4106 = vadd.xlane.f32.xlu0 %v4105
      %v4107 = vpop.xlane.xlu0 %4106
      %v4108 = vmul.f32 %v4101, %v1636
      %v4109 = vmul.f32 %v4104, %v1636
      %v4110 = vmul.f32 %v4107, %v1636
      %v4111 = vadd.f32 %v4108, 1e-05
      %v4112 = vadd.f32 %v4109, 1e-05
      %v4113 = vadd.f32 %v4110, 1e-05
      %v4114 = vrsqrt.pop %v4111
      %v4115 = vrsqrt.pop %v4112
      %v4116 = vrsqrt.pop %v4113
      %v4117 = vmul.f32 %v4093, %v4114
      %v4118 = vmul.f32 %v4094, %v4115
      %v4119 = vmul.f32 %v4095, %v4116
      %v4121 = vlaneseq
      %v4122 = vshrl.u32 %v4121, 7
      %v4123 = vsub.s32 0, %v4122
      %v4124 = vrot.slane %v1609, %v4123
      %v4126 = vmul.f32 %v4117, %v4124
      %v4127 = vmul.f32 %v4118, %v4124
      %v4128 = vmul.f32 %v4119, %v4124
      %v4130 = vlaneseq
      %v4131 = vshrl.u32 %v4130, 7
      %v4132 = vsub.s32 0, %v4131
      %v4133 = vrot.slane %v1610, %v4132
      %v4135 = vadd.f32 %v4126, %v4133
      %v4136 = vadd.f32 %v4127, %v4133
      %v4137 = vadd.f32 %v4128, %v4133
      %v4139 = vlaneseq
      %v4140 = vshrl.u32 %v4139, 7
      %v4141 = vsub.s32 0, %v4140
      %v4142 = vrot.slane %v1615, %v4141
      %v4145 = vsel %vm1625, %v4135, 0
      %v4148 = vsel %vm1625, %v4136, 0
      %v4151 = vsel %vm1625, %v4137, 0
      %4153 = vmatprep.subr.mxu0 0.0
      %4154 = vmatpush1.msra.mxu0 %v1611
      %4155 = vmatprep.subr.mxu0 0.0
      %4156 = vmatpush1.msra.mxu0 %v1612
      %4157 = vmatprep.subr.mxu0 0.0
      %4158 = vmatpush1.msra.mxu0 %v1613
      %4159 = vmatprep.subr.mxu0 0.0
      %4160 = vmatpush1.msra.mxu0 %v1614
      %4161 = vmatprep.subr.mxu0 0.0
      %4162 = vmatpush1.msra.mxu0 0.0
      %4163 = vmatprep.subr.mxu0 0.0
      %4164 = vmatpush1.msra.mxu0 0.0
      %4165 = vmatprep.subr.mxu0 0.0
      %4166 = vmatpush1.msra.mxu0 0.0
      %4167 = vmatprep.subr.mxu0 0.0
      %4168 = vmatpush1.msra.mxu0 0.0
      %4169 = vmatprep.subr.mxu0 0.0
      %4170 = vmatpush1.msra.mxu0 0.0
      %4171 = vmatprep.subr.mxu0 0.0
      %4172 = vmatpush1.msra.mxu0 0.0
      %4173 = vmatprep.subr.mxu0 0.0
      %4174 = vmatpush1.msra.mxu0 0.0
      %4175 = vmatprep.subr.mxu0 0.0
      %4176 = vmatpush1.msra.mxu0 0.0
      %4177 = vmatprep.subr.mxu0 0.0
      %4178 = vmatpush1.msra.mxu0 0.0
      %4179 = vmatprep.subr.mxu0 0.0
      %4180 = vmatpush1.msra.mxu0 0.0
      %4181 = vmatprep.subr.mxu0 0.0
      %4182 = vmatpush1.msra.mxu0 0.0
      %4183 = vmatprep.subr.mxu0 0.0
      %4184 = vmatpush1.msra.mxu0 0.0
      %4185 = vmatprep.subr.mxu0 0.0
      %4186 = vmatpush1.msra.mxu0 0.0
      %4187 = vmatprep.subr.mxu0 0.0
      %4188 = vmatpush1.msra.mxu0 0.0
      %4189 = vmatprep.subr.mxu0 0.0
      %4190 = vmatpush1.msra.mxu0 0.0
      %4191 = vmatprep.subr.mxu0 0.0
      %4192 = vmatpush1.msra.mxu0 0.0
      %4193 = vmatprep.subr.mxu0 0.0
      %4194 = vmatpush1.msra.mxu0 0.0
      %4195 = vmatprep.subr.mxu0 0.0
      %4196 = vmatpush1.msra.mxu0 0.0
      %4197 = vmatprep.subr.mxu0 0.0
      %4198 = vmatpush1.msra.mxu0 0.0
      %4199 = vmatprep.subr.mxu0 0.0
      %4200 = vmatpush1.msra.mxu0 0.0
      %4201 = vmatprep.subr.mxu0 0.0
      %4202 = vmatpush1.msra.mxu0 0.0
      %4203 = vmatprep.subr.mxu0 0.0
      %4204 = vmatpush1.msra.mxu0 0.0
      %4205 = vmatprep.subr.mxu0 0.0
      %4206 = vmatpush1.msra.mxu0 0.0
      %4207 = vmatprep.subr.mxu0 0.0
      %4208 = vmatpush1.msra.mxu0 0.0
      %4209 = vmatprep.subr.mxu0 0.0
      %4210 = vmatpush1.msra.mxu0 0.0
      %4211 = vmatprep.subr.mxu0 0.0
      %4212 = vmatpush1.msra.mxu0 0.0
      %4213 = vmatprep.subr.mxu0 0.0
      %4214 = vmatpush1.msra.mxu0 0.0
      %4215 = vmatprep.subr.mxu0 0.0
      %4216 = vmatpush1.msra.mxu0 0.0
      %4217 = vmatprep.mubr.f32.mxu0 0.0
      %4218 = vmatmul.mubr.f32.gmra.mrb[0].mxu0 %v4145
      %v4219 = vpop.f32.mrb[0].mxu0
      %v4220 = vadd.f32 %v4142, %v4219
      %v4221 = vpop.f32.mrb[0].mxu0
      %4222 = vmatprep.mubr.f32.mxu0 0.0
      %4223 = vmatmul.mubr.f32.gmra.mrb[0].mxu0 %v4148
      %v4224 = vpop.f32.mrb[0].mxu0
      %v4225 = vadd.f32 %v4142, %v4224
      %v4226 = vpop.f32.mrb[0].mxu0
      %4227 = vmatprep.mubr.f32.mxu0 0.0
      %4228 = vmatmul.mubr.f32.gmra.mrb[0].mxu0 %v4151
      %v4229 = vpop.f32.mrb[0].mxu0
      %v4230 = vadd.f32 %v4142, %v4229
      %v4231 = vpop.f32.mrb[0].mxu0
      %4232 = vdwg.mxu0
      %v4233 = vmul.f32 %v4220, 1.702
      %v4234 = vmul.f32 %v4225, 1.702
      %v4235 = vmul.f32 %v4230, 1.702
      %v4236 = vxor.u32 %v4233, 2147483648
      %v4237 = vxor.u32 %v4234, 2147483648
      %v4238 = vxor.u32 %v4235, 2147483648
      %v4239 = vmul.f32 %v4236, 1.442695
      %v4240 = vpow.pop %v4239
      %v4241 = vmul.f32 %v4237, 1.442695
      %v4242 = vpow.pop %v4241
      %v4243 = vmul.f32 %v4238, 1.442695
      %v4244 = vpow.pop %v4243
      %v4245 = vadd.f32 %v4240, 1.0
      %v4246 = vadd.f32 %v4242, 1.0
      %v4247 = vadd.f32 %v4244, 1.0
      %v4248 = vrcp.pop %v4245
      %v4249 = vmul.f32 1.0, %v4248
      %v4250 = vrcp.pop %v4246
      %v4251 = vmul.f32 1.0, %v4250
      %v4252 = vrcp.pop %v4247
      %v4253 = vmul.f32 1.0, %v4252
      %v4254 = vmul.f32 %v4220, %v4249
      %v4255 = vmul.f32 %v4225, %v4251
      %v4256 = vmul.f32 %v4230, %v4253
      %v4258 = vlaneseq
      %v4259 = vshrl.u32 %v4258, 7
      %v4260 = vsub.s32 0, %v4259
      %v4261 = vrot.slane %v1624, %v4260
      %vm4263 = vcmask 523264
      %v4265 = vsel %vm4263, %v4254, 0
      %v4268 = vsel %vm4263, %v4255, 0
      %v4271 = vsel %vm4263, %v4256, 0
      %4273 = vmatprep.subr.mxu0 0.0
      %4274 = vmatpush1.msra.mxu0 %v1616
      %4275 = vmatprep.subr.mxu0 0.0
      %4276 = vmatpush1.msra.mxu0 %v1617
      %4277 = vmatprep.subr.mxu0 0.0
      %4278 = vmatpush1.msra.mxu0 %v1618
      %4279 = vmatprep.subr.mxu0 0.0
      %4280 = vmatpush1.msra.mxu0 %v1619
      %4281 = vmatprep.subr.mxu0 0.0
      %4282 = vmatpush1.msra.mxu0 %v1620
      %4283 = vmatprep.subr.mxu0 0.0
      %4284 = vmatpush1.msra.mxu0 %v1621
      %4285 = vmatprep.subr.mxu0 0.0
      %4286 = vmatpush1.msra.mxu0 %v1622
      %4287 = vmatprep.subr.mxu0 0.0
      %4288 = vmatpush1.msra.mxu0 %v1623
      %4289 = vmatprep.subr.mxu0 0.0
      %4290 = vmatpush1.msra.mxu0 0.0
      %4291 = vmatprep.subr.mxu0 0.0
      %4292 = vmatpush1.msra.mxu0 0.0
      %4293 = vmatprep.subr.mxu0 0.0
      %4294 = vmatpush1.msra.mxu0 0.0
      %4295 = vmatprep.subr.mxu0 0.0
      %4296 = vmatpush1.msra.mxu0 0.0
      %4297 = vmatprep.subr.mxu0 0.0
      %4298 = vmatpush1.msra.mxu0 0.0
      %4299 = vmatprep.subr.mxu0 0.0
      %4300 = vmatpush1.msra.mxu0 0.0
      %4301 = vmatprep.subr.mxu0 0.0
      %4302 = vmatpush1.msra.mxu0 0.0
      %4303 = vmatprep.subr.mxu0 0.0
      %4304 = vmatpush1.msra.mxu0 0.0
      %4305 = vmatprep.subr.mxu0 0.0
      %4306 = vmatpush1.msra.mxu0 0.0
      %4307 = vmatprep.subr.mxu0 0.0
      %4308 = vmatpush1.msra.mxu0 0.0
      %4309 = vmatprep.subr.mxu0 0.0
      %4310 = vmatpush1.msra.mxu0 0.0
      %4311 = vmatprep.subr.mxu0 0.0
      %4312 = vmatpush1.msra.mxu0 0.0
      %4313 = vmatprep.subr.mxu0 0.0
      %4314 = vmatpush1.msra.mxu0 0.0
      %4315 = vmatprep.subr.mxu0 0.0
      %4316 = vmatpush1.msra.mxu0 0.0
      %4317 = vmatprep.subr.mxu0 0.0
      %4318 = vmatpush1.msra.mxu0 0.0
      %4319 = vmatprep.subr.mxu0 0.0
      %4320 = vmatpush1.msra.mxu0 0.0
      %4321 = vmatprep.subr.mxu0 0.0
      %4322 = vmatpush1.msra.mxu0 0.0
      %4323 = vmatprep.subr.mxu0 0.0
      %4324 = vmatpush1.msra.mxu0 0.0
      %4325 = vmatprep.subr.mxu0 0.0
      %4326 = vmatpush1.msra.mxu0 0.0
      %4327 = vmatprep.subr.mxu0 0.0
      %4328 = vmatpush1.msra.mxu0 0.0
      %4329 = vmatprep.subr.mxu0 0.0
      %4330 = vmatpush1.msra.mxu0 0.0
      %4331 = vmatprep.subr.mxu0 0.0
      %4332 = vmatpush1.msra.mxu0 0.0
      %4333 = vmatprep.subr.mxu0 0.0
      %4334 = vmatpush1.msra.mxu0 0.0
      %4335 = vmatprep.subr.mxu0 0.0
      %4336 = vmatpush1.msra.mxu0 0.0
      %4337 = vmatprep.mubr.f32.mxu0 0.0
      %4338 = vmatmul.mubr.f32.gmra.mrb[0].mxu0 %v4265
      %v4339 = vpop.f32.mrb[0].mxu0
      %v4340 = vadd.f32 %v4261, %v4339
      %v4341 = vpop.f32.mrb[0].mxu0
      %4342 = vmatprep.mubr.f32.mxu0 0.0
      %4343 = vmatmul.mubr.f32.gmra.mrb[0].mxu0 %v4268
      %v4344 = vpop.f32.mrb[0].mxu0
      %v4345 = vadd.f32 %v4261, %v4344
      %v4346 = vpop.f32.mrb[0].mxu0
      %4347 = vmatprep.mubr.f32.mxu0 0.0
      %4348 = vmatmul.mubr.f32.gmra.mrb[0].mxu0 %v4271
      %v4349 = vpop.f32.mrb[0].mxu0
      %v4350 = vadd.f32 %v4261, %v4349
      %v4351 = vpop.f32.mrb[0].mxu0
      %4352 = vdwg.mxu0
      %v4353 = vadd.f32 %v4078, %v4340
      %v4354 = vadd.f32 %v4079, %v4345
      %v4355 = vadd.f32 %v4080, %v4350
      %4356 = vst.msk [vmem:[#allocation2] sm:$0xff] %vm1625, %v4353
      %4357 = vst.msk [vmem:[#allocation2 + $0x8] sm:$0xff] %vm1625, %v4354
      %4358 = vst.msk [vmem:[#allocation2 + $0x10] sm:$0x1] %vm1632, %v4355
      %p4359 = scmp.eq.s32.totalorder %s89, 1
      // Predicated region
      $region169: #{owlvit_forward.3} parent=163 // pred_check
        %p4360 = pneg %p4359
      $region170: #{owlvit_forward.3} parent=163 // pred_check_branch
        %4362 = sbr.rel (%p4360) target = $region172
      $region171: #{owlvit_forward.3} parent=163 // pred_region
        %v4363 = vld [vmem:[%s43] sm:$0x1]
        %v4364 = vld [vmem:[%s45] sm:$0x1]
        %v4365 = vsel %vm1625, %v4353, 0.0
        %4366 = vadd.xlane.f32.xlu0 %v4365
        %v4367 = vpop.xlane.xlu0 %4366
        %v4368 = vsel %vm1625, %v4354, 0.0
        %4369 = vadd.xlane.f32.xlu0 %v4368
        %v4370 = vpop.xlane.xlu0 %4369
        %v4371 = vsel %vm1632, %v4355, 0.0
        %4372 = vadd.xlane.f32.xlu0 %v4371
        %v4373 = vpop.xlane.xlu0 %4372
        %v4374 = vmul.f32 %v4367, %v1636
        %v4375 = vmul.f32 %v4370, %v1636
        %v4376 = vmul.f32 %v4373, %v1636
        %v4377 = vsub.f32 %v4353, %v4374
        %v4378 = vsub.f32 %v4354, %v4375
        %v4379 = vsub.f32 %v4355, %v4376
        %v4380 = vmul.f32 %v4377, %v4377
        %v4381 = vmul.f32 %v4378, %v4378
        %v4382 = vmul.f32 %v4379, %v4379
        %v4383 = vsel %vm1625, %v4380, 0.0
        %4384 = vadd.xlane.f32.xlu0 %v4383
        %v4385 = vpop.xlane.xlu0 %4384
        %v4386 = vsel %vm1625, %v4381, 0.0
        %4387 = vadd.xlane.f32.xlu0 %v4386
        %v4388 = vpop.xlane.xlu0 %4387
        %v4389 = vsel %vm1632, %v4382, 0.0
        %4390 = vadd.xlane.f32.xlu0 %v4389
        %v4391 = vpop.xlane.xlu0 %4390
        %v4392 = vmul.f32 %v4385, %v1636
        %v4393 = vmul.f32 %v4388, %v1636
        %v4394 = vmul.f32 %v4391, %v1636
        %v4395 = vadd.f32 %v4392, 1e-05
        %v4396 = vadd.f32 %v4393, 1e-05
        %v4397 = vadd.f32 %v4394, 1e-05
        %v4398 = vrsqrt.pop %v4395
        %v4399 = vrsqrt.pop %v4396
        %v4400 = vrsqrt.pop %v4397
        %v4401 = vmul.f32 %v4377, %v4398
        %v4402 = vmul.f32 %v4378, %v4399
        %v4403 = vmul.f32 %v4379, %v4400
        %v4405 = vlaneseq
        %v4406 = vshrl.u32 %v4405, 7
        %v4407 = vsub.s32 0, %v4406
        %v4408 = vrot.slane %v4363, %v4407
        %v4410 = vmul.f32 %v4401, %v4408
        %v4411 = vmul.f32 %v4402, %v4408
        %v4412 = vmul.f32 %v4403, %v4408
        %v4414 = vlaneseq
        %v4415 = vshrl.u32 %v4414, 7
        %v4416 = vsub.s32 0, %v4415
        %v4417 = vrot.slane %v4364, %v4416
        %v4419 = vadd.f32 %v4410, %v4417
        %v4420 = vadd.f32 %v4411, %v4417
        %v4421 = vadd.f32 %v4412, %v4417
        %v4422 = vlaneseq
        %v4423 = vshrl.u32 %v4422, 7
        %v4424 = vsub.s32 0, %v4423
        %v4425 = vrot.slane %v4419, %v4424
        %v4426 = vmul.f32 %v4419, %v4425
        %v4427 = vmul.f32 %v4420, %v4425
        %v4428 = vmul.f32 %v4421, %v4425
        %v4429 = vld [vmem:[%s47] sm:$0x1]
        %v4430 = vld [vmem:[%s49] sm:$0x1]
        %vm4431 = vcmask 261121
        %v4432 = vsel %vm4431, %v4426, 0.0
        %4433 = vadd.xlane.f32.xlu0 %v4432
        %v4434 = vpop.xlane.xlu0 %4433
        %v4435 = vsel %vm1625, %v4427, 0.0
        %4436 = vadd.xlane.f32.xlu0 %v4435
        %v4437 = vpop.xlane.xlu0 %4436
        %v4438 = vsel %vm1632, %v4428, 0.0
        %4439 = vadd.xlane.f32.xlu0 %v4438
        %v4440 = vpop.xlane.xlu0 %4439
        %v4441 = vmul.f32 %v4434, %v1636
        %v4442 = vmul.f32 %v4437, %v1636
        %v4443 = vmul.f32 %v4440, %v1636
        %v4444 = vsub.f32 %v4426, %v4441
        %v4445 = vsub.f32 %v4427, %v4442
        %v4446 = vsub.f32 %v4428, %v4443
        %v4447 = vmul.f32 %v4444, %v4444
        %v4448 = vmul.f32 %v4445, %v4445
        %v4449 = vmul.f32 %v4446, %v4446
        %v4450 = vsel %vm4431, %v4447, 0.0
        %4451 = vadd.xlane.f32.xlu0 %v4450
        %v4452 = vpop.xlane.xlu0 %4451
        %v4453 = vsel %vm1625, %v4448, 0.0
        %4454 = vadd.xlane.f32.xlu0 %v4453
        %v4455 = vpop.xlane.xlu0 %4454
        %v4456 = vsel %vm1632, %v4449, 0.0
        %4457 = vadd.xlane.f32.xlu0 %v4456
        %v4458 = vpop.xlane.xlu0 %4457
        %v4459 = vmul.f32 %v4452, %v1636
        %v4460 = vmul.f32 %v4455, %v1636
        %v4461 = vmul.f32 %v4458, %v1636
        %v4462 = vadd.f32 %v4459, 1e-05
        %v4463 = vadd.f32 %v4460, 1e-05
        %v4464 = vadd.f32 %v4461, 1e-05
        %v4465 = vrsqrt.pop %v4462
        %v4466 = vrsqrt.pop %v4463
        %v4467 = vrsqrt.pop %v4464
        %v4468 = vmul.f32 %v4444, %v4465
        %v4469 = vmul.f32 %v4445, %v4466
        %v4470 = vmul.f32 %v4446, %v4467
        %v4472 = vlaneseq
        %v4473 = vshrl.u32 %v4472, 7
        %v4474 = vsub.s32 0, %v4473
        %v4475 = vrot.slane %v4429, %v4474
        %v4477 = vmul.f32 %v4468, %v4475
        %v4478 = vmul.f32 %v4469, %v4475
        %v4479 = vmul.f32 %v4470, %v4475
        %v4481 = vlaneseq
        %v4482 = vshrl.u32 %v4481, 7
        %v4483 = vsub.s32 0, %v4482
        %v4484 = vrot.slane %v4430, %v4483
        %v4486 = vadd.f32 %v4477, %v4484
        %v4487 = vadd.f32 %v4478, %v4484
        %v4488 = vadd.f32 %v4479, %v4484
        %v4489 = vld [vmem:[%s51] sm:$0xff]
        %v4490 = vld [vmem:[%s51 + $0x8] sm:$0xff]
        %v4491 = vld [vmem:[%s51 + $0x10] sm:$0xff]
        %v4492 = vld [vmem:[%s51 + $0x18] sm:$0xff]
        %v4493 = vld [vmem:[%s53] sm:$0x1]
        %v4495 = vlaneseq
        %v4496 = vshrl.u32 %v4495, 7
        %v4497 = vsub.s32 0, %v4496
        %v4498 = vrot.slane %v4493, %v4497
        %vm4503 = vcmask 1046528
        %v4504 = vrot.slane %v4486, 1
        %v4505 = vrot.slane %v4487, 1
        %v4506 = vsel %vm4503, %v4504, %v4505
        %v4507 = vrot.slane %v4488, 1
        %v4508 = vsel %vm4503, %v4505, %v4507
        %v4509 = vsel %vm1625, %v4506, 0
        %v4511 = vsel %vm1625, %v4508, 0
        %4513 = vmatprep.subr.mxu0 0.0
        %4514 = vmatpush1.msra.mxu0 %v4489
        %4515 = vmatprep.subr.mxu0 0.0
        %4516 = vmatpush1.msra.mxu0 %v4490
        %4517 = vmatprep.subr.mxu0 0.0
        %4518 = vmatpush1.msra.mxu0 %v4491
        %4519 = vmatprep.subr.mxu0 0.0
        %4520 = vmatpush1.msra.mxu0 %v4492
        %4521 = vmatprep.subr.mxu0 0.0
        %4522 = vmatpush1.msra.mxu0 0.0
        %4523 = vmatprep.subr.mxu0 0.0
        %4524 = vmatpush1.msra.mxu0 0.0
        %4525 = vmatprep.subr.mxu0 0.0
        %4526 = vmatpush1.msra.mxu0 0.0
        %4527 = vmatprep.subr.mxu0 0.0
        %4528 = vmatpush1.msra.mxu0 0.0
        %4529 = vmatprep.subr.mxu0 0.0
        %4530 = vmatpush1.msra.mxu0 0.0
        %4531 = vmatprep.subr.mxu0 0.0
        %4532 = vmatpush1.msra.mxu0 0.0
        %4533 = vmatprep.subr.mxu0 0.0
        %4534 = vmatpush1.msra.mxu0 0.0
        %4535 = vmatprep.subr.mxu0 0.0
        %4536 = vmatpush1.msra.mxu0 0.0
        %4537 = vmatprep.subr.mxu0 0.0
        %4538 = vmatpush1.msra.mxu0 0.0
        %4539 = vmatprep.subr.mxu0 0.0
        %4540 = vmatpush1.msra.mxu0 0.0
        %4541 = vmatprep.subr.mxu0 0.0
        %4542 = vmatpush1.msra.mxu0 0.0
        %4543 = vmatprep.subr.mxu0 0.0
        %4544 = vmatpush1.msra.mxu0 0.0
        %4545 = vmatprep.subr.mxu0 0.0
        %4546 = vmatpush1.msra.mxu0 0.0
        %4547 = vmatprep.subr.mxu0 0.0
        %4548 = vmatpush1.msra.mxu0 0.0
        %4549 = vmatprep.subr.mxu0 0.0
        %4550 = vmatpush1.msra.mxu0 0.0
        %4551 = vmatprep.subr.mxu0 0.0
        %4552 = vmatpush1.msra.mxu0 0.0
        %4553 = vmatprep.subr.mxu0 0.0
        %4554 = vmatpush1.msra.mxu0 0.0
        %4555 = vmatprep.subr.mxu0 0.0
        %4556 = vmatpush1.msra.mxu0 0.0
        %4557 = vmatprep.subr.mxu0 0.0
        %4558 = vmatpush1.msra.mxu0 0.0
        %4559 = vmatprep.subr.mxu0 0.0
        %4560 = vmatpush1.msra.mxu0 0.0
        %4561 = vmatprep.subr.mxu0 0.0
        %4562 = vmatpush1.msra.mxu0 0.0
        %4563 = vmatprep.subr.mxu0 0.0
        %4564 = vmatpush1.msra.mxu0 0.0
        %4565 = vmatprep.subr.mxu0 0.0
        %4566 = vmatpush1.msra.mxu0 0.0
        %4567 = vmatprep.subr.mxu0 0.0
        %4568 = vmatpush1.msra.mxu0 0.0
        %4569 = vmatprep.subr.mxu0 0.0
        %4570 = vmatpush1.msra.mxu0 0.0
        %4571 = vmatprep.subr.mxu0 0.0
        %4572 = vmatpush1.msra.mxu0 0.0
        %4573 = vmatprep.subr.mxu0 0.0
        %4574 = vmatpush1.msra.mxu0 0.0
        %4575 = vmatprep.subr.mxu0 0.0
        %4576 = vmatpush1.msra.mxu0 0.0
        %4577 = vmatprep.mubr.f32.mxu0 0.0
        %4578 = vmatmul.mubr.f32.gmra.mrb[0].mxu0 %v4509
        %v4579 = vpop.f32.mrb[0].mxu0
        %v4580 = vadd.f32 %v4498, %v4579
        %v4581 = vpop.f32.mrb[0].mxu0
        %4582 = vmatprep.mubr.f32.mxu0 0.0
        %4583 = vmatmul.mubr.f32.gmra.mrb[0].mxu0 %v4511
        %v4584 = vpop.f32.mrb[0].mxu0
        %v4585 = vadd.f32 %v4498, %v4584
        %v4586 = vpop.f32.mrb[0].mxu0
        %4587 = vdwg.mxu0
        %v4588 = vmul.f32 %v4580, %v4580
        %v4589 = vmul.f32 %v4585, %v4585
        %vm4590 = vcmask 130048
        %v4591 = vsel %vm4590, %v4588, 0.0
        %4592 = vadd.xlane.f32.xlu0 %v4591
        %v4593 = vpop.xlane.xlu0 %4592
        %v4594 = vsel %vm4590, %v4589, 0.0
        %4595 = vadd.xlane.f32.xlu0 %v4594
        %v4596 = vpop.xlane.xlu0 %4595
        %v4597 = vadd.f32 %v4593, 1e-06
        %v4598 = vadd.f32 %v4596, 1e-06
        %v4599 = vrsqrt.pop %v4597
        %v4600 = vrsqrt.pop %v4598
        %v4601 = vmul.f32 %v4580, %v4599
        %v4602 = vmul.f32 %v4585, %v4600
        %v4603 = vld [vmem:[%s1402] sm:$0x3]
        %v4604 = vmul.f32 %v4603, %v4603
        %vm4605 = vcmask 123904
        %v4606 = vsel %vm4605, %v4604, 0.0
        %4607 = vadd.xlane.f32.xlu0 %v4606
        %v4608 = vpop.xlane.xlu0 %4607
        %v4609 = vadd.f32 %v4608, 1e-06
        %v4610 = vrsqrt.pop %v4609
        %v4611 = vmul.f32 %v4603, %v4610
        %vm4612 = vcmp.gt.f32.partialorder %v4580, 0.0
        %vm4613 = vcmp.gt.f32.partialorder %v4585, 0.0
        %v4614 = vmin.f32 %v4580, 0.0
        %v4615 = vmin.f32 %v4585, 0.0
        %v4616 = vmul.f32 %v4614, 1.442695
        %v4617 = vpow.pop %v4616
        %v4618 = vmul.f32 %v4615, 1.442695
        %v4619 = vpow.pop %v4618
        %v4620 = vsub.f32 %v4617, 1.0
        %v4621 = vsub.f32 %v4619, 1.0
        %v4622 = vsel %vm4612, %v4580, %v4620
        %v4623 = vsel %vm4613, %v4585, %v4621
        %v4624 = vadd.f32 %v4622, 1.0
        %v4625 = vadd.f32 %v4623, 1.0
        %4627 = vset.pattern.permute.xlu0 16
        %4628 = vperm.xlu0 %4627, %v4580
        %v4629 = vpop.permute.xlu0 %4628
        %4632 = vset.pattern.permute.xlu0 16
        %4633 = vperm.xlu0 %4632, %v4585
        %v4634 = vpop.permute.xlu0 %4633
        %v4637 = vsel %vm4590, %v4601, 0
        %v4640 = vsel %vm4590, %v4602, 0
        %v4643 = vsel %vm4590, %v4611, 0
        %4645 = vmatprep.subr.mxu0 0.0
        %4646 = vmatpush1.xpose.msra.mxu0 %v4643
        %4647 = vmatprep.subr.mxu0 0.0
        %4648 = vmatpush1.xpose.msra.mxu0 0.0
        %4649 = vmatprep.subr.mxu0 0.0
        %4650 = vmatpush1.xpose.msra.mxu0 0.0
        %4651 = vmatprep.subr.mxu0 0.0
        %4652 = vmatpush1.xpose.msra.mxu0 0.0
        %4653 = vmatprep.subr.mxu0 0.0
        %4654 = vmatpush1.xpose.msra.mxu0 0.0
        %4655 = vmatprep.subr.mxu0 0.0
        %4656 = vmatpush1.xpose.msra.mxu0 0.0
        %4657 = vmatprep.subr.mxu0 0.0
        %4658 = vmatpush1.xpose.msra.mxu0 0.0
        %4659 = vmatprep.subr.mxu0 0.0
        %4660 = vmatpush1.xpose.msra.mxu0 0.0
        %4661 = vmatprep.subr.mxu0 0.0
        %4662 = vmatpush1.xpose.msra.mxu0 0.0
        %4663 = vmatprep.subr.mxu0 0.0
        %4664 = vmatpush1.xpose.msra.mxu0 0.0
        %4665 = vmatprep.subr.mxu0 0.0
        %4666 = vmatpush1.xpose.msra.mxu0 0.0
        %4667 = vmatprep.subr.mxu0 0.0
        %4668 = vmatpush1.xpose.msra.mxu0 0.0
        %4669 = vmatprep.subr.mxu0 0.0
        %4670 = vmatpush1.xpose.msra.mxu0 0.0
        %4671 = vmatprep.subr.mxu0 0.0
        %4672 = vmatpush1.xpose.msra.mxu0 0.0
        %4673 = vmatprep.subr.mxu0 0.0
        %4674 = vmatpush1.xpose.msra.mxu0 0.0
        %4675 = vmatprep.subr.mxu0 0.0
        %4676 = vmatpush1.xpose.msra.mxu0 0.0
        %4677 = vmatprep.subr.mxu0 0.0
        %4678 = vmatpush1.xpose.msra.mxu0 0.0
        %4679 = vmatprep.subr.mxu0 0.0
        %4680 = vmatpush1.xpose.msra.mxu0 0.0
        %4681 = vmatprep.subr.mxu0 0.0
        %4682 = vmatpush1.xpose.msra.mxu0 0.0
        %4683 = vmatprep.subr.mxu0 0.0
        %4684 = vmatpush1.xpose.msra.mxu0 0.0
        %4685 = vmatprep.subr.mxu0 0.0
        %4686 = vmatpush1.xpose.msra.mxu0 0.0
        %4687 = vmatprep.subr.mxu0 0.0
        %4688 = vmatpush1.xpose.msra.mxu0 0.0
        %4689 = vmatprep.subr.mxu0 0.0
        %4690 = vmatpush1.xpose.msra.mxu0 0.0
        %4691 = vmatprep.subr.mxu0 0.0
        %4692 = vmatpush1.xpose.msra.mxu0 0.0
        %4693 = vmatprep.subr.mxu0 0.0
        %4694 = vmatpush1.xpose.msra.mxu0 0.0
        %4695 = vmatprep.subr.mxu0 0.0
        %4696 = vmatpush1.xpose.msra.mxu0 0.0
        %4697 = vmatprep.subr.mxu0 0.0
        %4698 = vmatpush1.xpose.msra.mxu0 0.0
        %4699 = vmatprep.subr.mxu0 0.0
        %4700 = vmatpush1.xpose.msra.mxu0 0.0
        %4701 = vmatprep.subr.mxu0 0.0
        %4702 = vmatpush1.xpose.msra.mxu0 0.0
        %4703 = vmatprep.subr.mxu0 0.0
        %4704 = vmatpush1.xpose.msra.mxu0 0.0
        %4705 = vmatprep.subr.mxu0 0.0
        %4706 = vmatpush1.xpose.msra.mxu0 0.0
        %4707 = vmatprep.subr.mxu0 0.0
        %4708 = vmatpush1.xpose.msra.mxu0 0.0
        %4709 = vmatprep.mubr.f32.mxu0 0.0
        %4710 = vmatmul.mubr.f32.gmra.mrb[0].mxu0 %v4637
        %v4711 = vpop.f32.mrb[0].mxu0
        %v4712 = vadd.f32 %v4629, %v4711
        %v4713 = vpop.f32.mrb[0].mxu0
        %4714 = vmatprep.mubr.f32.mxu0 0.0
        %4715 = vmatmul.mubr.f32.gmra.mrb[0].mxu0 %v4640
        %v4716 = vpop.f32.mrb[0].mxu0
        %v4717 = vadd.f32 %v4634, %v4716
        %v4718 = vpop.f32.mrb[0].mxu0
        %4719 = vdwg.mxu0
        %4721 = vset.pattern.permute.xlu0 17
        %4722 = vperm.xlu0 %4721, %v4624
        %v4723 = vpop.permute.xlu0 %4722
        %4726 = vset.pattern.permute.xlu0 17
        %4727 = vperm.xlu0 %4726, %v4625
        %v4728 = vpop.permute.xlu0 %4727
        %v4730 = vmul.f32 %v4712, %v4723
        %v4731 = vmul.f32 %v4717, %v4728
        %v4732 = vld [vmem:[%s1405] sm:$0x1]
        %vm4733 = vcmp.gt.f32.partialorder %v4732, 0.0
        %v4734 = vsel %vm4733, 1, 0
        %v4735 = vlaneseq
        %v4736 = vshrl.u32 %v4735, 7
        %v4737 = vsub.s32 0, %v4736
        %v4738 = vrot.slane %v4734, %v4737
        %vm4739 = vcmp.eq.s32.totalorder %v4738, 1
        %v4740 = vsel %vm4739, %v4730, -3.4028235e+38
        %v4741 = vsel %vm4739, %v4731, -3.4028235e+38
        %v4742 = vld [vmem:[%s55] sm:$0xff]
        %v4743 = vld [vmem:[%s55 + $0x8] sm:$0xff]
        %v4744 = vld [vmem:[%s55 + $0x10] sm:$0xff]
        %v4745 = vld [vmem:[%s55 + $0x18] sm:$0xff]
        %v4746 = vld [vmem:[%s57] sm:$0x1]
        %v4748 = vlaneseq
        %v4749 = vshrl.u32 %v4748, 7
        %v4750 = vsub.s32 0, %v4749
        %v4751 = vrot.slane %v4746, %v4750
        %4753 = vmatprep.subr.mxu0 0.0
        %4754 = vmatpush1.msra.mxu0 %v4742
        %4755 = vmatprep.subr.mxu0 0.0
        %4756 = vmatpush1.msra.mxu0 %v4743
        %4757 = vmatprep.subr.mxu0 0.0
        %4758 = vmatpush1.msra.mxu0 %v4744
        %4759 = vmatprep.subr.mxu0 0.0
        %4760 = vmatpush1.msra.mxu0 %v4745
        %4761 = vmatprep.subr.mxu0 0.0
        %4762 = vmatpush1.msra.mxu0 0.0
        %4763 = vmatprep.subr.mxu0 0.0
        %4764 = vmatpush1.msra.mxu0 0.0
        %4765 = vmatprep.subr.mxu0 0.0
        %4766 = vmatpush1.msra.mxu0 0.0
        %4767 = vmatprep.subr.mxu0 0.0
        %4768 = vmatpush1.msra.mxu0 0.0
        %4769 = vmatprep.subr.mxu0 0.0
        %4770 = vmatpush1.msra.mxu0 0.0
        %4771 = vmatprep.subr.mxu0 0.0
        %4772 = vmatpush1.msra.mxu0 0.0
        %4773 = vmatprep.subr.mxu0 0.0
        %4774 = vmatpush1.msra.mxu0 0.0
        %4775 = vmatprep.subr.mxu0 0.0
        %4776 = vmatpush1.msra.mxu0 0.0
        %4777 = vmatprep.subr.mxu0 0.0
        %4778 = vmatpush1.msra.mxu0 0.0
        %4779 = vmatprep.subr.mxu0 0.0
        %4780 = vmatpush1.msra.mxu0 0.0
        %4781 = vmatprep.subr.mxu0 0.0
        %4782 = vmatpush1.msra.mxu0 0.0
        %4783 = vmatprep.subr.mxu0 0.0
        %4784 = vmatpush1.msra.mxu0 0.0
        %4785 = vmatprep.subr.mxu0 0.0
        %4786 = vmatpush1.msra.mxu0 0.0
        %4787 = vmatprep.subr.mxu0 0.0
        %4788 = vmatpush1.msra.mxu0 0.0
        %4789 = vmatprep.subr.mxu0 0.0
        %4790 = vmatpush1.msra.mxu0 0.0
        %4791 = vmatprep.subr.mxu0 0.0
        %4792 = vmatpush1.msra.mxu0 0.0
        %4793 = vmatprep.subr.mxu0 0.0
        %4794 = vmatpush1.msra.mxu0 0.0
        %4795 = vmatprep.subr.mxu0 0.0
        %4796 = vmatpush1.msra.mxu0 0.0
        %4797 = vmatprep.subr.mxu0 0.0
        %4798 = vmatpush1.msra.mxu0 0.0
        %4799 = vmatprep.subr.mxu0 0.0
        %4800 = vmatpush1.msra.mxu0 0.0
        %4801 = vmatprep.subr.mxu0 0.0
        %4802 = vmatpush1.msra.mxu0 0.0
        %4803 = vmatprep.subr.mxu0 0.0
        %4804 = vmatpush1.msra.mxu0 0.0
        %4805 = vmatprep.subr.mxu0 0.0
        %4806 = vmatpush1.msra.mxu0 0.0
        %4807 = vmatprep.subr.mxu0 0.0
        %4808 = vmatpush1.msra.mxu0 0.0
        %4809 = vmatprep.subr.mxu0 0.0
        %4810 = vmatpush1.msra.mxu0 0.0
        %4811 = vmatprep.subr.mxu0 0.0
        %4812 = vmatpush1.msra.mxu0 0.0
        %4813 = vmatprep.subr.mxu0 0.0
        %4814 = vmatpush1.msra.mxu0 0.0
        %4815 = vmatprep.subr.mxu0 0.0
        %4816 = vmatpush1.msra.mxu0 0.0
        %4817 = vmatprep.mubr.f32.mxu0 0.0
        %4818 = vmatmul.mubr.f32.gmra.mrb[0].mxu0 %v4509
        %v4819 = vpop.f32.mrb[0].mxu0
        %v4820 = vadd.f32 %v4751, %v4819
        %v4821 = vpop.f32.mrb[0].mxu0
        %4822 = vmatprep.mubr.f32.mxu0 0.0
        %4823 = vmatmul.mubr.f32.gmra.mrb[0].mxu0 %v4511
        %v4824 = vpop.f32.mrb[0].mxu0
        %v4825 = vadd.f32 %v4751, %v4824
        %v4826 = vpop.f32.mrb[0].mxu0
        %4827 = vdwg.mxu0
        %v4828 = vmul.f32 %v4820, 0.5
        %v4829 = vmul.f32 %v4825, 0.5
        %v4830 = vmul.f32 %v4820, 0.70710677
        %v4831 = vmul.f32 %v4825, 0.70710677
        %v4832 = vand.u32 2147483647, %v4830
        %v4833 = vand.u32 2147483647, %v4831
        %v4834 = vmul.f32 %v4832, 0.3275911
        %v4835 = vmul.f32 %v4833, 0.3275911
        %v4836 = vadd.f32 %v4834, 1.0
        %v4837 = vadd.f32 %v4835, 1.0
        %v4838 = vrcp.pop %v4836
        %v4839 = vmul.f32 1.0, %v4838
        %v4840 = vrcp.pop %v4837
        %v4841 = vmul.f32 1.0, %v4840
        %v4842 = vmul.f32 %v4839, 1.0614054
        %v4843 = vmul.f32 %v4841, 1.0614054
        %v4844 = vadd.f32 %v4842, -1.4531521
        %v4845 = vadd.f32 %v4843, -1.4531521
        %v4846 = vmul.f32 %v4844, %v4839
        %v4847 = vmul.f32 %v4845, %v4841
        %v4848 = vadd.f32 %v4846, 1.4214138
        %v4849 = vadd.f32 %v4847, 1.4214138
        %v4850 = vmul.f32 %v4848, %v4839
        %v4851 = vmul.f32 %v4849, %v4841
        %v4852 = vadd.f32 %v4850, -0.28449672
        %v4853 = vadd.f32 %v4851, -0.28449672
        %v4854 = vmul.f32 %v4852, %v4839
        %v4855 = vmul.f32 %v4853, %v4841
        %v4856 = vadd.f32 %v4854, 0.2548296
        %v4857 = vadd.f32 %v4855, 0.2548296
        %v4858 = vmul.f32 %v4856, %v4839
        %v4859 = vmul.f32 %v4857, %v4841
        %v4860 = vsub.f32 0.0, %v4832
        %v4861 = vsub.f32 0.0, %v4833
        %v4862 = vmul.f32 %v4860, %v4832
        %v4863 = vmul.f32 %v4861, %v4833
        %v4864 = vmul.f32 %v4862, 1.442695
        %v4865 = vpow.pop %v4864
        %v4866 = vmul.f32 %v4863, 1.442695
        %v4867 = vpow.pop %v4866
        %v4868 = vmul.f32 %v4858, %v4865
        %v4869 = vmul.f32 %v4859, %v4867
        %v4870 = vsub.f32 1.0, %v4868
        %v4871 = vsub.f32 1.0, %v4869
        %vm4872 = vcmp.ge.f32.partialorder %v4830, 0.0
        %vm4873 = vcmp.ge.f32.partialorder %v4831, 0.0
        %v4874 = vsub.f32 0.0, %v4870
        %v4875 = vsub.f32 0.0, %v4871
        %v4876 = vsel %vm4872, %v4870, %v4874
        %v4877 = vsel %vm4873, %v4871, %v4875
        %v4878 = vadd.f32 %v4876, 1.0
        %v4879 = vadd.f32 %v4877, 1.0
        %v4880 = vmul.f32 %v4828, %v4878
        %v4881 = vmul.f32 %v4829, %v4879
        %v4882 = vld [vmem:[%s59] sm:$0xff]
        %v4883 = vld [vmem:[%s59 + $0x8] sm:$0xff]
        %v4884 = vld [vmem:[%s59 + $0x10] sm:$0xff]
        %v4885 = vld [vmem:[%s59 + $0x18] sm:$0xff]
        %v4886 = vld [vmem:[%s61] sm:$0x1]
        %v4888 = vlaneseq
        %v4889 = vshrl.u32 %v4888, 7
        %v4890 = vsub.s32 0, %v4889
        %v4891 = vrot.slane %v4886, %v4890
        %v4894 = vsel %vm1625, %v4880, 0
        %v4897 = vsel %vm1625, %v4881, 0
        %4899 = vmatprep.subr.mxu0 0.0
        %4900 = vmatpush1.msra.mxu0 %v4882
        %4901 = vmatprep.subr.mxu0 0.0
        %4902 = vmatpush1.msra.mxu0 %v4883
        %4903 = vmatprep.subr.mxu0 0.0
        %4904 = vmatpush1.msra.mxu0 %v4884
        %4905 = vmatprep.subr.mxu0 0.0
        %4906 = vmatpush1.msra.mxu0 %v4885
        %4907 = vmatprep.subr.mxu0 0.0
        %4908 = vmatpush1.msra.mxu0 0.0
        %4909 = vmatprep.subr.mxu0 0.0
        %4910 = vmatpush1.msra.mxu0 0.0
        %4911 = vmatprep.subr.mxu0 0.0
        %4912 = vmatpush1.msra.mxu0 0.0
        %4913 = vmatprep.subr.mxu0 0.0
        %4914 = vmatpush1.msra.mxu0 0.0
        %4915 = vmatprep.subr.mxu0 0.0
        %4916 = vmatpush1.msra.mxu0 0.0
        %4917 = vmatprep.subr.mxu0 0.0
        %4918 = vmatpush1.msra.mxu0 0.0
        %4919 = vmatprep.subr.mxu0 0.0
        %4920 = vmatpush1.msra.mxu0 0.0
        %4921 = vmatprep.subr.mxu0 0.0
        %4922 = vmatpush1.msra.mxu0 0.0
        %4923 = vmatprep.subr.mxu0 0.0
        %4924 = vmatpush1.msra.mxu0 0.0
        %4925 = vmatprep.subr.mxu0 0.0
        %4926 = vmatpush1.msra.mxu0 0.0
        %4927 = vmatprep.subr.mxu0 0.0
        %4928 = vmatpush1.msra.mxu0 0.0
        %4929 = vmatprep.subr.mxu0 0.0
        %4930 = vmatpush1.msra.mxu0 0.0
        %4931 = vmatprep.subr.mxu0 0.0
        %4932 = vmatpush1.msra.mxu0 0.0
        %4933 = vmatprep.subr.mxu0 0.0
        %4934 = vmatpush1.msra.mxu0 0.0
        %4935 = vmatprep.subr.mxu0 0.0
        %4936 = vmatpush1.msra.mxu0 0.0
        %4937 = vmatprep.subr.mxu0 0.0
        %4938 = vmatpush1.msra.mxu0 0.0
        %4939 = vmatprep.subr.mxu0 0.0
        %4940 = vmatpush1.msra.mxu0 0.0
        %4941 = vmatprep.subr.mxu0 0.0
        %4942 = vmatpush1.msra.mxu0 0.0
        %4943 = vmatprep.subr.mxu0 0.0
        %4944 = vmatpush1.msra.mxu0 0.0
        %4945 = vmatprep.subr.mxu0 0.0
        %4946 = vmatpush1.msra.mxu0 0.0
        %4947 = vmatprep.subr.mxu0 0.0
        %4948 = vmatpush1.msra.mxu0 0.0
        %4949 = vmatprep.subr.mxu0 0.0
        %4950 = vmatpush1.msra.mxu0 0.0
        %4951 = vmatprep.subr.mxu0 0.0
        %4952 = vmatpush1.msra.mxu0 0.0
        %4953 = vmatprep.subr.mxu0 0.0
        %4954 = vmatpush1.msra.mxu0 0.0
        %4955 = vmatprep.subr.mxu0 0.0
        %4956 = vmatpush1.msra.mxu0 0.0
        %4957 = vmatprep.subr.mxu0 0.0
        %4958 = vmatpush1.msra.mxu0 0.0
        %4959 = vmatprep.subr.mxu0 0.0
        %4960 = vmatpush1.msra.mxu0 0.0
        %4961 = vmatprep.subr.mxu0 0.0
        %4962 = vmatpush1.msra.mxu0 0.0
        %4963 = vmatprep.mubr.f32.mxu0 0.0
        %4964 = vmatmul.mubr.f32.gmra.mrb[0].mxu0 %v4894
        %v4965 = vpop.f32.mrb[0].mxu0
        %v4966 = vadd.f32 %v4891, %v4965
        %v4967 = vpop.f32.mrb[0].mxu0
        %4968 = vmatprep.mubr.f32.mxu0 0.0
        %4969 = vmatmul.mubr.f32.gmra.mrb[0].mxu0 %v4897
        %v4970 = vpop.f32.mrb[0].mxu0
        %v4971 = vadd.f32 %v4891, %v4970
        %v4972 = vpop.f32.mrb[0].mxu0
        %4973 = vdwg.mxu0
        %v4974 = vmul.f32 %v4966, 0.5
        %v4975 = vmul.f32 %v4971, 0.5
        %v4976 = vmul.f32 %v4966, 0.70710677
        %v4977 = vmul.f32 %v4971, 0.70710677
        %v4978 = vand.u32 2147483647, %v4976
        %v4979 = vand.u32 2147483647, %v4977
        %v4980 = vmul.f32 %v4978, 0.3275911
        %v4981 = vmul.f32 %v4979, 0.3275911
        %v4982 = vadd.f32 %v4980, 1.0
        %v4983 = vadd.f32 %v4981, 1.0
        %v4984 = vrcp.pop %v4982
        %v4985 = vmul.f32 1.0, %v4984
        %v4986 = vrcp.pop %v4983
        %v4987 = vmul.f32 1.0, %v4986
        %v4988 = vmul.f32 %v4985, 1.0614054
        %v4989 = vmul.f32 %v4987, 1.0614054
        %v4990 = vadd.f32 %v4988, -1.4531521
        %v4991 = vadd.f32 %v4989, -1.4531521
        %v4992 = vmul.f32 %v4990, %v4985
        %v4993 = vmul.f32 %v4991, %v4987
        %v4994 = vadd.f32 %v4992, 1.4214138
        %v4995 = vadd.f32 %v4993, 1.4214138
        %v4996 = vmul.f32 %v4994, %v4985
        %v4997 = vmul.f32 %v4995, %v4987
        %v4998 = vadd.f32 %v4996, -0.28449672
        %v4999 = vadd.f32 %v4997, -0.28449672
        %v5000 = vmul.f32 %v4998, %v4985
        %v5001 = vmul.f32 %v4999, %v4987
        %v5002 = vadd.f32 %v5000, 0.2548296
        %v5003 = vadd.f32 %v5001, 0.2548296
        %v5004 = vmul.f32 %v5002, %v4985
        %v5005 = vmul.f32 %v5003, %v4987
        %v5006 = vsub.f32 0.0, %v4978
        %v5007 = vsub.f32 0.0, %v4979
        %v5008 = vmul.f32 %v5006, %v4978
        %v5009 = vmul.f32 %v5007, %v4979
        %v5010 = vmul.f32 %v5008, 1.442695
        %v5011 = vpow.pop %v5010
        %v5012 = vmul.f32 %v5009, 1.442695
        %v5013 = vpow.pop %v5012
        %v5014 = vmul.f32 %v5004, %v5011
        %v5015 = vmul.f32 %v5005, %v5013
        %v5016 = vsub.f32 1.0, %v5014
        %v5017 = vsub.f32 1.0, %v5015
        %vm5018 = vcmp.ge.f32.partialorder %v4976, 0.0
        %vm5019 = vcmp.ge.f32.partialorder %v4977, 0.0
        %v5020 = vsub.f32 0.0, %v5016
        %v5021 = vsub.f32 0.0, %v5017
        %v5022 = vsel %vm5018, %v5016, %v5020
        %v5023 = vsel %vm5019, %v5017, %v5021
        %v5024 = vadd.f32 %v5022, 1.0
        %v5025 = vadd.f32 %v5023, 1.0
        %v5026 = vmul.f32 %v4974, %v5024
        %v5027 = vmul.f32 %v4975, %v5025
        %v5028 = vld [vmem:[%s63] sm:$0xff]
        %v5029 = vld [vmem:[%s63 + $0x8] sm:$0xff]
        %v5030 = vld [vmem:[%s63 + $0x10] sm:$0xff]
        %v5031 = vld [vmem:[%s63 + $0x18] sm:$0xff]
        %v5032 = vld [vmem:[%s65] sm:$0x1]
        %v5034 = vlaneseq
        %v5035 = vshrl.u32 %v5034, 7
        %v5036 = vsub.s32 0, %v5035
        %v5037 = vrot.slane %v5032, %v5036
        %v5040 = vsel %vm1625, %v5026, 0
        %v5043 = vsel %vm1625, %v5027, 0
        %5045 = vmatprep.subr.mxu0 0.0
        %5046 = vmatpush1.msra.mxu0 %v5028
        %5047 = vmatprep.subr.mxu0 0.0
        %5048 = vmatpush1.msra.mxu0 %v5029
        %5049 = vmatprep.subr.mxu0 0.0
        %5050 = vmatpush1.msra.mxu0 %v5030
        %5051 = vmatprep.subr.mxu0 0.0
        %5052 = vmatpush1.msra.mxu0 %v5031
        %5053 = vmatprep.subr.mxu0 0.0
        %5054 = vmatpush1.msra.mxu0 0.0
        %5055 = vmatprep.subr.mxu0 0.0
        %5056 = vmatpush1.msra.mxu0 0.0
        %5057 = vmatprep.subr.mxu0 0.0
        %5058 = vmatpush1.msra.mxu0 0.0
        %5059 = vmatprep.subr.mxu0 0.0
        %5060 = vmatpush1.msra.mxu0 0.0
        %5061 = vmatprep.subr.mxu0 0.0
        %5062 = vmatpush1.msra.mxu0 0.0
        %5063 = vmatprep.subr.mxu0 0.0
        %5064 = vmatpush1.msra.mxu0 0.0
        %5065 = vmatprep.subr.mxu0 0.0
        %5066 = vmatpush1.msra.mxu0 0.0
        %5067 = vmatprep.subr.mxu0 0.0
        %5068 = vmatpush1.msra.mxu0 0.0
        %5069 = vmatprep.subr.mxu0 0.0
        %5070 = vmatpush1.msra.mxu0 0.0
        %5071 = vmatprep.subr.mxu0 0.0
        %5072 = vmatpush1.msra.mxu0 0.0
        %5073 = vmatprep.subr.mxu0 0.0
        %5074 = vmatpush1.msra.mxu0 0.0
        %5075 = vmatprep.subr.mxu0 0.0
        %5076 = vmatpush1.msra.mxu0 0.0
        %5077 = vmatprep.subr.mxu0 0.0
        %5078 = vmatpush1.msra.mxu0 0.0
        %5079 = vmatprep.subr.mxu0 0.0
        %5080 = vmatpush1.msra.mxu0 0.0
        %5081 = vmatprep.subr.mxu0 0.0
        %5082 = vmatpush1.msra.mxu0 0.0
        %5083 = vmatprep.subr.mxu0 0.0
        %5084 = vmatpush1.msra.mxu0 0.0
        %5085 = vmatprep.subr.mxu0 0.0
        %5086 = vmatpush1.msra.mxu0 0.0
        %5087 = vmatprep.subr.mxu0 0.0
        %5088 = vmatpush1.msra.mxu0 0.0
        %5089 = vmatprep.subr.mxu0 0.0
        %5090 = vmatpush1.msra.mxu0 0.0
        %5091 = vmatprep.subr.mxu0 0.0
        %5092 = vmatpush1.msra.mxu0 0.0
        %5093 = vmatprep.subr.mxu0 0.0
        %5094 = vmatpush1.msra.mxu0 0.0
        %5095 = vmatprep.subr.mxu0 0.0
        %5096 = vmatpush1.msra.mxu0 0.0
        %5097 = vmatprep.subr.mxu0 0.0
        %5098 = vmatpush1.msra.mxu0 0.0
        %5099 = vmatprep.subr.mxu0 0.0
        %5100 = vmatpush1.msra.mxu0 0.0
        %5101 = vmatprep.subr.mxu0 0.0
        %5102 = vmatpush1.msra.mxu0 0.0
        %5103 = vmatprep.subr.mxu0 0.0
        %5104 = vmatpush1.msra.mxu0 0.0
        %5105 = vmatprep.subr.mxu0 0.0
        %5106 = vmatpush1.msra.mxu0 0.0
        %5107 = vmatprep.subr.mxu0 0.0
        %5108 = vmatpush1.msra.mxu0 0.0
        %5109 = vmatprep.mubr.f32.mxu0 0.0
        %5110 = vmatmul.mubr.f32.gmra.mrb[0].mxu0 %v5040
        %v5111 = vpop.f32.mrb[0].mxu0
        %v5112 = vadd.f32 %v5037, %v5111
        %v5113 = vpop.f32.mrb[0].mxu0
        %5114 = vmatprep.mubr.f32.mxu0 0.0
        %5115 = vmatmul.mubr.f32.gmra.mrb[0].mxu0 %v5043
        %v5116 = vpop.f32.mrb[0].mxu0
        %v5117 = vadd.f32 %v5037, %v5116
        %v5118 = vpop.f32.mrb[0].mxu0
        %5119 = vdwg.mxu0
        %v5120 = vld [vmem:[%s67] sm:$0xff]
        %v5121 = vld [vmem:[%s67 + $0x8] sm:$0xff]
        %v5122 = vadd.f32 %v5112, %v5120
        %v5123 = vadd.f32 %v5117, %v5121
        %v5124 = vxor.u32 %v5122, 2147483648
        %v5125 = vxor.u32 %v5123, 2147483648
        %v5126 = vmul.f32 %v5124, 1.442695
        %v5127 = vpow.pop %v5126
        %v5128 = vmul.f32 %v5125, 1.442695
        %v5129 = vpow.pop %v5128
        %v5130 = vadd.f32 %v5127, 1.0
        %v5131 = vadd.f32 %v5129, 1.0
        %v5132 = vrcp.pop %v5130
        %v5133 = vmul.f32 1.0, %v5132
        %v5134 = vrcp.pop %v5131
        %v5135 = vmul.f32 1.0, %v5134
        %5136 = vst [vmem:[%s1410] sm:$0xff] 0.0
        %5137 = vst [vmem:[%s1410 + $0x8] sm:$0xff] 0.0
        %5140 = vrot.lane.b32.xlu0 %v5133, 2
        %v5141 = vpop.permute.xlu0 %5140
        %5142 = vrot.lane.b32.xlu0 %v5135, 2
        %v5143 = vpop.permute.xlu0 %5142
        %vm5146 = vcmask 15360
        %v5147 = vsel %vm5146, %v4740, %v5141
        %v5148 = vsel %vm5146, %v4741, %v5143
        %vm5149 = vcmask 48128
        %5150 = vst.msk [vmem:[%s1410] sm:$0xff] %vm5149, %v5147
        %5151 = vst.msk [vmem:[%s1410 + $0x8] sm:$0xff] %vm5149, %v5148
      $region172: #{owlvit_forward.3} parent=163 // pred_fallthru
        _
      %p5152 = scmp.lt.s32.totalorder %s88, 1
      %s5153 = scalar_select %p5152, %s88, 1
      %s5154 = smul.addr %s5153, 2
      %s5155 = smul.addr %s5154, 8
      %s5156 = scalar_lea.vmem %s73, %s5155
      // Predicated region
      $region173: #{owlvit_forward.3} parent=163 // pred_check
        %p5157 = pneg %p965
      $region174: #{owlvit_forward.3} parent=163 // pred_check_branch
        %5159 = sbr.rel (%p5157) target = $region176
      $region175: #{owlvit_forward.3} parent=163 // pred_region
        _
      $region176: #{owlvit_forward.3} parent=163 // pred_fallthru
        _
    $region164: #{owlvit_forward.3} parent=5 // pred_fallthru
      _
    %p5160 = scmp.le.s32.totalorder 2, %s79
    // Predicated region
    $region177: #{owlvit_forward.3} parent=5 // pred_check
      %p5161 = pneg %p5160
    $region178: #{owlvit_forward.3} parent=5 // pred_check_branch
      %5163 = sbr.rel (%p5161) target = $region180
    $region179: #{owlvit_forward.3} parent=5 // pred_region
      %s5164 = ssub.s32 %s79, 2
      // Predicated region
      $region181: #{owlvit_forward.3} parent=179 // pred_check
        %p5165 = pneg %p971
      $region182: #{owlvit_forward.3} parent=179 // pred_check_branch
        %5167 = sbr.rel (%p5165) target = $region184
      $region183: #{owlvit_forward.3} parent=179 // pred_region
        %p5168 = scmp.lt.s32.totalorder %s90, 1
        %s5169 = scalar_select %p5168, %s90, 1
        %s5170 = smul.addr %s5169, 2
        %s5171 = smul.addr %s5170, 8
        %s5172 = scalar_lea.vmem %s73, %s5171
      $region184: #{owlvit_forward.3} parent=179 // pred_fallthru
        _
    $region180: #{owlvit_forward.3} parent=5 // pred_fallthru
      _
  $region6: #{owlvit_forward.3} parent=0 // loop_footer
    %s83 = sadd.s32 1, %s79
  $region7: #{owlvit_forward.3} parent=0 // loop_footer_branch
    %78 = sbr.rel target = $region3
  $region8: #{owlvit_forward.3} parent=0 // loop_exit
    _

</llo_original>
